<compile_context>
chip_gen: v7x
topology: tpu7x:2x2x1
jax: 0.10.0
libtpu: 0.0.40
codegen_flags: <defaults>
</compile_context>

<pallas_src>
import jax
import jax.numpy as jnp
from jax.experimental import pallas as pl
from jax.experimental.pallas import tpu as pltpu


# =============================================================================
# Parameter packing (PyTorch per-direction weights -> lane-aligned fused blocks)
# =============================================================================
def _gate_pad(H):
    # Width of one gate block (>= 2H, multiple of 128).  Within a block:
    # lanes [0, H) = forward direction, [H, 2H) = backward direction, rest zero pad.
    return max(128, ((2 * H + 127) // 128) * 128)


def _pack_bias(fwd, bwd, H, P):
    (_, _, b_ih_f, b_hh_f) = fwd
    (_, _, b_ih_b, b_hh_b) = bwd
    b = jnp.zeros((4 * P,), jnp.float32)
    for g in range(4):
        c0 = g * P
        b = b.at[c0:c0 + H].set(b_ih_f[g * H:(g + 1) * H] + b_hh_f[g * H:(g + 1) * H])
        b = b.at[c0 + H:c0 + 2 * H].set(
            b_ih_b[g * H:(g + 1) * H] + b_hh_b[g * H:(g + 1) * H])
    return b.reshape(1, 4 * P)


def _pack_whh(fwd, bwd, H, P):
    (_, w_hh_f, _, _) = fwd
    (_, w_hh_b, _, _) = bwd
    wh = jnp.zeros((P, 4 * P), jnp.float32)
    for g in range(4):
        c0 = g * P
        wh = wh.at[:H, c0:c0 + H].set(w_hh_f[g * H:(g + 1) * H, :].T)
        wh = wh.at[H:2 * H, c0 + H:c0 + 2 * H].set(w_hh_b[g * H:(g + 1) * H, :].T)
    return wh


def _pack_layer0(fwd, bwd, H, P, D):
    """Layer 0: the hoisted input GEMM reads the raw x sequence (K = D)."""
    w_ih_f, w_ih_b = fwd[0], bwd[0]
    wxf = jnp.zeros((D, 4 * P), jnp.float32)   # -> forward-gate lane blocks
    wxb = jnp.zeros((D, 4 * P), jnp.float32)   # -> backward-gate lane blocks
    for g in range(4):
        c0 = g * P
        wxf = wxf.at[:, c0:c0 + H].set(w_ih_f[g * H:(g + 1) * H, :].T)
        wxb = wxb.at[:, c0 + H:c0 + 2 * H].set(w_ih_b[g * H:(g + 1) * H, :].T)
    return (wxf, wxb, _pack_whh(fwd, bwd, H, P), _pack_bias(fwd, bwd, H, P))


def _pack_deep_layer(fwd, bwd, H, P):
    """Layers l > 0: the hoisted input GEMM reads the previous layer's two full-width
    step buffers (fwd step order / bwd step order).  Zero row blocks pick the valid
    lanes of each source, so the kernel never slices lanes."""
    w_ih_f, w_ih_b = fwd[0], bwd[0]   # (4H, 2H): cols [0,H)=prev fwd out, [H,2H)=prev bwd out
    zeros = lambda: jnp.zeros((P, 4 * P), jnp.float32)
    wxf_f, wxf_b, wxb_f, wxb_b = zeros(), zeros(), zeros(), zeros()
    for g in range(4):
        c0 = g * P
        gf = w_ih_f[g * H:(g + 1) * H, :]
        gb = w_ih_b[g * H:(g + 1) * H, :]
        wxf_f = wxf_f.at[:H, c0:c0 + H].set(gf[:, :H].T)            # prev-fwd -> fwd gates
        wxf_b = wxf_b.at[H:2 * H, c0:c0 + H].set(gf[:, H:].T)       # prev-bwd -> fwd gates
        wxb_f = wxb_f.at[:H, c0 + H:c0 + 2 * H].set(gb[:, :H].T)    # prev-fwd -> bwd gates
        wxb_b = wxb_b.at[H:2 * H, c0 + H:c0 + 2 * H].set(gb[:, H:].T)  # prev-bwd -> bwd gates
    return (wxf_f, wxf_b, wxb_f, wxb_b, _pack_whh(fwd, bwd, H, P),
            _pack_bias(fwd, bwd, H, P))


def _pack_fc(fc_w, fc_b, H, P):
    """fc_w: (2H, C).  Split by source half and zero-row pad so the FC head reads the
    lane-padded last-layer states directly (no lane slicing)."""
    C = fc_w.shape[1]
    fc_from_f = jnp.zeros((P, C), jnp.float32).at[:H, :].set(fc_w[:H, :])
    fc_from_b = jnp.zeros((P, C), jnp.float32).at[H:2 * H, :].set(fc_w[H:2 * H, :])
    return fc_from_f, fc_from_b, fc_b.reshape(1, C)


# =============================================================================
# Fused kernel: all layers, both directions, all timesteps, plus the FC head.
# =============================================================================
def _make_kernel(num_layers, T, B, BP, C, P):
    G = 4 * P
    f32 = jnp.float32

    def kernel(*refs):
        k = 0
        x_ref = refs[k]; k += 1                       # (T*BP, D)
        layer0 = refs[k:k + 4]; k += 4                # wxf, wxb, wh, bias
        deep = []
        for _ in range(num_layers - 1):
            deep.append(refs[k:k + 6]); k += 6        # wxf_f, wxf_b, wxb_f, wxb_b, wh, bias
        fcf_ref, fcb_ref, fcbias_ref = refs[k:k + 3]; k += 3
        out_ref = refs[k]; k += 1
        gxf, gxb, obf, obb = refs[k:k + 4]            # VMEM scratch

        def mm(a, b_ref):
            return jnp.dot(a, b_ref[...], preferred_element_type=f32)

        def run_layer(wh_ref, is_last):
            # T is a small static constant -> full unroll (static slab offsets, max
            # scheduler visibility).  Switch to lax.fori_loop if T grows beyond ~32.
            h = jnp.zeros((BP, P), f32)   # lanes [0,H)=fwd state, [H,2H)=bwd state, rest 0
            c = jnp.zeros((BP, P), f32)
            h_s0 = h_sT = None
            for s in range(T):
                r = T - 1 - s
                # Precomputed input contribution (off the serial h/c dependency chain).
                gx = gxf[pl.ds(s * BP, BP), :] + gxb[pl.ds(r * BP, BP), :]
                gates = gx + mm(h, wh_ref)                        # (BP, 4P)
                i_g = jax.nn.sigmoid(gates[:, 0 * P:1 * P])
                f_g = jax.nn.sigmoid(gates[:, 1 * P:2 * P])
                g_g = jnp.tanh(gates[:, 2 * P:3 * P])
                o_g = jax.nn.sigmoid(gates[:, 3 * P:4 * P])
                c = f_g * c + i_g * g_g
                h = o_g * jnp.tanh(c)
                if is_last:
                    if s == 0:
                        h_s0 = h          # holds h_bwd(T-1) in lanes [H, 2H)
                    if s == T - 1:
                        h_sT = h          # holds h_fwd(T-1) in lanes [0, H)
                else:
                    # Full-width, tile-aligned stores; next layer untangles the two
                    # time orders through its zero-row weight blocks.
                    obf[pl.ds(s * BP, BP), :] = h   # fwd output of original time s
                    obb[pl.ds(r * BP, BP), :] = h   # bwd output of original time r
            return h_s0, h_sT

        # ----- layer 0: hoisted input GEMM (M = T*BP) -----
        wxf0, wxb0, wh0, b0 = layer0
        x2d = x_ref[...]
        gxf[...] = mm(x2d, wxf0) + b0[...]    # combined bias folded into the fwd-indexed buffer
        gxb[...] = mm(x2d, wxb0)
        h_s0, h_sT = run_layer(wh0, num_layers == 1)

        # ----- layers 1 .. L-1 -----
        for li in range(1, num_layers):
            wxf_f, wxf_b, wxb_f, wxb_b, whl, bl = deep[li - 1]
            src_f = obf[...]                  # (T*BP, P), fwd step order
            src_b = obb[...]                  # (T*BP, P), original time order (bwd lanes valid)
            gxf[...] = mm(src_f, wxf_f) + mm(src_b, wxf_b) + bl[...]
            gxb[...] = mm(src_f, wxb_f) + mm(src_b, wxb_b)
            h_s0, h_sT = run_layer(whl, li == num_layers - 1)

        # ----- FC head on out[:, -1, :] = [h_fwd(T-1) || h_bwd(T-1)] -----
        logits = mm(h_sT, fcf_ref) + mm(h_s0, fcb_ref) + fcbias_ref[...]   # (BP, C)
        out_ref[...] = logits[:B, :].astype(out_ref.dtype)

    return kernel


def lstm_model_forward(params, x):
    """x: (B, T, input_size), batch_first — same semantics as the PyTorch module."""
    B, T, D = x.shape
    P = params["layer0"][3].shape[1] // 4      # gate block width (>= 2H, lane aligned)
    C = params["fc_bias"].shape[1]
    num_layers = 1 + len(params["deep"])
    BP = ((B + 7) // 8) * 8                    # sublane-padded batch (full (8,128) tiles)

    # Time-major, batch padded to full sublane tiles, flattened for the hoisted GEMMs.
    x_tm = jnp.transpose(x, (1, 0, 2)).astype(jnp.float32)                 # (T, B, D)
    x2d = jnp.zeros((T, BP, D), jnp.float32).at[:, :B, :].set(x_tm)
    x2d = x2d.reshape(T * BP, D)

    args = [x2d, *params["layer0"]]
    for lw in params["deep"]:
        args.extend(lw)
    args.extend([params["fc_from_f"], params["fc_from_b"], params["fc_bias"]])

    kernel = _make_kernel(num_layers, T, B, BP, C, P)
    return pl.pallas_call(
        kernel,
        out_shape=jax.ShapeDtypeStruct((B, C), jnp.float32),
        scratch_shapes=[
            pltpu.VMEM((T * BP, 4 * P), jnp.float32),  # gxf: input->gates, indexed by fwd time
            pltpu.VMEM((T * BP, 4 * P), jnp.float32),  # gxb: input->gates, indexed by orig time
            pltpu.VMEM((T * BP, P), jnp.float32),      # per-step outputs, fwd step order
            pltpu.VMEM((T * BP, P), jnp.float32),      # per-step outputs, bwd step order
        ],
    )(*args)


# =============================================================================
# Init (PyTorch-style U(-1/sqrt(H), 1/sqrt(H))) + pure-JAX reference
# =============================================================================
def init_params(key, input_size, hidden_size, num_layers, num_classes):
    H = hidden_size
    P = _gate_pad(H)
    bound = 1.0 / (H ** 0.5)

    def uni(k, shape, b):
        return jax.random.uniform(k, shape, jnp.float32, -b, b)

    raw_layers = []
    layer0 = None
    deep = []
    for l in range(num_layers):
        d_in = input_size if l == 0 else 2 * H
        dirs = []
        for _ in range(2):  # fwd, bwd
            key, k1, k2, k3, k4 = jax.random.split(key, 5)
            dirs.append((uni(k1, (4 * H, d_in), bound),
                         uni(k2, (4 * H, H), bound),
                         uni(k3, (4 * H,), bound),
                         uni(k4, (4 * H,), bound)))
        raw_layers.append(tuple(dirs))
        if l == 0:
            layer0 = _pack_layer0(dirs[0], dirs[1], H, P, input_size)
        else:
            deep.append(_pack_deep_layer(dirs[0], dirs[1], H, P))

    fc_in = 2 * H
    fb = 1.0 / (fc_in ** 0.5)
    key, kw, kb = jax.random.split(key, 3)
    fc_w = uni(kw, (fc_in, num_classes), fb)
    fc_b = uni(kb, (num_classes,), fb)
    fc_from_f, fc_from_b, fc_bias = _pack_fc(fc_w, fc_b, H, P)

    params = {"layer0": layer0, "deep": deep,
              "fc_from_f": fc_from_f, "fc_from_b": fc_from_b, "fc_bias": fc_bias}
    raw = {"layers": raw_layers, "fc_w": fc_w, "fc_b": fc_b}
    return params, raw


def _reference_forward(raw, x, H):
    """Plain JAX bidirectional LSTM matching torch.nn.LSTM semantics."""
    B, T, _ = x.shape
    h_seq = x
    for fwd, bwd in raw["layers"]:
        outs = []
        for (w_ih, w_hh, b_ih, b_hh), rev in ((fwd, False), (bwd, True)):
            h = jnp.zeros((B, H), jnp.float32)
            c = jnp.zeros((B, H), jnp.float32)
            ys = [None] * T
            order = range(T - 1, -1, -1) if rev else range(T)
            for t in order:
                g = h_seq[:, t, :] @ w_ih.T + h @ w_hh.T + b_ih + b_hh
                i = jax.nn.sigmoid(g[:, 0:H])
                f = jax.nn.sigmoid(g[:, H:2 * H])
                gg = jnp.tanh(g[:, 2 * H:3 * H])
                o = jax.nn.sigmoid(g[:, 3 * H:4 * H])
                c = f * c + i * gg
                h = o * jnp.tanh(c)
                ys[t] = h
            outs.append(jnp.stack(ys, axis=1))
        h_seq = jnp.concatenate(outs, axis=-1)
    return h_seq[:, -1, :] @ raw["fc_w"] + raw["fc_b"]


if __name__ == "__main__":
    input_size = 16
    hidden_size = 32
    num_layers = 2
    seq_len = 8
    num_classes = 10
    batch = 2

    key = jax.random.PRNGKey(0)
    pkey, xkey = jax.random.split(key)
    params, raw = init_params(pkey, input_size, hidden_size, num_layers, num_classes)
    x = jax.random.normal(xkey, (batch, seq_len, input_size), dtype=jnp.float32)

    fwd = jax.jit(lstm_model_forward)
    out = fwd(params, x)
    jax.block_until_ready(out)

    assert out.shape == (batch, num_classes)
    assert out.dtype == jnp.float32

    ref = _reference_forward(raw, x, hidden_size)
    assert jnp.allclose(out, ref, atol=1e-3, rtol=1e-3), "mismatch vs reference"

    print("KERNEL_OK")
</pallas_src>

<mosaic_0001>
module attributes {stable_mosaic.version = 11 : i64} {
  func.func @kernel(%arg0: memref<64x16xf32, #tpu.memory_space<vmem>>, %arg1: memref<16x512xf32, #tpu.memory_space<vmem>>, %arg2: memref<16x512xf32, #tpu.memory_space<vmem>>, %arg3: memref<128x512xf32, #tpu.memory_space<vmem>>, %arg4: memref<1x512xf32, #tpu.memory_space<vmem>>, %arg5: memref<128x512xf32, #tpu.memory_space<vmem>>, %arg6: memref<128x512xf32, #tpu.memory_space<vmem>>, %arg7: memref<128x512xf32, #tpu.memory_space<vmem>>, %arg8: memref<128x512xf32, #tpu.memory_space<vmem>>, %arg9: memref<128x512xf32, #tpu.memory_space<vmem>>, %arg10: memref<1x512xf32, #tpu.memory_space<vmem>>, %arg11: memref<128x10xf32, #tpu.memory_space<vmem>>, %arg12: memref<128x10xf32, #tpu.memory_space<vmem>>, %arg13: memref<1x10xf32, #tpu.memory_space<vmem>>, %arg14: memref<2x10xf32, #tpu.memory_space<vmem>>, %arg15: memref<64x512xf32, #tpu.memory_space<vmem>>, %arg16: memref<64x512xf32, #tpu.memory_space<vmem>>, %arg17: memref<64x128xf32, #tpu.memory_space<vmem>>, %arg18: memref<64x128xf32, #tpu.memory_space<vmem>>) attributes {dimension_semantics = [], scalar_prefetch = 0 : i64, scratch_operands = 4 : i64, tpu.core_type = #tpu.core_type<tc>} {
    %c0 = arith.constant 0 : index
    %c0_0 = arith.constant 0 : index
    %0 = vector.load %arg0[%c0, %c0_0] : memref<64x16xf32, #tpu.memory_space<vmem>>, vector<64x16xf32>
    %c0_1 = arith.constant 0 : index
    %c0_2 = arith.constant 0 : index
    %1 = vector.load %arg1[%c0_1, %c0_2] : memref<16x512xf32, #tpu.memory_space<vmem>>, vector<16x512xf32>
    %cst = arith.constant dense<0.000000e+00> : vector<64x512xf32>
    %2 = tpu.matmul %0, %1, %cst {dimension_numbers = #tpu.dot_dimension_numbers<[1], [0], [0], [1], [0, 0, 1, 1], [], []>} : vector<64x16xf32>, vector<16x512xf32>, vector<64x512xf32> -> vector<64x512xf32>
    %c0_3 = arith.constant 0 : index
    %c0_4 = arith.constant 0 : index
    %3 = vector.load %arg4[%c0_3, %c0_4] : memref<1x512xf32, #tpu.memory_space<vmem>>, vector<1x512xf32>
    %4 = vector.broadcast %3 : vector<1x512xf32> to vector<64x512xf32>
    %5 = arith.addf %2, %4 : vector<64x512xf32>
    %c0_5 = arith.constant 0 : index
    %c0_6 = arith.constant 0 : index
    %6 = vector.load %arg15[%c0_5, %c0_6] : memref<64x512xf32, #tpu.memory_space<vmem>>, vector<64x512xf32>
    tpu.vector_store %arg15[%c0_5, %c0_6], %5 {strides = array<i32>} : memref<64x512xf32, #tpu.memory_space<vmem>>, vector<64x512xf32>,
    %c0_7 = arith.constant 0 : index
    %c0_8 = arith.constant 0 : index
    %7 = vector.load %arg2[%c0_7, %c0_8] : memref<16x512xf32, #tpu.memory_space<vmem>>, vector<16x512xf32>
    %cst_9 = arith.constant dense<0.000000e+00> : vector<64x512xf32>
    %8 = tpu.matmul %0, %7, %cst_9 {dimension_numbers = #tpu.dot_dimension_numbers<[1], [0], [0], [1], [0, 0, 1, 1], [], []>} : vector<64x16xf32>, vector<16x512xf32>, vector<64x512xf32> -> vector<64x512xf32>
    %c0_10 = arith.constant 0 : index
    %c0_11 = arith.constant 0 : index
    %9 = vector.load %arg16[%c0_10, %c0_11] : memref<64x512xf32, #tpu.memory_space<vmem>>, vector<64x512xf32>
    tpu.vector_store %arg16[%c0_10, %c0_11], %8 {strides = array<i32>} : memref<64x512xf32, #tpu.memory_space<vmem>>, vector<64x512xf32>,
    %cst_12 = arith.constant 0.000000e+00 : f32
    %10 = vector.broadcast %cst_12 : f32 to vector<8x128xf32>
    %cst_13 = arith.constant 0.000000e+00 : f32
    %11 = vector.broadcast %cst_13 : f32 to vector<8x128xf32>
    %c0_14 = arith.constant 0 : index
    %c0_15 = arith.constant 0 : index
    %12 = vector.load %arg15[%c0_14, %c0_15] : memref<64x512xf32, #tpu.memory_space<vmem>>, vector<8x512xf32>
    %c56 = arith.constant 56 : index
    %c0_16 = arith.constant 0 : index
    %13 = vector.load %arg16[%c56, %c0_16] : memref<64x512xf32, #tpu.memory_space<vmem>>, vector<8x512xf32>
    %14 = arith.addf %12, %13 : vector<8x512xf32>
    %c0_17 = arith.constant 0 : index
    %c0_18 = arith.constant 0 : index
    %15 = vector.load %arg3[%c0_17, %c0_18] : memref<128x512xf32, #tpu.memory_space<vmem>>, vector<128x512xf32>
    %cst_19 = arith.constant dense<0.000000e+00> : vector<8x512xf32>
    %16 = tpu.matmul %10, %15, %cst_19 {dimension_numbers = #tpu.dot_dimension_numbers<[1], [0], [0], [1], [0, 0, 1, 1], [], []>} : vector<8x128xf32>, vector<128x512xf32>, vector<8x512xf32> -> vector<8x512xf32>
    %17 = arith.addf %14, %16 : vector<8x512xf32>
    %18 = vector.extract_strided_slice %17 {offsets = [0, 0], sizes = [8, 128], strides = [1, 1]} : vector<8x512xf32> to vector<8x128xf32>
    %19 = arith.negf %18 : vector<8x128xf32>
    %20 = math.exp %19 : vector<8x128xf32>
    %cst_20 = arith.constant 1.000000e+00 : f32
    %21 = vector.broadcast %cst_20 : f32 to vector<8x128xf32>
    %22 = arith.addf %21, %20 : vector<8x128xf32>
    %23 = arith.divf %21, %22 : vector<8x128xf32>
    %24 = vector.extract_strided_slice %17 {offsets = [0, 128], sizes = [8, 128], strides = [1, 1]} : vector<8x512xf32> to vector<8x128xf32>
    %25 = arith.negf %24 : vector<8x128xf32>
    %26 = math.exp %25 : vector<8x128xf32>
    %cst_21 = arith.constant 1.000000e+00 : f32
    %27 = vector.broadcast %cst_21 : f32 to vector<8x128xf32>
    %28 = arith.addf %27, %26 : vector<8x128xf32>
    %29 = arith.divf %27, %28 : vector<8x128xf32>
    %30 = vector.extract_strided_slice %17 {offsets = [0, 256], sizes = [8, 128], strides = [1, 1]} : vector<8x512xf32> to vector<8x128xf32>
    %31 = math.tanh %30 : vector<8x128xf32>
    %32 = vector.extract_strided_slice %17 {offsets = [0, 384], sizes = [8, 128], strides = [1, 1]} : vector<8x512xf32> to vector<8x128xf32>
    %33 = arith.negf %32 : vector<8x128xf32>
    %34 = math.exp %33 : vector<8x128xf32>
    %cst_22 = arith.constant 1.000000e+00 : f32
    %35 = vector.broadcast %cst_22 : f32 to vector<8x128xf32>
    %36 = arith.addf %35, %34 : vector<8x128xf32>
    %37 = arith.divf %35, %36 : vector<8x128xf32>
    %38 = arith.mulf %29, %11 : vector<8x128xf32>
    %39 = arith.mulf %23, %31 : vector<8x128xf32>
    %40 = arith.addf %38, %39 : vector<8x128xf32>
    %41 = math.tanh %40 : vector<8x128xf32>
    %42 = arith.mulf %37, %41 : vector<8x128xf32>
    %c0_23 = arith.constant 0 : index
    %c0_24 = arith.constant 0 : index
    %43 = vector.load %arg17[%c0_23, %c0_24] : memref<64x128xf32, #tpu.memory_space<vmem>>, vector<8x128xf32>
    tpu.vector_store %arg17[%c0_23, %c0_24], %42 {strides = array<i32>} : memref<64x128xf32, #tpu.memory_space<vmem>>, vector<8x128xf32>,
    %c56_25 = arith.constant 56 : index
    %c0_26 = arith.constant 0 : index
    %44 = vector.load %arg18[%c56_25, %c0_26] : memref<64x128xf32, #tpu.memory_space<vmem>>, vector<8x128xf32>
    tpu.vector_store %arg18[%c56_25, %c0_26], %42 {strides = array<i32>} : memref<64x128xf32, #tpu.memory_space<vmem>>, vector<8x128xf32>,
    %c8 = arith.constant 8 : index
    %c0_27 = arith.constant 0 : index
    %45 = vector.load %arg15[%c8, %c0_27] : memref<64x512xf32, #tpu.memory_space<vmem>>, vector<8x512xf32>
    %c48 = arith.constant 48 : index
    %c0_28 = arith.constant 0 : index
    %46 = vector.load %arg16[%c48, %c0_28] : memref<64x512xf32, #tpu.memory_space<vmem>>, vector<8x512xf32>
    %47 = arith.addf %45, %46 : vector<8x512xf32>
    %c0_29 = arith.constant 0 : index
    %c0_30 = arith.constant 0 : index
    %48 = vector.load %arg3[%c0_29, %c0_30] : memref<128x512xf32, #tpu.memory_space<vmem>>, vector<128x512xf32>
    %cst_31 = arith.constant dense<0.000000e+00> : vector<8x512xf32>
    %49 = tpu.matmul %42, %48, %cst_31 {dimension_numbers = #tpu.dot_dimension_numbers<[1], [0], [0], [1], [0, 0, 1, 1], [], []>} : vector<8x128xf32>, vector<128x512xf32>, vector<8x512xf32> -> vector<8x512xf32>
    %50 = arith.addf %47, %49 : vector<8x512xf32>
    %51 = vector.extract_strided_slice %50 {offsets = [0, 0], sizes = [8, 128], strides = [1, 1]} : vector<8x512xf32> to vector<8x128xf32>
    %52 = arith.negf %51 : vector<8x128xf32>
    %53 = math.exp %52 : vector<8x128xf32>
    %cst_32 = arith.constant 1.000000e+00 : f32
    %54 = vector.broadcast %cst_32 : f32 to vector<8x128xf32>
    %55 = arith.addf %54, %53 : vector<8x128xf32>
    %56 = arith.divf %54, %55 : vector<8x128xf32>
    %57 = vector.extract_strided_slice %50 {offsets = [0, 128], sizes = [8, 128], strides = [1, 1]} : vector<8x512xf32> to vector<8x128xf32>
    %58 = arith.negf %57 : vector<8x128xf32>
    %59 = math.exp %58 : vector<8x128xf32>
    %cst_33 = arith.constant 1.000000e+00 : f32
    %60 = vector.broadcast %cst_33 : f32 to vector<8x128xf32>
    %61 = arith.addf %60, %59 : vector<8x128xf32>
    %62 = arith.divf %60, %61 : vector<8x128xf32>
    %63 = vector.extract_strided_slice %50 {offsets = [0, 256], sizes = [8, 128], strides = [1, 1]} : vector<8x512xf32> to vector<8x128xf32>
    %64 = math.tanh %63 : vector<8x128xf32>
    %65 = vector.extract_strided_slice %50 {offsets = [0, 384], sizes = [8, 128], strides = [1, 1]} : vector<8x512xf32> to vector<8x128xf32>
    %66 = arith.negf %65 : vector<8x128xf32>
    %67 = math.exp %66 : vector<8x128xf32>
    %cst_34 = arith.constant 1.000000e+00 : f32
    %68 = vector.broadcast %cst_34 : f32 to vector<8x128xf32>
    %69 = arith.addf %68, %67 : vector<8x128xf32>
    %70 = arith.divf %68, %69 : vector<8x128xf32>
    %71 = arith.mulf %62, %40 : vector<8x128xf32>
    %72 = arith.mulf %56, %64 : vector<8x128xf32>
    %73 = arith.addf %71, %72 : vector<8x128xf32>
    %74 = math.tanh %73 : vector<8x128xf32>
    %75 = arith.mulf %70, %74 : vector<8x128xf32>
    %c8_35 = arith.constant 8 : index
    %c0_36 = arith.constant 0 : index
    %76 = vector.load %arg17[%c8_35, %c0_36] : memref<64x128xf32, #tpu.memory_space<vmem>>, vector<8x128xf32>
    tpu.vector_store %arg17[%c8_35, %c0_36], %75 {strides = array<i32>} : memref<64x128xf32, #tpu.memory_space<vmem>>, vector<8x128xf32>,
    %c48_37 = arith.constant 48 : index
    %c0_38 = arith.constant 0 : index
    %77 = vector.load %arg18[%c48_37, %c0_38] : memref<64x128xf32, #tpu.memory_space<vmem>>, vector<8x128xf32>
    tpu.vector_store %arg18[%c48_37, %c0_38], %75 {strides = array<i32>} : memref<64x128xf32, #tpu.memory_space<vmem>>, vector<8x128xf32>,
    %c16 = arith.constant 16 : index
    %c0_39 = arith.constant 0 : index
    %78 = vector.load %arg15[%c16, %c0_39] : memref<64x512xf32, #tpu.memory_space<vmem>>, vector<8x512xf32>
    %c40 = arith.constant 40 : index
    %c0_40 = arith.constant 0 : index
    %79 = vector.load %arg16[%c40, %c0_40] : memref<64x512xf32, #tpu.memory_space<vmem>>, vector<8x512xf32>
    %80 = arith.addf %78, %79 : vector<8x512xf32>
    %c0_41 = arith.constant 0 : index
    %c0_42 = arith.constant 0 : index
    %81 = vector.load %arg3[%c0_41, %c0_42] : memref<128x512xf32, #tpu.memory_space<vmem>>, vector<128x512xf32>
    %cst_43 = arith.constant dense<0.000000e+00> : vector<8x512xf32>
    %82 = tpu.matmul %75, %81, %cst_43 {dimension_numbers = #tpu.dot_dimension_numbers<[1], [0], [0], [1], [0, 0, 1, 1], [], []>} : vector<8x128xf32>, vector<128x512xf32>, vector<8x512xf32> -> vector<8x512xf32>
    %83 = arith.addf %80, %82 : vector<8x512xf32>
    %84 = vector.extract_strided_slice %83 {offsets = [0, 0], sizes = [8, 128], strides = [1, 1]} : vector<8x512xf32> to vector<8x128xf32>
    %85 = arith.negf %84 : vector<8x128xf32>
    %86 = math.exp %85 : vector<8x128xf32>
    %cst_44 = arith.constant 1.000000e+00 : f32
    %87 = vector.broadcast %cst_44 : f32 to vector<8x128xf32>
    %88 = arith.addf %87, %86 : vector<8x128xf32>
    %89 = arith.divf %87, %88 : vector<8x128xf32>
    %90 = vector.extract_strided_slice %83 {offsets = [0, 128], sizes = [8, 128], strides = [1, 1]} : vector<8x512xf32> to vector<8x128xf32>
    %91 = arith.negf %90 : vector<8x128xf32>
    %92 = math.exp %91 : vector<8x128xf32>
    %cst_45 = arith.constant 1.000000e+00 : f32
    %93 = vector.broadcast %cst_45 : f32 to vector<8x128xf32>
    %94 = arith.addf %93, %92 : vector<8x128xf32>
    %95 = arith.divf %93, %94 : vector<8x128xf32>
    %96 = vector.extract_strided_slice %83 {offsets = [0, 256], sizes = [8, 128], strides = [1, 1]} : vector<8x512xf32> to vector<8x128xf32>
    %97 = math.tanh %96 : vector<8x128xf32>
    %98 = vector.extract_strided_slice %83 {offsets = [0, 384], sizes = [8, 128], strides = [1, 1]} : vector<8x512xf32> to vector<8x128xf32>
    %99 = arith.negf %98 : vector<8x128xf32>
    %100 = math.exp %99 : vector<8x128xf32>
    %cst_46 = arith.constant 1.000000e+00 : f32
    %101 = vector.broadcast %cst_46 : f32 to vector<8x128xf32>
    %102 = arith.addf %101, %100 : vector<8x128xf32>
    %103 = arith.divf %101, %102 : vector<8x128xf32>
    %104 = arith.mulf %95, %73 : vector<8x128xf32>
    %105 = arith.mulf %89, %97 : vector<8x128xf32>
    %106 = arith.addf %104, %105 : vector<8x128xf32>
    %107 = math.tanh %106 : vector<8x128xf32>
    %108 = arith.mulf %103, %107 : vector<8x128xf32>
    %c16_47 = arith.constant 16 : index
    %c0_48 = arith.constant 0 : index
    %109 = vector.load %arg17[%c16_47, %c0_48] : memref<64x128xf32, #tpu.memory_space<vmem>>, vector<8x128xf32>
    tpu.vector_store %arg17[%c16_47, %c0_48], %108 {strides = array<i32>} : memref<64x128xf32, #tpu.memory_space<vmem>>, vector<8x128xf32>,
    %c40_49 = arith.constant 40 : index
    %c0_50 = arith.constant 0 : index
    %110 = vector.load %arg18[%c40_49, %c0_50] : memref<64x128xf32, #tpu.memory_space<vmem>>, vector<8x128xf32>
    tpu.vector_store %arg18[%c40_49, %c0_50], %108 {strides = array<i32>} : memref<64x128xf32, #tpu.memory_space<vmem>>, vector<8x128xf32>,
    %c24 = arith.constant 24 : index
    %c0_51 = arith.constant 0 : index
    %111 = vector.load %arg15[%c24, %c0_51] : memref<64x512xf32, #tpu.memory_space<vmem>>, vector<8x512xf32>
    %c32 = arith.constant 32 : index
    %c0_52 = arith.constant 0 : index
    %112 = vector.load %arg16[%c32, %c0_52] : memref<64x512xf32, #tpu.memory_space<vmem>>, vector<8x512xf32>
    %113 = arith.addf %111, %112 : vector<8x512xf32>
    %c0_53 = arith.constant 0 : index
    %c0_54 = arith.constant 0 : index
    %114 = vector.load %arg3[%c0_53, %c0_54] : memref<128x512xf32, #tpu.memory_space<vmem>>, vector<128x512xf32>
    %cst_55 = arith.constant dense<0.000000e+00> : vector<8x512xf32>
    %115 = tpu.matmul %108, %114, %cst_55 {dimension_numbers = #tpu.dot_dimension_numbers<[1], [0], [0], [1], [0, 0, 1, 1], [], []>} : vector<8x128xf32>, vector<128x512xf32>, vector<8x512xf32> -> vector<8x512xf32>
    %116 = arith.addf %113, %115 : vector<8x512xf32>
    %117 = vector.extract_strided_slice %116 {offsets = [0, 0], sizes = [8, 128], strides = [1, 1]} : vector<8x512xf32> to vector<8x128xf32>
    %118 = arith.negf %117 : vector<8x128xf32>
    %119 = math.exp %118 : vector<8x128xf32>
    %cst_56 = arith.constant 1.000000e+00 : f32
    %120 = vector.broadcast %cst_56 : f32 to vector<8x128xf32>
    %121 = arith.addf %120, %119 : vector<8x128xf32>
    %122 = arith.divf %120, %121 : vector<8x128xf32>
    %123 = vector.extract_strided_slice %116 {offsets = [0, 128], sizes = [8, 128], strides = [1, 1]} : vector<8x512xf32> to vector<8x128xf32>
    %124 = arith.negf %123 : vector<8x128xf32>
    %125 = math.exp %124 : vector<8x128xf32>
    %cst_57 = arith.constant 1.000000e+00 : f32
    %126 = vector.broadcast %cst_57 : f32 to vector<8x128xf32>
    %127 = arith.addf %126, %125 : vector<8x128xf32>
    %128 = arith.divf %126, %127 : vector<8x128xf32>
    %129 = vector.extract_strided_slice %116 {offsets = [0, 256], sizes = [8, 128], strides = [1, 1]} : vector<8x512xf32> to vector<8x128xf32>
    %130 = math.tanh %129 : vector<8x128xf32>
    %131 = vector.extract_strided_slice %116 {offsets = [0, 384], sizes = [8, 128], strides = [1, 1]} : vector<8x512xf32> to vector<8x128xf32>
    %132 = arith.negf %131 : vector<8x128xf32>
    %133 = math.exp %132 : vector<8x128xf32>
    %cst_58 = arith.constant 1.000000e+00 : f32
    %134 = vector.broadcast %cst_58 : f32 to vector<8x128xf32>
    %135 = arith.addf %134, %133 : vector<8x128xf32>
    %136 = arith.divf %134, %135 : vector<8x128xf32>
    %137 = arith.mulf %128, %106 : vector<8x128xf32>
    %138 = arith.mulf %122, %130 : vector<8x128xf32>
    %139 = arith.addf %137, %138 : vector<8x128xf32>
    %140 = math.tanh %139 : vector<8x128xf32>
    %141 = arith.mulf %136, %140 : vector<8x128xf32>
    %c24_59 = arith.constant 24 : index
    %c0_60 = arith.constant 0 : index
    %142 = vector.load %arg17[%c24_59, %c0_60] : memref<64x128xf32, #tpu.memory_space<vmem>>, vector<8x128xf32>
    tpu.vector_store %arg17[%c24_59, %c0_60], %141 {strides = array<i32>} : memref<64x128xf32, #tpu.memory_space<vmem>>, vector<8x128xf32>,
    %c32_61 = arith.constant 32 : index
    %c0_62 = arith.constant 0 : index
    %143 = vector.load %arg18[%c32_61, %c0_62] : memref<64x128xf32, #tpu.memory_space<vmem>>, vector<8x128xf32>
    tpu.vector_store %arg18[%c32_61, %c0_62], %141 {strides = array<i32>} : memref<64x128xf32, #tpu.memory_space<vmem>>, vector<8x128xf32>,
    %c32_63 = arith.constant 32 : index
    %c0_64 = arith.constant 0 : index
    %144 = vector.load %arg15[%c32_63, %c0_64] : memref<64x512xf32, #tpu.memory_space<vmem>>, vector<8x512xf32>
    %c24_65 = arith.constant 24 : index
    %c0_66 = arith.constant 0 : index
    %145 = vector.load %arg16[%c24_65, %c0_66] : memref<64x512xf32, #tpu.memory_space<vmem>>, vector<8x512xf32>
    %146 = arith.addf %144, %145 : vector<8x512xf32>
    %c0_67 = arith.constant 0 : index
    %c0_68 = arith.constant 0 : index
    %147 = vector.load %arg3[%c0_67, %c0_68] : memref<128x512xf32, #tpu.memory_space<vmem>>, vector<128x512xf32>
    %cst_69 = arith.constant dense<0.000000e+00> : vector<8x512xf32>
    %148 = tpu.matmul %141, %147, %cst_69 {dimension_numbers = #tpu.dot_dimension_numbers<[1], [0], [0], [1], [0, 0, 1, 1], [], []>} : vector<8x128xf32>, vector<128x512xf32>, vector<8x512xf32> -> vector<8x512xf32>
    %149 = arith.addf %146, %148 : vector<8x512xf32>
    %150 = vector.extract_strided_slice %149 {offsets = [0, 0], sizes = [8, 128], strides = [1, 1]} : vector<8x512xf32> to vector<8x128xf32>
    %151 = arith.negf %150 : vector<8x128xf32>
    %152 = math.exp %151 : vector<8x128xf32>
    %cst_70 = arith.constant 1.000000e+00 : f32
    %153 = vector.broadcast %cst_70 : f32 to vector<8x128xf32>
    %154 = arith.addf %153, %152 : vector<8x128xf32>
    %155 = arith.divf %153, %154 : vector<8x128xf32>
    %156 = vector.extract_strided_slice %149 {offsets = [0, 128], sizes = [8, 128], strides = [1, 1]} : vector<8x512xf32> to vector<8x128xf32>
    %157 = arith.negf %156 : vector<8x128xf32>
    %158 = math.exp %157 : vector<8x128xf32>
    %cst_71 = arith.constant 1.000000e+00 : f32
    %159 = vector.broadcast %cst_71 : f32 to vector<8x128xf32>
    %160 = arith.addf %159, %158 : vector<8x128xf32>
    %161 = arith.divf %159, %160 : vector<8x128xf32>
    %162 = vector.extract_strided_slice %149 {offsets = [0, 256], sizes = [8, 128], strides = [1, 1]} : vector<8x512xf32> to vector<8x128xf32>
    %163 = math.tanh %162 : vector<8x128xf32>
    %164 = vector.extract_strided_slice %149 {offsets = [0, 384], sizes = [8, 128], strides = [1, 1]} : vector<8x512xf32> to vector<8x128xf32>
    %165 = arith.negf %164 : vector<8x128xf32>
    %166 = math.exp %165 : vector<8x128xf32>
    %cst_72 = arith.constant 1.000000e+00 : f32
    %167 = vector.broadcast %cst_72 : f32 to vector<8x128xf32>
    %168 = arith.addf %167, %166 : vector<8x128xf32>
    %169 = arith.divf %167, %168 : vector<8x128xf32>
    %170 = arith.mulf %161, %139 : vector<8x128xf32>
    %171 = arith.mulf %155, %163 : vector<8x128xf32>
    %172 = arith.addf %170, %171 : vector<8x128xf32>
    %173 = math.tanh %172 : vector<8x128xf32>
    %174 = arith.mulf %169, %173 : vector<8x128xf32>
    %c32_73 = arith.constant 32 : index
    %c0_74 = arith.constant 0 : index
    %175 = vector.load %arg17[%c32_73, %c0_74] : memref<64x128xf32, #tpu.memory_space<vmem>>, vector<8x128xf32>
    tpu.vector_store %arg17[%c32_73, %c0_74], %174 {strides = array<i32>} : memref<64x128xf32, #tpu.memory_space<vmem>>, vector<8x128xf32>,
    %c24_75 = arith.constant 24 : index
    %c0_76 = arith.constant 0 : index
    %176 = vector.load %arg18[%c24_75, %c0_76] : memref<64x128xf32, #tpu.memory_space<vmem>>, vector<8x128xf32>
    tpu.vector_store %arg18[%c24_75, %c0_76], %174 {strides = array<i32>} : memref<64x128xf32, #tpu.memory_space<vmem>>, vector<8x128xf32>,
    %c40_77 = arith.constant 40 : index
    %c0_78 = arith.constant 0 : index
    %177 = vector.load %arg15[%c40_77, %c0_78] : memref<64x512xf32, #tpu.memory_space<vmem>>, vector<8x512xf32>
    %c16_79 = arith.constant 16 : index
    %c0_80 = arith.constant 0 : index
    %178 = vector.load %arg16[%c16_79, %c0_80] : memref<64x512xf32, #tpu.memory_space<vmem>>, vector<8x512xf32>
    %179 = arith.addf %177, %178 : vector<8x512xf32>
    %c0_81 = arith.constant 0 : index
    %c0_82 = arith.constant 0 : index
    %180 = vector.load %arg3[%c0_81, %c0_82] : memref<128x512xf32, #tpu.memory_space<vmem>>, vector<128x512xf32>
    %cst_83 = arith.constant dense<0.000000e+00> : vector<8x512xf32>
    %181 = tpu.matmul %174, %180, %cst_83 {dimension_numbers = #tpu.dot_dimension_numbers<[1], [0], [0], [1], [0, 0, 1, 1], [], []>} : vector<8x128xf32>, vector<128x512xf32>, vector<8x512xf32> -> vector<8x512xf32>
    %182 = arith.addf %179, %181 : vector<8x512xf32>
    %183 = vector.extract_strided_slice %182 {offsets = [0, 0], sizes = [8, 128], strides = [1, 1]} : vector<8x512xf32> to vector<8x128xf32>
    %184 = arith.negf %183 : vector<8x128xf32>
    %185 = math.exp %184 : vector<8x128xf32>
    %cst_84 = arith.constant 1.000000e+00 : f32
    %186 = vector.broadcast %cst_84 : f32 to vector<8x128xf32>
    %187 = arith.addf %186, %185 : vector<8x128xf32>
    %188 = arith.divf %186, %187 : vector<8x128xf32>
    %189 = vector.extract_strided_slice %182 {offsets = [0, 128], sizes = [8, 128], strides = [1, 1]} : vector<8x512xf32> to vector<8x128xf32>
    %190 = arith.negf %189 : vector<8x128xf32>
    %191 = math.exp %190 : vector<8x128xf32>
    %cst_85 = arith.constant 1.000000e+00 : f32
    %192 = vector.broadcast %cst_85 : f32 to vector<8x128xf32>
    %193 = arith.addf %192, %191 : vector<8x128xf32>
    %194 = arith.divf %192, %193 : vector<8x128xf32>
    %195 = vector.extract_strided_slice %182 {offsets = [0, 256], sizes = [8, 128], strides = [1, 1]} : vector<8x512xf32> to vector<8x128xf32>
    %196 = math.tanh %195 : vector<8x128xf32>
    %197 = vector.extract_strided_slice %182 {offsets = [0, 384], sizes = [8, 128], strides = [1, 1]} : vector<8x512xf32> to vector<8x128xf32>
    %198 = arith.negf %197 : vector<8x128xf32>
    %199 = math.exp %198 : vector<8x128xf32>
    %cst_86 = arith.constant 1.000000e+00 : f32
    %200 = vector.broadcast %cst_86 : f32 to vector<8x128xf32>
    %201 = arith.addf %200, %199 : vector<8x128xf32>
    %202 = arith.divf %200, %201 : vector<8x128xf32>
    %203 = arith.mulf %194, %172 : vector<8x128xf32>
    %204 = arith.mulf %188, %196 : vector<8x128xf32>
    %205 = arith.addf %203, %204 : vector<8x128xf32>
    %206 = math.tanh %205 : vector<8x128xf32>
    %207 = arith.mulf %202, %206 : vector<8x128xf32>
    %c40_87 = arith.constant 40 : index
    %c0_88 = arith.constant 0 : index
    %208 = vector.load %arg17[%c40_87, %c0_88] : memref<64x128xf32, #tpu.memory_space<vmem>>, vector<8x128xf32>
    tpu.vector_store %arg17[%c40_87, %c0_88], %207 {strides = array<i32>} : memref<64x128xf32, #tpu.memory_space<vmem>>, vector<8x128xf32>,
    %c16_89 = arith.constant 16 : index
    %c0_90 = arith.constant 0 : index
    %209 = vector.load %arg18[%c16_89, %c0_90] : memref<64x128xf32, #tpu.memory_space<vmem>>, vector<8x128xf32>
    tpu.vector_store %arg18[%c16_89, %c0_90], %207 {strides = array<i32>} : memref<64x128xf32, #tpu.memory_space<vmem>>, vector<8x128xf32>,
    %c48_91 = arith.constant 48 : index
    %c0_92 = arith.constant 0 : index
    %210 = vector.load %arg15[%c48_91, %c0_92] : memref<64x512xf32, #tpu.memory_space<vmem>>, vector<8x512xf32>
    %c8_93 = arith.constant 8 : index
    %c0_94 = arith.constant 0 : index
    %211 = vector.load %arg16[%c8_93, %c0_94] : memref<64x512xf32, #tpu.memory_space<vmem>>, vector<8x512xf32>
    %212 = arith.addf %210, %211 : vector<8x512xf32>
    %c0_95 = arith.constant 0 : index
    %c0_96 = arith.constant 0 : index
    %213 = vector.load %arg3[%c0_95, %c0_96] : memref<128x512xf32, #tpu.memory_space<vmem>>, vector<128x512xf32>
    %cst_97 = arith.constant dense<0.000000e+00> : vector<8x512xf32>
    %214 = tpu.matmul %207, %213, %cst_97 {dimension_numbers = #tpu.dot_dimension_numbers<[1], [0], [0], [1], [0, 0, 1, 1], [], []>} : vector<8x128xf32>, vector<128x512xf32>, vector<8x512xf32> -> vector<8x512xf32>
    %215 = arith.addf %212, %214 : vector<8x512xf32>
    %216 = vector.extract_strided_slice %215 {offsets = [0, 0], sizes = [8, 128], strides = [1, 1]} : vector<8x512xf32> to vector<8x128xf32>
    %217 = arith.negf %216 : vector<8x128xf32>
    %218 = math.exp %217 : vector<8x128xf32>
    %cst_98 = arith.constant 1.000000e+00 : f32
    %219 = vector.broadcast %cst_98 : f32 to vector<8x128xf32>
    %220 = arith.addf %219, %218 : vector<8x128xf32>
    %221 = arith.divf %219, %220 : vector<8x128xf32>
    %222 = vector.extract_strided_slice %215 {offsets = [0, 128], sizes = [8, 128], strides = [1, 1]} : vector<8x512xf32> to vector<8x128xf32>
    %223 = arith.negf %222 : vector<8x128xf32>
    %224 = math.exp %223 : vector<8x128xf32>
    %cst_99 = arith.constant 1.000000e+00 : f32
    %225 = vector.broadcast %cst_99 : f32 to vector<8x128xf32>
    %226 = arith.addf %225, %224 : vector<8x128xf32>
    %227 = arith.divf %225, %226 : vector<8x128xf32>
    %228 = vector.extract_strided_slice %215 {offsets = [0, 256], sizes = [8, 128], strides = [1, 1]} : vector<8x512xf32> to vector<8x128xf32>
    %229 = math.tanh %228 : vector<8x128xf32>
    %230 = vector.extract_strided_slice %215 {offsets = [0, 384], sizes = [8, 128], strides = [1, 1]} : vector<8x512xf32> to vector<8x128xf32>
    %231 = arith.negf %230 : vector<8x128xf32>
    %232 = math.exp %231 : vector<8x128xf32>
    %cst_100 = arith.constant 1.000000e+00 : f32
    %233 = vector.broadcast %cst_100 : f32 to vector<8x128xf32>
    %234 = arith.addf %233, %232 : vector<8x128xf32>
    %235 = arith.divf %233, %234 : vector<8x128xf32>
    %236 = arith.mulf %227, %205 : vector<8x128xf32>
    %237 = arith.mulf %221, %229 : vector<8x128xf32>
    %238 = arith.addf %236, %237 : vector<8x128xf32>
    %239 = math.tanh %238 : vector<8x128xf32>
    %240 = arith.mulf %235, %239 : vector<8x128xf32>
    %c48_101 = arith.constant 48 : index
    %c0_102 = arith.constant 0 : index
    %241 = vector.load %arg17[%c48_101, %c0_102] : memref<64x128xf32, #tpu.memory_space<vmem>>, vector<8x128xf32>
    tpu.vector_store %arg17[%c48_101, %c0_102], %240 {strides = array<i32>} : memref<64x128xf32, #tpu.memory_space<vmem>>, vector<8x128xf32>,
    %c8_103 = arith.constant 8 : index
    %c0_104 = arith.constant 0 : index
    %242 = vector.load %arg18[%c8_103, %c0_104] : memref<64x128xf32, #tpu.memory_space<vmem>>, vector<8x128xf32>
    tpu.vector_store %arg18[%c8_103, %c0_104], %240 {strides = array<i32>} : memref<64x128xf32, #tpu.memory_space<vmem>>, vector<8x128xf32>,
    %c56_105 = arith.constant 56 : index
    %c0_106 = arith.constant 0 : index
    %243 = vector.load %arg15[%c56_105, %c0_106] : memref<64x512xf32, #tpu.memory_space<vmem>>, vector<8x512xf32>
    %c0_107 = arith.constant 0 : index
    %c0_108 = arith.constant 0 : index
    %244 = vector.load %arg16[%c0_107, %c0_108] : memref<64x512xf32, #tpu.memory_space<vmem>>, vector<8x512xf32>
    %245 = arith.addf %243, %244 : vector<8x512xf32>
    %c0_109 = arith.constant 0 : index
    %c0_110 = arith.constant 0 : index
    %246 = vector.load %arg3[%c0_109, %c0_110] : memref<128x512xf32, #tpu.memory_space<vmem>>, vector<128x512xf32>
    %cst_111 = arith.constant dense<0.000000e+00> : vector<8x512xf32>
    %247 = tpu.matmul %240, %246, %cst_111 {dimension_numbers = #tpu.dot_dimension_numbers<[1], [0], [0], [1], [0, 0, 1, 1], [], []>} : vector<8x128xf32>, vector<128x512xf32>, vector<8x512xf32> -> vector<8x512xf32>
    %248 = arith.addf %245, %247 : vector<8x512xf32>
    %249 = vector.extract_strided_slice %248 {offsets = [0, 0], sizes = [8, 128], strides = [1, 1]} : vector<8x512xf32> to vector<8x128xf32>
    %250 = arith.negf %249 : vector<8x128xf32>
    %251 = math.exp %250 : vector<8x128xf32>
    %cst_112 = arith.constant 1.000000e+00 : f32
    %252 = vector.broadcast %cst_112 : f32 to vector<8x128xf32>
    %253 = arith.addf %252, %251 : vector<8x128xf32>
    %254 = arith.divf %252, %253 : vector<8x128xf32>
    %255 = vector.extract_strided_slice %248 {offsets = [0, 128], sizes = [8, 128], strides = [1, 1]} : vector<8x512xf32> to vector<8x128xf32>
    %256 = arith.negf %255 : vector<8x128xf32>
    %257 = math.exp %256 : vector<8x128xf32>
    %cst_113 = arith.constant 1.000000e+00 : f32
    %258 = vector.broadcast %cst_113 : f32 to vector<8x128xf32>
    %259 = arith.addf %258, %257 : vector<8x128xf32>
    %260 = arith.divf %258, %259 : vector<8x128xf32>
    %261 = vector.extract_strided_slice %248 {offsets = [0, 256], sizes = [8, 128], strides = [1, 1]} : vector<8x512xf32> to vector<8x128xf32>
    %262 = math.tanh %261 : vector<8x128xf32>
    %263 = vector.extract_strided_slice %248 {offsets = [0, 384], sizes = [8, 128], strides = [1, 1]} : vector<8x512xf32> to vector<8x128xf32>
    %264 = arith.negf %263 : vector<8x128xf32>
    %265 = math.exp %264 : vector<8x128xf32>
    %cst_114 = arith.constant 1.000000e+00 : f32
    %266 = vector.broadcast %cst_114 : f32 to vector<8x128xf32>
    %267 = arith.addf %266, %265 : vector<8x128xf32>
    %268 = arith.divf %266, %267 : vector<8x128xf32>
    %269 = arith.mulf %260, %238 : vector<8x128xf32>
    %270 = arith.mulf %254, %262 : vector<8x128xf32>
    %271 = arith.addf %269, %270 : vector<8x128xf32>
    %272 = math.tanh %271 : vector<8x128xf32>
    %273 = arith.mulf %268, %272 : vector<8x128xf32>
    %c56_115 = arith.constant 56 : index
    %c0_116 = arith.constant 0 : index
    %274 = vector.load %arg17[%c56_115, %c0_116] : memref<64x128xf32, #tpu.memory_space<vmem>>, vector<8x128xf32>
    tpu.vector_store %arg17[%c56_115, %c0_116], %273 {strides = array<i32>} : memref<64x128xf32, #tpu.memory_space<vmem>>, vector<8x128xf32>,
    %c0_117 = arith.constant 0 : index
    %c0_118 = arith.constant 0 : index
    %275 = vector.load %arg18[%c0_117, %c0_118] : memref<64x128xf32, #tpu.memory_space<vmem>>, vector<8x128xf32>
    tpu.vector_store %arg18[%c0_117, %c0_118], %273 {strides = array<i32>} : memref<64x128xf32, #tpu.memory_space<vmem>>, vector<8x128xf32>,
    %c0_119 = arith.constant 0 : index
    %c0_120 = arith.constant 0 : index
    %276 = vector.load %arg17[%c0_119, %c0_120] : memref<64x128xf32, #tpu.memory_space<vmem>>, vector<64x128xf32>
    %c0_121 = arith.constant 0 : index
    %c0_122 = arith.constant 0 : index
    %277 = vector.load %arg18[%c0_121, %c0_122] : memref<64x128xf32, #tpu.memory_space<vmem>>, vector<64x128xf32>
    %c0_123 = arith.constant 0 : index
    %c0_124 = arith.constant 0 : index
    %278 = vector.load %arg5[%c0_123, %c0_124] : memref<128x512xf32, #tpu.memory_space<vmem>>, vector<128x512xf32>
    %cst_125 = arith.constant dense<0.000000e+00> : vector<64x512xf32>
    %279 = tpu.matmul %276, %278, %cst_125 {dimension_numbers = #tpu.dot_dimension_numbers<[1], [0], [0], [1], [0, 0, 1, 1], [], []>} : vector<64x128xf32>, vector<128x512xf32>, vector<64x512xf32> -> vector<64x512xf32>
    %c0_126 = arith.constant 0 : index
    %c0_127 = arith.constant 0 : index
    %280 = vector.load %arg6[%c0_126, %c0_127] : memref<128x512xf32, #tpu.memory_space<vmem>>, vector<128x512xf32>
    %cst_128 = arith.constant dense<0.000000e+00> : vector<64x512xf32>
    %281 = tpu.matmul %277, %280, %cst_128 {dimension_numbers = #tpu.dot_dimension_numbers<[1], [0], [0], [1], [0, 0, 1, 1], [], []>} : vector<64x128xf32>, vector<128x512xf32>, vector<64x512xf32> -> vector<64x512xf32>
    %282 = arith.addf %279, %281 : vector<64x512xf32>
    %c0_129 = arith.constant 0 : index
    %c0_130 = arith.constant 0 : index
    %283 = vector.load %arg10[%c0_129, %c0_130] : memref<1x512xf32, #tpu.memory_space<vmem>>, vector<1x512xf32>
    %284 = vector.broadcast %283 : vector<1x512xf32> to vector<64x512xf32>
    %285 = arith.addf %282, %284 : vector<64x512xf32>
    %c0_131 = arith.constant 0 : index
    %c0_132 = arith.constant 0 : index
    %286 = vector.load %arg15[%c0_131, %c0_132] : memref<64x512xf32, #tpu.memory_space<vmem>>, vector<64x512xf32>
    tpu.vector_store %arg15[%c0_131, %c0_132], %285 {strides = array<i32>} : memref<64x512xf32, #tpu.memory_space<vmem>>, vector<64x512xf32>,
    %c0_133 = arith.constant 0 : index
    %c0_134 = arith.constant 0 : index
    %287 = vector.load %arg7[%c0_133, %c0_134] : memref<128x512xf32, #tpu.memory_space<vmem>>, vector<128x512xf32>
    %cst_135 = arith.constant dense<0.000000e+00> : vector<64x512xf32>
    %288 = tpu.matmul %276, %287, %cst_135 {dimension_numbers = #tpu.dot_dimension_numbers<[1], [0], [0], [1], [0, 0, 1, 1], [], []>} : vector<64x128xf32>, vector<128x512xf32>, vector<64x512xf32> -> vector<64x512xf32>
    %c0_136 = arith.constant 0 : index
    %c0_137 = arith.constant 0 : index
    %289 = vector.load %arg8[%c0_136, %c0_137] : memref<128x512xf32, #tpu.memory_space<vmem>>, vector<128x512xf32>
    %cst_138 = arith.constant dense<0.000000e+00> : vector<64x512xf32>
    %290 = tpu.matmul %277, %289, %cst_138 {dimension_numbers = #tpu.dot_dimension_numbers<[1], [0], [0], [1], [0, 0, 1, 1], [], []>} : vector<64x128xf32>, vector<128x512xf32>, vector<64x512xf32> -> vector<64x512xf32>
    %291 = arith.addf %288, %290 : vector<64x512xf32>
    %c0_139 = arith.constant 0 : index
    %c0_140 = arith.constant 0 : index
    %292 = vector.load %arg16[%c0_139, %c0_140] : memref<64x512xf32, #tpu.memory_space<vmem>>, vector<64x512xf32>
    tpu.vector_store %arg16[%c0_139, %c0_140], %291 {strides = array<i32>} : memref<64x512xf32, #tpu.memory_space<vmem>>, vector<64x512xf32>,
    %cst_141 = arith.constant 0.000000e+00 : f32
    %293 = vector.broadcast %cst_141 : f32 to vector<8x128xf32>
    %cst_142 = arith.constant 0.000000e+00 : f32
    %294 = vector.broadcast %cst_142 : f32 to vector<8x128xf32>
    %c0_143 = arith.constant 0 : index
    %c0_144 = arith.constant 0 : index
    %295 = vector.load %arg15[%c0_143, %c0_144] : memref<64x512xf32, #tpu.memory_space<vmem>>, vector<8x512xf32>
    %c56_145 = arith.constant 56 : index
    %c0_146 = arith.constant 0 : index
    %296 = vector.load %arg16[%c56_145, %c0_146] : memref<64x512xf32, #tpu.memory_space<vmem>>, vector<8x512xf32>
    %297 = arith.addf %295, %296 : vector<8x512xf32>
    %c0_147 = arith.constant 0 : index
    %c0_148 = arith.constant 0 : index
    %298 = vector.load %arg9[%c0_147, %c0_148] : memref<128x512xf32, #tpu.memory_space<vmem>>, vector<128x512xf32>
    %cst_149 = arith.constant dense<0.000000e+00> : vector<8x512xf32>
    %299 = tpu.matmul %293, %298, %cst_149 {dimension_numbers = #tpu.dot_dimension_numbers<[1], [0], [0], [1], [0, 0, 1, 1], [], []>} : vector<8x128xf32>, vector<128x512xf32>, vector<8x512xf32> -> vector<8x512xf32>
    %300 = arith.addf %297, %299 : vector<8x512xf32>
    %301 = vector.extract_strided_slice %300 {offsets = [0, 0], sizes = [8, 128], strides = [1, 1]} : vector<8x512xf32> to vector<8x128xf32>
    %302 = arith.negf %301 : vector<8x128xf32>
    %303 = math.exp %302 : vector<8x128xf32>
    %cst_150 = arith.constant 1.000000e+00 : f32
    %304 = vector.broadcast %cst_150 : f32 to vector<8x128xf32>
    %305 = arith.addf %304, %303 : vector<8x128xf32>
    %306 = arith.divf %304, %305 : vector<8x128xf32>
    %307 = vector.extract_strided_slice %300 {offsets = [0, 128], sizes = [8, 128], strides = [1, 1]} : vector<8x512xf32> to vector<8x128xf32>
    %308 = arith.negf %307 : vector<8x128xf32>
    %309 = math.exp %308 : vector<8x128xf32>
    %cst_151 = arith.constant 1.000000e+00 : f32
    %310 = vector.broadcast %cst_151 : f32 to vector<8x128xf32>
    %311 = arith.addf %310, %309 : vector<8x128xf32>
    %312 = arith.divf %310, %311 : vector<8x128xf32>
    %313 = vector.extract_strided_slice %300 {offsets = [0, 256], sizes = [8, 128], strides = [1, 1]} : vector<8x512xf32> to vector<8x128xf32>
    %314 = math.tanh %313 : vector<8x128xf32>
    %315 = vector.extract_strided_slice %300 {offsets = [0, 384], sizes = [8, 128], strides = [1, 1]} : vector<8x512xf32> to vector<8x128xf32>
    %316 = arith.negf %315 : vector<8x128xf32>
    %317 = math.exp %316 : vector<8x128xf32>
    %cst_152 = arith.constant 1.000000e+00 : f32
    %318 = vector.broadcast %cst_152 : f32 to vector<8x128xf32>
    %319 = arith.addf %318, %317 : vector<8x128xf32>
    %320 = arith.divf %318, %319 : vector<8x128xf32>
    %321 = arith.mulf %312, %294 : vector<8x128xf32>
    %322 = arith.mulf %306, %314 : vector<8x128xf32>
    %323 = arith.addf %321, %322 : vector<8x128xf32>
    %324 = math.tanh %323 : vector<8x128xf32>
    %325 = arith.mulf %320, %324 : vector<8x128xf32>
    %c8_153 = arith.constant 8 : index
    %c0_154 = arith.constant 0 : index
    %326 = vector.load %arg15[%c8_153, %c0_154] : memref<64x512xf32, #tpu.memory_space<vmem>>, vector<8x512xf32>
    %c48_155 = arith.constant 48 : index
    %c0_156 = arith.constant 0 : index
    %327 = vector.load %arg16[%c48_155, %c0_156] : memref<64x512xf32, #tpu.memory_space<vmem>>, vector<8x512xf32>
    %328 = arith.addf %326, %327 : vector<8x512xf32>
    %c0_157 = arith.constant 0 : index
    %c0_158 = arith.constant 0 : index
    %329 = vector.load %arg9[%c0_157, %c0_158] : memref<128x512xf32, #tpu.memory_space<vmem>>, vector<128x512xf32>
    %cst_159 = arith.constant dense<0.000000e+00> : vector<8x512xf32>
    %330 = tpu.matmul %325, %329, %cst_159 {dimension_numbers = #tpu.dot_dimension_numbers<[1], [0], [0], [1], [0, 0, 1, 1], [], []>} : vector<8x128xf32>, vector<128x512xf32>, vector<8x512xf32> -> vector<8x512xf32>
    %331 = arith.addf %328, %330 : vector<8x512xf32>
    %332 = vector.extract_strided_slice %331 {offsets = [0, 0], sizes = [8, 128], strides = [1, 1]} : vector<8x512xf32> to vector<8x128xf32>
    %333 = arith.negf %332 : vector<8x128xf32>
    %334 = math.exp %333 : vector<8x128xf32>
    %cst_160 = arith.constant 1.000000e+00 : f32
    %335 = vector.broadcast %cst_160 : f32 to vector<8x128xf32>
    %336 = arith.addf %335, %334 : vector<8x128xf32>
    %337 = arith.divf %335, %336 : vector<8x128xf32>
    %338 = vector.extract_strided_slice %331 {offsets = [0, 128], sizes = [8, 128], strides = [1, 1]} : vector<8x512xf32> to vector<8x128xf32>
    %339 = arith.negf %338 : vector<8x128xf32>
    %340 = math.exp %339 : vector<8x128xf32>
    %cst_161 = arith.constant 1.000000e+00 : f32
    %341 = vector.broadcast %cst_161 : f32 to vector<8x128xf32>
    %342 = arith.addf %341, %340 : vector<8x128xf32>
    %343 = arith.divf %341, %342 : vector<8x128xf32>
    %344 = vector.extract_strided_slice %331 {offsets = [0, 256], sizes = [8, 128], strides = [1, 1]} : vector<8x512xf32> to vector<8x128xf32>
    %345 = math.tanh %344 : vector<8x128xf32>
    %346 = vector.extract_strided_slice %331 {offsets = [0, 384], sizes = [8, 128], strides = [1, 1]} : vector<8x512xf32> to vector<8x128xf32>
    %347 = arith.negf %346 : vector<8x128xf32>
    %348 = math.exp %347 : vector<8x128xf32>
    %cst_162 = arith.constant 1.000000e+00 : f32
    %349 = vector.broadcast %cst_162 : f32 to vector<8x128xf32>
    %350 = arith.addf %349, %348 : vector<8x128xf32>
    %351 = arith.divf %349, %350 : vector<8x128xf32>
    %352 = arith.mulf %343, %323 : vector<8x128xf32>
    %353 = arith.mulf %337, %345 : vector<8x128xf32>
    %354 = arith.addf %352, %353 : vector<8x128xf32>
    %355 = math.tanh %354 : vector<8x128xf32>
    %356 = arith.mulf %351, %355 : vector<8x128xf32>
    %c16_163 = arith.constant 16 : index
    %c0_164 = arith.constant 0 : index
    %357 = vector.load %arg15[%c16_163, %c0_164] : memref<64x512xf32, #tpu.memory_space<vmem>>, vector<8x512xf32>
    %c40_165 = arith.constant 40 : index
    %c0_166 = arith.constant 0 : index
    %358 = vector.load %arg16[%c40_165, %c0_166] : memref<64x512xf32, #tpu.memory_space<vmem>>, vector<8x512xf32>
    %359 = arith.addf %357, %358 : vector<8x512xf32>
    %c0_167 = arith.constant 0 : index
    %c0_168 = arith.constant 0 : index
    %360 = vector.load %arg9[%c0_167, %c0_168] : memref<128x512xf32, #tpu.memory_space<vmem>>, vector<128x512xf32>
    %cst_169 = arith.constant dense<0.000000e+00> : vector<8x512xf32>
    %361 = tpu.matmul %356, %360, %cst_169 {dimension_numbers = #tpu.dot_dimension_numbers<[1], [0], [0], [1], [0, 0, 1, 1], [], []>} : vector<8x128xf32>, vector<128x512xf32>, vector<8x512xf32> -> vector<8x512xf32>
    %362 = arith.addf %359, %361 : vector<8x512xf32>
    %363 = vector.extract_strided_slice %362 {offsets = [0, 0], sizes = [8, 128], strides = [1, 1]} : vector<8x512xf32> to vector<8x128xf32>
    %364 = arith.negf %363 : vector<8x128xf32>
    %365 = math.exp %364 : vector<8x128xf32>
    %cst_170 = arith.constant 1.000000e+00 : f32
    %366 = vector.broadcast %cst_170 : f32 to vector<8x128xf32>
    %367 = arith.addf %366, %365 : vector<8x128xf32>
    %368 = arith.divf %366, %367 : vector<8x128xf32>
    %369 = vector.extract_strided_slice %362 {offsets = [0, 128], sizes = [8, 128], strides = [1, 1]} : vector<8x512xf32> to vector<8x128xf32>
    %370 = arith.negf %369 : vector<8x128xf32>
    %371 = math.exp %370 : vector<8x128xf32>
    %cst_171 = arith.constant 1.000000e+00 : f32
    %372 = vector.broadcast %cst_171 : f32 to vector<8x128xf32>
    %373 = arith.addf %372, %371 : vector<8x128xf32>
    %374 = arith.divf %372, %373 : vector<8x128xf32>
    %375 = vector.extract_strided_slice %362 {offsets = [0, 256], sizes = [8, 128], strides = [1, 1]} : vector<8x512xf32> to vector<8x128xf32>
    %376 = math.tanh %375 : vector<8x128xf32>
    %377 = vector.extract_strided_slice %362 {offsets = [0, 384], sizes = [8, 128], strides = [1, 1]} : vector<8x512xf32> to vector<8x128xf32>
    %378 = arith.negf %377 : vector<8x128xf32>
    %379 = math.exp %378 : vector<8x128xf32>
    %cst_172 = arith.constant 1.000000e+00 : f32
    %380 = vector.broadcast %cst_172 : f32 to vector<8x128xf32>
    %381 = arith.addf %380, %379 : vector<8x128xf32>
    %382 = arith.divf %380, %381 : vector<8x128xf32>
    %383 = arith.mulf %374, %354 : vector<8x128xf32>
    %384 = arith.mulf %368, %376 : vector<8x128xf32>
    %385 = arith.addf %383, %384 : vector<8x128xf32>
    %386 = math.tanh %385 : vector<8x128xf32>
    %387 = arith.mulf %382, %386 : vector<8x128xf32>
    %c24_173 = arith.constant 24 : index
    %c0_174 = arith.constant 0 : index
    %388 = vector.load %arg15[%c24_173, %c0_174] : memref<64x512xf32, #tpu.memory_space<vmem>>, vector<8x512xf32>
    %c32_175 = arith.constant 32 : index
    %c0_176 = arith.constant 0 : index
    %389 = vector.load %arg16[%c32_175, %c0_176] : memref<64x512xf32, #tpu.memory_space<vmem>>, vector<8x512xf32>
    %390 = arith.addf %388, %389 : vector<8x512xf32>
    %c0_177 = arith.constant 0 : index
    %c0_178 = arith.constant 0 : index
    %391 = vector.load %arg9[%c0_177, %c0_178] : memref<128x512xf32, #tpu.memory_space<vmem>>, vector<128x512xf32>
    %cst_179 = arith.constant dense<0.000000e+00> : vector<8x512xf32>
    %392 = tpu.matmul %387, %391, %cst_179 {dimension_numbers = #tpu.dot_dimension_numbers<[1], [0], [0], [1], [0, 0, 1, 1], [], []>} : vector<8x128xf32>, vector<128x512xf32>, vector<8x512xf32> -> vector<8x512xf32>
    %393 = arith.addf %390, %392 : vector<8x512xf32>
    %394 = vector.extract_strided_slice %393 {offsets = [0, 0], sizes = [8, 128], strides = [1, 1]} : vector<8x512xf32> to vector<8x128xf32>
    %395 = arith.negf %394 : vector<8x128xf32>
    %396 = math.exp %395 : vector<8x128xf32>
    %cst_180 = arith.constant 1.000000e+00 : f32
    %397 = vector.broadcast %cst_180 : f32 to vector<8x128xf32>
    %398 = arith.addf %397, %396 : vector<8x128xf32>
    %399 = arith.divf %397, %398 : vector<8x128xf32>
    %400 = vector.extract_strided_slice %393 {offsets = [0, 128], sizes = [8, 128], strides = [1, 1]} : vector<8x512xf32> to vector<8x128xf32>
    %401 = arith.negf %400 : vector<8x128xf32>
    %402 = math.exp %401 : vector<8x128xf32>
    %cst_181 = arith.constant 1.000000e+00 : f32
    %403 = vector.broadcast %cst_181 : f32 to vector<8x128xf32>
    %404 = arith.addf %403, %402 : vector<8x128xf32>
    %405 = arith.divf %403, %404 : vector<8x128xf32>
    %406 = vector.extract_strided_slice %393 {offsets = [0, 256], sizes = [8, 128], strides = [1, 1]} : vector<8x512xf32> to vector<8x128xf32>
    %407 = math.tanh %406 : vector<8x128xf32>
    %408 = vector.extract_strided_slice %393 {offsets = [0, 384], sizes = [8, 128], strides = [1, 1]} : vector<8x512xf32> to vector<8x128xf32>
    %409 = arith.negf %408 : vector<8x128xf32>
    %410 = math.exp %409 : vector<8x128xf32>
    %cst_182 = arith.constant 1.000000e+00 : f32
    %411 = vector.broadcast %cst_182 : f32 to vector<8x128xf32>
    %412 = arith.addf %411, %410 : vector<8x128xf32>
    %413 = arith.divf %411, %412 : vector<8x128xf32>
    %414 = arith.mulf %405, %385 : vector<8x128xf32>
    %415 = arith.mulf %399, %407 : vector<8x128xf32>
    %416 = arith.addf %414, %415 : vector<8x128xf32>
    %417 = math.tanh %416 : vector<8x128xf32>
    %418 = arith.mulf %413, %417 : vector<8x128xf32>
    %c32_183 = arith.constant 32 : index
    %c0_184 = arith.constant 0 : index
    %419 = vector.load %arg15[%c32_183, %c0_184] : memref<64x512xf32, #tpu.memory_space<vmem>>, vector<8x512xf32>
    %c24_185 = arith.constant 24 : index
    %c0_186 = arith.constant 0 : index
    %420 = vector.load %arg16[%c24_185, %c0_186] : memref<64x512xf32, #tpu.memory_space<vmem>>, vector<8x512xf32>
    %421 = arith.addf %419, %420 : vector<8x512xf32>
    %c0_187 = arith.constant 0 : index
    %c0_188 = arith.constant 0 : index
    %422 = vector.load %arg9[%c0_187, %c0_188] : memref<128x512xf32, #tpu.memory_space<vmem>>, vector<128x512xf32>
    %cst_189 = arith.constant dense<0.000000e+00> : vector<8x512xf32>
    %423 = tpu.matmul %418, %422, %cst_189 {dimension_numbers = #tpu.dot_dimension_numbers<[1], [0], [0], [1], [0, 0, 1, 1], [], []>} : vector<8x128xf32>, vector<128x512xf32>, vector<8x512xf32> -> vector<8x512xf32>
    %424 = arith.addf %421, %423 : vector<8x512xf32>
    %425 = vector.extract_strided_slice %424 {offsets = [0, 0], sizes = [8, 128], strides = [1, 1]} : vector<8x512xf32> to vector<8x128xf32>
    %426 = arith.negf %425 : vector<8x128xf32>
    %427 = math.exp %426 : vector<8x128xf32>
    %cst_190 = arith.constant 1.000000e+00 : f32
    %428 = vector.broadcast %cst_190 : f32 to vector<8x128xf32>
    %429 = arith.addf %428, %427 : vector<8x128xf32>
    %430 = arith.divf %428, %429 : vector<8x128xf32>
    %431 = vector.extract_strided_slice %424 {offsets = [0, 128], sizes = [8, 128], strides = [1, 1]} : vector<8x512xf32> to vector<8x128xf32>
    %432 = arith.negf %431 : vector<8x128xf32>
    %433 = math.exp %432 : vector<8x128xf32>
    %cst_191 = arith.constant 1.000000e+00 : f32
    %434 = vector.broadcast %cst_191 : f32 to vector<8x128xf32>
    %435 = arith.addf %434, %433 : vector<8x128xf32>
    %436 = arith.divf %434, %435 : vector<8x128xf32>
    %437 = vector.extract_strided_slice %424 {offsets = [0, 256], sizes = [8, 128], strides = [1, 1]} : vector<8x512xf32> to vector<8x128xf32>
    %438 = math.tanh %437 : vector<8x128xf32>
    %439 = vector.extract_strided_slice %424 {offsets = [0, 384], sizes = [8, 128], strides = [1, 1]} : vector<8x512xf32> to vector<8x128xf32>
    %440 = arith.negf %439 : vector<8x128xf32>
    %441 = math.exp %440 : vector<8x128xf32>
    %cst_192 = arith.constant 1.000000e+00 : f32
    %442 = vector.broadcast %cst_192 : f32 to vector<8x128xf32>
    %443 = arith.addf %442, %441 : vector<8x128xf32>
    %444 = arith.divf %442, %443 : vector<8x128xf32>
    %445 = arith.mulf %436, %416 : vector<8x128xf32>
    %446 = arith.mulf %430, %438 : vector<8x128xf32>
    %447 = arith.addf %445, %446 : vector<8x128xf32>
    %448 = math.tanh %447 : vector<8x128xf32>
    %449 = arith.mulf %444, %448 : vector<8x128xf32>
    %c40_193 = arith.constant 40 : index
    %c0_194 = arith.constant 0 : index
    %450 = vector.load %arg15[%c40_193, %c0_194] : memref<64x512xf32, #tpu.memory_space<vmem>>, vector<8x512xf32>
    %c16_195 = arith.constant 16 : index
    %c0_196 = arith.constant 0 : index
    %451 = vector.load %arg16[%c16_195, %c0_196] : memref<64x512xf32, #tpu.memory_space<vmem>>, vector<8x512xf32>
    %452 = arith.addf %450, %451 : vector<8x512xf32>
    %c0_197 = arith.constant 0 : index
    %c0_198 = arith.constant 0 : index
    %453 = vector.load %arg9[%c0_197, %c0_198] : memref<128x512xf32, #tpu.memory_space<vmem>>, vector<128x512xf32>
    %cst_199 = arith.constant dense<0.000000e+00> : vector<8x512xf32>
    %454 = tpu.matmul %449, %453, %cst_199 {dimension_numbers = #tpu.dot_dimension_numbers<[1], [0], [0], [1], [0, 0, 1, 1], [], []>} : vector<8x128xf32>, vector<128x512xf32>, vector<8x512xf32> -> vector<8x512xf32>
    %455 = arith.addf %452, %454 : vector<8x512xf32>
    %456 = vector.extract_strided_slice %455 {offsets = [0, 0], sizes = [8, 128], strides = [1, 1]} : vector<8x512xf32> to vector<8x128xf32>
    %457 = arith.negf %456 : vector<8x128xf32>
    %458 = math.exp %457 : vector<8x128xf32>
    %cst_200 = arith.constant 1.000000e+00 : f32
    %459 = vector.broadcast %cst_200 : f32 to vector<8x128xf32>
    %460 = arith.addf %459, %458 : vector<8x128xf32>
    %461 = arith.divf %459, %460 : vector<8x128xf32>
    %462 = vector.extract_strided_slice %455 {offsets = [0, 128], sizes = [8, 128], strides = [1, 1]} : vector<8x512xf32> to vector<8x128xf32>
    %463 = arith.negf %462 : vector<8x128xf32>
    %464 = math.exp %463 : vector<8x128xf32>
    %cst_201 = arith.constant 1.000000e+00 : f32
    %465 = vector.broadcast %cst_201 : f32 to vector<8x128xf32>
    %466 = arith.addf %465, %464 : vector<8x128xf32>
    %467 = arith.divf %465, %466 : vector<8x128xf32>
    %468 = vector.extract_strided_slice %455 {offsets = [0, 256], sizes = [8, 128], strides = [1, 1]} : vector<8x512xf32> to vector<8x128xf32>
    %469 = math.tanh %468 : vector<8x128xf32>
    %470 = vector.extract_strided_slice %455 {offsets = [0, 384], sizes = [8, 128], strides = [1, 1]} : vector<8x512xf32> to vector<8x128xf32>
    %471 = arith.negf %470 : vector<8x128xf32>
    %472 = math.exp %471 : vector<8x128xf32>
    %cst_202 = arith.constant 1.000000e+00 : f32
    %473 = vector.broadcast %cst_202 : f32 to vector<8x128xf32>
    %474 = arith.addf %473, %472 : vector<8x128xf32>
    %475 = arith.divf %473, %474 : vector<8x128xf32>
    %476 = arith.mulf %467, %447 : vector<8x128xf32>
    %477 = arith.mulf %461, %469 : vector<8x128xf32>
    %478 = arith.addf %476, %477 : vector<8x128xf32>
    %479 = math.tanh %478 : vector<8x128xf32>
    %480 = arith.mulf %475, %479 : vector<8x128xf32>
    %c48_203 = arith.constant 48 : index
    %c0_204 = arith.constant 0 : index
    %481 = vector.load %arg15[%c48_203, %c0_204] : memref<64x512xf32, #tpu.memory_space<vmem>>, vector<8x512xf32>
    %c8_205 = arith.constant 8 : index
    %c0_206 = arith.constant 0 : index
    %482 = vector.load %arg16[%c8_205, %c0_206] : memref<64x512xf32, #tpu.memory_space<vmem>>, vector<8x512xf32>
    %483 = arith.addf %481, %482 : vector<8x512xf32>
    %c0_207 = arith.constant 0 : index
    %c0_208 = arith.constant 0 : index
    %484 = vector.load %arg9[%c0_207, %c0_208] : memref<128x512xf32, #tpu.memory_space<vmem>>, vector<128x512xf32>
    %cst_209 = arith.constant dense<0.000000e+00> : vector<8x512xf32>
    %485 = tpu.matmul %480, %484, %cst_209 {dimension_numbers = #tpu.dot_dimension_numbers<[1], [0], [0], [1], [0, 0, 1, 1], [], []>} : vector<8x128xf32>, vector<128x512xf32>, vector<8x512xf32> -> vector<8x512xf32>
    %486 = arith.addf %483, %485 : vector<8x512xf32>
    %487 = vector.extract_strided_slice %486 {offsets = [0, 0], sizes = [8, 128], strides = [1, 1]} : vector<8x512xf32> to vector<8x128xf32>
    %488 = arith.negf %487 : vector<8x128xf32>
    %489 = math.exp %488 : vector<8x128xf32>
    %cst_210 = arith.constant 1.000000e+00 : f32
    %490 = vector.broadcast %cst_210 : f32 to vector<8x128xf32>
    %491 = arith.addf %490, %489 : vector<8x128xf32>
    %492 = arith.divf %490, %491 : vector<8x128xf32>
    %493 = vector.extract_strided_slice %486 {offsets = [0, 128], sizes = [8, 128], strides = [1, 1]} : vector<8x512xf32> to vector<8x128xf32>
    %494 = arith.negf %493 : vector<8x128xf32>
    %495 = math.exp %494 : vector<8x128xf32>
    %cst_211 = arith.constant 1.000000e+00 : f32
    %496 = vector.broadcast %cst_211 : f32 to vector<8x128xf32>
    %497 = arith.addf %496, %495 : vector<8x128xf32>
    %498 = arith.divf %496, %497 : vector<8x128xf32>
    %499 = vector.extract_strided_slice %486 {offsets = [0, 256], sizes = [8, 128], strides = [1, 1]} : vector<8x512xf32> to vector<8x128xf32>
    %500 = math.tanh %499 : vector<8x128xf32>
    %501 = vector.extract_strided_slice %486 {offsets = [0, 384], sizes = [8, 128], strides = [1, 1]} : vector<8x512xf32> to vector<8x128xf32>
    %502 = arith.negf %501 : vector<8x128xf32>
    %503 = math.exp %502 : vector<8x128xf32>
    %cst_212 = arith.constant 1.000000e+00 : f32
    %504 = vector.broadcast %cst_212 : f32 to vector<8x128xf32>
    %505 = arith.addf %504, %503 : vector<8x128xf32>
    %506 = arith.divf %504, %505 : vector<8x128xf32>
    %507 = arith.mulf %498, %478 : vector<8x128xf32>
    %508 = arith.mulf %492, %500 : vector<8x128xf32>
    %509 = arith.addf %507, %508 : vector<8x128xf32>
    %510 = math.tanh %509 : vector<8x128xf32>
    %511 = arith.mulf %506, %510 : vector<8x128xf32>
    %c56_213 = arith.constant 56 : index
    %c0_214 = arith.constant 0 : index
    %512 = vector.load %arg15[%c56_213, %c0_214] : memref<64x512xf32, #tpu.memory_space<vmem>>, vector<8x512xf32>
    %c0_215 = arith.constant 0 : index
    %c0_216 = arith.constant 0 : index
    %513 = vector.load %arg16[%c0_215, %c0_216] : memref<64x512xf32, #tpu.memory_space<vmem>>, vector<8x512xf32>
    %514 = arith.addf %512, %513 : vector<8x512xf32>
    %c0_217 = arith.constant 0 : index
    %c0_218 = arith.constant 0 : index
    %515 = vector.load %arg9[%c0_217, %c0_218] : memref<128x512xf32, #tpu.memory_space<vmem>>, vector<128x512xf32>
    %cst_219 = arith.constant dense<0.000000e+00> : vector<8x512xf32>
    %516 = tpu.matmul %511, %515, %cst_219 {dimension_numbers = #tpu.dot_dimension_numbers<[1], [0], [0], [1], [0, 0, 1, 1], [], []>} : vector<8x128xf32>, vector<128x512xf32>, vector<8x512xf32> -> vector<8x512xf32>
    %517 = arith.addf %514, %516 : vector<8x512xf32>
    %518 = vector.extract_strided_slice %517 {offsets = [0, 0], sizes = [8, 128], strides = [1, 1]} : vector<8x512xf32> to vector<8x128xf32>
    %519 = arith.negf %518 : vector<8x128xf32>
    %520 = math.exp %519 : vector<8x128xf32>
    %cst_220 = arith.constant 1.000000e+00 : f32
    %521 = vector.broadcast %cst_220 : f32 to vector<8x128xf32>
    %522 = arith.addf %521, %520 : vector<8x128xf32>
    %523 = arith.divf %521, %522 : vector<8x128xf32>
    %524 = vector.extract_strided_slice %517 {offsets = [0, 128], sizes = [8, 128], strides = [1, 1]} : vector<8x512xf32> to vector<8x128xf32>
    %525 = arith.negf %524 : vector<8x128xf32>
    %526 = math.exp %525 : vector<8x128xf32>
    %cst_221 = arith.constant 1.000000e+00 : f32
    %527 = vector.broadcast %cst_221 : f32 to vector<8x128xf32>
    %528 = arith.addf %527, %526 : vector<8x128xf32>
    %529 = arith.divf %527, %528 : vector<8x128xf32>
    %530 = vector.extract_strided_slice %517 {offsets = [0, 256], sizes = [8, 128], strides = [1, 1]} : vector<8x512xf32> to vector<8x128xf32>
    %531 = math.tanh %530 : vector<8x128xf32>
    %532 = vector.extract_strided_slice %517 {offsets = [0, 384], sizes = [8, 128], strides = [1, 1]} : vector<8x512xf32> to vector<8x128xf32>
    %533 = arith.negf %532 : vector<8x128xf32>
    %534 = math.exp %533 : vector<8x128xf32>
    %cst_222 = arith.constant 1.000000e+00 : f32
    %535 = vector.broadcast %cst_222 : f32 to vector<8x128xf32>
    %536 = arith.addf %535, %534 : vector<8x128xf32>
    %537 = arith.divf %535, %536 : vector<8x128xf32>
    %538 = arith.mulf %529, %509 : vector<8x128xf32>
    %539 = arith.mulf %523, %531 : vector<8x128xf32>
    %540 = arith.addf %538, %539 : vector<8x128xf32>
    %541 = math.tanh %540 : vector<8x128xf32>
    %542 = arith.mulf %537, %541 : vector<8x128xf32>
    %c0_223 = arith.constant 0 : index
    %c0_224 = arith.constant 0 : index
    %543 = vector.load %arg11[%c0_223, %c0_224] : memref<128x10xf32, #tpu.memory_space<vmem>>, vector<128x10xf32>
    %cst_225 = arith.constant dense<0.000000e+00> : vector<8x10xf32>
    %544 = tpu.matmul %542, %543, %cst_225 {dimension_numbers = #tpu.dot_dimension_numbers<[1], [0], [0], [1], [0, 0, 1, 1], [], []>} : vector<8x128xf32>, vector<128x10xf32>, vector<8x10xf32> -> vector<8x10xf32>
    %c0_226 = arith.constant 0 : index
    %c0_227 = arith.constant 0 : index
    %545 = vector.load %arg12[%c0_226, %c0_227] : memref<128x10xf32, #tpu.memory_space<vmem>>, vector<128x10xf32>
    %cst_228 = arith.constant dense<0.000000e+00> : vector<8x10xf32>
    %546 = tpu.matmul %325, %545, %cst_228 {dimension_numbers = #tpu.dot_dimension_numbers<[1], [0], [0], [1], [0, 0, 1, 1], [], []>} : vector<8x128xf32>, vector<128x10xf32>, vector<8x10xf32> -> vector<8x10xf32>
    %547 = arith.addf %544, %546 : vector<8x10xf32>
    %c0_229 = arith.constant 0 : index
    %c0_230 = arith.constant 0 : index
    %548 = vector.load %arg13[%c0_229, %c0_230] : memref<1x10xf32, #tpu.memory_space<vmem>>, vector<1x10xf32>
    %549 = vector.broadcast %548 : vector<1x10xf32> to vector<8x10xf32>
    %550 = arith.addf %547, %549 : vector<8x10xf32>
    %551 = vector.extract_strided_slice %550 {offsets = [0, 0], sizes = [2, 10], strides = [1, 1]} : vector<8x10xf32> to vector<2x10xf32>
    %c0_231 = arith.constant 0 : index
    %c0_232 = arith.constant 0 : index
    %552 = vector.load %arg14[%c0_231, %c0_232] : memref<2x10xf32, #tpu.memory_space<vmem>>, vector<2x10xf32>
    tpu.vector_store %arg14[%c0_231, %c0_232], %551 {strides = array<i32>} : memref<2x10xf32, #tpu.memory_space<vmem>>, vector<2x10xf32>,
    return
  }
}

</mosaic_0001>

<llo_original>
// kernel: lstm_model_forward.1
$region0: #{lstm_model_forward.1}
  #allocation0 [shape = 'u32[]', space=smem, size = 0x4, offset = 0x4, fixed_abs, tag = 'smem constant byte address 0x4 - core index']
  #allocation1 [shape = 'u32[144,128]{1,0:T(1,128)}', space=vmem, size = 0x12000, scoped, tag = 'internal scratch']
  #allocation2 [shape = 'f32[64,512]{1,0:T(8,128)}', space=vmem, size = 0x20000, scoped, tag = 'scratch operand']
  #allocation3 [shape = 'f32[64,512]{1,0:T(8,128)}', space=vmem, size = 0x20000, scoped, tag = 'scratch operand']
  #allocation4 [shape = 'f32[64,128]{1,0:T(8,128)}', space=vmem, size = 0x8000, scoped, tag = 'scratch operand']
  #allocation5 [shape = 'f32[64,128]{1,0:T(8,128)}', space=vmem, size = 0x8000, scoped, tag = 'scratch operand']
  %s0 = inlined_call_operand.vmem [shape: f32[64,16], index: 0, kind: input, shape index: {}]
  %s1 = inlined_call_operand.vmem [shape: f32[16,512], index: 1, kind: input, shape index: {}]
  %s2 = inlined_call_operand.vmem [shape: f32[16,512], index: 2, kind: input, shape index: {}]
  %s3 = inlined_call_operand.hbm [shape: f32[128,512], index: 3, kind: input, shape index: {}]
  %s4 = inlined_call_operand.vmem [shape: f32[1,512], index: 4, kind: input, shape index: {}]
  %s5 = inlined_call_operand.hbm [shape: f32[128,512], index: 5, kind: input, shape index: {}]
  %s6 = inlined_call_operand.hbm [shape: f32[128,512], index: 6, kind: input, shape index: {}]
  %s7 = inlined_call_operand.hbm [shape: f32[128,512], index: 7, kind: input, shape index: {}]
  %s8 = inlined_call_operand.hbm [shape: f32[128,512], index: 8, kind: input, shape index: {}]
  %s9 = inlined_call_operand.hbm [shape: f32[128,512], index: 9, kind: input, shape index: {}]
  %s10 = inlined_call_operand.vmem [shape: f32[1,512], index: 10, kind: input, shape index: {}]
  %s11 = inlined_call_operand.vmem [shape: f32[128,10], index: 11, kind: input, shape index: {}]
  %s12 = inlined_call_operand.vmem [shape: f32[128,10], index: 12, kind: input, shape index: {}]
  %s13 = inlined_call_operand.vmem [shape: f32[1,10], index: 13, kind: input, shape index: {}]
  %s14 = inlined_call_operand.hbm [shape: f32[2,10], index: 14, kind: output, shape index: {}]
  %s15 = sld [smem:[#allocation0]]
  $region90: #{lstm_model_forward.1} parent=0
    _
  %s17 = ssub.s32 1, %s15
  %s18 = scalar_select 0, %s17, %s15
  $region1: #{lstm_model_forward.1} parent=0
    #allocation6 [shape = 'u8[262144]{0}', space=vmem, size = 0x40000, scoped, tag = 'input window, operand 3, single buffered']
    #allocation7 [shape = 's32[1]{0}', space=sflag, size = 0x4, scoped, tag = 'scoped memory for lstm_model_forward.1']
    #allocation8 [shape = 's32[1]{0}', space=sflag, size = 0x4, scoped, tag = 'scoped memory for lstm_model_forward.1']
    #allocation9 [shape = 'u8[262144]{0}', space=vmem, size = 0x40000, scoped, tag = 'input window, operand 5, single buffered']
    #allocation10 [shape = 's32[1]{0}', space=sflag, size = 0x4, scoped, tag = 'scoped memory for lstm_model_forward.1']
    #allocation11 [shape = 'u8[262144]{0}', space=vmem, size = 0x40000, scoped, tag = 'input window, operand 6, single buffered']
    #allocation12 [shape = 'u8[262144]{0}', space=vmem, size = 0x40000, scoped, tag = 'input window, operand 7, single buffered']
    #allocation13 [shape = 's32[1]{0}', space=sflag, size = 0x4, scoped, tag = 'scoped memory for lstm_model_forward.1']
    #allocation14 [shape = 'u8[262144]{0}', space=vmem, size = 0x40000, scoped, tag = 'input window, operand 8, single buffered']
    #allocation15 [shape = 'u8[262144]{0}', space=vmem, size = 0x40000, scoped, tag = 'input window, operand 9, single buffered']
    #allocation16 [shape = 's32[1]{0}', space=sflag, size = 0x4, scoped, tag = 'scoped memory for lstm_model_forward.1']
    #allocation17 [shape = 'u8[1024]{0}', space=vmem, size = 0x400, scoped, tag = 'output window, operand 0, single buffered']
    %19 = vsyncpa [#allocation7], 0
    %20 = vsyncpa [#allocation10], 0
    %21 = vsyncpa [#allocation13], 0
    %22 = vsyncpa [#allocation16], 0
    %23 = vsyncpa [#allocation8], 0
    // Predicated region
    $region2: #{lstm_model_forward.1} parent=1 // pred_check
      _
    $region3: #{lstm_model_forward.1} parent=1 // pred_check_branch
      %25 = sbr.rel (0) target = $region5
    $region4: #{lstm_model_forward.1} parent=1 // pred_region
      _
    $region5: #{lstm_model_forward.1} parent=1 // pred_fallthru
      _
    // Predicated region
    $region6: #{lstm_model_forward.1} parent=1 // pred_check
      _
    $region7: #{lstm_model_forward.1} parent=1 // pred_check_branch
      %27 = sbr.rel (0) target = $region9
    $region8: #{lstm_model_forward.1} parent=1 // pred_region
      _
    $region9: #{lstm_model_forward.1} parent=1 // pred_fallthru
      _
    // Predicated region
    $region10: #{lstm_model_forward.1} parent=1 // pred_check
      _
    $region11: #{lstm_model_forward.1} parent=1 // pred_check_branch
      %29 = sbr.rel (0) target = $region13
    $region12: #{lstm_model_forward.1} parent=1 // pred_region
      _
    $region13: #{lstm_model_forward.1} parent=1 // pred_fallthru
      _
    // Predicated region
    $region14: #{lstm_model_forward.1} parent=1 // pred_check
      _
    $region15: #{lstm_model_forward.1} parent=1 // pred_check_branch
      %31 = sbr.rel (0) target = $region17
    $region16: #{lstm_model_forward.1} parent=1 // pred_region
      %s33 = ssub.s32 8192, 8192
      %34 = vsyncadd [#allocation7], %s33
      %s35 = sshll.u32 [#allocation6], 4
      %s36 = int_to_ptr.vmem [resolvable:$true] %s35
      %41 = dma.hbm_to_vmem [thread:$0]  %s3, 8192, %s36, [#allocation7], 512, 512, 32
    $region17: #{lstm_model_forward.1} parent=1 // pred_fallthru
      _
    // Predicated region
    $region18: #{lstm_model_forward.1} parent=1 // pred_check
      _
    $region19: #{lstm_model_forward.1} parent=1 // pred_check_branch
      %43 = sbr.rel (0) target = $region21
    $region20: #{lstm_model_forward.1} parent=1 // pred_region
      _
    $region21: #{lstm_model_forward.1} parent=1 // pred_fallthru
      _
    // Predicated region
    $region22: #{lstm_model_forward.1} parent=1 // pred_check
      _
    $region23: #{lstm_model_forward.1} parent=1 // pred_check_branch
      %45 = sbr.rel (0) target = $region25
    $region24: #{lstm_model_forward.1} parent=1 // pred_region
      %s47 = ssub.s32 8192, 8192
      %48 = vsyncadd [#allocation10], %s47
      %s49 = sshll.u32 [#allocation9], 4
      %s50 = int_to_ptr.vmem [resolvable:$true] %s49
      %55 = dma.hbm_to_vmem [thread:$0]  %s5, 8192, %s50, [#allocation10], 512, 512, 32
    $region25: #{lstm_model_forward.1} parent=1 // pred_fallthru
      _
    // Predicated region
    $region26: #{lstm_model_forward.1} parent=1 // pred_check
      _
    $region27: #{lstm_model_forward.1} parent=1 // pred_check_branch
      %57 = sbr.rel (0) target = $region29
    $region28: #{lstm_model_forward.1} parent=1 // pred_region
      %s59 = ssub.s32 8192, 8192
      %60 = vsyncadd [#allocation10], %s59
      %s61 = sshll.u32 [#allocation11], 4
      %s62 = int_to_ptr.vmem [resolvable:$true] %s61
      %67 = dma.hbm_to_vmem [thread:$0]  %s6, 8192, %s62, [#allocation10], 512, 512, 32
    $region29: #{lstm_model_forward.1} parent=1 // pred_fallthru
      _
    // Predicated region
    $region30: #{lstm_model_forward.1} parent=1 // pred_check
      _
    $region31: #{lstm_model_forward.1} parent=1 // pred_check_branch
      %69 = sbr.rel (0) target = $region33
    $region32: #{lstm_model_forward.1} parent=1 // pred_region
      %s71 = ssub.s32 8192, 8192
      %72 = vsyncadd [#allocation13], %s71
      %s73 = sshll.u32 [#allocation12], 4
      %s74 = int_to_ptr.vmem [resolvable:$true] %s73
      %79 = dma.hbm_to_vmem [thread:$0]  %s7, 8192, %s74, [#allocation13], 512, 512, 32
    $region33: #{lstm_model_forward.1} parent=1 // pred_fallthru
      _
    // Predicated region
    $region34: #{lstm_model_forward.1} parent=1 // pred_check
      _
    $region35: #{lstm_model_forward.1} parent=1 // pred_check_branch
      %81 = sbr.rel (0) target = $region37
    $region36: #{lstm_model_forward.1} parent=1 // pred_region
      %s83 = ssub.s32 8192, 8192
      %84 = vsyncadd [#allocation13], %s83
      %s85 = sshll.u32 [#allocation14], 4
      %s86 = int_to_ptr.vmem [resolvable:$true] %s85
      %91 = dma.hbm_to_vmem [thread:$0]  %s8, 8192, %s86, [#allocation13], 512, 512, 32
    $region37: #{lstm_model_forward.1} parent=1 // pred_fallthru
      _
    // Predicated region
    $region38: #{lstm_model_forward.1} parent=1 // pred_check
      _
    $region39: #{lstm_model_forward.1} parent=1 // pred_check_branch
      %93 = sbr.rel (0) target = $region41
    $region40: #{lstm_model_forward.1} parent=1 // pred_region
      %s95 = ssub.s32 8192, 8192
      %96 = vsyncadd [#allocation16], %s95
      %s97 = sshll.u32 [#allocation15], 4
      %s98 = int_to_ptr.vmem [resolvable:$true] %s97
      %103 = dma.hbm_to_vmem [thread:$0]  %s9, 8192, %s98, [#allocation16], 512, 512, 32
    $region41: #{lstm_model_forward.1} parent=1 // pred_fallthru
      _
    // Predicated region
    $region42: #{lstm_model_forward.1} parent=1 // pred_check
      _
    $region43: #{lstm_model_forward.1} parent=1 // pred_check_branch
      %105 = sbr.rel (0) target = $region45
    $region44: #{lstm_model_forward.1} parent=1 // pred_region
      _
    $region45: #{lstm_model_forward.1} parent=1 // pred_fallthru
      _
    // Predicated region
    $region46: #{lstm_model_forward.1} parent=1 // pred_check
      _
    $region47: #{lstm_model_forward.1} parent=1 // pred_check_branch
      %107 = sbr.rel (0) target = $region49
    $region48: #{lstm_model_forward.1} parent=1 // pred_region
      _
    $region49: #{lstm_model_forward.1} parent=1 // pred_fallthru
      _
    // Predicated region
    $region50: #{lstm_model_forward.1} parent=1 // pred_check
      _
    $region51: #{lstm_model_forward.1} parent=1 // pred_check_branch
      %109 = sbr.rel (0) target = $region53
    $region52: #{lstm_model_forward.1} parent=1 // pred_region
      _
    $region53: #{lstm_model_forward.1} parent=1 // pred_fallthru
      _
    // Predicated region
    $region54: #{lstm_model_forward.1} parent=1 // pred_check
      _
    $region55: #{lstm_model_forward.1} parent=1 // pred_check_branch
      %111 = sbr.rel (0) target = $region57
    $region56: #{lstm_model_forward.1} parent=1 // pred_region
      _
    $region57: #{lstm_model_forward.1} parent=1 // pred_fallthru
      _
    // Predicated region
    $region58: #{lstm_model_forward.1} parent=1 // pred_check
      _
    $region59: #{lstm_model_forward.1} parent=1 // pred_check_branch
      %113 = sbr.rel (0) target = $region61
    $region60: #{lstm_model_forward.1} parent=1 // pred_region
      %114 = dma.done [#allocation7], 8192
    $region61: #{lstm_model_forward.1} parent=1 // pred_fallthru
      _
    // Predicated region
    $region62: #{lstm_model_forward.1} parent=1 // pred_check
      _
    $region63: #{lstm_model_forward.1} parent=1 // pred_check_branch
      %116 = sbr.rel (0) target = $region65
    $region64: #{lstm_model_forward.1} parent=1 // pred_region
      %117 = dma.done [#allocation10], 8192
    $region65: #{lstm_model_forward.1} parent=1 // pred_fallthru
      _
    // Predicated region
    $region66: #{lstm_model_forward.1} parent=1 // pred_check
      _
    $region67: #{lstm_model_forward.1} parent=1 // pred_check_branch
      %119 = sbr.rel (0) target = $region69
    $region68: #{lstm_model_forward.1} parent=1 // pred_region
      %120 = dma.done [#allocation10], 8192
    $region69: #{lstm_model_forward.1} parent=1 // pred_fallthru
      _
    // Predicated region
    $region70: #{lstm_model_forward.1} parent=1 // pred_check
      _
    $region71: #{lstm_model_forward.1} parent=1 // pred_check_branch
      %122 = sbr.rel (0) target = $region73
    $region72: #{lstm_model_forward.1} parent=1 // pred_region
      %123 = dma.done [#allocation13], 8192
    $region73: #{lstm_model_forward.1} parent=1 // pred_fallthru
      _
    // Predicated region
    $region74: #{lstm_model_forward.1} parent=1 // pred_check
      _
    $region75: #{lstm_model_forward.1} parent=1 // pred_check_branch
      %125 = sbr.rel (0) target = $region77
    $region76: #{lstm_model_forward.1} parent=1 // pred_region
      %126 = dma.done [#allocation13], 8192
    $region77: #{lstm_model_forward.1} parent=1 // pred_fallthru
      _
    // Predicated region
    $region78: #{lstm_model_forward.1} parent=1 // pred_check
      _
    $region79: #{lstm_model_forward.1} parent=1 // pred_check_branch
      %128 = sbr.rel (0) target = $region81
    $region80: #{lstm_model_forward.1} parent=1 // pred_region
      %129 = dma.done [#allocation16], 8192
    $region81: #{lstm_model_forward.1} parent=1 // pred_fallthru
      _
    %v130 = vld [vmem:[%s0] sm:$0xff]
    %v131 = vld [vmem:[%s0 + $0x8] sm:$0xff]
    %v132 = vld [vmem:[%s0 + $0x10] sm:$0xff]
    %v133 = vld [vmem:[%s0 + $0x18] sm:$0xff]
    %v134 = vld [vmem:[%s0 + $0x20] sm:$0xff]
    %v135 = vld [vmem:[%s0 + $0x28] sm:$0xff]
    %v136 = vld [vmem:[%s0 + $0x30] sm:$0xff]
    %v137 = vld [vmem:[%s0 + $0x38] sm:$0xff]
    %v138 = vld [vmem:[%s1] sm:$0xff]
    %v139 = vld [vmem:[%s1 + $0x8] sm:$0xff]
    %v140 = vld [vmem:[%s1 + $0x10] sm:$0xff]
    %v141 = vld [vmem:[%s1 + $0x18] sm:$0xff]
    %v142 = vld [vmem:[%s1 + $0x20] sm:$0xff]
    %v143 = vld [vmem:[%s1 + $0x28] sm:$0xff]
    %v144 = vld [vmem:[%s1 + $0x30] sm:$0xff]
    %v145 = vld [vmem:[%s1 + $0x38] sm:$0xff]
    %v146 = vld [vmem:[%s4] sm:$0xf]
    %v148 = vlaneseq
    %v149 = vshrl.u32 %v148, 7
    %v150 = vsub.s32 0, %v149
    %v151 = vrot.slane %v146, %v150
    %v152 = vlaneseq
    %v153 = vshrl.u32 %v152, 7
    %v154 = vsub.s32 1, %v153
    %v155 = vrot.slane %v146, %v154
    %v156 = vlaneseq
    %v157 = vshrl.u32 %v156, 7
    %v158 = vsub.s32 2, %v157
    %v159 = vrot.slane %v146, %v158
    %v160 = vlaneseq
    %v161 = vshrl.u32 %v160, 7
    %v162 = vsub.s32 3, %v161
    %v163 = vrot.slane %v146, %v162
    %vm168 = vcmask 130048
    %v170 = vsel %vm168, %v130, 0
    %v173 = vsel %vm168, %v131, 0
    %v176 = vsel %vm168, %v132, 0
    %v179 = vsel %vm168, %v133, 0
    %v182 = vsel %vm168, %v134, 0
    %v185 = vsel %vm168, %v135, 0
    %v188 = vsel %vm168, %v136, 0
    %v191 = vsel %vm168, %v137, 0
    %193 = vmatprep.subr.mxu0 %v139
    %194 = vmatpush1.msra.mxu0 %v138
    %195 = vmatprep.subr.mxu0 %v143
    %196 = vmatpush1.msra.mxu0 %v142
    %197 = vmatprep.subr.mxu0 0.0
    %198 = vmatpush1.msra.mxu0 0.0
    %199 = vmatprep.subr.mxu0 0.0
    %200 = vmatpush1.msra.mxu0 0.0
    %201 = vmatprep.subr.mxu0 0.0
    %202 = vmatpush1.msra.mxu0 0.0
    %203 = vmatprep.subr.mxu0 0.0
    %204 = vmatpush1.msra.mxu0 0.0
    %205 = vmatprep.subr.mxu0 0.0
    %206 = vmatpush1.msra.mxu0 0.0
    %207 = vmatprep.subr.mxu0 0.0
    %208 = vmatpush1.msra.mxu0 0.0
    %209 = vmatprep.subr.mxu0 0.0
    %210 = vmatpush1.msra.mxu0 0.0
    %211 = vmatprep.subr.mxu0 0.0
    %212 = vmatpush1.msra.mxu0 0.0
    %213 = vmatprep.subr.mxu0 0.0
    %214 = vmatpush1.msra.mxu0 0.0
    %215 = vmatprep.subr.mxu0 0.0
    %216 = vmatpush1.msra.mxu0 0.0
    %217 = vmatprep.subr.mxu0 0.0
    %218 = vmatpush1.msra.mxu0 0.0
    %219 = vmatprep.subr.mxu0 0.0
    %220 = vmatpush1.msra.mxu0 0.0
    %221 = vmatprep.subr.mxu0 0.0
    %222 = vmatpush1.msra.mxu0 0.0
    %223 = vmatprep.subr.mxu0 0.0
    %224 = vmatpush1.msra.mxu0 0.0
    %225 = vmatprep.subr.mxu0 0.0
    %226 = vmatpush1.msra.mxu0 0.0
    %227 = vmatprep.subr.mxu0 0.0
    %228 = vmatpush1.msra.mxu0 0.0
    %229 = vmatprep.subr.mxu0 0.0
    %230 = vmatpush1.msra.mxu0 0.0
    %231 = vmatprep.subr.mxu0 0.0
    %232 = vmatpush1.msra.mxu0 0.0
    %233 = vmatprep.subr.mxu0 0.0
    %234 = vmatpush1.msra.mxu0 0.0
    %235 = vmatprep.subr.mxu0 0.0
    %236 = vmatpush1.msra.mxu0 0.0
    %237 = vmatprep.subr.mxu0 0.0
    %238 = vmatpush1.msra.mxu0 0.0
    %239 = vmatprep.subr.mxu0 0.0
    %240 = vmatpush1.msra.mxu0 0.0
    %241 = vmatprep.subr.mxu0 0.0
    %242 = vmatpush1.msra.mxu0 0.0
    %243 = vmatprep.subr.mxu0 0.0
    %244 = vmatpush1.msra.mxu0 0.0
    %245 = vmatprep.subr.mxu0 0.0
    %246 = vmatpush1.msra.mxu0 0.0
    %247 = vmatprep.subr.mxu0 0.0
    %248 = vmatpush1.msra.mxu0 0.0
    %249 = vmatprep.subr.mxu0 0.0
    %250 = vmatpush1.msra.mxu0 0.0
    %251 = vmatprep.subr.mxu0 0.0
    %252 = vmatpush1.msra.mxu0 0.0
    %253 = vmatprep.subr.mxu0 0.0
    %254 = vmatpush1.msra.mxu0 0.0
    %255 = vmatprep.subr.mxu0 0.0
    %256 = vmatpush1.msra.mxu0 0.0
    %257 = vmatprep.mubr.f32.mxu0 0.0
    %258 = vmatmul.mubr.f32.gmra.mrb[0].mxu0 %v170
    %v259 = vpop.f32.mrb[0].mxu0
    %v260 = vadd.f32 %v151, %v259
    %v261 = vpop.f32.mrb[0].mxu0
    %v262 = vadd.f32 %v155, %v261
    %263 = vmatprep.mubr.f32.mxu0 0.0
    %264 = vmatmul.mubr.f32.gmra.mrb[0].mxu0 %v173
    %v265 = vpop.f32.mrb[0].mxu0
    %v266 = vadd.f32 %v151, %v265
    %v267 = vpop.f32.mrb[0].mxu0
    %v268 = vadd.f32 %v155, %v267
    %269 = vmatprep.mubr.f32.mxu0 0.0
    %270 = vmatmul.mubr.f32.gmra.mrb[0].mxu0 %v176
    %v271 = vpop.f32.mrb[0].mxu0
    %v272 = vadd.f32 %v151, %v271
    %v273 = vpop.f32.mrb[0].mxu0
    %v274 = vadd.f32 %v155, %v273
    %275 = vmatprep.mubr.f32.mxu0 0.0
    %276 = vmatmul.mubr.f32.gmra.mrb[0].mxu0 %v179
    %v277 = vpop.f32.mrb[0].mxu0
    %v278 = vadd.f32 %v151, %v277
    %v279 = vpop.f32.mrb[0].mxu0
    %v280 = vadd.f32 %v155, %v279
    %281 = vmatprep.mubr.f32.mxu0 0.0
    %282 = vmatmul.mubr.f32.gmra.mrb[0].mxu0 %v182
    %v283 = vpop.f32.mrb[0].mxu0
    %v284 = vadd.f32 %v151, %v283
    %v285 = vpop.f32.mrb[0].mxu0
    %v286 = vadd.f32 %v155, %v285
    %287 = vmatprep.mubr.f32.mxu0 0.0
    %288 = vmatmul.mubr.f32.gmra.mrb[0].mxu0 %v185
    %v289 = vpop.f32.mrb[0].mxu0
    %v290 = vadd.f32 %v151, %v289
    %v291 = vpop.f32.mrb[0].mxu0
    %v292 = vadd.f32 %v155, %v291
    %293 = vmatprep.mubr.f32.mxu0 0.0
    %294 = vmatmul.mubr.f32.gmra.mrb[0].mxu0 %v188
    %v295 = vpop.f32.mrb[0].mxu0
    %v296 = vadd.f32 %v151, %v295
    %v297 = vpop.f32.mrb[0].mxu0
    %v298 = vadd.f32 %v155, %v297
    %299 = vmatprep.mubr.f32.mxu0 0.0
    %300 = vmatmul.mubr.f32.gmra.mrb[0].mxu0 %v191
    %v301 = vpop.f32.mrb[0].mxu0
    %v302 = vadd.f32 %v151, %v301
    %v303 = vpop.f32.mrb[0].mxu0
    %v304 = vadd.f32 %v155, %v303
    %305 = vdwg.mxu0
    %306 = vmatprep.subr.mxu0 %v141
    %307 = vmatpush1.msra.mxu0 %v140
    %308 = vmatprep.subr.mxu0 %v145
    %309 = vmatpush1.msra.mxu0 %v144
    %310 = vmatprep.subr.mxu0 0.0
    %311 = vmatpush1.msra.mxu0 0.0
    %312 = vmatprep.subr.mxu0 0.0
    %313 = vmatpush1.msra.mxu0 0.0
    %314 = vmatprep.subr.mxu0 0.0
    %315 = vmatpush1.msra.mxu0 0.0
    %316 = vmatprep.subr.mxu0 0.0
    %317 = vmatpush1.msra.mxu0 0.0
    %318 = vmatprep.subr.mxu0 0.0
    %319 = vmatpush1.msra.mxu0 0.0
    %320 = vmatprep.subr.mxu0 0.0
    %321 = vmatpush1.msra.mxu0 0.0
    %322 = vmatprep.subr.mxu0 0.0
    %323 = vmatpush1.msra.mxu0 0.0
    %324 = vmatprep.subr.mxu0 0.0
    %325 = vmatpush1.msra.mxu0 0.0
    %326 = vmatprep.subr.mxu0 0.0
    %327 = vmatpush1.msra.mxu0 0.0
    %328 = vmatprep.subr.mxu0 0.0
    %329 = vmatpush1.msra.mxu0 0.0
    %330 = vmatprep.subr.mxu0 0.0
    %331 = vmatpush1.msra.mxu0 0.0
    %332 = vmatprep.subr.mxu0 0.0
    %333 = vmatpush1.msra.mxu0 0.0
    %334 = vmatprep.subr.mxu0 0.0
    %335 = vmatpush1.msra.mxu0 0.0
    %336 = vmatprep.subr.mxu0 0.0
    %337 = vmatpush1.msra.mxu0 0.0
    %338 = vmatprep.subr.mxu0 0.0
    %339 = vmatpush1.msra.mxu0 0.0
    %340 = vmatprep.subr.mxu0 0.0
    %341 = vmatpush1.msra.mxu0 0.0
    %342 = vmatprep.subr.mxu0 0.0
    %343 = vmatpush1.msra.mxu0 0.0
    %344 = vmatprep.subr.mxu0 0.0
    %345 = vmatpush1.msra.mxu0 0.0
    %346 = vmatprep.subr.mxu0 0.0
    %347 = vmatpush1.msra.mxu0 0.0
    %348 = vmatprep.subr.mxu0 0.0
    %349 = vmatpush1.msra.mxu0 0.0
    %350 = vmatprep.subr.mxu0 0.0
    %351 = vmatpush1.msra.mxu0 0.0
    %352 = vmatprep.subr.mxu0 0.0
    %353 = vmatpush1.msra.mxu0 0.0
    %354 = vmatprep.subr.mxu0 0.0
    %355 = vmatpush1.msra.mxu0 0.0
    %356 = vmatprep.subr.mxu0 0.0
    %357 = vmatpush1.msra.mxu0 0.0
    %358 = vmatprep.subr.mxu0 0.0
    %359 = vmatpush1.msra.mxu0 0.0
    %360 = vmatprep.subr.mxu0 0.0
    %361 = vmatpush1.msra.mxu0 0.0
    %362 = vmatprep.subr.mxu0 0.0
    %363 = vmatpush1.msra.mxu0 0.0
    %364 = vmatprep.subr.mxu0 0.0
    %365 = vmatpush1.msra.mxu0 0.0
    %366 = vmatprep.subr.mxu0 0.0
    %367 = vmatpush1.msra.mxu0 0.0
    %368 = vmatprep.subr.mxu0 0.0
    %369 = vmatpush1.msra.mxu0 0.0
    %370 = vmatprep.mubr.f32.mxu0 0.0
    %371 = vmatmul.mubr.f32.gmra.mrb[0].mxu0 %v170
    %v372 = vpop.f32.mrb[0].mxu0
    %v373 = vadd.f32 %v159, %v372
    %v374 = vpop.f32.mrb[0].mxu0
    %v375 = vadd.f32 %v163, %v374
    %376 = vmatprep.mubr.f32.mxu0 0.0
    %377 = vmatmul.mubr.f32.gmra.mrb[0].mxu0 %v173
    %v378 = vpop.f32.mrb[0].mxu0
    %v379 = vadd.f32 %v159, %v378
    %v380 = vpop.f32.mrb[0].mxu0
    %v381 = vadd.f32 %v163, %v380
    %382 = vmatprep.mubr.f32.mxu0 0.0
    %383 = vmatmul.mubr.f32.gmra.mrb[0].mxu0 %v176
    %v384 = vpop.f32.mrb[0].mxu0
    %v385 = vadd.f32 %v159, %v384
    %v386 = vpop.f32.mrb[0].mxu0
    %v387 = vadd.f32 %v163, %v386
    %388 = vmatprep.mubr.f32.mxu0 0.0
    %389 = vmatmul.mubr.f32.gmra.mrb[0].mxu0 %v179
    %v390 = vpop.f32.mrb[0].mxu0
    %v391 = vadd.f32 %v159, %v390
    %v392 = vpop.f32.mrb[0].mxu0
    %v393 = vadd.f32 %v163, %v392
    %394 = vmatprep.mubr.f32.mxu0 0.0
    %395 = vmatmul.mubr.f32.gmra.mrb[0].mxu0 %v182
    %v396 = vpop.f32.mrb[0].mxu0
    %v397 = vadd.f32 %v159, %v396
    %v398 = vpop.f32.mrb[0].mxu0
    %v399 = vadd.f32 %v163, %v398
    %400 = vmatprep.mubr.f32.mxu0 0.0
    %401 = vmatmul.mubr.f32.gmra.mrb[0].mxu0 %v185
    %v402 = vpop.f32.mrb[0].mxu0
    %v403 = vadd.f32 %v159, %v402
    %v404 = vpop.f32.mrb[0].mxu0
    %v405 = vadd.f32 %v163, %v404
    %406 = vmatprep.mubr.f32.mxu0 0.0
    %407 = vmatmul.mubr.f32.gmra.mrb[0].mxu0 %v188
    %v408 = vpop.f32.mrb[0].mxu0
    %v409 = vadd.f32 %v159, %v408
    %v410 = vpop.f32.mrb[0].mxu0
    %v411 = vadd.f32 %v163, %v410
    %412 = vmatprep.mubr.f32.mxu0 0.0
    %413 = vmatmul.mubr.f32.gmra.mrb[0].mxu0 %v191
    %v414 = vpop.f32.mrb[0].mxu0
    %v415 = vadd.f32 %v159, %v414
    %v416 = vpop.f32.mrb[0].mxu0
    %v417 = vadd.f32 %v163, %v416
    %418 = vdwg.mxu0
    %419 = vst [vmem:[#allocation2] sm:$0xff] %v260
    %420 = vst [vmem:[#allocation2 + $0x8] sm:$0xff] %v262
    %421 = vst [vmem:[#allocation2 + $0x10] sm:$0xff] %v373
    %422 = vst [vmem:[#allocation2 + $0x18] sm:$0xff] %v375
    %423 = vst [vmem:[#allocation2 + $0x20] sm:$0xff] %v266
    %424 = vst [vmem:[#allocation2 + $0x28] sm:$0xff] %v268
    %425 = vst [vmem:[#allocation2 + $0x30] sm:$0xff] %v379
    %426 = vst [vmem:[#allocation2 + $0x38] sm:$0xff] %v381
    %427 = vst [vmem:[#allocation2 + $0x40] sm:$0xff] %v272
    %428 = vst [vmem:[#allocation2 + $0x48] sm:$0xff] %v274
    %429 = vst [vmem:[#allocation2 + $0x50] sm:$0xff] %v385
    %430 = vst [vmem:[#allocation2 + $0x58] sm:$0xff] %v387
    %431 = vst [vmem:[#allocation2 + $0x60] sm:$0xff] %v278
    %432 = vst [vmem:[#allocation2 + $0x68] sm:$0xff] %v280
    %433 = vst [vmem:[#allocation2 + $0x70] sm:$0xff] %v391
    %434 = vst [vmem:[#allocation2 + $0x78] sm:$0xff] %v393
    %435 = vst [vmem:[#allocation2 + $0x80] sm:$0xff] %v284
    %436 = vst [vmem:[#allocation2 + $0x88] sm:$0xff] %v286
    %437 = vst [vmem:[#allocation2 + $0x90] sm:$0xff] %v397
    %438 = vst [vmem:[#allocation2 + $0x98] sm:$0xff] %v399
    %439 = vst [vmem:[#allocation2 + $0xa0] sm:$0xff] %v290
    %440 = vst [vmem:[#allocation2 + $0xa8] sm:$0xff] %v292
    %441 = vst [vmem:[#allocation2 + $0xb0] sm:$0xff] %v403
    %442 = vst [vmem:[#allocation2 + $0xb8] sm:$0xff] %v405
    %443 = vst [vmem:[#allocation2 + $0xc0] sm:$0xff] %v296
    %444 = vst [vmem:[#allocation2 + $0xc8] sm:$0xff] %v298
    %445 = vst [vmem:[#allocation2 + $0xd0] sm:$0xff] %v409
    %446 = vst [vmem:[#allocation2 + $0xd8] sm:$0xff] %v411
    %447 = vst [vmem:[#allocation2 + $0xe0] sm:$0xff] %v302
    %448 = vst [vmem:[#allocation2 + $0xe8] sm:$0xff] %v304
    %449 = vst [vmem:[#allocation2 + $0xf0] sm:$0xff] %v415
    %450 = vst [vmem:[#allocation2 + $0xf8] sm:$0xff] %v417
    %v451 = vld [vmem:[%s2] sm:$0xff]
    %v452 = vld [vmem:[%s2 + $0x8] sm:$0xff]
    %v453 = vld [vmem:[%s2 + $0x10] sm:$0xff]
    %v454 = vld [vmem:[%s2 + $0x18] sm:$0xff]
    %v455 = vld [vmem:[%s2 + $0x20] sm:$0xff]
    %v456 = vld [vmem:[%s2 + $0x28] sm:$0xff]
    %v457 = vld [vmem:[%s2 + $0x30] sm:$0xff]
    %v458 = vld [vmem:[%s2 + $0x38] sm:$0xff]
    %459 = vmatprep.subr.mxu0 %v452
    %460 = vmatpush1.msra.mxu0 %v451
    %461 = vmatprep.subr.mxu0 %v456
    %462 = vmatpush1.msra.mxu0 %v455
    %463 = vmatprep.subr.mxu0 0.0
    %464 = vmatpush1.msra.mxu0 0.0
    %465 = vmatprep.subr.mxu0 0.0
    %466 = vmatpush1.msra.mxu0 0.0
    %467 = vmatprep.subr.mxu0 0.0
    %468 = vmatpush1.msra.mxu0 0.0
    %469 = vmatprep.subr.mxu0 0.0
    %470 = vmatpush1.msra.mxu0 0.0
    %471 = vmatprep.subr.mxu0 0.0
    %472 = vmatpush1.msra.mxu0 0.0
    %473 = vmatprep.subr.mxu0 0.0
    %474 = vmatpush1.msra.mxu0 0.0
    %475 = vmatprep.subr.mxu0 0.0
    %476 = vmatpush1.msra.mxu0 0.0
    %477 = vmatprep.subr.mxu0 0.0
    %478 = vmatpush1.msra.mxu0 0.0
    %479 = vmatprep.subr.mxu0 0.0
    %480 = vmatpush1.msra.mxu0 0.0
    %481 = vmatprep.subr.mxu0 0.0
    %482 = vmatpush1.msra.mxu0 0.0
    %483 = vmatprep.subr.mxu0 0.0
    %484 = vmatpush1.msra.mxu0 0.0
    %485 = vmatprep.subr.mxu0 0.0
    %486 = vmatpush1.msra.mxu0 0.0
    %487 = vmatprep.subr.mxu0 0.0
    %488 = vmatpush1.msra.mxu0 0.0
    %489 = vmatprep.subr.mxu0 0.0
    %490 = vmatpush1.msra.mxu0 0.0
    %491 = vmatprep.subr.mxu0 0.0
    %492 = vmatpush1.msra.mxu0 0.0
    %493 = vmatprep.subr.mxu0 0.0
    %494 = vmatpush1.msra.mxu0 0.0
    %495 = vmatprep.subr.mxu0 0.0
    %496 = vmatpush1.msra.mxu0 0.0
    %497 = vmatprep.subr.mxu0 0.0
    %498 = vmatpush1.msra.mxu0 0.0
    %499 = vmatprep.subr.mxu0 0.0
    %500 = vmatpush1.msra.mxu0 0.0
    %501 = vmatprep.subr.mxu0 0.0
    %502 = vmatpush1.msra.mxu0 0.0
    %503 = vmatprep.subr.mxu0 0.0
    %504 = vmatpush1.msra.mxu0 0.0
    %505 = vmatprep.subr.mxu0 0.0
    %506 = vmatpush1.msra.mxu0 0.0
    %507 = vmatprep.subr.mxu0 0.0
    %508 = vmatpush1.msra.mxu0 0.0
    %509 = vmatprep.subr.mxu0 0.0
    %510 = vmatpush1.msra.mxu0 0.0
    %511 = vmatprep.subr.mxu0 0.0
    %512 = vmatpush1.msra.mxu0 0.0
    %513 = vmatprep.subr.mxu0 0.0
    %514 = vmatpush1.msra.mxu0 0.0
    %515 = vmatprep.subr.mxu0 0.0
    %516 = vmatpush1.msra.mxu0 0.0
    %517 = vmatprep.subr.mxu0 0.0
    %518 = vmatpush1.msra.mxu0 0.0
    %519 = vmatprep.subr.mxu0 0.0
    %520 = vmatpush1.msra.mxu0 0.0
    %521 = vmatprep.subr.mxu0 0.0
    %522 = vmatpush1.msra.mxu0 0.0
    %523 = vmatprep.mubr.f32.mxu0 0.0
    %524 = vmatmul.mubr.f32.gmra.mrb[0].mxu0 %v170
    %v525 = vpop.f32.mrb[0].mxu0
    %v526 = vadd.f32 0.0, %v525
    %v527 = vpop.f32.mrb[0].mxu0
    %v528 = vadd.f32 0.0, %v527
    %529 = vmatprep.mubr.f32.mxu0 0.0
    %530 = vmatmul.mubr.f32.gmra.mrb[0].mxu0 %v173
    %v531 = vpop.f32.mrb[0].mxu0
    %v532 = vadd.f32 0.0, %v531
    %v533 = vpop.f32.mrb[0].mxu0
    %v534 = vadd.f32 0.0, %v533
    %535 = vmatprep.mubr.f32.mxu0 0.0
    %536 = vmatmul.mubr.f32.gmra.mrb[0].mxu0 %v176
    %v537 = vpop.f32.mrb[0].mxu0
    %v538 = vadd.f32 0.0, %v537
    %v539 = vpop.f32.mrb[0].mxu0
    %v540 = vadd.f32 0.0, %v539
    %541 = vmatprep.mubr.f32.mxu0 0.0
    %542 = vmatmul.mubr.f32.gmra.mrb[0].mxu0 %v179
    %v543 = vpop.f32.mrb[0].mxu0
    %v544 = vadd.f32 0.0, %v543
    %v545 = vpop.f32.mrb[0].mxu0
    %v546 = vadd.f32 0.0, %v545
    %547 = vmatprep.mubr.f32.mxu0 0.0
    %548 = vmatmul.mubr.f32.gmra.mrb[0].mxu0 %v182
    %v549 = vpop.f32.mrb[0].mxu0
    %v550 = vadd.f32 0.0, %v549
    %v551 = vpop.f32.mrb[0].mxu0
    %v552 = vadd.f32 0.0, %v551
    %553 = vmatprep.mubr.f32.mxu0 0.0
    %554 = vmatmul.mubr.f32.gmra.mrb[0].mxu0 %v185
    %v555 = vpop.f32.mrb[0].mxu0
    %v556 = vadd.f32 0.0, %v555
    %v557 = vpop.f32.mrb[0].mxu0
    %v558 = vadd.f32 0.0, %v557
    %559 = vmatprep.mubr.f32.mxu0 0.0
    %560 = vmatmul.mubr.f32.gmra.mrb[0].mxu0 %v188
    %v561 = vpop.f32.mrb[0].mxu0
    %v562 = vadd.f32 0.0, %v561
    %v563 = vpop.f32.mrb[0].mxu0
    %v564 = vadd.f32 0.0, %v563
    %565 = vmatprep.mubr.f32.mxu0 0.0
    %566 = vmatmul.mubr.f32.gmra.mrb[0].mxu0 %v191
    %v567 = vpop.f32.mrb[0].mxu0
    %v568 = vadd.f32 0.0, %v567
    %v569 = vpop.f32.mrb[0].mxu0
    %v570 = vadd.f32 0.0, %v569
    %571 = vdwg.mxu0
    %572 = vmatprep.subr.mxu0 %v454
    %573 = vmatpush1.msra.mxu0 %v453
    %574 = vmatprep.subr.mxu0 %v458
    %575 = vmatpush1.msra.mxu0 %v457
    %576 = vmatprep.subr.mxu0 0.0
    %577 = vmatpush1.msra.mxu0 0.0
    %578 = vmatprep.subr.mxu0 0.0
    %579 = vmatpush1.msra.mxu0 0.0
    %580 = vmatprep.subr.mxu0 0.0
    %581 = vmatpush1.msra.mxu0 0.0
    %582 = vmatprep.subr.mxu0 0.0
    %583 = vmatpush1.msra.mxu0 0.0
    %584 = vmatprep.subr.mxu0 0.0
    %585 = vmatpush1.msra.mxu0 0.0
    %586 = vmatprep.subr.mxu0 0.0
    %587 = vmatpush1.msra.mxu0 0.0
    %588 = vmatprep.subr.mxu0 0.0
    %589 = vmatpush1.msra.mxu0 0.0
    %590 = vmatprep.subr.mxu0 0.0
    %591 = vmatpush1.msra.mxu0 0.0
    %592 = vmatprep.subr.mxu0 0.0
    %593 = vmatpush1.msra.mxu0 0.0
    %594 = vmatprep.subr.mxu0 0.0
    %595 = vmatpush1.msra.mxu0 0.0
    %596 = vmatprep.subr.mxu0 0.0
    %597 = vmatpush1.msra.mxu0 0.0
    %598 = vmatprep.subr.mxu0 0.0
    %599 = vmatpush1.msra.mxu0 0.0
    %600 = vmatprep.subr.mxu0 0.0
    %601 = vmatpush1.msra.mxu0 0.0
    %602 = vmatprep.subr.mxu0 0.0
    %603 = vmatpush1.msra.mxu0 0.0
    %604 = vmatprep.subr.mxu0 0.0
    %605 = vmatpush1.msra.mxu0 0.0
    %606 = vmatprep.subr.mxu0 0.0
    %607 = vmatpush1.msra.mxu0 0.0
    %608 = vmatprep.subr.mxu0 0.0
    %609 = vmatpush1.msra.mxu0 0.0
    %610 = vmatprep.subr.mxu0 0.0
    %611 = vmatpush1.msra.mxu0 0.0
    %612 = vmatprep.subr.mxu0 0.0
    %613 = vmatpush1.msra.mxu0 0.0
    %614 = vmatprep.subr.mxu0 0.0
    %615 = vmatpush1.msra.mxu0 0.0
    %616 = vmatprep.subr.mxu0 0.0
    %617 = vmatpush1.msra.mxu0 0.0
    %618 = vmatprep.subr.mxu0 0.0
    %619 = vmatpush1.msra.mxu0 0.0
    %620 = vmatprep.subr.mxu0 0.0
    %621 = vmatpush1.msra.mxu0 0.0
    %622 = vmatprep.subr.mxu0 0.0
    %623 = vmatpush1.msra.mxu0 0.0
    %624 = vmatprep.subr.mxu0 0.0
    %625 = vmatpush1.msra.mxu0 0.0
    %626 = vmatprep.subr.mxu0 0.0
    %627 = vmatpush1.msra.mxu0 0.0
    %628 = vmatprep.subr.mxu0 0.0
    %629 = vmatpush1.msra.mxu0 0.0
    %630 = vmatprep.subr.mxu0 0.0
    %631 = vmatpush1.msra.mxu0 0.0
    %632 = vmatprep.subr.mxu0 0.0
    %633 = vmatpush1.msra.mxu0 0.0
    %634 = vmatprep.subr.mxu0 0.0
    %635 = vmatpush1.msra.mxu0 0.0
    %636 = vmatprep.mubr.f32.mxu0 0.0
    %637 = vmatmul.mubr.f32.gmra.mrb[0].mxu0 %v170
    %v638 = vpop.f32.mrb[0].mxu0
    %v639 = vadd.f32 0.0, %v638
    %v640 = vpop.f32.mrb[0].mxu0
    %v641 = vadd.f32 0.0, %v640
    %642 = vmatprep.mubr.f32.mxu0 0.0
    %643 = vmatmul.mubr.f32.gmra.mrb[0].mxu0 %v173
    %v644 = vpop.f32.mrb[0].mxu0
    %v645 = vadd.f32 0.0, %v644
    %v646 = vpop.f32.mrb[0].mxu0
    %v647 = vadd.f32 0.0, %v646
    %648 = vmatprep.mubr.f32.mxu0 0.0
    %649 = vmatmul.mubr.f32.gmra.mrb[0].mxu0 %v176
    %v650 = vpop.f32.mrb[0].mxu0
    %v651 = vadd.f32 0.0, %v650
    %v652 = vpop.f32.mrb[0].mxu0
    %v653 = vadd.f32 0.0, %v652
    %654 = vmatprep.mubr.f32.mxu0 0.0
    %655 = vmatmul.mubr.f32.gmra.mrb[0].mxu0 %v179
    %v656 = vpop.f32.mrb[0].mxu0
    %v657 = vadd.f32 0.0, %v656
    %v658 = vpop.f32.mrb[0].mxu0
    %v659 = vadd.f32 0.0, %v658
    %660 = vmatprep.mubr.f32.mxu0 0.0
    %661 = vmatmul.mubr.f32.gmra.mrb[0].mxu0 %v182
    %v662 = vpop.f32.mrb[0].mxu0
    %v663 = vadd.f32 0.0, %v662
    %v664 = vpop.f32.mrb[0].mxu0
    %v665 = vadd.f32 0.0, %v664
    %666 = vmatprep.mubr.f32.mxu0 0.0
    %667 = vmatmul.mubr.f32.gmra.mrb[0].mxu0 %v185
    %v668 = vpop.f32.mrb[0].mxu0
    %v669 = vadd.f32 0.0, %v668
    %v670 = vpop.f32.mrb[0].mxu0
    %v671 = vadd.f32 0.0, %v670
    %672 = vmatprep.mubr.f32.mxu0 0.0
    %673 = vmatmul.mubr.f32.gmra.mrb[0].mxu0 %v188
    %v674 = vpop.f32.mrb[0].mxu0
    %v675 = vadd.f32 0.0, %v674
    %v676 = vpop.f32.mrb[0].mxu0
    %v677 = vadd.f32 0.0, %v676
    %678 = vmatprep.mubr.f32.mxu0 0.0
    %679 = vmatmul.mubr.f32.gmra.mrb[0].mxu0 %v191
    %v680 = vpop.f32.mrb[0].mxu0
    %v681 = vadd.f32 0.0, %v680
    %v682 = vpop.f32.mrb[0].mxu0
    %v683 = vadd.f32 0.0, %v682
    %684 = vdwg.mxu0
    %685 = vst [vmem:[#allocation3] sm:$0xff] %v526
    %686 = vst [vmem:[#allocation3 + $0x8] sm:$0xff] %v528
    %687 = vst [vmem:[#allocation3 + $0x10] sm:$0xff] %v639
    %688 = vst [vmem:[#allocation3 + $0x18] sm:$0xff] %v641
    %689 = vst [vmem:[#allocation3 + $0x20] sm:$0xff] %v532
    %690 = vst [vmem:[#allocation3 + $0x28] sm:$0xff] %v534
    %691 = vst [vmem:[#allocation3 + $0x30] sm:$0xff] %v645
    %692 = vst [vmem:[#allocation3 + $0x38] sm:$0xff] %v647
    %693 = vst [vmem:[#allocation3 + $0x40] sm:$0xff] %v538
    %694 = vst [vmem:[#allocation3 + $0x48] sm:$0xff] %v540
    %695 = vst [vmem:[#allocation3 + $0x50] sm:$0xff] %v651
    %696 = vst [vmem:[#allocation3 + $0x58] sm:$0xff] %v653
    %697 = vst [vmem:[#allocation3 + $0x60] sm:$0xff] %v544
    %698 = vst [vmem:[#allocation3 + $0x68] sm:$0xff] %v546
    %699 = vst [vmem:[#allocation3 + $0x70] sm:$0xff] %v657
    %700 = vst [vmem:[#allocation3 + $0x78] sm:$0xff] %v659
    %701 = vst [vmem:[#allocation3 + $0x80] sm:$0xff] %v550
    %702 = vst [vmem:[#allocation3 + $0x88] sm:$0xff] %v552
    %703 = vst [vmem:[#allocation3 + $0x90] sm:$0xff] %v663
    %704 = vst [vmem:[#allocation3 + $0x98] sm:$0xff] %v665
    %705 = vst [vmem:[#allocation3 + $0xa0] sm:$0xff] %v556
    %706 = vst [vmem:[#allocation3 + $0xa8] sm:$0xff] %v558
    %707 = vst [vmem:[#allocation3 + $0xb0] sm:$0xff] %v669
    %708 = vst [vmem:[#allocation3 + $0xb8] sm:$0xff] %v671
    %709 = vst [vmem:[#allocation3 + $0xc0] sm:$0xff] %v562
    %710 = vst [vmem:[#allocation3 + $0xc8] sm:$0xff] %v564
    %711 = vst [vmem:[#allocation3 + $0xd0] sm:$0xff] %v675
    %712 = vst [vmem:[#allocation3 + $0xd8] sm:$0xff] %v677
    %713 = vst [vmem:[#allocation3 + $0xe0] sm:$0xff] %v568
    %714 = vst [vmem:[#allocation3 + $0xe8] sm:$0xff] %v570
    %715 = vst [vmem:[#allocation3 + $0xf0] sm:$0xff] %v681
    %716 = vst [vmem:[#allocation3 + $0xf8] sm:$0xff] %v683
    %v717 = vld [vmem:[#allocation2] sm:$0xff]
    %v718 = vld [vmem:[#allocation2 + $0x8] sm:$0xff]
    %v719 = vld [vmem:[#allocation2 + $0x10] sm:$0xff]
    %v720 = vld [vmem:[#allocation2 + $0x18] sm:$0xff]
    %v721 = vld [vmem:[#allocation3 + $0xe0] sm:$0xff]
    %v722 = vld [vmem:[#allocation3 + $0xe8] sm:$0xff]
    %v723 = vld [vmem:[#allocation3 + $0xf0] sm:$0xff]
    %v724 = vld [vmem:[#allocation3 + $0xf8] sm:$0xff]
    %v725 = vadd.f32 %v717, %v721
    %v726 = vadd.f32 %v718, %v722
    %v727 = vadd.f32 %v719, %v723
    %v728 = vadd.f32 %v720, %v724
    %v729 = vld [vmem:[#allocation6] sm:$0xff]
    %v730 = vld [vmem:[#allocation6 + $0x8] sm:$0xff]
    %v731 = vld [vmem:[#allocation6 + $0x10] sm:$0xff]
    %v732 = vld [vmem:[#allocation6 + $0x18] sm:$0xff]
    %v733 = vld [vmem:[#allocation6 + $0x20] sm:$0xff]
    %v734 = vld [vmem:[#allocation6 + $0x28] sm:$0xff]
    %v735 = vld [vmem:[#allocation6 + $0x30] sm:$0xff]
    %v736 = vld [vmem:[#allocation6 + $0x38] sm:$0xff]
    %v737 = vld [vmem:[#allocation6 + $0x40] sm:$0xff]
    %v738 = vld [vmem:[#allocation6 + $0x48] sm:$0xff]
    %v739 = vld [vmem:[#allocation6 + $0x50] sm:$0xff]
    %v740 = vld [vmem:[#allocation6 + $0x58] sm:$0xff]
    %v741 = vld [vmem:[#allocation6 + $0x60] sm:$0xff]
    %v742 = vld [vmem:[#allocation6 + $0x68] sm:$0xff]
    %v743 = vld [vmem:[#allocation6 + $0x70] sm:$0xff]
    %v744 = vld [vmem:[#allocation6 + $0x78] sm:$0xff]
    %v745 = vld [vmem:[#allocation6 + $0x80] sm:$0xff]
    %v746 = vld [vmem:[#allocation6 + $0x88] sm:$0xff]
    %v747 = vld [vmem:[#allocation6 + $0x90] sm:$0xff]
    %v748 = vld [vmem:[#allocation6 + $0x98] sm:$0xff]
    %v749 = vld [vmem:[#allocation6 + $0xa0] sm:$0xff]
    %v750 = vld [vmem:[#allocation6 + $0xa8] sm:$0xff]
    %v751 = vld [vmem:[#allocation6 + $0xb0] sm:$0xff]
    %v752 = vld [vmem:[#allocation6 + $0xb8] sm:$0xff]
    %v753 = vld [vmem:[#allocation6 + $0xc0] sm:$0xff]
    %v754 = vld [vmem:[#allocation6 + $0xc8] sm:$0xff]
    %v755 = vld [vmem:[#allocation6 + $0xd0] sm:$0xff]
    %v756 = vld [vmem:[#allocation6 + $0xd8] sm:$0xff]
    %v757 = vld [vmem:[#allocation6 + $0xe0] sm:$0xff]
    %v758 = vld [vmem:[#allocation6 + $0xe8] sm:$0xff]
    %v759 = vld [vmem:[#allocation6 + $0xf0] sm:$0xff]
    %v760 = vld [vmem:[#allocation6 + $0xf8] sm:$0xff]
    %v761 = vld [vmem:[#allocation6 + $0x100] sm:$0xff]
    %v762 = vld [vmem:[#allocation6 + $0x108] sm:$0xff]
    %v763 = vld [vmem:[#allocation6 + $0x110] sm:$0xff]
    %v764 = vld [vmem:[#allocation6 + $0x118] sm:$0xff]
    %v765 = vld [vmem:[#allocation6 + $0x120] sm:$0xff]
    %v766 = vld [vmem:[#allocation6 + $0x128] sm:$0xff]
    %v767 = vld [vmem:[#allocation6 + $0x130] sm:$0xff]
    %v768 = vld [vmem:[#allocation6 + $0x138] sm:$0xff]
    %v769 = vld [vmem:[#allocation6 + $0x140] sm:$0xff]
    %v770 = vld [vmem:[#allocation6 + $0x148] sm:$0xff]
    %v771 = vld [vmem:[#allocation6 + $0x150] sm:$0xff]
    %v772 = vld [vmem:[#allocation6 + $0x158] sm:$0xff]
    %v773 = vld [vmem:[#allocation6 + $0x160] sm:$0xff]
    %v774 = vld [vmem:[#allocation6 + $0x168] sm:$0xff]
    %v775 = vld [vmem:[#allocation6 + $0x170] sm:$0xff]
    %v776 = vld [vmem:[#allocation6 + $0x178] sm:$0xff]
    %v777 = vld [vmem:[#allocation6 + $0x180] sm:$0xff]
    %v778 = vld [vmem:[#allocation6 + $0x188] sm:$0xff]
    %v779 = vld [vmem:[#allocation6 + $0x190] sm:$0xff]
    %v780 = vld [vmem:[#allocation6 + $0x198] sm:$0xff]
    %v781 = vld [vmem:[#allocation6 + $0x1a0] sm:$0xff]
    %v782 = vld [vmem:[#allocation6 + $0x1a8] sm:$0xff]
    %v783 = vld [vmem:[#allocation6 + $0x1b0] sm:$0xff]
    %v784 = vld [vmem:[#allocation6 + $0x1b8] sm:$0xff]
    %v785 = vld [vmem:[#allocation6 + $0x1c0] sm:$0xff]
    %v786 = vld [vmem:[#allocation6 + $0x1c8] sm:$0xff]
    %v787 = vld [vmem:[#allocation6 + $0x1d0] sm:$0xff]
    %v788 = vld [vmem:[#allocation6 + $0x1d8] sm:$0xff]
    %v789 = vld [vmem:[#allocation6 + $0x1e0] sm:$0xff]
    %v790 = vld [vmem:[#allocation6 + $0x1e8] sm:$0xff]
    %v791 = vld [vmem:[#allocation6 + $0x1f0] sm:$0xff]
    %v792 = vld [vmem:[#allocation6 + $0x1f8] sm:$0xff]
    %793 = vmatprep.subr.mxu0 %v730
    %794 = vmatpush1.msra.mxu0 %v729
    %795 = vmatprep.subr.mxu0 %v734
    %796 = vmatpush1.msra.mxu0 %v733
    %797 = vmatprep.subr.mxu0 %v738
    %798 = vmatpush1.msra.mxu0 %v737
    %799 = vmatprep.subr.mxu0 %v742
    %800 = vmatpush1.msra.mxu0 %v741
    %801 = vmatprep.subr.mxu0 %v746
    %802 = vmatpush1.msra.mxu0 %v745
    %803 = vmatprep.subr.mxu0 %v750
    %804 = vmatpush1.msra.mxu0 %v749
    %805 = vmatprep.subr.mxu0 %v754
    %806 = vmatpush1.msra.mxu0 %v753
    %807 = vmatprep.subr.mxu0 %v758
    %808 = vmatpush1.msra.mxu0 %v757
    %809 = vmatprep.subr.mxu0 %v762
    %810 = vmatpush1.msra.mxu0 %v761
    %811 = vmatprep.subr.mxu0 %v766
    %812 = vmatpush1.msra.mxu0 %v765
    %813 = vmatprep.subr.mxu0 %v770
    %814 = vmatpush1.msra.mxu0 %v769
    %815 = vmatprep.subr.mxu0 %v774
    %816 = vmatpush1.msra.mxu0 %v773
    %817 = vmatprep.subr.mxu0 %v778
    %818 = vmatpush1.msra.mxu0 %v777
    %819 = vmatprep.subr.mxu0 %v782
    %820 = vmatpush1.msra.mxu0 %v781
    %821 = vmatprep.subr.mxu0 %v786
    %822 = vmatpush1.msra.mxu0 %v785
    %823 = vmatprep.subr.mxu0 %v790
    %824 = vmatpush1.msra.mxu0 %v789
    %825 = vmatprep.subr.mxu0 0.0
    %826 = vmatpush1.msra.mxu0 0.0
    %827 = vmatprep.subr.mxu0 0.0
    %828 = vmatpush1.msra.mxu0 0.0
    %829 = vmatprep.subr.mxu0 0.0
    %830 = vmatpush1.msra.mxu0 0.0
    %831 = vmatprep.subr.mxu0 0.0
    %832 = vmatpush1.msra.mxu0 0.0
    %833 = vmatprep.subr.mxu0 0.0
    %834 = vmatpush1.msra.mxu0 0.0
    %835 = vmatprep.subr.mxu0 0.0
    %836 = vmatpush1.msra.mxu0 0.0
    %837 = vmatprep.subr.mxu0 0.0
    %838 = vmatpush1.msra.mxu0 0.0
    %839 = vmatprep.subr.mxu0 0.0
    %840 = vmatpush1.msra.mxu0 0.0
    %841 = vmatprep.subr.mxu0 0.0
    %842 = vmatpush1.msra.mxu0 0.0
    %843 = vmatprep.subr.mxu0 0.0
    %844 = vmatpush1.msra.mxu0 0.0
    %845 = vmatprep.subr.mxu0 0.0
    %846 = vmatpush1.msra.mxu0 0.0
    %847 = vmatprep.subr.mxu0 0.0
    %848 = vmatpush1.msra.mxu0 0.0
    %849 = vmatprep.subr.mxu0 0.0
    %850 = vmatpush1.msra.mxu0 0.0
    %851 = vmatprep.subr.mxu0 0.0
    %852 = vmatpush1.msra.mxu0 0.0
    %853 = vmatprep.subr.mxu0 0.0
    %854 = vmatpush1.msra.mxu0 0.0
    %855 = vmatprep.subr.mxu0 0.0
    %856 = vmatpush1.msra.mxu0 0.0
    %857 = vmatprep.mubr.f32.mxu0 0.0
    %858 = vmatmul.mubr.f32.gmra.mrb[0].mxu0 0.0
    %v859 = vpop.f32.mrb[0].mxu0
    %v860 = vadd.f32 0.0, %v859
    %v861 = vpop.f32.mrb[0].mxu0
    %v862 = vadd.f32 0.0, %v861
    %863 = vdwg.mxu0
    %864 = vmatprep.subr.mxu0 %v732
    %865 = vmatpush1.msra.mxu0 %v731
    %866 = vmatprep.subr.mxu0 %v736
    %867 = vmatpush1.msra.mxu0 %v735
    %868 = vmatprep.subr.mxu0 %v740
    %869 = vmatpush1.msra.mxu0 %v739
    %870 = vmatprep.subr.mxu0 %v744
    %871 = vmatpush1.msra.mxu0 %v743
    %872 = vmatprep.subr.mxu0 %v748
    %873 = vmatpush1.msra.mxu0 %v747
    %874 = vmatprep.subr.mxu0 %v752
    %875 = vmatpush1.msra.mxu0 %v751
    %876 = vmatprep.subr.mxu0 %v756
    %877 = vmatpush1.msra.mxu0 %v755
    %878 = vmatprep.subr.mxu0 %v760
    %879 = vmatpush1.msra.mxu0 %v759
    %880 = vmatprep.subr.mxu0 %v764
    %881 = vmatpush1.msra.mxu0 %v763
    %882 = vmatprep.subr.mxu0 %v768
    %883 = vmatpush1.msra.mxu0 %v767
    %884 = vmatprep.subr.mxu0 %v772
    %885 = vmatpush1.msra.mxu0 %v771
    %886 = vmatprep.subr.mxu0 %v776
    %887 = vmatpush1.msra.mxu0 %v775
    %888 = vmatprep.subr.mxu0 %v780
    %889 = vmatpush1.msra.mxu0 %v779
    %890 = vmatprep.subr.mxu0 %v784
    %891 = vmatpush1.msra.mxu0 %v783
    %892 = vmatprep.subr.mxu0 %v788
    %893 = vmatpush1.msra.mxu0 %v787
    %894 = vmatprep.subr.mxu0 %v792
    %895 = vmatpush1.msra.mxu0 %v791
    %896 = vmatprep.subr.mxu0 0.0
    %897 = vmatpush1.msra.mxu0 0.0
    %898 = vmatprep.subr.mxu0 0.0
    %899 = vmatpush1.msra.mxu0 0.0
    %900 = vmatprep.subr.mxu0 0.0
    %901 = vmatpush1.msra.mxu0 0.0
    %902 = vmatprep.subr.mxu0 0.0
    %903 = vmatpush1.msra.mxu0 0.0
    %904 = vmatprep.subr.mxu0 0.0
    %905 = vmatpush1.msra.mxu0 0.0
    %906 = vmatprep.subr.mxu0 0.0
    %907 = vmatpush1.msra.mxu0 0.0
    %908 = vmatprep.subr.mxu0 0.0
    %909 = vmatpush1.msra.mxu0 0.0
    %910 = vmatprep.subr.mxu0 0.0
    %911 = vmatpush1.msra.mxu0 0.0
    %912 = vmatprep.subr.mxu0 0.0
    %913 = vmatpush1.msra.mxu0 0.0
    %914 = vmatprep.subr.mxu0 0.0
    %915 = vmatpush1.msra.mxu0 0.0
    %916 = vmatprep.subr.mxu0 0.0
    %917 = vmatpush1.msra.mxu0 0.0
    %918 = vmatprep.subr.mxu0 0.0
    %919 = vmatpush1.msra.mxu0 0.0
    %920 = vmatprep.subr.mxu0 0.0
    %921 = vmatpush1.msra.mxu0 0.0
    %922 = vmatprep.subr.mxu0 0.0
    %923 = vmatpush1.msra.mxu0 0.0
    %924 = vmatprep.subr.mxu0 0.0
    %925 = vmatpush1.msra.mxu0 0.0
    %926 = vmatprep.subr.mxu0 0.0
    %927 = vmatpush1.msra.mxu0 0.0
    %928 = vmatprep.mubr.f32.mxu0 0.0
    %929 = vmatmul.mubr.f32.gmra.mrb[0].mxu0 0.0
    %v930 = vpop.f32.mrb[0].mxu0
    %v931 = vadd.f32 0.0, %v930
    %v932 = vpop.f32.mrb[0].mxu0
    %v933 = vadd.f32 0.0, %v932
    %934 = vdwg.mxu0
    %v935 = vadd.f32 %v725, %v860
    %v936 = vadd.f32 %v726, %v862
    %v937 = vadd.f32 %v727, %v931
    %v938 = vadd.f32 %v728, %v933
    %v939 = vxor.u32 %v935, 2147483648
    %v940 = vmul.f32 %v939, 1.442695
    %v941 = vpow.pop %v940
    %v942 = vadd.f32 %v941, 1.0
    %v943 = vrcp.pop %v942
    %v944 = vmul.f32 1.0, %v943
    %v945 = vxor.u32 %v936, 2147483648
    %v946 = vmul.f32 %v945, 1.442695
    %v947 = vpow.pop %v946
    %v948 = vadd.f32 %v947, 1.0
    %v949 = vrcp.pop %v948
    %v950 = vmul.f32 1.0, %v949
    %v951 = vtanh.pop %v937
    %v952 = vxor.u32 %v938, 2147483648
    %v953 = vmul.f32 %v952, 1.442695
    %v954 = vpow.pop %v953
    %v955 = vadd.f32 %v954, 1.0
    %v956 = vrcp.pop %v955
    %v957 = vmul.f32 1.0, %v956
    %v958 = vmul.f32 %v950, 0.0
    %v959 = vmul.f32 %v944, %v951
    %v960 = vadd.f32 %v958, %v959
    %v961 = vtanh.pop %v960
    %v962 = vmul.f32 %v957, %v961
    %963 = vst [vmem:[#allocation4] sm:$0xff] %v962
    %964 = vst [vmem:[#allocation5 + $0x38] sm:$0xff] %v962
    %v965 = vld [vmem:[#allocation2 + $0x20] sm:$0xff]
    %v966 = vld [vmem:[#allocation2 + $0x28] sm:$0xff]
    %v967 = vld [vmem:[#allocation2 + $0x30] sm:$0xff]
    %v968 = vld [vmem:[#allocation2 + $0x38] sm:$0xff]
    %v969 = vld [vmem:[#allocation3 + $0xc0] sm:$0xff]
    %v970 = vld [vmem:[#allocation3 + $0xc8] sm:$0xff]
    %v971 = vld [vmem:[#allocation3 + $0xd0] sm:$0xff]
    %v972 = vld [vmem:[#allocation3 + $0xd8] sm:$0xff]
    %v973 = vadd.f32 %v965, %v969
    %v974 = vadd.f32 %v966, %v970
    %v975 = vadd.f32 %v967, %v971
    %v976 = vadd.f32 %v968, %v972
    %v977 = vld [vmem:[#allocation6] sm:$0xff]
    %v978 = vld [vmem:[#allocation6 + $0x8] sm:$0xff]
    %v979 = vld [vmem:[#allocation6 + $0x10] sm:$0xff]
    %v980 = vld [vmem:[#allocation6 + $0x18] sm:$0xff]
    %v981 = vld [vmem:[#allocation6 + $0x20] sm:$0xff]
    %v982 = vld [vmem:[#allocation6 + $0x28] sm:$0xff]
    %v983 = vld [vmem:[#allocation6 + $0x30] sm:$0xff]
    %v984 = vld [vmem:[#allocation6 + $0x38] sm:$0xff]
    %v985 = vld [vmem:[#allocation6 + $0x40] sm:$0xff]
    %v986 = vld [vmem:[#allocation6 + $0x48] sm:$0xff]
    %v987 = vld [vmem:[#allocation6 + $0x50] sm:$0xff]
    %v988 = vld [vmem:[#allocation6 + $0x58] sm:$0xff]
    %v989 = vld [vmem:[#allocation6 + $0x60] sm:$0xff]
    %v990 = vld [vmem:[#allocation6 + $0x68] sm:$0xff]
    %v991 = vld [vmem:[#allocation6 + $0x70] sm:$0xff]
    %v992 = vld [vmem:[#allocation6 + $0x78] sm:$0xff]
    %v993 = vld [vmem:[#allocation6 + $0x80] sm:$0xff]
    %v994 = vld [vmem:[#allocation6 + $0x88] sm:$0xff]
    %v995 = vld [vmem:[#allocation6 + $0x90] sm:$0xff]
    %v996 = vld [vmem:[#allocation6 + $0x98] sm:$0xff]
    %v997 = vld [vmem:[#allocation6 + $0xa0] sm:$0xff]
    %v998 = vld [vmem:[#allocation6 + $0xa8] sm:$0xff]
    %v999 = vld [vmem:[#allocation6 + $0xb0] sm:$0xff]
    %v1000 = vld [vmem:[#allocation6 + $0xb8] sm:$0xff]
    %v1001 = vld [vmem:[#allocation6 + $0xc0] sm:$0xff]
    %v1002 = vld [vmem:[#allocation6 + $0xc8] sm:$0xff]
    %v1003 = vld [vmem:[#allocation6 + $0xd0] sm:$0xff]
    %v1004 = vld [vmem:[#allocation6 + $0xd8] sm:$0xff]
    %v1005 = vld [vmem:[#allocation6 + $0xe0] sm:$0xff]
    %v1006 = vld [vmem:[#allocation6 + $0xe8] sm:$0xff]
    %v1007 = vld [vmem:[#allocation6 + $0xf0] sm:$0xff]
    %v1008 = vld [vmem:[#allocation6 + $0xf8] sm:$0xff]
    %v1009 = vld [vmem:[#allocation6 + $0x100] sm:$0xff]
    %v1010 = vld [vmem:[#allocation6 + $0x108] sm:$0xff]
    %v1011 = vld [vmem:[#allocation6 + $0x110] sm:$0xff]
    %v1012 = vld [vmem:[#allocation6 + $0x118] sm:$0xff]
    %v1013 = vld [vmem:[#allocation6 + $0x120] sm:$0xff]
    %v1014 = vld [vmem:[#allocation6 + $0x128] sm:$0xff]
    %v1015 = vld [vmem:[#allocation6 + $0x130] sm:$0xff]
    %v1016 = vld [vmem:[#allocation6 + $0x138] sm:$0xff]
    %v1017 = vld [vmem:[#allocation6 + $0x140] sm:$0xff]
    %v1018 = vld [vmem:[#allocation6 + $0x148] sm:$0xff]
    %v1019 = vld [vmem:[#allocation6 + $0x150] sm:$0xff]
    %v1020 = vld [vmem:[#allocation6 + $0x158] sm:$0xff]
    %v1021 = vld [vmem:[#allocation6 + $0x160] sm:$0xff]
    %v1022 = vld [vmem:[#allocation6 + $0x168] sm:$0xff]
    %v1023 = vld [vmem:[#allocation6 + $0x170] sm:$0xff]
    %v1024 = vld [vmem:[#allocation6 + $0x178] sm:$0xff]
    %v1025 = vld [vmem:[#allocation6 + $0x180] sm:$0xff]
    %v1026 = vld [vmem:[#allocation6 + $0x188] sm:$0xff]
    %v1027 = vld [vmem:[#allocation6 + $0x190] sm:$0xff]
    %v1028 = vld [vmem:[#allocation6 + $0x198] sm:$0xff]
    %v1029 = vld [vmem:[#allocation6 + $0x1a0] sm:$0xff]
    %v1030 = vld [vmem:[#allocation6 + $0x1a8] sm:$0xff]
    %v1031 = vld [vmem:[#allocation6 + $0x1b0] sm:$0xff]
    %v1032 = vld [vmem:[#allocation6 + $0x1b8] sm:$0xff]
    %v1033 = vld [vmem:[#allocation6 + $0x1c0] sm:$0xff]
    %v1034 = vld [vmem:[#allocation6 + $0x1c8] sm:$0xff]
    %v1035 = vld [vmem:[#allocation6 + $0x1d0] sm:$0xff]
    %v1036 = vld [vmem:[#allocation6 + $0x1d8] sm:$0xff]
    %v1037 = vld [vmem:[#allocation6 + $0x1e0] sm:$0xff]
    %v1038 = vld [vmem:[#allocation6 + $0x1e8] sm:$0xff]
    %v1039 = vld [vmem:[#allocation6 + $0x1f0] sm:$0xff]
    %v1040 = vld [vmem:[#allocation6 + $0x1f8] sm:$0xff]
    %1041 = vmatprep.subr.mxu0 %v978
    %1042 = vmatpush1.msra.mxu0 %v977
    %1043 = vmatprep.subr.mxu0 %v982
    %1044 = vmatpush1.msra.mxu0 %v981
    %1045 = vmatprep.subr.mxu0 %v986
    %1046 = vmatpush1.msra.mxu0 %v985
    %1047 = vmatprep.subr.mxu0 %v990
    %1048 = vmatpush1.msra.mxu0 %v989
    %1049 = vmatprep.subr.mxu0 %v994
    %1050 = vmatpush1.msra.mxu0 %v993
    %1051 = vmatprep.subr.mxu0 %v998
    %1052 = vmatpush1.msra.mxu0 %v997
    %1053 = vmatprep.subr.mxu0 %v1002
    %1054 = vmatpush1.msra.mxu0 %v1001
    %1055 = vmatprep.subr.mxu0 %v1006
    %1056 = vmatpush1.msra.mxu0 %v1005
    %1057 = vmatprep.subr.mxu0 %v1010
    %1058 = vmatpush1.msra.mxu0 %v1009
    %1059 = vmatprep.subr.mxu0 %v1014
    %1060 = vmatpush1.msra.mxu0 %v1013
    %1061 = vmatprep.subr.mxu0 %v1018
    %1062 = vmatpush1.msra.mxu0 %v1017
    %1063 = vmatprep.subr.mxu0 %v1022
    %1064 = vmatpush1.msra.mxu0 %v1021
    %1065 = vmatprep.subr.mxu0 %v1026
    %1066 = vmatpush1.msra.mxu0 %v1025
    %1067 = vmatprep.subr.mxu0 %v1030
    %1068 = vmatpush1.msra.mxu0 %v1029
    %1069 = vmatprep.subr.mxu0 %v1034
    %1070 = vmatpush1.msra.mxu0 %v1033
    %1071 = vmatprep.subr.mxu0 %v1038
    %1072 = vmatpush1.msra.mxu0 %v1037
    %1073 = vmatprep.subr.mxu0 0.0
    %1074 = vmatpush1.msra.mxu0 0.0
    %1075 = vmatprep.subr.mxu0 0.0
    %1076 = vmatpush1.msra.mxu0 0.0
    %1077 = vmatprep.subr.mxu0 0.0
    %1078 = vmatpush1.msra.mxu0 0.0
    %1079 = vmatprep.subr.mxu0 0.0
    %1080 = vmatpush1.msra.mxu0 0.0
    %1081 = vmatprep.subr.mxu0 0.0
    %1082 = vmatpush1.msra.mxu0 0.0
    %1083 = vmatprep.subr.mxu0 0.0
    %1084 = vmatpush1.msra.mxu0 0.0
    %1085 = vmatprep.subr.mxu0 0.0
    %1086 = vmatpush1.msra.mxu0 0.0
    %1087 = vmatprep.subr.mxu0 0.0
    %1088 = vmatpush1.msra.mxu0 0.0
    %1089 = vmatprep.subr.mxu0 0.0
    %1090 = vmatpush1.msra.mxu0 0.0
    %1091 = vmatprep.subr.mxu0 0.0
    %1092 = vmatpush1.msra.mxu0 0.0
    %1093 = vmatprep.subr.mxu0 0.0
    %1094 = vmatpush1.msra.mxu0 0.0
    %1095 = vmatprep.subr.mxu0 0.0
    %1096 = vmatpush1.msra.mxu0 0.0
    %1097 = vmatprep.subr.mxu0 0.0
    %1098 = vmatpush1.msra.mxu0 0.0
    %1099 = vmatprep.subr.mxu0 0.0
    %1100 = vmatpush1.msra.mxu0 0.0
    %1101 = vmatprep.subr.mxu0 0.0
    %1102 = vmatpush1.msra.mxu0 0.0
    %1103 = vmatprep.subr.mxu0 0.0
    %1104 = vmatpush1.msra.mxu0 0.0
    %1105 = vmatprep.mubr.f32.mxu0 0.0
    %1106 = vmatmul.mubr.f32.gmra.mrb[0].mxu0 %v962
    %v1107 = vpop.f32.mrb[0].mxu0
    %v1108 = vadd.f32 0.0, %v1107
    %v1109 = vpop.f32.mrb[0].mxu0
    %v1110 = vadd.f32 0.0, %v1109
    %1111 = vdwg.mxu0
    %1112 = vmatprep.subr.mxu0 %v980
    %1113 = vmatpush1.msra.mxu0 %v979
    %1114 = vmatprep.subr.mxu0 %v984
    %1115 = vmatpush1.msra.mxu0 %v983
    %1116 = vmatprep.subr.mxu0 %v988
    %1117 = vmatpush1.msra.mxu0 %v987
    %1118 = vmatprep.subr.mxu0 %v992
    %1119 = vmatpush1.msra.mxu0 %v991
    %1120 = vmatprep.subr.mxu0 %v996
    %1121 = vmatpush1.msra.mxu0 %v995
    %1122 = vmatprep.subr.mxu0 %v1000
    %1123 = vmatpush1.msra.mxu0 %v999
    %1124 = vmatprep.subr.mxu0 %v1004
    %1125 = vmatpush1.msra.mxu0 %v1003
    %1126 = vmatprep.subr.mxu0 %v1008
    %1127 = vmatpush1.msra.mxu0 %v1007
    %1128 = vmatprep.subr.mxu0 %v1012
    %1129 = vmatpush1.msra.mxu0 %v1011
    %1130 = vmatprep.subr.mxu0 %v1016
    %1131 = vmatpush1.msra.mxu0 %v1015
    %1132 = vmatprep.subr.mxu0 %v1020
    %1133 = vmatpush1.msra.mxu0 %v1019
    %1134 = vmatprep.subr.mxu0 %v1024
    %1135 = vmatpush1.msra.mxu0 %v1023
    %1136 = vmatprep.subr.mxu0 %v1028
    %1137 = vmatpush1.msra.mxu0 %v1027
    %1138 = vmatprep.subr.mxu0 %v1032
    %1139 = vmatpush1.msra.mxu0 %v1031
    %1140 = vmatprep.subr.mxu0 %v1036
    %1141 = vmatpush1.msra.mxu0 %v1035
    %1142 = vmatprep.subr.mxu0 %v1040
    %1143 = vmatpush1.msra.mxu0 %v1039
    %1144 = vmatprep.subr.mxu0 0.0
    %1145 = vmatpush1.msra.mxu0 0.0
    %1146 = vmatprep.subr.mxu0 0.0
    %1147 = vmatpush1.msra.mxu0 0.0
    %1148 = vmatprep.subr.mxu0 0.0
    %1149 = vmatpush1.msra.mxu0 0.0
    %1150 = vmatprep.subr.mxu0 0.0
    %1151 = vmatpush1.msra.mxu0 0.0
    %1152 = vmatprep.subr.mxu0 0.0
    %1153 = vmatpush1.msra.mxu0 0.0
    %1154 = vmatprep.subr.mxu0 0.0
    %1155 = vmatpush1.msra.mxu0 0.0
    %1156 = vmatprep.subr.mxu0 0.0
    %1157 = vmatpush1.msra.mxu0 0.0
    %1158 = vmatprep.subr.mxu0 0.0
    %1159 = vmatpush1.msra.mxu0 0.0
    %1160 = vmatprep.subr.mxu0 0.0
    %1161 = vmatpush1.msra.mxu0 0.0
    %1162 = vmatprep.subr.mxu0 0.0
    %1163 = vmatpush1.msra.mxu0 0.0
    %1164 = vmatprep.subr.mxu0 0.0
    %1165 = vmatpush1.msra.mxu0 0.0
    %1166 = vmatprep.subr.mxu0 0.0
    %1167 = vmatpush1.msra.mxu0 0.0
    %1168 = vmatprep.subr.mxu0 0.0
    %1169 = vmatpush1.msra.mxu0 0.0
    %1170 = vmatprep.subr.mxu0 0.0
    %1171 = vmatpush1.msra.mxu0 0.0
    %1172 = vmatprep.subr.mxu0 0.0
    %1173 = vmatpush1.msra.mxu0 0.0
    %1174 = vmatprep.subr.mxu0 0.0
    %1175 = vmatpush1.msra.mxu0 0.0
    %1176 = vmatprep.mubr.f32.mxu0 0.0
    %1177 = vmatmul.mubr.f32.gmra.mrb[0].mxu0 %v962
    %v1178 = vpop.f32.mrb[0].mxu0
    %v1179 = vadd.f32 0.0, %v1178
    %v1180 = vpop.f32.mrb[0].mxu0
    %v1181 = vadd.f32 0.0, %v1180
    %1182 = vdwg.mxu0
    %v1183 = vadd.f32 %v973, %v1108
    %v1184 = vadd.f32 %v974, %v1110
    %v1185 = vadd.f32 %v975, %v1179
    %v1186 = vadd.f32 %v976, %v1181
    %v1187 = vxor.u32 %v1183, 2147483648
    %v1188 = vmul.f32 %v1187, 1.442695
    %v1189 = vpow.pop %v1188
    %v1190 = vadd.f32 %v1189, 1.0
    %v1191 = vrcp.pop %v1190
    %v1192 = vmul.f32 1.0, %v1191
    %v1193 = vxor.u32 %v1184, 2147483648
    %v1194 = vmul.f32 %v1193, 1.442695
    %v1195 = vpow.pop %v1194
    %v1196 = vadd.f32 %v1195, 1.0
    %v1197 = vrcp.pop %v1196
    %v1198 = vmul.f32 1.0, %v1197
    %v1199 = vtanh.pop %v1185
    %v1200 = vxor.u32 %v1186, 2147483648
    %v1201 = vmul.f32 %v1200, 1.442695
    %v1202 = vpow.pop %v1201
    %v1203 = vadd.f32 %v1202, 1.0
    %v1204 = vrcp.pop %v1203
    %v1205 = vmul.f32 1.0, %v1204
    %v1206 = vmul.f32 %v1198, %v960
    %v1207 = vmul.f32 %v1192, %v1199
    %v1208 = vadd.f32 %v1206, %v1207
    %v1209 = vtanh.pop %v1208
    %v1210 = vmul.f32 %v1205, %v1209
    %1211 = vst [vmem:[#allocation4 + $0x8] sm:$0xff] %v1210
    %1212 = vst [vmem:[#allocation5 + $0x30] sm:$0xff] %v1210
    %v1213 = vld [vmem:[#allocation2 + $0x40] sm:$0xff]
    %v1214 = vld [vmem:[#allocation2 + $0x48] sm:$0xff]
    %v1215 = vld [vmem:[#allocation2 + $0x50] sm:$0xff]
    %v1216 = vld [vmem:[#allocation2 + $0x58] sm:$0xff]
    %v1217 = vld [vmem:[#allocation3 + $0xa0] sm:$0xff]
    %v1218 = vld [vmem:[#allocation3 + $0xa8] sm:$0xff]
    %v1219 = vld [vmem:[#allocation3 + $0xb0] sm:$0xff]
    %v1220 = vld [vmem:[#allocation3 + $0xb8] sm:$0xff]
    %v1221 = vadd.f32 %v1213, %v1217
    %v1222 = vadd.f32 %v1214, %v1218
    %v1223 = vadd.f32 %v1215, %v1219
    %v1224 = vadd.f32 %v1216, %v1220
    %v1225 = vld [vmem:[#allocation6] sm:$0xff]
    %v1226 = vld [vmem:[#allocation6 + $0x8] sm:$0xff]
    %v1227 = vld [vmem:[#allocation6 + $0x10] sm:$0xff]
    %v1228 = vld [vmem:[#allocation6 + $0x18] sm:$0xff]
    %v1229 = vld [vmem:[#allocation6 + $0x20] sm:$0xff]
    %v1230 = vld [vmem:[#allocation6 + $0x28] sm:$0xff]
    %v1231 = vld [vmem:[#allocation6 + $0x30] sm:$0xff]
    %v1232 = vld [vmem:[#allocation6 + $0x38] sm:$0xff]
    %v1233 = vld [vmem:[#allocation6 + $0x40] sm:$0xff]
    %v1234 = vld [vmem:[#allocation6 + $0x48] sm:$0xff]
    %v1235 = vld [vmem:[#allocation6 + $0x50] sm:$0xff]
    %v1236 = vld [vmem:[#allocation6 + $0x58] sm:$0xff]
    %v1237 = vld [vmem:[#allocation6 + $0x60] sm:$0xff]
    %v1238 = vld [vmem:[#allocation6 + $0x68] sm:$0xff]
    %v1239 = vld [vmem:[#allocation6 + $0x70] sm:$0xff]
    %v1240 = vld [vmem:[#allocation6 + $0x78] sm:$0xff]
    %v1241 = vld [vmem:[#allocation6 + $0x80] sm:$0xff]
    %v1242 = vld [vmem:[#allocation6 + $0x88] sm:$0xff]
    %v1243 = vld [vmem:[#allocation6 + $0x90] sm:$0xff]
    %v1244 = vld [vmem:[#allocation6 + $0x98] sm:$0xff]
    %v1245 = vld [vmem:[#allocation6 + $0xa0] sm:$0xff]
    %v1246 = vld [vmem:[#allocation6 + $0xa8] sm:$0xff]
    %v1247 = vld [vmem:[#allocation6 + $0xb0] sm:$0xff]
    %v1248 = vld [vmem:[#allocation6 + $0xb8] sm:$0xff]
    %v1249 = vld [vmem:[#allocation6 + $0xc0] sm:$0xff]
    %v1250 = vld [vmem:[#allocation6 + $0xc8] sm:$0xff]
    %v1251 = vld [vmem:[#allocation6 + $0xd0] sm:$0xff]
    %v1252 = vld [vmem:[#allocation6 + $0xd8] sm:$0xff]
    %v1253 = vld [vmem:[#allocation6 + $0xe0] sm:$0xff]
    %v1254 = vld [vmem:[#allocation6 + $0xe8] sm:$0xff]
    %v1255 = vld [vmem:[#allocation6 + $0xf0] sm:$0xff]
    %v1256 = vld [vmem:[#allocation6 + $0xf8] sm:$0xff]
    %v1257 = vld [vmem:[#allocation6 + $0x100] sm:$0xff]
    %v1258 = vld [vmem:[#allocation6 + $0x108] sm:$0xff]
    %v1259 = vld [vmem:[#allocation6 + $0x110] sm:$0xff]
    %v1260 = vld [vmem:[#allocation6 + $0x118] sm:$0xff]
    %v1261 = vld [vmem:[#allocation6 + $0x120] sm:$0xff]
    %v1262 = vld [vmem:[#allocation6 + $0x128] sm:$0xff]
    %v1263 = vld [vmem:[#allocation6 + $0x130] sm:$0xff]
    %v1264 = vld [vmem:[#allocation6 + $0x138] sm:$0xff]
    %v1265 = vld [vmem:[#allocation6 + $0x140] sm:$0xff]
    %v1266 = vld [vmem:[#allocation6 + $0x148] sm:$0xff]
    %v1267 = vld [vmem:[#allocation6 + $0x150] sm:$0xff]
    %v1268 = vld [vmem:[#allocation6 + $0x158] sm:$0xff]
    %v1269 = vld [vmem:[#allocation6 + $0x160] sm:$0xff]
    %v1270 = vld [vmem:[#allocation6 + $0x168] sm:$0xff]
    %v1271 = vld [vmem:[#allocation6 + $0x170] sm:$0xff]
    %v1272 = vld [vmem:[#allocation6 + $0x178] sm:$0xff]
    %v1273 = vld [vmem:[#allocation6 + $0x180] sm:$0xff]
    %v1274 = vld [vmem:[#allocation6 + $0x188] sm:$0xff]
    %v1275 = vld [vmem:[#allocation6 + $0x190] sm:$0xff]
    %v1276 = vld [vmem:[#allocation6 + $0x198] sm:$0xff]
    %v1277 = vld [vmem:[#allocation6 + $0x1a0] sm:$0xff]
    %v1278 = vld [vmem:[#allocation6 + $0x1a8] sm:$0xff]
    %v1279 = vld [vmem:[#allocation6 + $0x1b0] sm:$0xff]
    %v1280 = vld [vmem:[#allocation6 + $0x1b8] sm:$0xff]
    %v1281 = vld [vmem:[#allocation6 + $0x1c0] sm:$0xff]
    %v1282 = vld [vmem:[#allocation6 + $0x1c8] sm:$0xff]
    %v1283 = vld [vmem:[#allocation6 + $0x1d0] sm:$0xff]
    %v1284 = vld [vmem:[#allocation6 + $0x1d8] sm:$0xff]
    %v1285 = vld [vmem:[#allocation6 + $0x1e0] sm:$0xff]
    %v1286 = vld [vmem:[#allocation6 + $0x1e8] sm:$0xff]
    %v1287 = vld [vmem:[#allocation6 + $0x1f0] sm:$0xff]
    %v1288 = vld [vmem:[#allocation6 + $0x1f8] sm:$0xff]
    %1289 = vmatprep.subr.mxu0 %v1226
    %1290 = vmatpush1.msra.mxu0 %v1225
    %1291 = vmatprep.subr.mxu0 %v1230
    %1292 = vmatpush1.msra.mxu0 %v1229
    %1293 = vmatprep.subr.mxu0 %v1234
    %1294 = vmatpush1.msra.mxu0 %v1233
    %1295 = vmatprep.subr.mxu0 %v1238
    %1296 = vmatpush1.msra.mxu0 %v1237
    %1297 = vmatprep.subr.mxu0 %v1242
    %1298 = vmatpush1.msra.mxu0 %v1241
    %1299 = vmatprep.subr.mxu0 %v1246
    %1300 = vmatpush1.msra.mxu0 %v1245
    %1301 = vmatprep.subr.mxu0 %v1250
    %1302 = vmatpush1.msra.mxu0 %v1249
    %1303 = vmatprep.subr.mxu0 %v1254
    %1304 = vmatpush1.msra.mxu0 %v1253
    %1305 = vmatprep.subr.mxu0 %v1258
    %1306 = vmatpush1.msra.mxu0 %v1257
    %1307 = vmatprep.subr.mxu0 %v1262
    %1308 = vmatpush1.msra.mxu0 %v1261
    %1309 = vmatprep.subr.mxu0 %v1266
    %1310 = vmatpush1.msra.mxu0 %v1265
    %1311 = vmatprep.subr.mxu0 %v1270
    %1312 = vmatpush1.msra.mxu0 %v1269
    %1313 = vmatprep.subr.mxu0 %v1274
    %1314 = vmatpush1.msra.mxu0 %v1273
    %1315 = vmatprep.subr.mxu0 %v1278
    %1316 = vmatpush1.msra.mxu0 %v1277
    %1317 = vmatprep.subr.mxu0 %v1282
    %1318 = vmatpush1.msra.mxu0 %v1281
    %1319 = vmatprep.subr.mxu0 %v1286
    %1320 = vmatpush1.msra.mxu0 %v1285
    %1321 = vmatprep.subr.mxu0 0.0
    %1322 = vmatpush1.msra.mxu0 0.0
    %1323 = vmatprep.subr.mxu0 0.0
    %1324 = vmatpush1.msra.mxu0 0.0
    %1325 = vmatprep.subr.mxu0 0.0
    %1326 = vmatpush1.msra.mxu0 0.0
    %1327 = vmatprep.subr.mxu0 0.0
    %1328 = vmatpush1.msra.mxu0 0.0
    %1329 = vmatprep.subr.mxu0 0.0
    %1330 = vmatpush1.msra.mxu0 0.0
    %1331 = vmatprep.subr.mxu0 0.0
    %1332 = vmatpush1.msra.mxu0 0.0
    %1333 = vmatprep.subr.mxu0 0.0
    %1334 = vmatpush1.msra.mxu0 0.0
    %1335 = vmatprep.subr.mxu0 0.0
    %1336 = vmatpush1.msra.mxu0 0.0
    %1337 = vmatprep.subr.mxu0 0.0
    %1338 = vmatpush1.msra.mxu0 0.0
    %1339 = vmatprep.subr.mxu0 0.0
    %1340 = vmatpush1.msra.mxu0 0.0
    %1341 = vmatprep.subr.mxu0 0.0
    %1342 = vmatpush1.msra.mxu0 0.0
    %1343 = vmatprep.subr.mxu0 0.0
    %1344 = vmatpush1.msra.mxu0 0.0
    %1345 = vmatprep.subr.mxu0 0.0
    %1346 = vmatpush1.msra.mxu0 0.0
    %1347 = vmatprep.subr.mxu0 0.0
    %1348 = vmatpush1.msra.mxu0 0.0
    %1349 = vmatprep.subr.mxu0 0.0
    %1350 = vmatpush1.msra.mxu0 0.0
    %1351 = vmatprep.subr.mxu0 0.0
    %1352 = vmatpush1.msra.mxu0 0.0
    %1353 = vmatprep.mubr.f32.mxu0 0.0
    %1354 = vmatmul.mubr.f32.gmra.mrb[0].mxu0 %v1210
    %v1355 = vpop.f32.mrb[0].mxu0
    %v1356 = vadd.f32 0.0, %v1355
    %v1357 = vpop.f32.mrb[0].mxu0
    %v1358 = vadd.f32 0.0, %v1357
    %1359 = vdwg.mxu0
    %1360 = vmatprep.subr.mxu0 %v1228
    %1361 = vmatpush1.msra.mxu0 %v1227
    %1362 = vmatprep.subr.mxu0 %v1232
    %1363 = vmatpush1.msra.mxu0 %v1231
    %1364 = vmatprep.subr.mxu0 %v1236
    %1365 = vmatpush1.msra.mxu0 %v1235
    %1366 = vmatprep.subr.mxu0 %v1240
    %1367 = vmatpush1.msra.mxu0 %v1239
    %1368 = vmatprep.subr.mxu0 %v1244
    %1369 = vmatpush1.msra.mxu0 %v1243
    %1370 = vmatprep.subr.mxu0 %v1248
    %1371 = vmatpush1.msra.mxu0 %v1247
    %1372 = vmatprep.subr.mxu0 %v1252
    %1373 = vmatpush1.msra.mxu0 %v1251
    %1374 = vmatprep.subr.mxu0 %v1256
    %1375 = vmatpush1.msra.mxu0 %v1255
    %1376 = vmatprep.subr.mxu0 %v1260
    %1377 = vmatpush1.msra.mxu0 %v1259
    %1378 = vmatprep.subr.mxu0 %v1264
    %1379 = vmatpush1.msra.mxu0 %v1263
    %1380 = vmatprep.subr.mxu0 %v1268
    %1381 = vmatpush1.msra.mxu0 %v1267
    %1382 = vmatprep.subr.mxu0 %v1272
    %1383 = vmatpush1.msra.mxu0 %v1271
    %1384 = vmatprep.subr.mxu0 %v1276
    %1385 = vmatpush1.msra.mxu0 %v1275
    %1386 = vmatprep.subr.mxu0 %v1280
    %1387 = vmatpush1.msra.mxu0 %v1279
    %1388 = vmatprep.subr.mxu0 %v1284
    %1389 = vmatpush1.msra.mxu0 %v1283
    %1390 = vmatprep.subr.mxu0 %v1288
    %1391 = vmatpush1.msra.mxu0 %v1287
    %1392 = vmatprep.subr.mxu0 0.0
    %1393 = vmatpush1.msra.mxu0 0.0
    %1394 = vmatprep.subr.mxu0 0.0
    %1395 = vmatpush1.msra.mxu0 0.0
    %1396 = vmatprep.subr.mxu0 0.0
    %1397 = vmatpush1.msra.mxu0 0.0
    %1398 = vmatprep.subr.mxu0 0.0
    %1399 = vmatpush1.msra.mxu0 0.0
    %1400 = vmatprep.subr.mxu0 0.0
    %1401 = vmatpush1.msra.mxu0 0.0
    %1402 = vmatprep.subr.mxu0 0.0
    %1403 = vmatpush1.msra.mxu0 0.0
    %1404 = vmatprep.subr.mxu0 0.0
    %1405 = vmatpush1.msra.mxu0 0.0
    %1406 = vmatprep.subr.mxu0 0.0
    %1407 = vmatpush1.msra.mxu0 0.0
    %1408 = vmatprep.subr.mxu0 0.0
    %1409 = vmatpush1.msra.mxu0 0.0
    %1410 = vmatprep.subr.mxu0 0.0
    %1411 = vmatpush1.msra.mxu0 0.0
    %1412 = vmatprep.subr.mxu0 0.0
    %1413 = vmatpush1.msra.mxu0 0.0
    %1414 = vmatprep.subr.mxu0 0.0
    %1415 = vmatpush1.msra.mxu0 0.0
    %1416 = vmatprep.subr.mxu0 0.0
    %1417 = vmatpush1.msra.mxu0 0.0
    %1418 = vmatprep.subr.mxu0 0.0
    %1419 = vmatpush1.msra.mxu0 0.0
    %1420 = vmatprep.subr.mxu0 0.0
    %1421 = vmatpush1.msra.mxu0 0.0
    %1422 = vmatprep.subr.mxu0 0.0
    %1423 = vmatpush1.msra.mxu0 0.0
    %1424 = vmatprep.mubr.f32.mxu0 0.0
    %1425 = vmatmul.mubr.f32.gmra.mrb[0].mxu0 %v1210
    %v1426 = vpop.f32.mrb[0].mxu0
    %v1427 = vadd.f32 0.0, %v1426
    %v1428 = vpop.f32.mrb[0].mxu0
    %v1429 = vadd.f32 0.0, %v1428
    %1430 = vdwg.mxu0
    %v1431 = vadd.f32 %v1221, %v1356
    %v1432 = vadd.f32 %v1222, %v1358
    %v1433 = vadd.f32 %v1223, %v1427
    %v1434 = vadd.f32 %v1224, %v1429
    %v1435 = vxor.u32 %v1431, 2147483648
    %v1436 = vmul.f32 %v1435, 1.442695
    %v1437 = vpow.pop %v1436
    %v1438 = vadd.f32 %v1437, 1.0
    %v1439 = vrcp.pop %v1438
    %v1440 = vmul.f32 1.0, %v1439
    %v1441 = vxor.u32 %v1432, 2147483648
    %v1442 = vmul.f32 %v1441, 1.442695
    %v1443 = vpow.pop %v1442
    %v1444 = vadd.f32 %v1443, 1.0
    %v1445 = vrcp.pop %v1444
    %v1446 = vmul.f32 1.0, %v1445
    %v1447 = vtanh.pop %v1433
    %v1448 = vxor.u32 %v1434, 2147483648
    %v1449 = vmul.f32 %v1448, 1.442695
    %v1450 = vpow.pop %v1449
    %v1451 = vadd.f32 %v1450, 1.0
    %v1452 = vrcp.pop %v1451
    %v1453 = vmul.f32 1.0, %v1452
    %v1454 = vmul.f32 %v1446, %v1208
    %v1455 = vmul.f32 %v1440, %v1447
    %v1456 = vadd.f32 %v1454, %v1455
    %v1457 = vtanh.pop %v1456
    %v1458 = vmul.f32 %v1453, %v1457
    %1459 = vst [vmem:[#allocation4 + $0x10] sm:$0xff] %v1458
    %1460 = vst [vmem:[#allocation5 + $0x28] sm:$0xff] %v1458
    %v1461 = vld [vmem:[#allocation2 + $0x60] sm:$0xff]
    %v1462 = vld [vmem:[#allocation2 + $0x68] sm:$0xff]
    %v1463 = vld [vmem:[#allocation2 + $0x70] sm:$0xff]
    %v1464 = vld [vmem:[#allocation2 + $0x78] sm:$0xff]
    %v1465 = vld [vmem:[#allocation3 + $0x80] sm:$0xff]
    %v1466 = vld [vmem:[#allocation3 + $0x88] sm:$0xff]
    %v1467 = vld [vmem:[#allocation3 + $0x90] sm:$0xff]
    %v1468 = vld [vmem:[#allocation3 + $0x98] sm:$0xff]
    %v1469 = vadd.f32 %v1461, %v1465
    %v1470 = vadd.f32 %v1462, %v1466
    %v1471 = vadd.f32 %v1463, %v1467
    %v1472 = vadd.f32 %v1464, %v1468
    %v1473 = vld [vmem:[#allocation6] sm:$0xff]
    %v1474 = vld [vmem:[#allocation6 + $0x8] sm:$0xff]
    %v1475 = vld [vmem:[#allocation6 + $0x10] sm:$0xff]
    %v1476 = vld [vmem:[#allocation6 + $0x18] sm:$0xff]
    %v1477 = vld [vmem:[#allocation6 + $0x20] sm:$0xff]
    %v1478 = vld [vmem:[#allocation6 + $0x28] sm:$0xff]
    %v1479 = vld [vmem:[#allocation6 + $0x30] sm:$0xff]
    %v1480 = vld [vmem:[#allocation6 + $0x38] sm:$0xff]
    %v1481 = vld [vmem:[#allocation6 + $0x40] sm:$0xff]
    %v1482 = vld [vmem:[#allocation6 + $0x48] sm:$0xff]
    %v1483 = vld [vmem:[#allocation6 + $0x50] sm:$0xff]
    %v1484 = vld [vmem:[#allocation6 + $0x58] sm:$0xff]
    %v1485 = vld [vmem:[#allocation6 + $0x60] sm:$0xff]
    %v1486 = vld [vmem:[#allocation6 + $0x68] sm:$0xff]
    %v1487 = vld [vmem:[#allocation6 + $0x70] sm:$0xff]
    %v1488 = vld [vmem:[#allocation6 + $0x78] sm:$0xff]
    %v1489 = vld [vmem:[#allocation6 + $0x80] sm:$0xff]
    %v1490 = vld [vmem:[#allocation6 + $0x88] sm:$0xff]
    %v1491 = vld [vmem:[#allocation6 + $0x90] sm:$0xff]
    %v1492 = vld [vmem:[#allocation6 + $0x98] sm:$0xff]
    %v1493 = vld [vmem:[#allocation6 + $0xa0] sm:$0xff]
    %v1494 = vld [vmem:[#allocation6 + $0xa8] sm:$0xff]
    %v1495 = vld [vmem:[#allocation6 + $0xb0] sm:$0xff]
    %v1496 = vld [vmem:[#allocation6 + $0xb8] sm:$0xff]
    %v1497 = vld [vmem:[#allocation6 + $0xc0] sm:$0xff]
    %v1498 = vld [vmem:[#allocation6 + $0xc8] sm:$0xff]
    %v1499 = vld [vmem:[#allocation6 + $0xd0] sm:$0xff]
    %v1500 = vld [vmem:[#allocation6 + $0xd8] sm:$0xff]
    %v1501 = vld [vmem:[#allocation6 + $0xe0] sm:$0xff]
    %v1502 = vld [vmem:[#allocation6 + $0xe8] sm:$0xff]
    %v1503 = vld [vmem:[#allocation6 + $0xf0] sm:$0xff]
    %v1504 = vld [vmem:[#allocation6 + $0xf8] sm:$0xff]
    %v1505 = vld [vmem:[#allocation6 + $0x100] sm:$0xff]
    %v1506 = vld [vmem:[#allocation6 + $0x108] sm:$0xff]
    %v1507 = vld [vmem:[#allocation6 + $0x110] sm:$0xff]
    %v1508 = vld [vmem:[#allocation6 + $0x118] sm:$0xff]
    %v1509 = vld [vmem:[#allocation6 + $0x120] sm:$0xff]
    %v1510 = vld [vmem:[#allocation6 + $0x128] sm:$0xff]
    %v1511 = vld [vmem:[#allocation6 + $0x130] sm:$0xff]
    %v1512 = vld [vmem:[#allocation6 + $0x138] sm:$0xff]
    %v1513 = vld [vmem:[#allocation6 + $0x140] sm:$0xff]
    %v1514 = vld [vmem:[#allocation6 + $0x148] sm:$0xff]
    %v1515 = vld [vmem:[#allocation6 + $0x150] sm:$0xff]
    %v1516 = vld [vmem:[#allocation6 + $0x158] sm:$0xff]
    %v1517 = vld [vmem:[#allocation6 + $0x160] sm:$0xff]
    %v1518 = vld [vmem:[#allocation6 + $0x168] sm:$0xff]
    %v1519 = vld [vmem:[#allocation6 + $0x170] sm:$0xff]
    %v1520 = vld [vmem:[#allocation6 + $0x178] sm:$0xff]
    %v1521 = vld [vmem:[#allocation6 + $0x180] sm:$0xff]
    %v1522 = vld [vmem:[#allocation6 + $0x188] sm:$0xff]
    %v1523 = vld [vmem:[#allocation6 + $0x190] sm:$0xff]
    %v1524 = vld [vmem:[#allocation6 + $0x198] sm:$0xff]
    %v1525 = vld [vmem:[#allocation6 + $0x1a0] sm:$0xff]
    %v1526 = vld [vmem:[#allocation6 + $0x1a8] sm:$0xff]
    %v1527 = vld [vmem:[#allocation6 + $0x1b0] sm:$0xff]
    %v1528 = vld [vmem:[#allocation6 + $0x1b8] sm:$0xff]
    %v1529 = vld [vmem:[#allocation6 + $0x1c0] sm:$0xff]
    %v1530 = vld [vmem:[#allocation6 + $0x1c8] sm:$0xff]
    %v1531 = vld [vmem:[#allocation6 + $0x1d0] sm:$0xff]
    %v1532 = vld [vmem:[#allocation6 + $0x1d8] sm:$0xff]
    %v1533 = vld [vmem:[#allocation6 + $0x1e0] sm:$0xff]
    %v1534 = vld [vmem:[#allocation6 + $0x1e8] sm:$0xff]
    %v1535 = vld [vmem:[#allocation6 + $0x1f0] sm:$0xff]
    %v1536 = vld [vmem:[#allocation6 + $0x1f8] sm:$0xff]
    %1537 = vmatprep.subr.mxu0 %v1474
    %1538 = vmatpush1.msra.mxu0 %v1473
    %1539 = vmatprep.subr.mxu0 %v1478
    %1540 = vmatpush1.msra.mxu0 %v1477
    %1541 = vmatprep.subr.mxu0 %v1482
    %1542 = vmatpush1.msra.mxu0 %v1481
    %1543 = vmatprep.subr.mxu0 %v1486
    %1544 = vmatpush1.msra.mxu0 %v1485
    %1545 = vmatprep.subr.mxu0 %v1490
    %1546 = vmatpush1.msra.mxu0 %v1489
    %1547 = vmatprep.subr.mxu0 %v1494
    %1548 = vmatpush1.msra.mxu0 %v1493
    %1549 = vmatprep.subr.mxu0 %v1498
    %1550 = vmatpush1.msra.mxu0 %v1497
    %1551 = vmatprep.subr.mxu0 %v1502
    %1552 = vmatpush1.msra.mxu0 %v1501
    %1553 = vmatprep.subr.mxu0 %v1506
    %1554 = vmatpush1.msra.mxu0 %v1505
    %1555 = vmatprep.subr.mxu0 %v1510
    %1556 = vmatpush1.msra.mxu0 %v1509
    %1557 = vmatprep.subr.mxu0 %v1514
    %1558 = vmatpush1.msra.mxu0 %v1513
    %1559 = vmatprep.subr.mxu0 %v1518
    %1560 = vmatpush1.msra.mxu0 %v1517
    %1561 = vmatprep.subr.mxu0 %v1522
    %1562 = vmatpush1.msra.mxu0 %v1521
    %1563 = vmatprep.subr.mxu0 %v1526
    %1564 = vmatpush1.msra.mxu0 %v1525
    %1565 = vmatprep.subr.mxu0 %v1530
    %1566 = vmatpush1.msra.mxu0 %v1529
    %1567 = vmatprep.subr.mxu0 %v1534
    %1568 = vmatpush1.msra.mxu0 %v1533
    %1569 = vmatprep.subr.mxu0 0.0
    %1570 = vmatpush1.msra.mxu0 0.0
    %1571 = vmatprep.subr.mxu0 0.0
    %1572 = vmatpush1.msra.mxu0 0.0
    %1573 = vmatprep.subr.mxu0 0.0
    %1574 = vmatpush1.msra.mxu0 0.0
    %1575 = vmatprep.subr.mxu0 0.0
    %1576 = vmatpush1.msra.mxu0 0.0
    %1577 = vmatprep.subr.mxu0 0.0
    %1578 = vmatpush1.msra.mxu0 0.0
    %1579 = vmatprep.subr.mxu0 0.0
    %1580 = vmatpush1.msra.mxu0 0.0
    %1581 = vmatprep.subr.mxu0 0.0
    %1582 = vmatpush1.msra.mxu0 0.0
    %1583 = vmatprep.subr.mxu0 0.0
    %1584 = vmatpush1.msra.mxu0 0.0
    %1585 = vmatprep.subr.mxu0 0.0
    %1586 = vmatpush1.msra.mxu0 0.0
    %1587 = vmatprep.subr.mxu0 0.0
    %1588 = vmatpush1.msra.mxu0 0.0
    %1589 = vmatprep.subr.mxu0 0.0
    %1590 = vmatpush1.msra.mxu0 0.0
    %1591 = vmatprep.subr.mxu0 0.0
    %1592 = vmatpush1.msra.mxu0 0.0
    %1593 = vmatprep.subr.mxu0 0.0
    %1594 = vmatpush1.msra.mxu0 0.0
    %1595 = vmatprep.subr.mxu0 0.0
    %1596 = vmatpush1.msra.mxu0 0.0
    %1597 = vmatprep.subr.mxu0 0.0
    %1598 = vmatpush1.msra.mxu0 0.0
    %1599 = vmatprep.subr.mxu0 0.0
    %1600 = vmatpush1.msra.mxu0 0.0
    %1601 = vmatprep.mubr.f32.mxu0 0.0
    %1602 = vmatmul.mubr.f32.gmra.mrb[0].mxu0 %v1458
    %v1603 = vpop.f32.mrb[0].mxu0
    %v1604 = vadd.f32 0.0, %v1603
    %v1605 = vpop.f32.mrb[0].mxu0
    %v1606 = vadd.f32 0.0, %v1605
    %1607 = vdwg.mxu0
    %1608 = vmatprep.subr.mxu0 %v1476
    %1609 = vmatpush1.msra.mxu0 %v1475
    %1610 = vmatprep.subr.mxu0 %v1480
    %1611 = vmatpush1.msra.mxu0 %v1479
    %1612 = vmatprep.subr.mxu0 %v1484
    %1613 = vmatpush1.msra.mxu0 %v1483
    %1614 = vmatprep.subr.mxu0 %v1488
    %1615 = vmatpush1.msra.mxu0 %v1487
    %1616 = vmatprep.subr.mxu0 %v1492
    %1617 = vmatpush1.msra.mxu0 %v1491
    %1618 = vmatprep.subr.mxu0 %v1496
    %1619 = vmatpush1.msra.mxu0 %v1495
    %1620 = vmatprep.subr.mxu0 %v1500
    %1621 = vmatpush1.msra.mxu0 %v1499
    %1622 = vmatprep.subr.mxu0 %v1504
    %1623 = vmatpush1.msra.mxu0 %v1503
    %1624 = vmatprep.subr.mxu0 %v1508
    %1625 = vmatpush1.msra.mxu0 %v1507
    %1626 = vmatprep.subr.mxu0 %v1512
    %1627 = vmatpush1.msra.mxu0 %v1511
    %1628 = vmatprep.subr.mxu0 %v1516
    %1629 = vmatpush1.msra.mxu0 %v1515
    %1630 = vmatprep.subr.mxu0 %v1520
    %1631 = vmatpush1.msra.mxu0 %v1519
    %1632 = vmatprep.subr.mxu0 %v1524
    %1633 = vmatpush1.msra.mxu0 %v1523
    %1634 = vmatprep.subr.mxu0 %v1528
    %1635 = vmatpush1.msra.mxu0 %v1527
    %1636 = vmatprep.subr.mxu0 %v1532
    %1637 = vmatpush1.msra.mxu0 %v1531
    %1638 = vmatprep.subr.mxu0 %v1536
    %1639 = vmatpush1.msra.mxu0 %v1535
    %1640 = vmatprep.subr.mxu0 0.0
    %1641 = vmatpush1.msra.mxu0 0.0
    %1642 = vmatprep.subr.mxu0 0.0
    %1643 = vmatpush1.msra.mxu0 0.0
    %1644 = vmatprep.subr.mxu0 0.0
    %1645 = vmatpush1.msra.mxu0 0.0
    %1646 = vmatprep.subr.mxu0 0.0
    %1647 = vmatpush1.msra.mxu0 0.0
    %1648 = vmatprep.subr.mxu0 0.0
    %1649 = vmatpush1.msra.mxu0 0.0
    %1650 = vmatprep.subr.mxu0 0.0
    %1651 = vmatpush1.msra.mxu0 0.0
    %1652 = vmatprep.subr.mxu0 0.0
    %1653 = vmatpush1.msra.mxu0 0.0
    %1654 = vmatprep.subr.mxu0 0.0
    %1655 = vmatpush1.msra.mxu0 0.0
    %1656 = vmatprep.subr.mxu0 0.0
    %1657 = vmatpush1.msra.mxu0 0.0
    %1658 = vmatprep.subr.mxu0 0.0
    %1659 = vmatpush1.msra.mxu0 0.0
    %1660 = vmatprep.subr.mxu0 0.0
    %1661 = vmatpush1.msra.mxu0 0.0
    %1662 = vmatprep.subr.mxu0 0.0
    %1663 = vmatpush1.msra.mxu0 0.0
    %1664 = vmatprep.subr.mxu0 0.0
    %1665 = vmatpush1.msra.mxu0 0.0
    %1666 = vmatprep.subr.mxu0 0.0
    %1667 = vmatpush1.msra.mxu0 0.0
    %1668 = vmatprep.subr.mxu0 0.0
    %1669 = vmatpush1.msra.mxu0 0.0
    %1670 = vmatprep.subr.mxu0 0.0
    %1671 = vmatpush1.msra.mxu0 0.0
    %1672 = vmatprep.mubr.f32.mxu0 0.0
    %1673 = vmatmul.mubr.f32.gmra.mrb[0].mxu0 %v1458
    %v1674 = vpop.f32.mrb[0].mxu0
    %v1675 = vadd.f32 0.0, %v1674
    %v1676 = vpop.f32.mrb[0].mxu0
    %v1677 = vadd.f32 0.0, %v1676
    %1678 = vdwg.mxu0
    %v1679 = vadd.f32 %v1469, %v1604
    %v1680 = vadd.f32 %v1470, %v1606
    %v1681 = vadd.f32 %v1471, %v1675
    %v1682 = vadd.f32 %v1472, %v1677
    %v1683 = vxor.u32 %v1679, 2147483648
    %v1684 = vmul.f32 %v1683, 1.442695
    %v1685 = vpow.pop %v1684
    %v1686 = vadd.f32 %v1685, 1.0
    %v1687 = vrcp.pop %v1686
    %v1688 = vmul.f32 1.0, %v1687
    %v1689 = vxor.u32 %v1680, 2147483648
    %v1690 = vmul.f32 %v1689, 1.442695
    %v1691 = vpow.pop %v1690
    %v1692 = vadd.f32 %v1691, 1.0
    %v1693 = vrcp.pop %v1692
    %v1694 = vmul.f32 1.0, %v1693
    %v1695 = vtanh.pop %v1681
    %v1696 = vxor.u32 %v1682, 2147483648
    %v1697 = vmul.f32 %v1696, 1.442695
    %v1698 = vpow.pop %v1697
    %v1699 = vadd.f32 %v1698, 1.0
    %v1700 = vrcp.pop %v1699
    %v1701 = vmul.f32 1.0, %v1700
    %v1702 = vmul.f32 %v1694, %v1456
    %v1703 = vmul.f32 %v1688, %v1695
    %v1704 = vadd.f32 %v1702, %v1703
    %v1705 = vtanh.pop %v1704
    %v1706 = vmul.f32 %v1701, %v1705
    %1707 = vst [vmem:[#allocation4 + $0x18] sm:$0xff] %v1706
    %1708 = vst [vmem:[#allocation5 + $0x20] sm:$0xff] %v1706
    %v1709 = vld [vmem:[#allocation2 + $0x80] sm:$0xff]
    %v1710 = vld [vmem:[#allocation2 + $0x88] sm:$0xff]
    %v1711 = vld [vmem:[#allocation2 + $0x90] sm:$0xff]
    %v1712 = vld [vmem:[#allocation2 + $0x98] sm:$0xff]
    %v1713 = vld [vmem:[#allocation3 + $0x60] sm:$0xff]
    %v1714 = vld [vmem:[#allocation3 + $0x68] sm:$0xff]
    %v1715 = vld [vmem:[#allocation3 + $0x70] sm:$0xff]
    %v1716 = vld [vmem:[#allocation3 + $0x78] sm:$0xff]
    %v1717 = vadd.f32 %v1709, %v1713
    %v1718 = vadd.f32 %v1710, %v1714
    %v1719 = vadd.f32 %v1711, %v1715
    %v1720 = vadd.f32 %v1712, %v1716
    %v1721 = vld [vmem:[#allocation6] sm:$0xff]
    %v1722 = vld [vmem:[#allocation6 + $0x8] sm:$0xff]
    %v1723 = vld [vmem:[#allocation6 + $0x10] sm:$0xff]
    %v1724 = vld [vmem:[#allocation6 + $0x18] sm:$0xff]
    %v1725 = vld [vmem:[#allocation6 + $0x20] sm:$0xff]
    %v1726 = vld [vmem:[#allocation6 + $0x28] sm:$0xff]
    %v1727 = vld [vmem:[#allocation6 + $0x30] sm:$0xff]
    %v1728 = vld [vmem:[#allocation6 + $0x38] sm:$0xff]
    %v1729 = vld [vmem:[#allocation6 + $0x40] sm:$0xff]
    %v1730 = vld [vmem:[#allocation6 + $0x48] sm:$0xff]
    %v1731 = vld [vmem:[#allocation6 + $0x50] sm:$0xff]
    %v1732 = vld [vmem:[#allocation6 + $0x58] sm:$0xff]
    %v1733 = vld [vmem:[#allocation6 + $0x60] sm:$0xff]
    %v1734 = vld [vmem:[#allocation6 + $0x68] sm:$0xff]
    %v1735 = vld [vmem:[#allocation6 + $0x70] sm:$0xff]
    %v1736 = vld [vmem:[#allocation6 + $0x78] sm:$0xff]
    %v1737 = vld [vmem:[#allocation6 + $0x80] sm:$0xff]
    %v1738 = vld [vmem:[#allocation6 + $0x88] sm:$0xff]
    %v1739 = vld [vmem:[#allocation6 + $0x90] sm:$0xff]
    %v1740 = vld [vmem:[#allocation6 + $0x98] sm:$0xff]
    %v1741 = vld [vmem:[#allocation6 + $0xa0] sm:$0xff]
    %v1742 = vld [vmem:[#allocation6 + $0xa8] sm:$0xff]
    %v1743 = vld [vmem:[#allocation6 + $0xb0] sm:$0xff]
    %v1744 = vld [vmem:[#allocation6 + $0xb8] sm:$0xff]
    %v1745 = vld [vmem:[#allocation6 + $0xc0] sm:$0xff]
    %v1746 = vld [vmem:[#allocation6 + $0xc8] sm:$0xff]
    %v1747 = vld [vmem:[#allocation6 + $0xd0] sm:$0xff]
    %v1748 = vld [vmem:[#allocation6 + $0xd8] sm:$0xff]
    %v1749 = vld [vmem:[#allocation6 + $0xe0] sm:$0xff]
    %v1750 = vld [vmem:[#allocation6 + $0xe8] sm:$0xff]
    %v1751 = vld [vmem:[#allocation6 + $0xf0] sm:$0xff]
    %v1752 = vld [vmem:[#allocation6 + $0xf8] sm:$0xff]
    %v1753 = vld [vmem:[#allocation6 + $0x100] sm:$0xff]
    %v1754 = vld [vmem:[#allocation6 + $0x108] sm:$0xff]
    %v1755 = vld [vmem:[#allocation6 + $0x110] sm:$0xff]
    %v1756 = vld [vmem:[#allocation6 + $0x118] sm:$0xff]
    %v1757 = vld [vmem:[#allocation6 + $0x120] sm:$0xff]
    %v1758 = vld [vmem:[#allocation6 + $0x128] sm:$0xff]
    %v1759 = vld [vmem:[#allocation6 + $0x130] sm:$0xff]
    %v1760 = vld [vmem:[#allocation6 + $0x138] sm:$0xff]
    %v1761 = vld [vmem:[#allocation6 + $0x140] sm:$0xff]
    %v1762 = vld [vmem:[#allocation6 + $0x148] sm:$0xff]
    %v1763 = vld [vmem:[#allocation6 + $0x150] sm:$0xff]
    %v1764 = vld [vmem:[#allocation6 + $0x158] sm:$0xff]
    %v1765 = vld [vmem:[#allocation6 + $0x160] sm:$0xff]
    %v1766 = vld [vmem:[#allocation6 + $0x168] sm:$0xff]
    %v1767 = vld [vmem:[#allocation6 + $0x170] sm:$0xff]
    %v1768 = vld [vmem:[#allocation6 + $0x178] sm:$0xff]
    %v1769 = vld [vmem:[#allocation6 + $0x180] sm:$0xff]
    %v1770 = vld [vmem:[#allocation6 + $0x188] sm:$0xff]
    %v1771 = vld [vmem:[#allocation6 + $0x190] sm:$0xff]
    %v1772 = vld [vmem:[#allocation6 + $0x198] sm:$0xff]
    %v1773 = vld [vmem:[#allocation6 + $0x1a0] sm:$0xff]
    %v1774 = vld [vmem:[#allocation6 + $0x1a8] sm:$0xff]
    %v1775 = vld [vmem:[#allocation6 + $0x1b0] sm:$0xff]
    %v1776 = vld [vmem:[#allocation6 + $0x1b8] sm:$0xff]
    %v1777 = vld [vmem:[#allocation6 + $0x1c0] sm:$0xff]
    %v1778 = vld [vmem:[#allocation6 + $0x1c8] sm:$0xff]
    %v1779 = vld [vmem:[#allocation6 + $0x1d0] sm:$0xff]
    %v1780 = vld [vmem:[#allocation6 + $0x1d8] sm:$0xff]
    %v1781 = vld [vmem:[#allocation6 + $0x1e0] sm:$0xff]
    %v1782 = vld [vmem:[#allocation6 + $0x1e8] sm:$0xff]
    %v1783 = vld [vmem:[#allocation6 + $0x1f0] sm:$0xff]
    %v1784 = vld [vmem:[#allocation6 + $0x1f8] sm:$0xff]
    %1785 = vmatprep.subr.mxu0 %v1722
    %1786 = vmatpush1.msra.mxu0 %v1721
    %1787 = vmatprep.subr.mxu0 %v1726
    %1788 = vmatpush1.msra.mxu0 %v1725
    %1789 = vmatprep.subr.mxu0 %v1730
    %1790 = vmatpush1.msra.mxu0 %v1729
    %1791 = vmatprep.subr.mxu0 %v1734
    %1792 = vmatpush1.msra.mxu0 %v1733
    %1793 = vmatprep.subr.mxu0 %v1738
    %1794 = vmatpush1.msra.mxu0 %v1737
    %1795 = vmatprep.subr.mxu0 %v1742
    %1796 = vmatpush1.msra.mxu0 %v1741
    %1797 = vmatprep.subr.mxu0 %v1746
    %1798 = vmatpush1.msra.mxu0 %v1745
    %1799 = vmatprep.subr.mxu0 %v1750
    %1800 = vmatpush1.msra.mxu0 %v1749
    %1801 = vmatprep.subr.mxu0 %v1754
    %1802 = vmatpush1.msra.mxu0 %v1753
    %1803 = vmatprep.subr.mxu0 %v1758
    %1804 = vmatpush1.msra.mxu0 %v1757
    %1805 = vmatprep.subr.mxu0 %v1762
    %1806 = vmatpush1.msra.mxu0 %v1761
    %1807 = vmatprep.subr.mxu0 %v1766
    %1808 = vmatpush1.msra.mxu0 %v1765
    %1809 = vmatprep.subr.mxu0 %v1770
    %1810 = vmatpush1.msra.mxu0 %v1769
    %1811 = vmatprep.subr.mxu0 %v1774
    %1812 = vmatpush1.msra.mxu0 %v1773
    %1813 = vmatprep.subr.mxu0 %v1778
    %1814 = vmatpush1.msra.mxu0 %v1777
    %1815 = vmatprep.subr.mxu0 %v1782
    %1816 = vmatpush1.msra.mxu0 %v1781
    %1817 = vmatprep.subr.mxu0 0.0
    %1818 = vmatpush1.msra.mxu0 0.0
    %1819 = vmatprep.subr.mxu0 0.0
    %1820 = vmatpush1.msra.mxu0 0.0
    %1821 = vmatprep.subr.mxu0 0.0
    %1822 = vmatpush1.msra.mxu0 0.0
    %1823 = vmatprep.subr.mxu0 0.0
    %1824 = vmatpush1.msra.mxu0 0.0
    %1825 = vmatprep.subr.mxu0 0.0
    %1826 = vmatpush1.msra.mxu0 0.0
    %1827 = vmatprep.subr.mxu0 0.0
    %1828 = vmatpush1.msra.mxu0 0.0
    %1829 = vmatprep.subr.mxu0 0.0
    %1830 = vmatpush1.msra.mxu0 0.0
    %1831 = vmatprep.subr.mxu0 0.0
    %1832 = vmatpush1.msra.mxu0 0.0
    %1833 = vmatprep.subr.mxu0 0.0
    %1834 = vmatpush1.msra.mxu0 0.0
    %1835 = vmatprep.subr.mxu0 0.0
    %1836 = vmatpush1.msra.mxu0 0.0
    %1837 = vmatprep.subr.mxu0 0.0
    %1838 = vmatpush1.msra.mxu0 0.0
    %1839 = vmatprep.subr.mxu0 0.0
    %1840 = vmatpush1.msra.mxu0 0.0
    %1841 = vmatprep.subr.mxu0 0.0
    %1842 = vmatpush1.msra.mxu0 0.0
    %1843 = vmatprep.subr.mxu0 0.0
    %1844 = vmatpush1.msra.mxu0 0.0
    %1845 = vmatprep.subr.mxu0 0.0
    %1846 = vmatpush1.msra.mxu0 0.0
    %1847 = vmatprep.subr.mxu0 0.0
    %1848 = vmatpush1.msra.mxu0 0.0
    %1849 = vmatprep.mubr.f32.mxu0 0.0
    %1850 = vmatmul.mubr.f32.gmra.mrb[0].mxu0 %v1706
    %v1851 = vpop.f32.mrb[0].mxu0
    %v1852 = vadd.f32 0.0, %v1851
    %v1853 = vpop.f32.mrb[0].mxu0
    %v1854 = vadd.f32 0.0, %v1853
    %1855 = vdwg.mxu0
    %1856 = vmatprep.subr.mxu0 %v1724
    %1857 = vmatpush1.msra.mxu0 %v1723
    %1858 = vmatprep.subr.mxu0 %v1728
    %1859 = vmatpush1.msra.mxu0 %v1727
    %1860 = vmatprep.subr.mxu0 %v1732
    %1861 = vmatpush1.msra.mxu0 %v1731
    %1862 = vmatprep.subr.mxu0 %v1736
    %1863 = vmatpush1.msra.mxu0 %v1735
    %1864 = vmatprep.subr.mxu0 %v1740
    %1865 = vmatpush1.msra.mxu0 %v1739
    %1866 = vmatprep.subr.mxu0 %v1744
    %1867 = vmatpush1.msra.mxu0 %v1743
    %1868 = vmatprep.subr.mxu0 %v1748
    %1869 = vmatpush1.msra.mxu0 %v1747
    %1870 = vmatprep.subr.mxu0 %v1752
    %1871 = vmatpush1.msra.mxu0 %v1751
    %1872 = vmatprep.subr.mxu0 %v1756
    %1873 = vmatpush1.msra.mxu0 %v1755
    %1874 = vmatprep.subr.mxu0 %v1760
    %1875 = vmatpush1.msra.mxu0 %v1759
    %1876 = vmatprep.subr.mxu0 %v1764
    %1877 = vmatpush1.msra.mxu0 %v1763
    %1878 = vmatprep.subr.mxu0 %v1768
    %1879 = vmatpush1.msra.mxu0 %v1767
    %1880 = vmatprep.subr.mxu0 %v1772
    %1881 = vmatpush1.msra.mxu0 %v1771
    %1882 = vmatprep.subr.mxu0 %v1776
    %1883 = vmatpush1.msra.mxu0 %v1775
    %1884 = vmatprep.subr.mxu0 %v1780
    %1885 = vmatpush1.msra.mxu0 %v1779
    %1886 = vmatprep.subr.mxu0 %v1784
    %1887 = vmatpush1.msra.mxu0 %v1783
    %1888 = vmatprep.subr.mxu0 0.0
    %1889 = vmatpush1.msra.mxu0 0.0
    %1890 = vmatprep.subr.mxu0 0.0
    %1891 = vmatpush1.msra.mxu0 0.0
    %1892 = vmatprep.subr.mxu0 0.0
    %1893 = vmatpush1.msra.mxu0 0.0
    %1894 = vmatprep.subr.mxu0 0.0
    %1895 = vmatpush1.msra.mxu0 0.0
    %1896 = vmatprep.subr.mxu0 0.0
    %1897 = vmatpush1.msra.mxu0 0.0
    %1898 = vmatprep.subr.mxu0 0.0
    %1899 = vmatpush1.msra.mxu0 0.0
    %1900 = vmatprep.subr.mxu0 0.0
    %1901 = vmatpush1.msra.mxu0 0.0
    %1902 = vmatprep.subr.mxu0 0.0
    %1903 = vmatpush1.msra.mxu0 0.0
    %1904 = vmatprep.subr.mxu0 0.0
    %1905 = vmatpush1.msra.mxu0 0.0
    %1906 = vmatprep.subr.mxu0 0.0
    %1907 = vmatpush1.msra.mxu0 0.0
    %1908 = vmatprep.subr.mxu0 0.0
    %1909 = vmatpush1.msra.mxu0 0.0
    %1910 = vmatprep.subr.mxu0 0.0
    %1911 = vmatpush1.msra.mxu0 0.0
    %1912 = vmatprep.subr.mxu0 0.0
    %1913 = vmatpush1.msra.mxu0 0.0
    %1914 = vmatprep.subr.mxu0 0.0
    %1915 = vmatpush1.msra.mxu0 0.0
    %1916 = vmatprep.subr.mxu0 0.0
    %1917 = vmatpush1.msra.mxu0 0.0
    %1918 = vmatprep.subr.mxu0 0.0
    %1919 = vmatpush1.msra.mxu0 0.0
    %1920 = vmatprep.mubr.f32.mxu0 0.0
    %1921 = vmatmul.mubr.f32.gmra.mrb[0].mxu0 %v1706
    %v1922 = vpop.f32.mrb[0].mxu0
    %v1923 = vadd.f32 0.0, %v1922
    %v1924 = vpop.f32.mrb[0].mxu0
    %v1925 = vadd.f32 0.0, %v1924
    %1926 = vdwg.mxu0
    %v1927 = vadd.f32 %v1717, %v1852
    %v1928 = vadd.f32 %v1718, %v1854
    %v1929 = vadd.f32 %v1719, %v1923
    %v1930 = vadd.f32 %v1720, %v1925
    %v1931 = vxor.u32 %v1927, 2147483648
    %v1932 = vmul.f32 %v1931, 1.442695
    %v1933 = vpow.pop %v1932
    %v1934 = vadd.f32 %v1933, 1.0
    %v1935 = vrcp.pop %v1934
    %v1936 = vmul.f32 1.0, %v1935
    %v1937 = vxor.u32 %v1928, 2147483648
    %v1938 = vmul.f32 %v1937, 1.442695
    %v1939 = vpow.pop %v1938
    %v1940 = vadd.f32 %v1939, 1.0
    %v1941 = vrcp.pop %v1940
    %v1942 = vmul.f32 1.0, %v1941
    %v1943 = vtanh.pop %v1929
    %v1944 = vxor.u32 %v1930, 2147483648
    %v1945 = vmul.f32 %v1944, 1.442695
    %v1946 = vpow.pop %v1945
    %v1947 = vadd.f32 %v1946, 1.0
    %v1948 = vrcp.pop %v1947
    %v1949 = vmul.f32 1.0, %v1948
    %v1950 = vmul.f32 %v1942, %v1704
    %v1951 = vmul.f32 %v1936, %v1943
    %v1952 = vadd.f32 %v1950, %v1951
    %v1953 = vtanh.pop %v1952
    %v1954 = vmul.f32 %v1949, %v1953
    %1955 = vst [vmem:[#allocation4 + $0x20] sm:$0xff] %v1954
    %1956 = vst [vmem:[#allocation5 + $0x18] sm:$0xff] %v1954
    %v1957 = vld [vmem:[#allocation2 + $0xa0] sm:$0xff]
    %v1958 = vld [vmem:[#allocation2 + $0xa8] sm:$0xff]
    %v1959 = vld [vmem:[#allocation2 + $0xb0] sm:$0xff]
    %v1960 = vld [vmem:[#allocation2 + $0xb8] sm:$0xff]
    %v1961 = vld [vmem:[#allocation3 + $0x40] sm:$0xff]
    %v1962 = vld [vmem:[#allocation3 + $0x48] sm:$0xff]
    %v1963 = vld [vmem:[#allocation3 + $0x50] sm:$0xff]
    %v1964 = vld [vmem:[#allocation3 + $0x58] sm:$0xff]
    %v1965 = vadd.f32 %v1957, %v1961
    %v1966 = vadd.f32 %v1958, %v1962
    %v1967 = vadd.f32 %v1959, %v1963
    %v1968 = vadd.f32 %v1960, %v1964
    %v1969 = vld [vmem:[#allocation6] sm:$0xff]
    %v1970 = vld [vmem:[#allocation6 + $0x8] sm:$0xff]
    %v1971 = vld [vmem:[#allocation6 + $0x10] sm:$0xff]
    %v1972 = vld [vmem:[#allocation6 + $0x18] sm:$0xff]
    %v1973 = vld [vmem:[#allocation6 + $0x20] sm:$0xff]
    %v1974 = vld [vmem:[#allocation6 + $0x28] sm:$0xff]
    %v1975 = vld [vmem:[#allocation6 + $0x30] sm:$0xff]
    %v1976 = vld [vmem:[#allocation6 + $0x38] sm:$0xff]
    %v1977 = vld [vmem:[#allocation6 + $0x40] sm:$0xff]
    %v1978 = vld [vmem:[#allocation6 + $0x48] sm:$0xff]
    %v1979 = vld [vmem:[#allocation6 + $0x50] sm:$0xff]
    %v1980 = vld [vmem:[#allocation6 + $0x58] sm:$0xff]
    %v1981 = vld [vmem:[#allocation6 + $0x60] sm:$0xff]
    %v1982 = vld [vmem:[#allocation6 + $0x68] sm:$0xff]
    %v1983 = vld [vmem:[#allocation6 + $0x70] sm:$0xff]
    %v1984 = vld [vmem:[#allocation6 + $0x78] sm:$0xff]
    %v1985 = vld [vmem:[#allocation6 + $0x80] sm:$0xff]
    %v1986 = vld [vmem:[#allocation6 + $0x88] sm:$0xff]
    %v1987 = vld [vmem:[#allocation6 + $0x90] sm:$0xff]
    %v1988 = vld [vmem:[#allocation6 + $0x98] sm:$0xff]
    %v1989 = vld [vmem:[#allocation6 + $0xa0] sm:$0xff]
    %v1990 = vld [vmem:[#allocation6 + $0xa8] sm:$0xff]
    %v1991 = vld [vmem:[#allocation6 + $0xb0] sm:$0xff]
    %v1992 = vld [vmem:[#allocation6 + $0xb8] sm:$0xff]
    %v1993 = vld [vmem:[#allocation6 + $0xc0] sm:$0xff]
    %v1994 = vld [vmem:[#allocation6 + $0xc8] sm:$0xff]
    %v1995 = vld [vmem:[#allocation6 + $0xd0] sm:$0xff]
    %v1996 = vld [vmem:[#allocation6 + $0xd8] sm:$0xff]
    %v1997 = vld [vmem:[#allocation6 + $0xe0] sm:$0xff]
    %v1998 = vld [vmem:[#allocation6 + $0xe8] sm:$0xff]
    %v1999 = vld [vmem:[#allocation6 + $0xf0] sm:$0xff]
    %v2000 = vld [vmem:[#allocation6 + $0xf8] sm:$0xff]
    %v2001 = vld [vmem:[#allocation6 + $0x100] sm:$0xff]
    %v2002 = vld [vmem:[#allocation6 + $0x108] sm:$0xff]
    %v2003 = vld [vmem:[#allocation6 + $0x110] sm:$0xff]
    %v2004 = vld [vmem:[#allocation6 + $0x118] sm:$0xff]
    %v2005 = vld [vmem:[#allocation6 + $0x120] sm:$0xff]
    %v2006 = vld [vmem:[#allocation6 + $0x128] sm:$0xff]
    %v2007 = vld [vmem:[#allocation6 + $0x130] sm:$0xff]
    %v2008 = vld [vmem:[#allocation6 + $0x138] sm:$0xff]
    %v2009 = vld [vmem:[#allocation6 + $0x140] sm:$0xff]
    %v2010 = vld [vmem:[#allocation6 + $0x148] sm:$0xff]
    %v2011 = vld [vmem:[#allocation6 + $0x150] sm:$0xff]
    %v2012 = vld [vmem:[#allocation6 + $0x158] sm:$0xff]
    %v2013 = vld [vmem:[#allocation6 + $0x160] sm:$0xff]
    %v2014 = vld [vmem:[#allocation6 + $0x168] sm:$0xff]
    %v2015 = vld [vmem:[#allocation6 + $0x170] sm:$0xff]
    %v2016 = vld [vmem:[#allocation6 + $0x178] sm:$0xff]
    %v2017 = vld [vmem:[#allocation6 + $0x180] sm:$0xff]
    %v2018 = vld [vmem:[#allocation6 + $0x188] sm:$0xff]
    %v2019 = vld [vmem:[#allocation6 + $0x190] sm:$0xff]
    %v2020 = vld [vmem:[#allocation6 + $0x198] sm:$0xff]
    %v2021 = vld [vmem:[#allocation6 + $0x1a0] sm:$0xff]
    %v2022 = vld [vmem:[#allocation6 + $0x1a8] sm:$0xff]
    %v2023 = vld [vmem:[#allocation6 + $0x1b0] sm:$0xff]
    %v2024 = vld [vmem:[#allocation6 + $0x1b8] sm:$0xff]
    %v2025 = vld [vmem:[#allocation6 + $0x1c0] sm:$0xff]
    %v2026 = vld [vmem:[#allocation6 + $0x1c8] sm:$0xff]
    %v2027 = vld [vmem:[#allocation6 + $0x1d0] sm:$0xff]
    %v2028 = vld [vmem:[#allocation6 + $0x1d8] sm:$0xff]
    %v2029 = vld [vmem:[#allocation6 + $0x1e0] sm:$0xff]
    %v2030 = vld [vmem:[#allocation6 + $0x1e8] sm:$0xff]
    %v2031 = vld [vmem:[#allocation6 + $0x1f0] sm:$0xff]
    %v2032 = vld [vmem:[#allocation6 + $0x1f8] sm:$0xff]
    %2033 = vmatprep.subr.mxu0 %v1970
    %2034 = vmatpush1.msra.mxu0 %v1969
    %2035 = vmatprep.subr.mxu0 %v1974
    %2036 = vmatpush1.msra.mxu0 %v1973
    %2037 = vmatprep.subr.mxu0 %v1978
    %2038 = vmatpush1.msra.mxu0 %v1977
    %2039 = vmatprep.subr.mxu0 %v1982
    %2040 = vmatpush1.msra.mxu0 %v1981
    %2041 = vmatprep.subr.mxu0 %v1986
    %2042 = vmatpush1.msra.mxu0 %v1985
    %2043 = vmatprep.subr.mxu0 %v1990
    %2044 = vmatpush1.msra.mxu0 %v1989
    %2045 = vmatprep.subr.mxu0 %v1994
    %2046 = vmatpush1.msra.mxu0 %v1993
    %2047 = vmatprep.subr.mxu0 %v1998
    %2048 = vmatpush1.msra.mxu0 %v1997
    %2049 = vmatprep.subr.mxu0 %v2002
    %2050 = vmatpush1.msra.mxu0 %v2001
    %2051 = vmatprep.subr.mxu0 %v2006
    %2052 = vmatpush1.msra.mxu0 %v2005
    %2053 = vmatprep.subr.mxu0 %v2010
    %2054 = vmatpush1.msra.mxu0 %v2009
    %2055 = vmatprep.subr.mxu0 %v2014
    %2056 = vmatpush1.msra.mxu0 %v2013
    %2057 = vmatprep.subr.mxu0 %v2018
    %2058 = vmatpush1.msra.mxu0 %v2017
    %2059 = vmatprep.subr.mxu0 %v2022
    %2060 = vmatpush1.msra.mxu0 %v2021
    %2061 = vmatprep.subr.mxu0 %v2026
    %2062 = vmatpush1.msra.mxu0 %v2025
    %2063 = vmatprep.subr.mxu0 %v2030
    %2064 = vmatpush1.msra.mxu0 %v2029
    %2065 = vmatprep.subr.mxu0 0.0
    %2066 = vmatpush1.msra.mxu0 0.0
    %2067 = vmatprep.subr.mxu0 0.0
    %2068 = vmatpush1.msra.mxu0 0.0
    %2069 = vmatprep.subr.mxu0 0.0
    %2070 = vmatpush1.msra.mxu0 0.0
    %2071 = vmatprep.subr.mxu0 0.0
    %2072 = vmatpush1.msra.mxu0 0.0
    %2073 = vmatprep.subr.mxu0 0.0
    %2074 = vmatpush1.msra.mxu0 0.0
    %2075 = vmatprep.subr.mxu0 0.0
    %2076 = vmatpush1.msra.mxu0 0.0
    %2077 = vmatprep.subr.mxu0 0.0
    %2078 = vmatpush1.msra.mxu0 0.0
    %2079 = vmatprep.subr.mxu0 0.0
    %2080 = vmatpush1.msra.mxu0 0.0
    %2081 = vmatprep.subr.mxu0 0.0
    %2082 = vmatpush1.msra.mxu0 0.0
    %2083 = vmatprep.subr.mxu0 0.0
    %2084 = vmatpush1.msra.mxu0 0.0
    %2085 = vmatprep.subr.mxu0 0.0
    %2086 = vmatpush1.msra.mxu0 0.0
    %2087 = vmatprep.subr.mxu0 0.0
    %2088 = vmatpush1.msra.mxu0 0.0
    %2089 = vmatprep.subr.mxu0 0.0
    %2090 = vmatpush1.msra.mxu0 0.0
    %2091 = vmatprep.subr.mxu0 0.0
    %2092 = vmatpush1.msra.mxu0 0.0
    %2093 = vmatprep.subr.mxu0 0.0
    %2094 = vmatpush1.msra.mxu0 0.0
    %2095 = vmatprep.subr.mxu0 0.0
    %2096 = vmatpush1.msra.mxu0 0.0
    %2097 = vmatprep.mubr.f32.mxu0 0.0
    %2098 = vmatmul.mubr.f32.gmra.mrb[0].mxu0 %v1954
    %v2099 = vpop.f32.mrb[0].mxu0
    %v2100 = vadd.f32 0.0, %v2099
    %v2101 = vpop.f32.mrb[0].mxu0
    %v2102 = vadd.f32 0.0, %v2101
    %2103 = vdwg.mxu0
    %2104 = vmatprep.subr.mxu0 %v1972
    %2105 = vmatpush1.msra.mxu0 %v1971
    %2106 = vmatprep.subr.mxu0 %v1976
    %2107 = vmatpush1.msra.mxu0 %v1975
    %2108 = vmatprep.subr.mxu0 %v1980
    %2109 = vmatpush1.msra.mxu0 %v1979
    %2110 = vmatprep.subr.mxu0 %v1984
    %2111 = vmatpush1.msra.mxu0 %v1983
    %2112 = vmatprep.subr.mxu0 %v1988
    %2113 = vmatpush1.msra.mxu0 %v1987
    %2114 = vmatprep.subr.mxu0 %v1992
    %2115 = vmatpush1.msra.mxu0 %v1991
    %2116 = vmatprep.subr.mxu0 %v1996
    %2117 = vmatpush1.msra.mxu0 %v1995
    %2118 = vmatprep.subr.mxu0 %v2000
    %2119 = vmatpush1.msra.mxu0 %v1999
    %2120 = vmatprep.subr.mxu0 %v2004
    %2121 = vmatpush1.msra.mxu0 %v2003
    %2122 = vmatprep.subr.mxu0 %v2008
    %2123 = vmatpush1.msra.mxu0 %v2007
    %2124 = vmatprep.subr.mxu0 %v2012
    %2125 = vmatpush1.msra.mxu0 %v2011
    %2126 = vmatprep.subr.mxu0 %v2016
    %2127 = vmatpush1.msra.mxu0 %v2015
    %2128 = vmatprep.subr.mxu0 %v2020
    %2129 = vmatpush1.msra.mxu0 %v2019
    %2130 = vmatprep.subr.mxu0 %v2024
    %2131 = vmatpush1.msra.mxu0 %v2023
    %2132 = vmatprep.subr.mxu0 %v2028
    %2133 = vmatpush1.msra.mxu0 %v2027
    %2134 = vmatprep.subr.mxu0 %v2032
    %2135 = vmatpush1.msra.mxu0 %v2031
    %2136 = vmatprep.subr.mxu0 0.0
    %2137 = vmatpush1.msra.mxu0 0.0
    %2138 = vmatprep.subr.mxu0 0.0
    %2139 = vmatpush1.msra.mxu0 0.0
    %2140 = vmatprep.subr.mxu0 0.0
    %2141 = vmatpush1.msra.mxu0 0.0
    %2142 = vmatprep.subr.mxu0 0.0
    %2143 = vmatpush1.msra.mxu0 0.0
    %2144 = vmatprep.subr.mxu0 0.0
    %2145 = vmatpush1.msra.mxu0 0.0
    %2146 = vmatprep.subr.mxu0 0.0
    %2147 = vmatpush1.msra.mxu0 0.0
    %2148 = vmatprep.subr.mxu0 0.0
    %2149 = vmatpush1.msra.mxu0 0.0
    %2150 = vmatprep.subr.mxu0 0.0
    %2151 = vmatpush1.msra.mxu0 0.0
    %2152 = vmatprep.subr.mxu0 0.0
    %2153 = vmatpush1.msra.mxu0 0.0
    %2154 = vmatprep.subr.mxu0 0.0
    %2155 = vmatpush1.msra.mxu0 0.0
    %2156 = vmatprep.subr.mxu0 0.0
    %2157 = vmatpush1.msra.mxu0 0.0
    %2158 = vmatprep.subr.mxu0 0.0
    %2159 = vmatpush1.msra.mxu0 0.0
    %2160 = vmatprep.subr.mxu0 0.0
    %2161 = vmatpush1.msra.mxu0 0.0
    %2162 = vmatprep.subr.mxu0 0.0
    %2163 = vmatpush1.msra.mxu0 0.0
    %2164 = vmatprep.subr.mxu0 0.0
    %2165 = vmatpush1.msra.mxu0 0.0
    %2166 = vmatprep.subr.mxu0 0.0
    %2167 = vmatpush1.msra.mxu0 0.0
    %2168 = vmatprep.mubr.f32.mxu0 0.0
    %2169 = vmatmul.mubr.f32.gmra.mrb[0].mxu0 %v1954
    %v2170 = vpop.f32.mrb[0].mxu0
    %v2171 = vadd.f32 0.0, %v2170
    %v2172 = vpop.f32.mrb[0].mxu0
    %v2173 = vadd.f32 0.0, %v2172
    %2174 = vdwg.mxu0
    %v2175 = vadd.f32 %v1965, %v2100
    %v2176 = vadd.f32 %v1966, %v2102
    %v2177 = vadd.f32 %v1967, %v2171
    %v2178 = vadd.f32 %v1968, %v2173
    %v2179 = vxor.u32 %v2175, 2147483648
    %v2180 = vmul.f32 %v2179, 1.442695
    %v2181 = vpow.pop %v2180
    %v2182 = vadd.f32 %v2181, 1.0
    %v2183 = vrcp.pop %v2182
    %v2184 = vmul.f32 1.0, %v2183
    %v2185 = vxor.u32 %v2176, 2147483648
    %v2186 = vmul.f32 %v2185, 1.442695
    %v2187 = vpow.pop %v2186
    %v2188 = vadd.f32 %v2187, 1.0
    %v2189 = vrcp.pop %v2188
    %v2190 = vmul.f32 1.0, %v2189
    %v2191 = vtanh.pop %v2177
    %v2192 = vxor.u32 %v2178, 2147483648
    %v2193 = vmul.f32 %v2192, 1.442695
    %v2194 = vpow.pop %v2193
    %v2195 = vadd.f32 %v2194, 1.0
    %v2196 = vrcp.pop %v2195
    %v2197 = vmul.f32 1.0, %v2196
    %v2198 = vmul.f32 %v2190, %v1952
    %v2199 = vmul.f32 %v2184, %v2191
    %v2200 = vadd.f32 %v2198, %v2199
    %v2201 = vtanh.pop %v2200
    %v2202 = vmul.f32 %v2197, %v2201
    %2203 = vst [vmem:[#allocation4 + $0x28] sm:$0xff] %v2202
    %2204 = vst [vmem:[#allocation5 + $0x10] sm:$0xff] %v2202
    %v2205 = vld [vmem:[#allocation2 + $0xc0] sm:$0xff]
    %v2206 = vld [vmem:[#allocation2 + $0xc8] sm:$0xff]
    %v2207 = vld [vmem:[#allocation2 + $0xd0] sm:$0xff]
    %v2208 = vld [vmem:[#allocation2 + $0xd8] sm:$0xff]
    %v2209 = vld [vmem:[#allocation3 + $0x20] sm:$0xff]
    %v2210 = vld [vmem:[#allocation3 + $0x28] sm:$0xff]
    %v2211 = vld [vmem:[#allocation3 + $0x30] sm:$0xff]
    %v2212 = vld [vmem:[#allocation3 + $0x38] sm:$0xff]
    %v2213 = vadd.f32 %v2205, %v2209
    %v2214 = vadd.f32 %v2206, %v2210
    %v2215 = vadd.f32 %v2207, %v2211
    %v2216 = vadd.f32 %v2208, %v2212
    %v2217 = vld [vmem:[#allocation6] sm:$0xff]
    %v2218 = vld [vmem:[#allocation6 + $0x8] sm:$0xff]
    %v2219 = vld [vmem:[#allocation6 + $0x10] sm:$0xff]
    %v2220 = vld [vmem:[#allocation6 + $0x18] sm:$0xff]
    %v2221 = vld [vmem:[#allocation6 + $0x20] sm:$0xff]
    %v2222 = vld [vmem:[#allocation6 + $0x28] sm:$0xff]
    %v2223 = vld [vmem:[#allocation6 + $0x30] sm:$0xff]
    %v2224 = vld [vmem:[#allocation6 + $0x38] sm:$0xff]
    %v2225 = vld [vmem:[#allocation6 + $0x40] sm:$0xff]
    %v2226 = vld [vmem:[#allocation6 + $0x48] sm:$0xff]
    %v2227 = vld [vmem:[#allocation6 + $0x50] sm:$0xff]
    %v2228 = vld [vmem:[#allocation6 + $0x58] sm:$0xff]
    %v2229 = vld [vmem:[#allocation6 + $0x60] sm:$0xff]
    %v2230 = vld [vmem:[#allocation6 + $0x68] sm:$0xff]
    %v2231 = vld [vmem:[#allocation6 + $0x70] sm:$0xff]
    %v2232 = vld [vmem:[#allocation6 + $0x78] sm:$0xff]
    %v2233 = vld [vmem:[#allocation6 + $0x80] sm:$0xff]
    %v2234 = vld [vmem:[#allocation6 + $0x88] sm:$0xff]
    %v2235 = vld [vmem:[#allocation6 + $0x90] sm:$0xff]
    %v2236 = vld [vmem:[#allocation6 + $0x98] sm:$0xff]
    %v2237 = vld [vmem:[#allocation6 + $0xa0] sm:$0xff]
    %v2238 = vld [vmem:[#allocation6 + $0xa8] sm:$0xff]
    %v2239 = vld [vmem:[#allocation6 + $0xb0] sm:$0xff]
    %v2240 = vld [vmem:[#allocation6 + $0xb8] sm:$0xff]
    %v2241 = vld [vmem:[#allocation6 + $0xc0] sm:$0xff]
    %v2242 = vld [vmem:[#allocation6 + $0xc8] sm:$0xff]
    %v2243 = vld [vmem:[#allocation6 + $0xd0] sm:$0xff]
    %v2244 = vld [vmem:[#allocation6 + $0xd8] sm:$0xff]
    %v2245 = vld [vmem:[#allocation6 + $0xe0] sm:$0xff]
    %v2246 = vld [vmem:[#allocation6 + $0xe8] sm:$0xff]
    %v2247 = vld [vmem:[#allocation6 + $0xf0] sm:$0xff]
    %v2248 = vld [vmem:[#allocation6 + $0xf8] sm:$0xff]
    %v2249 = vld [vmem:[#allocation6 + $0x100] sm:$0xff]
    %v2250 = vld [vmem:[#allocation6 + $0x108] sm:$0xff]
    %v2251 = vld [vmem:[#allocation6 + $0x110] sm:$0xff]
    %v2252 = vld [vmem:[#allocation6 + $0x118] sm:$0xff]
    %v2253 = vld [vmem:[#allocation6 + $0x120] sm:$0xff]
    %v2254 = vld [vmem:[#allocation6 + $0x128] sm:$0xff]
    %v2255 = vld [vmem:[#allocation6 + $0x130] sm:$0xff]
    %v2256 = vld [vmem:[#allocation6 + $0x138] sm:$0xff]
    %v2257 = vld [vmem:[#allocation6 + $0x140] sm:$0xff]
    %v2258 = vld [vmem:[#allocation6 + $0x148] sm:$0xff]
    %v2259 = vld [vmem:[#allocation6 + $0x150] sm:$0xff]
    %v2260 = vld [vmem:[#allocation6 + $0x158] sm:$0xff]
    %v2261 = vld [vmem:[#allocation6 + $0x160] sm:$0xff]
    %v2262 = vld [vmem:[#allocation6 + $0x168] sm:$0xff]
    %v2263 = vld [vmem:[#allocation6 + $0x170] sm:$0xff]
    %v2264 = vld [vmem:[#allocation6 + $0x178] sm:$0xff]
    %v2265 = vld [vmem:[#allocation6 + $0x180] sm:$0xff]
    %v2266 = vld [vmem:[#allocation6 + $0x188] sm:$0xff]
    %v2267 = vld [vmem:[#allocation6 + $0x190] sm:$0xff]
    %v2268 = vld [vmem:[#allocation6 + $0x198] sm:$0xff]
    %v2269 = vld [vmem:[#allocation6 + $0x1a0] sm:$0xff]
    %v2270 = vld [vmem:[#allocation6 + $0x1a8] sm:$0xff]
    %v2271 = vld [vmem:[#allocation6 + $0x1b0] sm:$0xff]
    %v2272 = vld [vmem:[#allocation6 + $0x1b8] sm:$0xff]
    %v2273 = vld [vmem:[#allocation6 + $0x1c0] sm:$0xff]
    %v2274 = vld [vmem:[#allocation6 + $0x1c8] sm:$0xff]
    %v2275 = vld [vmem:[#allocation6 + $0x1d0] sm:$0xff]
    %v2276 = vld [vmem:[#allocation6 + $0x1d8] sm:$0xff]
    %v2277 = vld [vmem:[#allocation6 + $0x1e0] sm:$0xff]
    %v2278 = vld [vmem:[#allocation6 + $0x1e8] sm:$0xff]
    %v2279 = vld [vmem:[#allocation6 + $0x1f0] sm:$0xff]
    %v2280 = vld [vmem:[#allocation6 + $0x1f8] sm:$0xff]
    %2281 = vmatprep.subr.mxu0 %v2218
    %2282 = vmatpush1.msra.mxu0 %v2217
    %2283 = vmatprep.subr.mxu0 %v2222
    %2284 = vmatpush1.msra.mxu0 %v2221
    %2285 = vmatprep.subr.mxu0 %v2226
    %2286 = vmatpush1.msra.mxu0 %v2225
    %2287 = vmatprep.subr.mxu0 %v2230
    %2288 = vmatpush1.msra.mxu0 %v2229
    %2289 = vmatprep.subr.mxu0 %v2234
    %2290 = vmatpush1.msra.mxu0 %v2233
    %2291 = vmatprep.subr.mxu0 %v2238
    %2292 = vmatpush1.msra.mxu0 %v2237
    %2293 = vmatprep.subr.mxu0 %v2242
    %2294 = vmatpush1.msra.mxu0 %v2241
    %2295 = vmatprep.subr.mxu0 %v2246
    %2296 = vmatpush1.msra.mxu0 %v2245
    %2297 = vmatprep.subr.mxu0 %v2250
    %2298 = vmatpush1.msra.mxu0 %v2249
    %2299 = vmatprep.subr.mxu0 %v2254
    %2300 = vmatpush1.msra.mxu0 %v2253
    %2301 = vmatprep.subr.mxu0 %v2258
    %2302 = vmatpush1.msra.mxu0 %v2257
    %2303 = vmatprep.subr.mxu0 %v2262
    %2304 = vmatpush1.msra.mxu0 %v2261
    %2305 = vmatprep.subr.mxu0 %v2266
    %2306 = vmatpush1.msra.mxu0 %v2265
    %2307 = vmatprep.subr.mxu0 %v2270
    %2308 = vmatpush1.msra.mxu0 %v2269
    %2309 = vmatprep.subr.mxu0 %v2274
    %2310 = vmatpush1.msra.mxu0 %v2273
    %2311 = vmatprep.subr.mxu0 %v2278
    %2312 = vmatpush1.msra.mxu0 %v2277
    %2313 = vmatprep.subr.mxu0 0.0
    %2314 = vmatpush1.msra.mxu0 0.0
    %2315 = vmatprep.subr.mxu0 0.0
    %2316 = vmatpush1.msra.mxu0 0.0
    %2317 = vmatprep.subr.mxu0 0.0
    %2318 = vmatpush1.msra.mxu0 0.0
    %2319 = vmatprep.subr.mxu0 0.0
    %2320 = vmatpush1.msra.mxu0 0.0
    %2321 = vmatprep.subr.mxu0 0.0
    %2322 = vmatpush1.msra.mxu0 0.0
    %2323 = vmatprep.subr.mxu0 0.0
    %2324 = vmatpush1.msra.mxu0 0.0
    %2325 = vmatprep.subr.mxu0 0.0
    %2326 = vmatpush1.msra.mxu0 0.0
    %2327 = vmatprep.subr.mxu0 0.0
    %2328 = vmatpush1.msra.mxu0 0.0
    %2329 = vmatprep.subr.mxu0 0.0
    %2330 = vmatpush1.msra.mxu0 0.0
    %2331 = vmatprep.subr.mxu0 0.0
    %2332 = vmatpush1.msra.mxu0 0.0
    %2333 = vmatprep.subr.mxu0 0.0
    %2334 = vmatpush1.msra.mxu0 0.0
    %2335 = vmatprep.subr.mxu0 0.0
    %2336 = vmatpush1.msra.mxu0 0.0
    %2337 = vmatprep.subr.mxu0 0.0
    %2338 = vmatpush1.msra.mxu0 0.0
    %2339 = vmatprep.subr.mxu0 0.0
    %2340 = vmatpush1.msra.mxu0 0.0
    %2341 = vmatprep.subr.mxu0 0.0
    %2342 = vmatpush1.msra.mxu0 0.0
    %2343 = vmatprep.subr.mxu0 0.0
    %2344 = vmatpush1.msra.mxu0 0.0
    %2345 = vmatprep.mubr.f32.mxu0 0.0
    %2346 = vmatmul.mubr.f32.gmra.mrb[0].mxu0 %v2202
    %v2347 = vpop.f32.mrb[0].mxu0
    %v2348 = vadd.f32 0.0, %v2347
    %v2349 = vpop.f32.mrb[0].mxu0
    %v2350 = vadd.f32 0.0, %v2349
    %2351 = vdwg.mxu0
    %2352 = vmatprep.subr.mxu0 %v2220
    %2353 = vmatpush1.msra.mxu0 %v2219
    %2354 = vmatprep.subr.mxu0 %v2224
    %2355 = vmatpush1.msra.mxu0 %v2223
    %2356 = vmatprep.subr.mxu0 %v2228
    %2357 = vmatpush1.msra.mxu0 %v2227
    %2358 = vmatprep.subr.mxu0 %v2232
    %2359 = vmatpush1.msra.mxu0 %v2231
    %2360 = vmatprep.subr.mxu0 %v2236
    %2361 = vmatpush1.msra.mxu0 %v2235
    %2362 = vmatprep.subr.mxu0 %v2240
    %2363 = vmatpush1.msra.mxu0 %v2239
    %2364 = vmatprep.subr.mxu0 %v2244
    %2365 = vmatpush1.msra.mxu0 %v2243
    %2366 = vmatprep.subr.mxu0 %v2248
    %2367 = vmatpush1.msra.mxu0 %v2247
    %2368 = vmatprep.subr.mxu0 %v2252
    %2369 = vmatpush1.msra.mxu0 %v2251
    %2370 = vmatprep.subr.mxu0 %v2256
    %2371 = vmatpush1.msra.mxu0 %v2255
    %2372 = vmatprep.subr.mxu0 %v2260
    %2373 = vmatpush1.msra.mxu0 %v2259
    %2374 = vmatprep.subr.mxu0 %v2264
    %2375 = vmatpush1.msra.mxu0 %v2263
    %2376 = vmatprep.subr.mxu0 %v2268
    %2377 = vmatpush1.msra.mxu0 %v2267
    %2378 = vmatprep.subr.mxu0 %v2272
    %2379 = vmatpush1.msra.mxu0 %v2271
    %2380 = vmatprep.subr.mxu0 %v2276
    %2381 = vmatpush1.msra.mxu0 %v2275
    %2382 = vmatprep.subr.mxu0 %v2280
    %2383 = vmatpush1.msra.mxu0 %v2279
    %2384 = vmatprep.subr.mxu0 0.0
    %2385 = vmatpush1.msra.mxu0 0.0
    %2386 = vmatprep.subr.mxu0 0.0
    %2387 = vmatpush1.msra.mxu0 0.0
    %2388 = vmatprep.subr.mxu0 0.0
    %2389 = vmatpush1.msra.mxu0 0.0
    %2390 = vmatprep.subr.mxu0 0.0
    %2391 = vmatpush1.msra.mxu0 0.0
    %2392 = vmatprep.subr.mxu0 0.0
    %2393 = vmatpush1.msra.mxu0 0.0
    %2394 = vmatprep.subr.mxu0 0.0
    %2395 = vmatpush1.msra.mxu0 0.0
    %2396 = vmatprep.subr.mxu0 0.0
    %2397 = vmatpush1.msra.mxu0 0.0
    %2398 = vmatprep.subr.mxu0 0.0
    %2399 = vmatpush1.msra.mxu0 0.0
    %2400 = vmatprep.subr.mxu0 0.0
    %2401 = vmatpush1.msra.mxu0 0.0
    %2402 = vmatprep.subr.mxu0 0.0
    %2403 = vmatpush1.msra.mxu0 0.0
    %2404 = vmatprep.subr.mxu0 0.0
    %2405 = vmatpush1.msra.mxu0 0.0
    %2406 = vmatprep.subr.mxu0 0.0
    %2407 = vmatpush1.msra.mxu0 0.0
    %2408 = vmatprep.subr.mxu0 0.0
    %2409 = vmatpush1.msra.mxu0 0.0
    %2410 = vmatprep.subr.mxu0 0.0
    %2411 = vmatpush1.msra.mxu0 0.0
    %2412 = vmatprep.subr.mxu0 0.0
    %2413 = vmatpush1.msra.mxu0 0.0
    %2414 = vmatprep.subr.mxu0 0.0
    %2415 = vmatpush1.msra.mxu0 0.0
    %2416 = vmatprep.mubr.f32.mxu0 0.0
    %2417 = vmatmul.mubr.f32.gmra.mrb[0].mxu0 %v2202
    %v2418 = vpop.f32.mrb[0].mxu0
    %v2419 = vadd.f32 0.0, %v2418
    %v2420 = vpop.f32.mrb[0].mxu0
    %v2421 = vadd.f32 0.0, %v2420
    %2422 = vdwg.mxu0
    %v2423 = vadd.f32 %v2213, %v2348
    %v2424 = vadd.f32 %v2214, %v2350
    %v2425 = vadd.f32 %v2215, %v2419
    %v2426 = vadd.f32 %v2216, %v2421
    %v2427 = vxor.u32 %v2423, 2147483648
    %v2428 = vmul.f32 %v2427, 1.442695
    %v2429 = vpow.pop %v2428
    %v2430 = vadd.f32 %v2429, 1.0
    %v2431 = vrcp.pop %v2430
    %v2432 = vmul.f32 1.0, %v2431
    %v2433 = vxor.u32 %v2424, 2147483648
    %v2434 = vmul.f32 %v2433, 1.442695
    %v2435 = vpow.pop %v2434
    %v2436 = vadd.f32 %v2435, 1.0
    %v2437 = vrcp.pop %v2436
    %v2438 = vmul.f32 1.0, %v2437
    %v2439 = vtanh.pop %v2425
    %v2440 = vxor.u32 %v2426, 2147483648
    %v2441 = vmul.f32 %v2440, 1.442695
    %v2442 = vpow.pop %v2441
    %v2443 = vadd.f32 %v2442, 1.0
    %v2444 = vrcp.pop %v2443
    %v2445 = vmul.f32 1.0, %v2444
    %v2446 = vmul.f32 %v2438, %v2200
    %v2447 = vmul.f32 %v2432, %v2439
    %v2448 = vadd.f32 %v2446, %v2447
    %v2449 = vtanh.pop %v2448
    %v2450 = vmul.f32 %v2445, %v2449
    %2451 = vst [vmem:[#allocation4 + $0x30] sm:$0xff] %v2450
    %2452 = vst [vmem:[#allocation5 + $0x8] sm:$0xff] %v2450
    %v2453 = vld [vmem:[#allocation2 + $0xe0] sm:$0xff]
    %v2454 = vld [vmem:[#allocation2 + $0xe8] sm:$0xff]
    %v2455 = vld [vmem:[#allocation2 + $0xf0] sm:$0xff]
    %v2456 = vld [vmem:[#allocation2 + $0xf8] sm:$0xff]
    %v2457 = vld [vmem:[#allocation3] sm:$0xff]
    %v2458 = vld [vmem:[#allocation3 + $0x8] sm:$0xff]
    %v2459 = vld [vmem:[#allocation3 + $0x10] sm:$0xff]
    %v2460 = vld [vmem:[#allocation3 + $0x18] sm:$0xff]
    %v2461 = vadd.f32 %v2453, %v2457
    %v2462 = vadd.f32 %v2454, %v2458
    %v2463 = vadd.f32 %v2455, %v2459
    %v2464 = vadd.f32 %v2456, %v2460
    %v2465 = vld [vmem:[#allocation6] sm:$0xff]
    %v2466 = vld [vmem:[#allocation6 + $0x8] sm:$0xff]
    %v2467 = vld [vmem:[#allocation6 + $0x10] sm:$0xff]
    %v2468 = vld [vmem:[#allocation6 + $0x18] sm:$0xff]
    %v2469 = vld [vmem:[#allocation6 + $0x20] sm:$0xff]
    %v2470 = vld [vmem:[#allocation6 + $0x28] sm:$0xff]
    %v2471 = vld [vmem:[#allocation6 + $0x30] sm:$0xff]
    %v2472 = vld [vmem:[#allocation6 + $0x38] sm:$0xff]
    %v2473 = vld [vmem:[#allocation6 + $0x40] sm:$0xff]
    %v2474 = vld [vmem:[#allocation6 + $0x48] sm:$0xff]
    %v2475 = vld [vmem:[#allocation6 + $0x50] sm:$0xff]
    %v2476 = vld [vmem:[#allocation6 + $0x58] sm:$0xff]
    %v2477 = vld [vmem:[#allocation6 + $0x60] sm:$0xff]
    %v2478 = vld [vmem:[#allocation6 + $0x68] sm:$0xff]
    %v2479 = vld [vmem:[#allocation6 + $0x70] sm:$0xff]
    %v2480 = vld [vmem:[#allocation6 + $0x78] sm:$0xff]
    %v2481 = vld [vmem:[#allocation6 + $0x80] sm:$0xff]
    %v2482 = vld [vmem:[#allocation6 + $0x88] sm:$0xff]
    %v2483 = vld [vmem:[#allocation6 + $0x90] sm:$0xff]
    %v2484 = vld [vmem:[#allocation6 + $0x98] sm:$0xff]
    %v2485 = vld [vmem:[#allocation6 + $0xa0] sm:$0xff]
    %v2486 = vld [vmem:[#allocation6 + $0xa8] sm:$0xff]
    %v2487 = vld [vmem:[#allocation6 + $0xb0] sm:$0xff]
    %v2488 = vld [vmem:[#allocation6 + $0xb8] sm:$0xff]
    %v2489 = vld [vmem:[#allocation6 + $0xc0] sm:$0xff]
    %v2490 = vld [vmem:[#allocation6 + $0xc8] sm:$0xff]
    %v2491 = vld [vmem:[#allocation6 + $0xd0] sm:$0xff]
    %v2492 = vld [vmem:[#allocation6 + $0xd8] sm:$0xff]
    %v2493 = vld [vmem:[#allocation6 + $0xe0] sm:$0xff]
    %v2494 = vld [vmem:[#allocation6 + $0xe8] sm:$0xff]
    %v2495 = vld [vmem:[#allocation6 + $0xf0] sm:$0xff]
    %v2496 = vld [vmem:[#allocation6 + $0xf8] sm:$0xff]
    %v2497 = vld [vmem:[#allocation6 + $0x100] sm:$0xff]
    %v2498 = vld [vmem:[#allocation6 + $0x108] sm:$0xff]
    %v2499 = vld [vmem:[#allocation6 + $0x110] sm:$0xff]
    %v2500 = vld [vmem:[#allocation6 + $0x118] sm:$0xff]
    %v2501 = vld [vmem:[#allocation6 + $0x120] sm:$0xff]
    %v2502 = vld [vmem:[#allocation6 + $0x128] sm:$0xff]
    %v2503 = vld [vmem:[#allocation6 + $0x130] sm:$0xff]
    %v2504 = vld [vmem:[#allocation6 + $0x138] sm:$0xff]
    %v2505 = vld [vmem:[#allocation6 + $0x140] sm:$0xff]
    %v2506 = vld [vmem:[#allocation6 + $0x148] sm:$0xff]
    %v2507 = vld [vmem:[#allocation6 + $0x150] sm:$0xff]
    %v2508 = vld [vmem:[#allocation6 + $0x158] sm:$0xff]
    %v2509 = vld [vmem:[#allocation6 + $0x160] sm:$0xff]
    %v2510 = vld [vmem:[#allocation6 + $0x168] sm:$0xff]
    %v2511 = vld [vmem:[#allocation6 + $0x170] sm:$0xff]
    %v2512 = vld [vmem:[#allocation6 + $0x178] sm:$0xff]
    %v2513 = vld [vmem:[#allocation6 + $0x180] sm:$0xff]
    %v2514 = vld [vmem:[#allocation6 + $0x188] sm:$0xff]
    %v2515 = vld [vmem:[#allocation6 + $0x190] sm:$0xff]
    %v2516 = vld [vmem:[#allocation6 + $0x198] sm:$0xff]
    %v2517 = vld [vmem:[#allocation6 + $0x1a0] sm:$0xff]
    %v2518 = vld [vmem:[#allocation6 + $0x1a8] sm:$0xff]
    %v2519 = vld [vmem:[#allocation6 + $0x1b0] sm:$0xff]
    %v2520 = vld [vmem:[#allocation6 + $0x1b8] sm:$0xff]
    %v2521 = vld [vmem:[#allocation6 + $0x1c0] sm:$0xff]
    %v2522 = vld [vmem:[#allocation6 + $0x1c8] sm:$0xff]
    %v2523 = vld [vmem:[#allocation6 + $0x1d0] sm:$0xff]
    %v2524 = vld [vmem:[#allocation6 + $0x1d8] sm:$0xff]
    %v2525 = vld [vmem:[#allocation6 + $0x1e0] sm:$0xff]
    %v2526 = vld [vmem:[#allocation6 + $0x1e8] sm:$0xff]
    %v2527 = vld [vmem:[#allocation6 + $0x1f0] sm:$0xff]
    %v2528 = vld [vmem:[#allocation6 + $0x1f8] sm:$0xff]
    %2529 = vmatprep.subr.mxu0 %v2466
    %2530 = vmatpush1.msra.mxu0 %v2465
    %2531 = vmatprep.subr.mxu0 %v2470
    %2532 = vmatpush1.msra.mxu0 %v2469
    %2533 = vmatprep.subr.mxu0 %v2474
    %2534 = vmatpush1.msra.mxu0 %v2473
    %2535 = vmatprep.subr.mxu0 %v2478
    %2536 = vmatpush1.msra.mxu0 %v2477
    %2537 = vmatprep.subr.mxu0 %v2482
    %2538 = vmatpush1.msra.mxu0 %v2481
    %2539 = vmatprep.subr.mxu0 %v2486
    %2540 = vmatpush1.msra.mxu0 %v2485
    %2541 = vmatprep.subr.mxu0 %v2490
    %2542 = vmatpush1.msra.mxu0 %v2489
    %2543 = vmatprep.subr.mxu0 %v2494
    %2544 = vmatpush1.msra.mxu0 %v2493
    %2545 = vmatprep.subr.mxu0 %v2498
    %2546 = vmatpush1.msra.mxu0 %v2497
    %2547 = vmatprep.subr.mxu0 %v2502
    %2548 = vmatpush1.msra.mxu0 %v2501
    %2549 = vmatprep.subr.mxu0 %v2506
    %2550 = vmatpush1.msra.mxu0 %v2505
    %2551 = vmatprep.subr.mxu0 %v2510
    %2552 = vmatpush1.msra.mxu0 %v2509
    %2553 = vmatprep.subr.mxu0 %v2514
    %2554 = vmatpush1.msra.mxu0 %v2513
    %2555 = vmatprep.subr.mxu0 %v2518
    %2556 = vmatpush1.msra.mxu0 %v2517
    %2557 = vmatprep.subr.mxu0 %v2522
    %2558 = vmatpush1.msra.mxu0 %v2521
    %2559 = vmatprep.subr.mxu0 %v2526
    %2560 = vmatpush1.msra.mxu0 %v2525
    %2561 = vmatprep.subr.mxu0 0.0
    %2562 = vmatpush1.msra.mxu0 0.0
    %2563 = vmatprep.subr.mxu0 0.0
    %2564 = vmatpush1.msra.mxu0 0.0
    %2565 = vmatprep.subr.mxu0 0.0
    %2566 = vmatpush1.msra.mxu0 0.0
    %2567 = vmatprep.subr.mxu0 0.0
    %2568 = vmatpush1.msra.mxu0 0.0
    %2569 = vmatprep.subr.mxu0 0.0
    %2570 = vmatpush1.msra.mxu0 0.0
    %2571 = vmatprep.subr.mxu0 0.0
    %2572 = vmatpush1.msra.mxu0 0.0
    %2573 = vmatprep.subr.mxu0 0.0
    %2574 = vmatpush1.msra.mxu0 0.0
    %2575 = vmatprep.subr.mxu0 0.0
    %2576 = vmatpush1.msra.mxu0 0.0
    %2577 = vmatprep.subr.mxu0 0.0
    %2578 = vmatpush1.msra.mxu0 0.0
    %2579 = vmatprep.subr.mxu0 0.0
    %2580 = vmatpush1.msra.mxu0 0.0
    %2581 = vmatprep.subr.mxu0 0.0
    %2582 = vmatpush1.msra.mxu0 0.0
    %2583 = vmatprep.subr.mxu0 0.0
    %2584 = vmatpush1.msra.mxu0 0.0
    %2585 = vmatprep.subr.mxu0 0.0
    %2586 = vmatpush1.msra.mxu0 0.0
    %2587 = vmatprep.subr.mxu0 0.0
    %2588 = vmatpush1.msra.mxu0 0.0
    %2589 = vmatprep.subr.mxu0 0.0
    %2590 = vmatpush1.msra.mxu0 0.0
    %2591 = vmatprep.subr.mxu0 0.0
    %2592 = vmatpush1.msra.mxu0 0.0
    %2593 = vmatprep.mubr.f32.mxu0 0.0
    %2594 = vmatmul.mubr.f32.gmra.mrb[0].mxu0 %v2450
    %v2595 = vpop.f32.mrb[0].mxu0
    %v2596 = vadd.f32 0.0, %v2595
    %v2597 = vpop.f32.mrb[0].mxu0
    %v2598 = vadd.f32 0.0, %v2597
    %2599 = vdwg.mxu0
    %2600 = vmatprep.subr.mxu0 %v2468
    %2601 = vmatpush1.msra.mxu0 %v2467
    %2602 = vmatprep.subr.mxu0 %v2472
    %2603 = vmatpush1.msra.mxu0 %v2471
    %2604 = vmatprep.subr.mxu0 %v2476
    %2605 = vmatpush1.msra.mxu0 %v2475
    %2606 = vmatprep.subr.mxu0 %v2480
    %2607 = vmatpush1.msra.mxu0 %v2479
    %2608 = vmatprep.subr.mxu0 %v2484
    %2609 = vmatpush1.msra.mxu0 %v2483
    %2610 = vmatprep.subr.mxu0 %v2488
    %2611 = vmatpush1.msra.mxu0 %v2487
    %2612 = vmatprep.subr.mxu0 %v2492
    %2613 = vmatpush1.msra.mxu0 %v2491
    %2614 = vmatprep.subr.mxu0 %v2496
    %2615 = vmatpush1.msra.mxu0 %v2495
    %2616 = vmatprep.subr.mxu0 %v2500
    %2617 = vmatpush1.msra.mxu0 %v2499
    %2618 = vmatprep.subr.mxu0 %v2504
    %2619 = vmatpush1.msra.mxu0 %v2503
    %2620 = vmatprep.subr.mxu0 %v2508
    %2621 = vmatpush1.msra.mxu0 %v2507
    %2622 = vmatprep.subr.mxu0 %v2512
    %2623 = vmatpush1.msra.mxu0 %v2511
    %2624 = vmatprep.subr.mxu0 %v2516
    %2625 = vmatpush1.msra.mxu0 %v2515
    %2626 = vmatprep.subr.mxu0 %v2520
    %2627 = vmatpush1.msra.mxu0 %v2519
    %2628 = vmatprep.subr.mxu0 %v2524
    %2629 = vmatpush1.msra.mxu0 %v2523
    %2630 = vmatprep.subr.mxu0 %v2528
    %2631 = vmatpush1.msra.mxu0 %v2527
    %2632 = vmatprep.subr.mxu0 0.0
    %2633 = vmatpush1.msra.mxu0 0.0
    %2634 = vmatprep.subr.mxu0 0.0
    %2635 = vmatpush1.msra.mxu0 0.0
    %2636 = vmatprep.subr.mxu0 0.0
    %2637 = vmatpush1.msra.mxu0 0.0
    %2638 = vmatprep.subr.mxu0 0.0
    %2639 = vmatpush1.msra.mxu0 0.0
    %2640 = vmatprep.subr.mxu0 0.0
    %2641 = vmatpush1.msra.mxu0 0.0
    %2642 = vmatprep.subr.mxu0 0.0
    %2643 = vmatpush1.msra.mxu0 0.0
    %2644 = vmatprep.subr.mxu0 0.0
    %2645 = vmatpush1.msra.mxu0 0.0
    %2646 = vmatprep.subr.mxu0 0.0
    %2647 = vmatpush1.msra.mxu0 0.0
    %2648 = vmatprep.subr.mxu0 0.0
    %2649 = vmatpush1.msra.mxu0 0.0
    %2650 = vmatprep.subr.mxu0 0.0
    %2651 = vmatpush1.msra.mxu0 0.0
    %2652 = vmatprep.subr.mxu0 0.0
    %2653 = vmatpush1.msra.mxu0 0.0
    %2654 = vmatprep.subr.mxu0 0.0
    %2655 = vmatpush1.msra.mxu0 0.0
    %2656 = vmatprep.subr.mxu0 0.0
    %2657 = vmatpush1.msra.mxu0 0.0
    %2658 = vmatprep.subr.mxu0 0.0
    %2659 = vmatpush1.msra.mxu0 0.0
    %2660 = vmatprep.subr.mxu0 0.0
    %2661 = vmatpush1.msra.mxu0 0.0
    %2662 = vmatprep.subr.mxu0 0.0
    %2663 = vmatpush1.msra.mxu0 0.0
    %2664 = vmatprep.mubr.f32.mxu0 0.0
    %2665 = vmatmul.mubr.f32.gmra.mrb[0].mxu0 %v2450
    %v2666 = vpop.f32.mrb[0].mxu0
    %v2667 = vadd.f32 0.0, %v2666
    %v2668 = vpop.f32.mrb[0].mxu0
    %v2669 = vadd.f32 0.0, %v2668
    %2670 = vdwg.mxu0
    %v2671 = vadd.f32 %v2461, %v2596
    %v2672 = vadd.f32 %v2462, %v2598
    %v2673 = vadd.f32 %v2463, %v2667
    %v2674 = vadd.f32 %v2464, %v2669
    %v2675 = vxor.u32 %v2671, 2147483648
    %v2676 = vmul.f32 %v2675, 1.442695
    %v2677 = vpow.pop %v2676
    %v2678 = vadd.f32 %v2677, 1.0
    %v2679 = vrcp.pop %v2678
    %v2680 = vmul.f32 1.0, %v2679
    %v2681 = vxor.u32 %v2672, 2147483648
    %v2682 = vmul.f32 %v2681, 1.442695
    %v2683 = vpow.pop %v2682
    %v2684 = vadd.f32 %v2683, 1.0
    %v2685 = vrcp.pop %v2684
    %v2686 = vmul.f32 1.0, %v2685
    %v2687 = vtanh.pop %v2673
    %v2688 = vxor.u32 %v2674, 2147483648
    %v2689 = vmul.f32 %v2688, 1.442695
    %v2690 = vpow.pop %v2689
    %v2691 = vadd.f32 %v2690, 1.0
    %v2692 = vrcp.pop %v2691
    %v2693 = vmul.f32 1.0, %v2692
    %v2694 = vmul.f32 %v2686, %v2448
    %v2695 = vmul.f32 %v2680, %v2687
    %v2696 = vadd.f32 %v2694, %v2695
    %v2697 = vtanh.pop %v2696
    %v2698 = vmul.f32 %v2693, %v2697
    %2699 = vst [vmem:[#allocation4 + $0x38] sm:$0xff] %v2698
    %2700 = vst [vmem:[#allocation5] sm:$0xff] %v2698
    %v2701 = vld [vmem:[#allocation4] sm:$0xff]
    %v2702 = vld [vmem:[#allocation4 + $0x8] sm:$0xff]
    %v2703 = vld [vmem:[#allocation4 + $0x10] sm:$0xff]
    %v2704 = vld [vmem:[#allocation4 + $0x18] sm:$0xff]
    %v2705 = vld [vmem:[#allocation4 + $0x20] sm:$0xff]
    %v2706 = vld [vmem:[#allocation4 + $0x28] sm:$0xff]
    %v2707 = vld [vmem:[#allocation4 + $0x30] sm:$0xff]
    %v2708 = vld [vmem:[#allocation4 + $0x38] sm:$0xff]
    %v2709 = vld [vmem:[#allocation5] sm:$0xff]
    %v2710 = vld [vmem:[#allocation5 + $0x8] sm:$0xff]
    %v2711 = vld [vmem:[#allocation5 + $0x10] sm:$0xff]
    %v2712 = vld [vmem:[#allocation5 + $0x18] sm:$0xff]
    %v2713 = vld [vmem:[#allocation5 + $0x20] sm:$0xff]
    %v2714 = vld [vmem:[#allocation5 + $0x28] sm:$0xff]
    %v2715 = vld [vmem:[#allocation5 + $0x30] sm:$0xff]
    %v2716 = vld [vmem:[#allocation5 + $0x38] sm:$0xff]
    %v2717 = vld [vmem:[#allocation9] sm:$0xff]
    %v2718 = vld [vmem:[#allocation9 + $0x8] sm:$0xff]
    %v2719 = vld [vmem:[#allocation9 + $0x10] sm:$0xff]
    %v2720 = vld [vmem:[#allocation9 + $0x18] sm:$0xff]
    %v2721 = vld [vmem:[#allocation9 + $0x20] sm:$0xff]
    %v2722 = vld [vmem:[#allocation9 + $0x28] sm:$0xff]
    %v2723 = vld [vmem:[#allocation9 + $0x30] sm:$0xff]
    %v2724 = vld [vmem:[#allocation9 + $0x38] sm:$0xff]
    %v2725 = vld [vmem:[#allocation9 + $0x40] sm:$0xff]
    %v2726 = vld [vmem:[#allocation9 + $0x48] sm:$0xff]
    %v2727 = vld [vmem:[#allocation9 + $0x50] sm:$0xff]
    %v2728 = vld [vmem:[#allocation9 + $0x58] sm:$0xff]
    %v2729 = vld [vmem:[#allocation9 + $0x60] sm:$0xff]
    %v2730 = vld [vmem:[#allocation9 + $0x68] sm:$0xff]
    %v2731 = vld [vmem:[#allocation9 + $0x70] sm:$0xff]
    %v2732 = vld [vmem:[#allocation9 + $0x78] sm:$0xff]
    %v2733 = vld [vmem:[#allocation9 + $0x80] sm:$0xff]
    %v2734 = vld [vmem:[#allocation9 + $0x88] sm:$0xff]
    %v2735 = vld [vmem:[#allocation9 + $0x90] sm:$0xff]
    %v2736 = vld [vmem:[#allocation9 + $0x98] sm:$0xff]
    %v2737 = vld [vmem:[#allocation9 + $0xa0] sm:$0xff]
    %v2738 = vld [vmem:[#allocation9 + $0xa8] sm:$0xff]
    %v2739 = vld [vmem:[#allocation9 + $0xb0] sm:$0xff]
    %v2740 = vld [vmem:[#allocation9 + $0xb8] sm:$0xff]
    %v2741 = vld [vmem:[#allocation9 + $0xc0] sm:$0xff]
    %v2742 = vld [vmem:[#allocation9 + $0xc8] sm:$0xff]
    %v2743 = vld [vmem:[#allocation9 + $0xd0] sm:$0xff]
    %v2744 = vld [vmem:[#allocation9 + $0xd8] sm:$0xff]
    %v2745 = vld [vmem:[#allocation9 + $0xe0] sm:$0xff]
    %v2746 = vld [vmem:[#allocation9 + $0xe8] sm:$0xff]
    %v2747 = vld [vmem:[#allocation9 + $0xf0] sm:$0xff]
    %v2748 = vld [vmem:[#allocation9 + $0xf8] sm:$0xff]
    %v2749 = vld [vmem:[#allocation9 + $0x100] sm:$0xff]
    %v2750 = vld [vmem:[#allocation9 + $0x108] sm:$0xff]
    %v2751 = vld [vmem:[#allocation9 + $0x110] sm:$0xff]
    %v2752 = vld [vmem:[#allocation9 + $0x118] sm:$0xff]
    %v2753 = vld [vmem:[#allocation9 + $0x120] sm:$0xff]
    %v2754 = vld [vmem:[#allocation9 + $0x128] sm:$0xff]
    %v2755 = vld [vmem:[#allocation9 + $0x130] sm:$0xff]
    %v2756 = vld [vmem:[#allocation9 + $0x138] sm:$0xff]
    %v2757 = vld [vmem:[#allocation9 + $0x140] sm:$0xff]
    %v2758 = vld [vmem:[#allocation9 + $0x148] sm:$0xff]
    %v2759 = vld [vmem:[#allocation9 + $0x150] sm:$0xff]
    %v2760 = vld [vmem:[#allocation9 + $0x158] sm:$0xff]
    %v2761 = vld [vmem:[#allocation9 + $0x160] sm:$0xff]
    %v2762 = vld [vmem:[#allocation9 + $0x168] sm:$0xff]
    %v2763 = vld [vmem:[#allocation9 + $0x170] sm:$0xff]
    %v2764 = vld [vmem:[#allocation9 + $0x178] sm:$0xff]
    %v2765 = vld [vmem:[#allocation9 + $0x180] sm:$0xff]
    %v2766 = vld [vmem:[#allocation9 + $0x188] sm:$0xff]
    %v2767 = vld [vmem:[#allocation9 + $0x190] sm:$0xff]
    %v2768 = vld [vmem:[#allocation9 + $0x198] sm:$0xff]
    %v2769 = vld [vmem:[#allocation9 + $0x1a0] sm:$0xff]
    %v2770 = vld [vmem:[#allocation9 + $0x1a8] sm:$0xff]
    %v2771 = vld [vmem:[#allocation9 + $0x1b0] sm:$0xff]
    %v2772 = vld [vmem:[#allocation9 + $0x1b8] sm:$0xff]
    %v2773 = vld [vmem:[#allocation9 + $0x1c0] sm:$0xff]
    %v2774 = vld [vmem:[#allocation9 + $0x1c8] sm:$0xff]
    %v2775 = vld [vmem:[#allocation9 + $0x1d0] sm:$0xff]
    %v2776 = vld [vmem:[#allocation9 + $0x1d8] sm:$0xff]
    %v2777 = vld [vmem:[#allocation9 + $0x1e0] sm:$0xff]
    %v2778 = vld [vmem:[#allocation9 + $0x1e8] sm:$0xff]
    %v2779 = vld [vmem:[#allocation9 + $0x1f0] sm:$0xff]
    %v2780 = vld [vmem:[#allocation9 + $0x1f8] sm:$0xff]
    %v2781 = vld [vmem:[#allocation11] sm:$0xff]
    %v2782 = vld [vmem:[#allocation11 + $0x8] sm:$0xff]
    %v2783 = vld [vmem:[#allocation11 + $0x10] sm:$0xff]
    %v2784 = vld [vmem:[#allocation11 + $0x18] sm:$0xff]
    %v2785 = vld [vmem:[#allocation11 + $0x20] sm:$0xff]
    %v2786 = vld [vmem:[#allocation11 + $0x28] sm:$0xff]
    %v2787 = vld [vmem:[#allocation11 + $0x30] sm:$0xff]
    %v2788 = vld [vmem:[#allocation11 + $0x38] sm:$0xff]
    %v2789 = vld [vmem:[#allocation11 + $0x40] sm:$0xff]
    %v2790 = vld [vmem:[#allocation11 + $0x48] sm:$0xff]
    %v2791 = vld [vmem:[#allocation11 + $0x50] sm:$0xff]
    %v2792 = vld [vmem:[#allocation11 + $0x58] sm:$0xff]
    %v2793 = vld [vmem:[#allocation11 + $0x60] sm:$0xff]
    %v2794 = vld [vmem:[#allocation11 + $0x68] sm:$0xff]
    %v2795 = vld [vmem:[#allocation11 + $0x70] sm:$0xff]
    %v2796 = vld [vmem:[#allocation11 + $0x78] sm:$0xff]
    %v2797 = vld [vmem:[#allocation11 + $0x80] sm:$0xff]
    %v2798 = vld [vmem:[#allocation11 + $0x88] sm:$0xff]
    %v2799 = vld [vmem:[#allocation11 + $0x90] sm:$0xff]
    %v2800 = vld [vmem:[#allocation11 + $0x98] sm:$0xff]
    %v2801 = vld [vmem:[#allocation11 + $0xa0] sm:$0xff]
    %v2802 = vld [vmem:[#allocation11 + $0xa8] sm:$0xff]
    %v2803 = vld [vmem:[#allocation11 + $0xb0] sm:$0xff]
    %v2804 = vld [vmem:[#allocation11 + $0xb8] sm:$0xff]
    %v2805 = vld [vmem:[#allocation11 + $0xc0] sm:$0xff]
    %v2806 = vld [vmem:[#allocation11 + $0xc8] sm:$0xff]
    %v2807 = vld [vmem:[#allocation11 + $0xd0] sm:$0xff]
    %v2808 = vld [vmem:[#allocation11 + $0xd8] sm:$0xff]
    %v2809 = vld [vmem:[#allocation11 + $0xe0] sm:$0xff]
    %v2810 = vld [vmem:[#allocation11 + $0xe8] sm:$0xff]
    %v2811 = vld [vmem:[#allocation11 + $0xf0] sm:$0xff]
    %v2812 = vld [vmem:[#allocation11 + $0xf8] sm:$0xff]
    %v2813 = vld [vmem:[#allocation11 + $0x100] sm:$0xff]
    %v2814 = vld [vmem:[#allocation11 + $0x108] sm:$0xff]
    %v2815 = vld [vmem:[#allocation11 + $0x110] sm:$0xff]
    %v2816 = vld [vmem:[#allocation11 + $0x118] sm:$0xff]
    %v2817 = vld [vmem:[#allocation11 + $0x120] sm:$0xff]
    %v2818 = vld [vmem:[#allocation11 + $0x128] sm:$0xff]
    %v2819 = vld [vmem:[#allocation11 + $0x130] sm:$0xff]
    %v2820 = vld [vmem:[#allocation11 + $0x138] sm:$0xff]
    %v2821 = vld [vmem:[#allocation11 + $0x140] sm:$0xff]
    %v2822 = vld [vmem:[#allocation11 + $0x148] sm:$0xff]
    %v2823 = vld [vmem:[#allocation11 + $0x150] sm:$0xff]
    %v2824 = vld [vmem:[#allocation11 + $0x158] sm:$0xff]
    %v2825 = vld [vmem:[#allocation11 + $0x160] sm:$0xff]
    %v2826 = vld [vmem:[#allocation11 + $0x168] sm:$0xff]
    %v2827 = vld [vmem:[#allocation11 + $0x170] sm:$0xff]
    %v2828 = vld [vmem:[#allocation11 + $0x178] sm:$0xff]
    %v2829 = vld [vmem:[#allocation11 + $0x180] sm:$0xff]
    %v2830 = vld [vmem:[#allocation11 + $0x188] sm:$0xff]
    %v2831 = vld [vmem:[#allocation11 + $0x190] sm:$0xff]
    %v2832 = vld [vmem:[#allocation11 + $0x198] sm:$0xff]
    %v2833 = vld [vmem:[#allocation11 + $0x1a0] sm:$0xff]
    %v2834 = vld [vmem:[#allocation11 + $0x1a8] sm:$0xff]
    %v2835 = vld [vmem:[#allocation11 + $0x1b0] sm:$0xff]
    %v2836 = vld [vmem:[#allocation11 + $0x1b8] sm:$0xff]
    %v2837 = vld [vmem:[#allocation11 + $0x1c0] sm:$0xff]
    %v2838 = vld [vmem:[#allocation11 + $0x1c8] sm:$0xff]
    %v2839 = vld [vmem:[#allocation11 + $0x1d0] sm:$0xff]
    %v2840 = vld [vmem:[#allocation11 + $0x1d8] sm:$0xff]
    %v2841 = vld [vmem:[#allocation11 + $0x1e0] sm:$0xff]
    %v2842 = vld [vmem:[#allocation11 + $0x1e8] sm:$0xff]
    %v2843 = vld [vmem:[#allocation11 + $0x1f0] sm:$0xff]
    %v2844 = vld [vmem:[#allocation11 + $0x1f8] sm:$0xff]
    %2845 = vmatprep.subr.mxu0 %v2782
    %2846 = vmatpush1.msra.mxu0 %v2781
    %2847 = vmatprep.subr.mxu0 %v2786
    %2848 = vmatpush1.msra.mxu0 %v2785
    %2849 = vmatprep.subr.mxu0 %v2790
    %2850 = vmatpush1.msra.mxu0 %v2789
    %2851 = vmatprep.subr.mxu0 %v2794
    %2852 = vmatpush1.msra.mxu0 %v2793
    %2853 = vmatprep.subr.mxu0 %v2798
    %2854 = vmatpush1.msra.mxu0 %v2797
    %2855 = vmatprep.subr.mxu0 %v2802
    %2856 = vmatpush1.msra.mxu0 %v2801
    %2857 = vmatprep.subr.mxu0 %v2806
    %2858 = vmatpush1.msra.mxu0 %v2805
    %2859 = vmatprep.subr.mxu0 %v2810
    %2860 = vmatpush1.msra.mxu0 %v2809
    %2861 = vmatprep.subr.mxu0 %v2814
    %2862 = vmatpush1.msra.mxu0 %v2813
    %2863 = vmatprep.subr.mxu0 %v2818
    %2864 = vmatpush1.msra.mxu0 %v2817
    %2865 = vmatprep.subr.mxu0 %v2822
    %2866 = vmatpush1.msra.mxu0 %v2821
    %2867 = vmatprep.subr.mxu0 %v2826
    %2868 = vmatpush1.msra.mxu0 %v2825
    %2869 = vmatprep.subr.mxu0 %v2830
    %2870 = vmatpush1.msra.mxu0 %v2829
    %2871 = vmatprep.subr.mxu0 %v2834
    %2872 = vmatpush1.msra.mxu0 %v2833
    %2873 = vmatprep.subr.mxu0 %v2838
    %2874 = vmatpush1.msra.mxu0 %v2837
    %2875 = vmatprep.subr.mxu0 %v2842
    %2876 = vmatpush1.msra.mxu0 %v2841
    %2877 = vmatprep.subr.mxu0 0.0
    %2878 = vmatpush1.msra.mxu0 0.0
    %2879 = vmatprep.subr.mxu0 0.0
    %2880 = vmatpush1.msra.mxu0 0.0
    %2881 = vmatprep.subr.mxu0 0.0
    %2882 = vmatpush1.msra.mxu0 0.0
    %2883 = vmatprep.subr.mxu0 0.0
    %2884 = vmatpush1.msra.mxu0 0.0
    %2885 = vmatprep.subr.mxu0 0.0
    %2886 = vmatpush1.msra.mxu0 0.0
    %2887 = vmatprep.subr.mxu0 0.0
    %2888 = vmatpush1.msra.mxu0 0.0
    %2889 = vmatprep.subr.mxu0 0.0
    %2890 = vmatpush1.msra.mxu0 0.0
    %2891 = vmatprep.subr.mxu0 0.0
    %2892 = vmatpush1.msra.mxu0 0.0
    %2893 = vmatprep.subr.mxu0 0.0
    %2894 = vmatpush1.msra.mxu0 0.0
    %2895 = vmatprep.subr.mxu0 0.0
    %2896 = vmatpush1.msra.mxu0 0.0
    %2897 = vmatprep.subr.mxu0 0.0
    %2898 = vmatpush1.msra.mxu0 0.0
    %2899 = vmatprep.subr.mxu0 0.0
    %2900 = vmatpush1.msra.mxu0 0.0
    %2901 = vmatprep.subr.mxu0 0.0
    %2902 = vmatpush1.msra.mxu0 0.0
    %2903 = vmatprep.subr.mxu0 0.0
    %2904 = vmatpush1.msra.mxu0 0.0
    %2905 = vmatprep.subr.mxu0 0.0
    %2906 = vmatpush1.msra.mxu0 0.0
    %2907 = vmatprep.subr.mxu0 0.0
    %2908 = vmatpush1.msra.mxu0 0.0
    %2909 = vmatprep.mubr.f32.mxu0 0.0
    %2910 = vmatmul.mubr.f32.gmra.mrb[0].mxu0 %v2709
    %v2911 = vpop.f32.mrb[0].mxu0
    %v2912 = vadd.f32 0.0, %v2911
    %v2913 = vpop.f32.mrb[0].mxu0
    %v2914 = vadd.f32 0.0, %v2913
    %2915 = vmatprep.mubr.f32.mxu0 0.0
    %2916 = vmatmul.mubr.f32.gmra.mrb[0].mxu0 %v2710
    %v2917 = vpop.f32.mrb[0].mxu0
    %v2918 = vadd.f32 0.0, %v2917
    %v2919 = vpop.f32.mrb[0].mxu0
    %v2920 = vadd.f32 0.0, %v2919
    %2921 = vmatprep.mubr.f32.mxu0 0.0
    %2922 = vmatmul.mubr.f32.gmra.mrb[0].mxu0 %v2711
    %v2923 = vpop.f32.mrb[0].mxu0
    %v2924 = vadd.f32 0.0, %v2923
    %v2925 = vpop.f32.mrb[0].mxu0
    %v2926 = vadd.f32 0.0, %v2925
    %2927 = vmatprep.mubr.f32.mxu0 0.0
    %2928 = vmatmul.mubr.f32.gmra.mrb[0].mxu0 %v2712
    %v2929 = vpop.f32.mrb[0].mxu0
    %v2930 = vadd.f32 0.0, %v2929
    %v2931 = vpop.f32.mrb[0].mxu0
    %v2932 = vadd.f32 0.0, %v2931
    %2933 = vmatprep.mubr.f32.mxu0 0.0
    %2934 = vmatmul.mubr.f32.gmra.mrb[0].mxu0 %v2713
    %v2935 = vpop.f32.mrb[0].mxu0
    %v2936 = vadd.f32 0.0, %v2935
    %v2937 = vpop.f32.mrb[0].mxu0
    %v2938 = vadd.f32 0.0, %v2937
    %2939 = vmatprep.mubr.f32.mxu0 0.0
    %2940 = vmatmul.mubr.f32.gmra.mrb[0].mxu0 %v2714
    %v2941 = vpop.f32.mrb[0].mxu0
    %v2942 = vadd.f32 0.0, %v2941
    %v2943 = vpop.f32.mrb[0].mxu0
    %v2944 = vadd.f32 0.0, %v2943
    %2945 = vmatprep.mubr.f32.mxu0 0.0
    %2946 = vmatmul.mubr.f32.gmra.mrb[0].mxu0 %v2715
    %v2947 = vpop.f32.mrb[0].mxu0
    %v2948 = vadd.f32 0.0, %v2947
    %v2949 = vpop.f32.mrb[0].mxu0
    %v2950 = vadd.f32 0.0, %v2949
    %2951 = vmatprep.mubr.f32.mxu0 0.0
    %2952 = vmatmul.mubr.f32.gmra.mrb[0].mxu0 %v2716
    %v2953 = vpop.f32.mrb[0].mxu0
    %v2954 = vadd.f32 0.0, %v2953
    %v2955 = vpop.f32.mrb[0].mxu0
    %v2956 = vadd.f32 0.0, %v2955
    %2957 = vdwg.mxu0
    %2958 = vmatprep.subr.mxu0 %v2784
    %2959 = vmatpush1.msra.mxu0 %v2783
    %2960 = vmatprep.subr.mxu0 %v2788
    %2961 = vmatpush1.msra.mxu0 %v2787
    %2962 = vmatprep.subr.mxu0 %v2792
    %2963 = vmatpush1.msra.mxu0 %v2791
    %2964 = vmatprep.subr.mxu0 %v2796
    %2965 = vmatpush1.msra.mxu0 %v2795
    %2966 = vmatprep.subr.mxu0 %v2800
    %2967 = vmatpush1.msra.mxu0 %v2799
    %2968 = vmatprep.subr.mxu0 %v2804
    %2969 = vmatpush1.msra.mxu0 %v2803
    %2970 = vmatprep.subr.mxu0 %v2808
    %2971 = vmatpush1.msra.mxu0 %v2807
    %2972 = vmatprep.subr.mxu0 %v2812
    %2973 = vmatpush1.msra.mxu0 %v2811
    %2974 = vmatprep.subr.mxu0 %v2816
    %2975 = vmatpush1.msra.mxu0 %v2815
    %2976 = vmatprep.subr.mxu0 %v2820
    %2977 = vmatpush1.msra.mxu0 %v2819
    %2978 = vmatprep.subr.mxu0 %v2824
    %2979 = vmatpush1.msra.mxu0 %v2823
    %2980 = vmatprep.subr.mxu0 %v2828
    %2981 = vmatpush1.msra.mxu0 %v2827
    %2982 = vmatprep.subr.mxu0 %v2832
    %2983 = vmatpush1.msra.mxu0 %v2831
    %2984 = vmatprep.subr.mxu0 %v2836
    %2985 = vmatpush1.msra.mxu0 %v2835
    %2986 = vmatprep.subr.mxu0 %v2840
    %2987 = vmatpush1.msra.mxu0 %v2839
    %2988 = vmatprep.subr.mxu0 %v2844
    %2989 = vmatpush1.msra.mxu0 %v2843
    %2990 = vmatprep.subr.mxu0 0.0
    %2991 = vmatpush1.msra.mxu0 0.0
    %2992 = vmatprep.subr.mxu0 0.0
    %2993 = vmatpush1.msra.mxu0 0.0
    %2994 = vmatprep.subr.mxu0 0.0
    %2995 = vmatpush1.msra.mxu0 0.0
    %2996 = vmatprep.subr.mxu0 0.0
    %2997 = vmatpush1.msra.mxu0 0.0
    %2998 = vmatprep.subr.mxu0 0.0
    %2999 = vmatpush1.msra.mxu0 0.0
    %3000 = vmatprep.subr.mxu0 0.0
    %3001 = vmatpush1.msra.mxu0 0.0
    %3002 = vmatprep.subr.mxu0 0.0
    %3003 = vmatpush1.msra.mxu0 0.0
    %3004 = vmatprep.subr.mxu0 0.0
    %3005 = vmatpush1.msra.mxu0 0.0
    %3006 = vmatprep.subr.mxu0 0.0
    %3007 = vmatpush1.msra.mxu0 0.0
    %3008 = vmatprep.subr.mxu0 0.0
    %3009 = vmatpush1.msra.mxu0 0.0
    %3010 = vmatprep.subr.mxu0 0.0
    %3011 = vmatpush1.msra.mxu0 0.0
    %3012 = vmatprep.subr.mxu0 0.0
    %3013 = vmatpush1.msra.mxu0 0.0
    %3014 = vmatprep.subr.mxu0 0.0
    %3015 = vmatpush1.msra.mxu0 0.0
    %3016 = vmatprep.subr.mxu0 0.0
    %3017 = vmatpush1.msra.mxu0 0.0
    %3018 = vmatprep.subr.mxu0 0.0
    %3019 = vmatpush1.msra.mxu0 0.0
    %3020 = vmatprep.subr.mxu0 0.0
    %3021 = vmatpush1.msra.mxu0 0.0
    %3022 = vmatprep.mubr.f32.mxu0 0.0
    %3023 = vmatmul.mubr.f32.gmra.mrb[0].mxu0 %v2709
    %v3024 = vpop.f32.mrb[0].mxu0
    %v3025 = vadd.f32 0.0, %v3024
    %v3026 = vpop.f32.mrb[0].mxu0
    %v3027 = vadd.f32 0.0, %v3026
    %3028 = vmatprep.mubr.f32.mxu0 0.0
    %3029 = vmatmul.mubr.f32.gmra.mrb[0].mxu0 %v2710
    %v3030 = vpop.f32.mrb[0].mxu0
    %v3031 = vadd.f32 0.0, %v3030
    %v3032 = vpop.f32.mrb[0].mxu0
    %v3033 = vadd.f32 0.0, %v3032
    %3034 = vmatprep.mubr.f32.mxu0 0.0
    %3035 = vmatmul.mubr.f32.gmra.mrb[0].mxu0 %v2711
    %v3036 = vpop.f32.mrb[0].mxu0
    %v3037 = vadd.f32 0.0, %v3036
    %v3038 = vpop.f32.mrb[0].mxu0
    %v3039 = vadd.f32 0.0, %v3038
    %3040 = vmatprep.mubr.f32.mxu0 0.0
    %3041 = vmatmul.mubr.f32.gmra.mrb[0].mxu0 %v2712
    %v3042 = vpop.f32.mrb[0].mxu0
    %v3043 = vadd.f32 0.0, %v3042
    %v3044 = vpop.f32.mrb[0].mxu0
    %v3045 = vadd.f32 0.0, %v3044
    %3046 = vmatprep.mubr.f32.mxu0 0.0
    %3047 = vmatmul.mubr.f32.gmra.mrb[0].mxu0 %v2713
    %v3048 = vpop.f32.mrb[0].mxu0
    %v3049 = vadd.f32 0.0, %v3048
    %v3050 = vpop.f32.mrb[0].mxu0
    %v3051 = vadd.f32 0.0, %v3050
    %3052 = vmatprep.mubr.f32.mxu0 0.0
    %3053 = vmatmul.mubr.f32.gmra.mrb[0].mxu0 %v2714
    %v3054 = vpop.f32.mrb[0].mxu0
    %v3055 = vadd.f32 0.0, %v3054
    %v3056 = vpop.f32.mrb[0].mxu0
    %v3057 = vadd.f32 0.0, %v3056
    %3058 = vmatprep.mubr.f32.mxu0 0.0
    %3059 = vmatmul.mubr.f32.gmra.mrb[0].mxu0 %v2715
    %v3060 = vpop.f32.mrb[0].mxu0
    %v3061 = vadd.f32 0.0, %v3060
    %v3062 = vpop.f32.mrb[0].mxu0
    %v3063 = vadd.f32 0.0, %v3062
    %3064 = vmatprep.mubr.f32.mxu0 0.0
    %3065 = vmatmul.mubr.f32.gmra.mrb[0].mxu0 %v2716
    %v3066 = vpop.f32.mrb[0].mxu0
    %v3067 = vadd.f32 0.0, %v3066
    %v3068 = vpop.f32.mrb[0].mxu0
    %v3069 = vadd.f32 0.0, %v3068
    %3070 = vdwg.mxu0
    %3071 = vmatprep.subr.mxu0 %v2718
    %3072 = vmatpush1.msra.mxu0 %v2717
    %3073 = vmatprep.subr.mxu0 %v2722
    %3074 = vmatpush1.msra.mxu0 %v2721
    %3075 = vmatprep.subr.mxu0 %v2726
    %3076 = vmatpush1.msra.mxu0 %v2725
    %3077 = vmatprep.subr.mxu0 %v2730
    %3078 = vmatpush1.msra.mxu0 %v2729
    %3079 = vmatprep.subr.mxu0 %v2734
    %3080 = vmatpush1.msra.mxu0 %v2733
    %3081 = vmatprep.subr.mxu0 %v2738
    %3082 = vmatpush1.msra.mxu0 %v2737
    %3083 = vmatprep.subr.mxu0 %v2742
    %3084 = vmatpush1.msra.mxu0 %v2741
    %3085 = vmatprep.subr.mxu0 %v2746
    %3086 = vmatpush1.msra.mxu0 %v2745
    %3087 = vmatprep.subr.mxu0 %v2750
    %3088 = vmatpush1.msra.mxu0 %v2749
    %3089 = vmatprep.subr.mxu0 %v2754
    %3090 = vmatpush1.msra.mxu0 %v2753
    %3091 = vmatprep.subr.mxu0 %v2758
    %3092 = vmatpush1.msra.mxu0 %v2757
    %3093 = vmatprep.subr.mxu0 %v2762
    %3094 = vmatpush1.msra.mxu0 %v2761
    %3095 = vmatprep.subr.mxu0 %v2766
    %3096 = vmatpush1.msra.mxu0 %v2765
    %3097 = vmatprep.subr.mxu0 %v2770
    %3098 = vmatpush1.msra.mxu0 %v2769
    %3099 = vmatprep.subr.mxu0 %v2774
    %3100 = vmatpush1.msra.mxu0 %v2773
    %3101 = vmatprep.subr.mxu0 %v2778
    %3102 = vmatpush1.msra.mxu0 %v2777
    %3103 = vmatprep.subr.mxu0 0.0
    %3104 = vmatpush1.msra.mxu0 0.0
    %3105 = vmatprep.subr.mxu0 0.0
    %3106 = vmatpush1.msra.mxu0 0.0
    %3107 = vmatprep.subr.mxu0 0.0
    %3108 = vmatpush1.msra.mxu0 0.0
    %3109 = vmatprep.subr.mxu0 0.0
    %3110 = vmatpush1.msra.mxu0 0.0
    %3111 = vmatprep.subr.mxu0 0.0
    %3112 = vmatpush1.msra.mxu0 0.0
    %3113 = vmatprep.subr.mxu0 0.0
    %3114 = vmatpush1.msra.mxu0 0.0
    %3115 = vmatprep.subr.mxu0 0.0
    %3116 = vmatpush1.msra.mxu0 0.0
    %3117 = vmatprep.subr.mxu0 0.0
    %3118 = vmatpush1.msra.mxu0 0.0
    %3119 = vmatprep.subr.mxu0 0.0
    %3120 = vmatpush1.msra.mxu0 0.0
    %3121 = vmatprep.subr.mxu0 0.0
    %3122 = vmatpush1.msra.mxu0 0.0
    %3123 = vmatprep.subr.mxu0 0.0
    %3124 = vmatpush1.msra.mxu0 0.0
    %3125 = vmatprep.subr.mxu0 0.0
    %3126 = vmatpush1.msra.mxu0 0.0
    %3127 = vmatprep.subr.mxu0 0.0
    %3128 = vmatpush1.msra.mxu0 0.0
    %3129 = vmatprep.subr.mxu0 0.0
    %3130 = vmatpush1.msra.mxu0 0.0
    %3131 = vmatprep.subr.mxu0 0.0
    %3132 = vmatpush1.msra.mxu0 0.0
    %3133 = vmatprep.subr.mxu0 0.0
    %3134 = vmatpush1.msra.mxu0 0.0
    %3135 = vmatprep.mubr.f32.mxu0 0.0
    %3136 = vmatmul.mubr.f32.gmra.mrb[0].mxu0 %v2701
    %v3137 = vpop.f32.mrb[0].mxu0
    %v3138 = vadd.f32 %v2912, %v3137
    %v3139 = vpop.f32.mrb[0].mxu0
    %v3140 = vadd.f32 %v2914, %v3139
    %3141 = vmatprep.mubr.f32.mxu0 0.0
    %3142 = vmatmul.mubr.f32.gmra.mrb[0].mxu0 %v2702
    %v3143 = vpop.f32.mrb[0].mxu0
    %v3144 = vadd.f32 %v2918, %v3143
    %v3145 = vpop.f32.mrb[0].mxu0
    %v3146 = vadd.f32 %v2920, %v3145
    %3147 = vmatprep.mubr.f32.mxu0 0.0
    %3148 = vmatmul.mubr.f32.gmra.mrb[0].mxu0 %v2703
    %v3149 = vpop.f32.mrb[0].mxu0
    %v3150 = vadd.f32 %v2924, %v3149
    %v3151 = vpop.f32.mrb[0].mxu0
    %v3152 = vadd.f32 %v2926, %v3151
    %3153 = vmatprep.mubr.f32.mxu0 0.0
    %3154 = vmatmul.mubr.f32.gmra.mrb[0].mxu0 %v2704
    %v3155 = vpop.f32.mrb[0].mxu0
    %v3156 = vadd.f32 %v2930, %v3155
    %v3157 = vpop.f32.mrb[0].mxu0
    %v3158 = vadd.f32 %v2932, %v3157
    %3159 = vmatprep.mubr.f32.mxu0 0.0
    %3160 = vmatmul.mubr.f32.gmra.mrb[0].mxu0 %v2705
    %v3161 = vpop.f32.mrb[0].mxu0
    %v3162 = vadd.f32 %v2936, %v3161
    %v3163 = vpop.f32.mrb[0].mxu0
    %v3164 = vadd.f32 %v2938, %v3163
    %3165 = vmatprep.mubr.f32.mxu0 0.0
    %3166 = vmatmul.mubr.f32.gmra.mrb[0].mxu0 %v2706
    %v3167 = vpop.f32.mrb[0].mxu0
    %v3168 = vadd.f32 %v2942, %v3167
    %v3169 = vpop.f32.mrb[0].mxu0
    %v3170 = vadd.f32 %v2944, %v3169
    %3171 = vmatprep.mubr.f32.mxu0 0.0
    %3172 = vmatmul.mubr.f32.gmra.mrb[0].mxu0 %v2707
    %v3173 = vpop.f32.mrb[0].mxu0
    %v3174 = vadd.f32 %v2948, %v3173
    %v3175 = vpop.f32.mrb[0].mxu0
    %v3176 = vadd.f32 %v2950, %v3175
    %3177 = vmatprep.mubr.f32.mxu0 0.0
    %3178 = vmatmul.mubr.f32.gmra.mrb[0].mxu0 %v2708
    %v3179 = vpop.f32.mrb[0].mxu0
    %v3180 = vadd.f32 %v2954, %v3179
    %v3181 = vpop.f32.mrb[0].mxu0
    %v3182 = vadd.f32 %v2956, %v3181
    %3183 = vdwg.mxu0
    %3184 = vmatprep.subr.mxu0 %v2720
    %3185 = vmatpush1.msra.mxu0 %v2719
    %3186 = vmatprep.subr.mxu0 %v2724
    %3187 = vmatpush1.msra.mxu0 %v2723
    %3188 = vmatprep.subr.mxu0 %v2728
    %3189 = vmatpush1.msra.mxu0 %v2727
    %3190 = vmatprep.subr.mxu0 %v2732
    %3191 = vmatpush1.msra.mxu0 %v2731
    %3192 = vmatprep.subr.mxu0 %v2736
    %3193 = vmatpush1.msra.mxu0 %v2735
    %3194 = vmatprep.subr.mxu0 %v2740
    %3195 = vmatpush1.msra.mxu0 %v2739
    %3196 = vmatprep.subr.mxu0 %v2744
    %3197 = vmatpush1.msra.mxu0 %v2743
    %3198 = vmatprep.subr.mxu0 %v2748
    %3199 = vmatpush1.msra.mxu0 %v2747
    %3200 = vmatprep.subr.mxu0 %v2752
    %3201 = vmatpush1.msra.mxu0 %v2751
    %3202 = vmatprep.subr.mxu0 %v2756
    %3203 = vmatpush1.msra.mxu0 %v2755
    %3204 = vmatprep.subr.mxu0 %v2760
    %3205 = vmatpush1.msra.mxu0 %v2759
    %3206 = vmatprep.subr.mxu0 %v2764
    %3207 = vmatpush1.msra.mxu0 %v2763
    %3208 = vmatprep.subr.mxu0 %v2768
    %3209 = vmatpush1.msra.mxu0 %v2767
    %3210 = vmatprep.subr.mxu0 %v2772
    %3211 = vmatpush1.msra.mxu0 %v2771
    %3212 = vmatprep.subr.mxu0 %v2776
    %3213 = vmatpush1.msra.mxu0 %v2775
    %3214 = vmatprep.subr.mxu0 %v2780
    %3215 = vmatpush1.msra.mxu0 %v2779
    %3216 = vmatprep.subr.mxu0 0.0
    %3217 = vmatpush1.msra.mxu0 0.0
    %3218 = vmatprep.subr.mxu0 0.0
    %3219 = vmatpush1.msra.mxu0 0.0
    %3220 = vmatprep.subr.mxu0 0.0
    %3221 = vmatpush1.msra.mxu0 0.0
    %3222 = vmatprep.subr.mxu0 0.0
    %3223 = vmatpush1.msra.mxu0 0.0
    %3224 = vmatprep.subr.mxu0 0.0
    %3225 = vmatpush1.msra.mxu0 0.0
    %3226 = vmatprep.subr.mxu0 0.0
    %3227 = vmatpush1.msra.mxu0 0.0
    %3228 = vmatprep.subr.mxu0 0.0
    %3229 = vmatpush1.msra.mxu0 0.0
    %3230 = vmatprep.subr.mxu0 0.0
    %3231 = vmatpush1.msra.mxu0 0.0
    %3232 = vmatprep.subr.mxu0 0.0
    %3233 = vmatpush1.msra.mxu0 0.0
    %3234 = vmatprep.subr.mxu0 0.0
    %3235 = vmatpush1.msra.mxu0 0.0
    %3236 = vmatprep.subr.mxu0 0.0
    %3237 = vmatpush1.msra.mxu0 0.0
    %3238 = vmatprep.subr.mxu0 0.0
    %3239 = vmatpush1.msra.mxu0 0.0
    %3240 = vmatprep.subr.mxu0 0.0
    %3241 = vmatpush1.msra.mxu0 0.0
    %3242 = vmatprep.subr.mxu0 0.0
    %3243 = vmatpush1.msra.mxu0 0.0
    %3244 = vmatprep.subr.mxu0 0.0
    %3245 = vmatpush1.msra.mxu0 0.0
    %3246 = vmatprep.subr.mxu0 0.0
    %3247 = vmatpush1.msra.mxu0 0.0
    %3248 = vmatprep.mubr.f32.mxu0 0.0
    %3249 = vmatmul.mubr.f32.gmra.mrb[0].mxu0 %v2701
    %v3250 = vpop.f32.mrb[0].mxu0
    %v3251 = vadd.f32 %v3025, %v3250
    %v3252 = vpop.f32.mrb[0].mxu0
    %v3253 = vadd.f32 %v3027, %v3252
    %3254 = vmatprep.mubr.f32.mxu0 0.0
    %3255 = vmatmul.mubr.f32.gmra.mrb[0].mxu0 %v2702
    %v3256 = vpop.f32.mrb[0].mxu0
    %v3257 = vadd.f32 %v3031, %v3256
    %v3258 = vpop.f32.mrb[0].mxu0
    %v3259 = vadd.f32 %v3033, %v3258
    %3260 = vmatprep.mubr.f32.mxu0 0.0
    %3261 = vmatmul.mubr.f32.gmra.mrb[0].mxu0 %v2703
    %v3262 = vpop.f32.mrb[0].mxu0
    %v3263 = vadd.f32 %v3037, %v3262
    %v3264 = vpop.f32.mrb[0].mxu0
    %v3265 = vadd.f32 %v3039, %v3264
    %3266 = vmatprep.mubr.f32.mxu0 0.0
    %3267 = vmatmul.mubr.f32.gmra.mrb[0].mxu0 %v2704
    %v3268 = vpop.f32.mrb[0].mxu0
    %v3269 = vadd.f32 %v3043, %v3268
    %v3270 = vpop.f32.mrb[0].mxu0
    %v3271 = vadd.f32 %v3045, %v3270
    %3272 = vmatprep.mubr.f32.mxu0 0.0
    %3273 = vmatmul.mubr.f32.gmra.mrb[0].mxu0 %v2705
    %v3274 = vpop.f32.mrb[0].mxu0
    %v3275 = vadd.f32 %v3049, %v3274
    %v3276 = vpop.f32.mrb[0].mxu0
    %v3277 = vadd.f32 %v3051, %v3276
    %3278 = vmatprep.mubr.f32.mxu0 0.0
    %3279 = vmatmul.mubr.f32.gmra.mrb[0].mxu0 %v2706
    %v3280 = vpop.f32.mrb[0].mxu0
    %v3281 = vadd.f32 %v3055, %v3280
    %v3282 = vpop.f32.mrb[0].mxu0
    %v3283 = vadd.f32 %v3057, %v3282
    %3284 = vmatprep.mubr.f32.mxu0 0.0
    %3285 = vmatmul.mubr.f32.gmra.mrb[0].mxu0 %v2707
    %v3286 = vpop.f32.mrb[0].mxu0
    %v3287 = vadd.f32 %v3061, %v3286
    %v3288 = vpop.f32.mrb[0].mxu0
    %v3289 = vadd.f32 %v3063, %v3288
    %3290 = vmatprep.mubr.f32.mxu0 0.0
    %3291 = vmatmul.mubr.f32.gmra.mrb[0].mxu0 %v2708
    %v3292 = vpop.f32.mrb[0].mxu0
    %v3293 = vadd.f32 %v3067, %v3292
    %v3294 = vpop.f32.mrb[0].mxu0
    %v3295 = vadd.f32 %v3069, %v3294
    %3296 = vdwg.mxu0
    %v3297 = vld [vmem:[%s10] sm:$0xf]
    %v3299 = vlaneseq
    %v3300 = vshrl.u32 %v3299, 7
    %v3301 = vsub.s32 0, %v3300
    %v3302 = vrot.slane %v3297, %v3301
    %v3303 = vlaneseq
    %v3304 = vshrl.u32 %v3303, 7
    %v3305 = vsub.s32 1, %v3304
    %v3306 = vrot.slane %v3297, %v3305
    %v3307 = vlaneseq
    %v3308 = vshrl.u32 %v3307, 7
    %v3309 = vsub.s32 2, %v3308
    %v3310 = vrot.slane %v3297, %v3309
    %v3311 = vlaneseq
    %v3312 = vshrl.u32 %v3311, 7
    %v3313 = vsub.s32 3, %v3312
    %v3314 = vrot.slane %v3297, %v3313
    %v3319 = vadd.f32 %v3138, %v3302
    %v3320 = vadd.f32 %v3140, %v3306
    %v3321 = vadd.f32 %v3251, %v3310
    %v3322 = vadd.f32 %v3253, %v3314
    %v3323 = vadd.f32 %v3144, %v3302
    %v3324 = vadd.f32 %v3146, %v3306
    %v3325 = vadd.f32 %v3257, %v3310
    %v3326 = vadd.f32 %v3259, %v3314
    %v3327 = vadd.f32 %v3150, %v3302
    %v3328 = vadd.f32 %v3152, %v3306
    %v3329 = vadd.f32 %v3263, %v3310
    %v3330 = vadd.f32 %v3265, %v3314
    %v3331 = vadd.f32 %v3156, %v3302
    %v3332 = vadd.f32 %v3158, %v3306
    %v3333 = vadd.f32 %v3269, %v3310
    %v3334 = vadd.f32 %v3271, %v3314
    %v3335 = vadd.f32 %v3162, %v3302
    %v3336 = vadd.f32 %v3164, %v3306
    %v3337 = vadd.f32 %v3275, %v3310
    %v3338 = vadd.f32 %v3277, %v3314
    %v3339 = vadd.f32 %v3168, %v3302
    %v3340 = vadd.f32 %v3170, %v3306
    %v3341 = vadd.f32 %v3281, %v3310
    %v3342 = vadd.f32 %v3283, %v3314
    %v3343 = vadd.f32 %v3174, %v3302
    %v3344 = vadd.f32 %v3176, %v3306
    %v3345 = vadd.f32 %v3287, %v3310
    %v3346 = vadd.f32 %v3289, %v3314
    %v3347 = vadd.f32 %v3180, %v3302
    %v3348 = vadd.f32 %v3182, %v3306
    %v3349 = vadd.f32 %v3293, %v3310
    %v3350 = vadd.f32 %v3295, %v3314
    %3351 = vst [vmem:[#allocation2] sm:$0xff] %v3319
    %3352 = vst [vmem:[#allocation2 + $0x8] sm:$0xff] %v3320
    %3353 = vst [vmem:[#allocation2 + $0x10] sm:$0xff] %v3321
    %3354 = vst [vmem:[#allocation2 + $0x18] sm:$0xff] %v3322
    %3355 = vst [vmem:[#allocation2 + $0x20] sm:$0xff] %v3323
    %3356 = vst [vmem:[#allocation2 + $0x28] sm:$0xff] %v3324
    %3357 = vst [vmem:[#allocation2 + $0x30] sm:$0xff] %v3325
    %3358 = vst [vmem:[#allocation2 + $0x38] sm:$0xff] %v3326
    %3359 = vst [vmem:[#allocation2 + $0x40] sm:$0xff] %v3327
    %3360 = vst [vmem:[#allocation2 + $0x48] sm:$0xff] %v3328
    %3361 = vst [vmem:[#allocation2 + $0x50] sm:$0xff] %v3329
    %3362 = vst [vmem:[#allocation2 + $0x58] sm:$0xff] %v3330
    %3363 = vst [vmem:[#allocation2 + $0x60] sm:$0xff] %v3331
    %3364 = vst [vmem:[#allocation2 + $0x68] sm:$0xff] %v3332
    %3365 = vst [vmem:[#allocation2 + $0x70] sm:$0xff] %v3333
    %3366 = vst [vmem:[#allocation2 + $0x78] sm:$0xff] %v3334
    %3367 = vst [vmem:[#allocation2 + $0x80] sm:$0xff] %v3335
    %3368 = vst [vmem:[#allocation2 + $0x88] sm:$0xff] %v3336
    %3369 = vst [vmem:[#allocation2 + $0x90] sm:$0xff] %v3337
    %3370 = vst [vmem:[#allocation2 + $0x98] sm:$0xff] %v3338
    %3371 = vst [vmem:[#allocation2 + $0xa0] sm:$0xff] %v3339
    %3372 = vst [vmem:[#allocation2 + $0xa8] sm:$0xff] %v3340
    %3373 = vst [vmem:[#allocation2 + $0xb0] sm:$0xff] %v3341
    %3374 = vst [vmem:[#allocation2 + $0xb8] sm:$0xff] %v3342
    %3375 = vst [vmem:[#allocation2 + $0xc0] sm:$0xff] %v3343
    %3376 = vst [vmem:[#allocation2 + $0xc8] sm:$0xff] %v3344
    %3377 = vst [vmem:[#allocation2 + $0xd0] sm:$0xff] %v3345
    %3378 = vst [vmem:[#allocation2 + $0xd8] sm:$0xff] %v3346
    %3379 = vst [vmem:[#allocation2 + $0xe0] sm:$0xff] %v3347
    %3380 = vst [vmem:[#allocation2 + $0xe8] sm:$0xff] %v3348
    %3381 = vst [vmem:[#allocation2 + $0xf0] sm:$0xff] %v3349
    %3382 = vst [vmem:[#allocation2 + $0xf8] sm:$0xff] %v3350
    %v3383 = vld [vmem:[#allocation12] sm:$0xff]
    %v3384 = vld [vmem:[#allocation12 + $0x8] sm:$0xff]
    %v3385 = vld [vmem:[#allocation12 + $0x10] sm:$0xff]
    %v3386 = vld [vmem:[#allocation12 + $0x18] sm:$0xff]
    %v3387 = vld [vmem:[#allocation12 + $0x20] sm:$0xff]
    %v3388 = vld [vmem:[#allocation12 + $0x28] sm:$0xff]
    %v3389 = vld [vmem:[#allocation12 + $0x30] sm:$0xff]
    %v3390 = vld [vmem:[#allocation12 + $0x38] sm:$0xff]
    %v3391 = vld [vmem:[#allocation12 + $0x40] sm:$0xff]
    %v3392 = vld [vmem:[#allocation12 + $0x48] sm:$0xff]
    %v3393 = vld [vmem:[#allocation12 + $0x50] sm:$0xff]
    %v3394 = vld [vmem:[#allocation12 + $0x58] sm:$0xff]
    %v3395 = vld [vmem:[#allocation12 + $0x60] sm:$0xff]
    %v3396 = vld [vmem:[#allocation12 + $0x68] sm:$0xff]
    %v3397 = vld [vmem:[#allocation12 + $0x70] sm:$0xff]
    %v3398 = vld [vmem:[#allocation12 + $0x78] sm:$0xff]
    %v3399 = vld [vmem:[#allocation12 + $0x80] sm:$0xff]
    %v3400 = vld [vmem:[#allocation12 + $0x88] sm:$0xff]
    %v3401 = vld [vmem:[#allocation12 + $0x90] sm:$0xff]
    %v3402 = vld [vmem:[#allocation12 + $0x98] sm:$0xff]
    %v3403 = vld [vmem:[#allocation12 + $0xa0] sm:$0xff]
    %v3404 = vld [vmem:[#allocation12 + $0xa8] sm:$0xff]
    %v3405 = vld [vmem:[#allocation12 + $0xb0] sm:$0xff]
    %v3406 = vld [vmem:[#allocation12 + $0xb8] sm:$0xff]
    %v3407 = vld [vmem:[#allocation12 + $0xc0] sm:$0xff]
    %v3408 = vld [vmem:[#allocation12 + $0xc8] sm:$0xff]
    %v3409 = vld [vmem:[#allocation12 + $0xd0] sm:$0xff]
    %v3410 = vld [vmem:[#allocation12 + $0xd8] sm:$0xff]
    %v3411 = vld [vmem:[#allocation12 + $0xe0] sm:$0xff]
    %v3412 = vld [vmem:[#allocation12 + $0xe8] sm:$0xff]
    %v3413 = vld [vmem:[#allocation12 + $0xf0] sm:$0xff]
    %v3414 = vld [vmem:[#allocation12 + $0xf8] sm:$0xff]
    %v3415 = vld [vmem:[#allocation12 + $0x100] sm:$0xff]
    %v3416 = vld [vmem:[#allocation12 + $0x108] sm:$0xff]
    %v3417 = vld [vmem:[#allocation12 + $0x110] sm:$0xff]
    %v3418 = vld [vmem:[#allocation12 + $0x118] sm:$0xff]
    %v3419 = vld [vmem:[#allocation12 + $0x120] sm:$0xff]
    %v3420 = vld [vmem:[#allocation12 + $0x128] sm:$0xff]
    %v3421 = vld [vmem:[#allocation12 + $0x130] sm:$0xff]
    %v3422 = vld [vmem:[#allocation12 + $0x138] sm:$0xff]
    %v3423 = vld [vmem:[#allocation12 + $0x140] sm:$0xff]
    %v3424 = vld [vmem:[#allocation12 + $0x148] sm:$0xff]
    %v3425 = vld [vmem:[#allocation12 + $0x150] sm:$0xff]
    %v3426 = vld [vmem:[#allocation12 + $0x158] sm:$0xff]
    %v3427 = vld [vmem:[#allocation12 + $0x160] sm:$0xff]
    %v3428 = vld [vmem:[#allocation12 + $0x168] sm:$0xff]
    %v3429 = vld [vmem:[#allocation12 + $0x170] sm:$0xff]
    %v3430 = vld [vmem:[#allocation12 + $0x178] sm:$0xff]
    %v3431 = vld [vmem:[#allocation12 + $0x180] sm:$0xff]
    %v3432 = vld [vmem:[#allocation12 + $0x188] sm:$0xff]
    %v3433 = vld [vmem:[#allocation12 + $0x190] sm:$0xff]
    %v3434 = vld [vmem:[#allocation12 + $0x198] sm:$0xff]
    %v3435 = vld [vmem:[#allocation12 + $0x1a0] sm:$0xff]
    %v3436 = vld [vmem:[#allocation12 + $0x1a8] sm:$0xff]
    %v3437 = vld [vmem:[#allocation12 + $0x1b0] sm:$0xff]
    %v3438 = vld [vmem:[#allocation12 + $0x1b8] sm:$0xff]
    %v3439 = vld [vmem:[#allocation12 + $0x1c0] sm:$0xff]
    %v3440 = vld [vmem:[#allocation12 + $0x1c8] sm:$0xff]
    %v3441 = vld [vmem:[#allocation12 + $0x1d0] sm:$0xff]
    %v3442 = vld [vmem:[#allocation12 + $0x1d8] sm:$0xff]
    %v3443 = vld [vmem:[#allocation12 + $0x1e0] sm:$0xff]
    %v3444 = vld [vmem:[#allocation12 + $0x1e8] sm:$0xff]
    %v3445 = vld [vmem:[#allocation12 + $0x1f0] sm:$0xff]
    %v3446 = vld [vmem:[#allocation12 + $0x1f8] sm:$0xff]
    %v3447 = vld [vmem:[#allocation14] sm:$0xff]
    %v3448 = vld [vmem:[#allocation14 + $0x8] sm:$0xff]
    %v3449 = vld [vmem:[#allocation14 + $0x10] sm:$0xff]
    %v3450 = vld [vmem:[#allocation14 + $0x18] sm:$0xff]
    %v3451 = vld [vmem:[#allocation14 + $0x20] sm:$0xff]
    %v3452 = vld [vmem:[#allocation14 + $0x28] sm:$0xff]
    %v3453 = vld [vmem:[#allocation14 + $0x30] sm:$0xff]
    %v3454 = vld [vmem:[#allocation14 + $0x38] sm:$0xff]
    %v3455 = vld [vmem:[#allocation14 + $0x40] sm:$0xff]
    %v3456 = vld [vmem:[#allocation14 + $0x48] sm:$0xff]
    %v3457 = vld [vmem:[#allocation14 + $0x50] sm:$0xff]
    %v3458 = vld [vmem:[#allocation14 + $0x58] sm:$0xff]
    %v3459 = vld [vmem:[#allocation14 + $0x60] sm:$0xff]
    %v3460 = vld [vmem:[#allocation14 + $0x68] sm:$0xff]
    %v3461 = vld [vmem:[#allocation14 + $0x70] sm:$0xff]
    %v3462 = vld [vmem:[#allocation14 + $0x78] sm:$0xff]
    %v3463 = vld [vmem:[#allocation14 + $0x80] sm:$0xff]
    %v3464 = vld [vmem:[#allocation14 + $0x88] sm:$0xff]
    %v3465 = vld [vmem:[#allocation14 + $0x90] sm:$0xff]
    %v3466 = vld [vmem:[#allocation14 + $0x98] sm:$0xff]
    %v3467 = vld [vmem:[#allocation14 + $0xa0] sm:$0xff]
    %v3468 = vld [vmem:[#allocation14 + $0xa8] sm:$0xff]
    %v3469 = vld [vmem:[#allocation14 + $0xb0] sm:$0xff]
    %v3470 = vld [vmem:[#allocation14 + $0xb8] sm:$0xff]
    %v3471 = vld [vmem:[#allocation14 + $0xc0] sm:$0xff]
    %v3472 = vld [vmem:[#allocation14 + $0xc8] sm:$0xff]
    %v3473 = vld [vmem:[#allocation14 + $0xd0] sm:$0xff]
    %v3474 = vld [vmem:[#allocation14 + $0xd8] sm:$0xff]
    %v3475 = vld [vmem:[#allocation14 + $0xe0] sm:$0xff]
    %v3476 = vld [vmem:[#allocation14 + $0xe8] sm:$0xff]
    %v3477 = vld [vmem:[#allocation14 + $0xf0] sm:$0xff]
    %v3478 = vld [vmem:[#allocation14 + $0xf8] sm:$0xff]
    %v3479 = vld [vmem:[#allocation14 + $0x100] sm:$0xff]
    %v3480 = vld [vmem:[#allocation14 + $0x108] sm:$0xff]
    %v3481 = vld [vmem:[#allocation14 + $0x110] sm:$0xff]
    %v3482 = vld [vmem:[#allocation14 + $0x118] sm:$0xff]
    %v3483 = vld [vmem:[#allocation14 + $0x120] sm:$0xff]
    %v3484 = vld [vmem:[#allocation14 + $0x128] sm:$0xff]
    %v3485 = vld [vmem:[#allocation14 + $0x130] sm:$0xff]
    %v3486 = vld [vmem:[#allocation14 + $0x138] sm:$0xff]
    %v3487 = vld [vmem:[#allocation14 + $0x140] sm:$0xff]
    %v3488 = vld [vmem:[#allocation14 + $0x148] sm:$0xff]
    %v3489 = vld [vmem:[#allocation14 + $0x150] sm:$0xff]
    %v3490 = vld [vmem:[#allocation14 + $0x158] sm:$0xff]
    %v3491 = vld [vmem:[#allocation14 + $0x160] sm:$0xff]
    %v3492 = vld [vmem:[#allocation14 + $0x168] sm:$0xff]
    %v3493 = vld [vmem:[#allocation14 + $0x170] sm:$0xff]
    %v3494 = vld [vmem:[#allocation14 + $0x178] sm:$0xff]
    %v3495 = vld [vmem:[#allocation14 + $0x180] sm:$0xff]
    %v3496 = vld [vmem:[#allocation14 + $0x188] sm:$0xff]
    %v3497 = vld [vmem:[#allocation14 + $0x190] sm:$0xff]
    %v3498 = vld [vmem:[#allocation14 + $0x198] sm:$0xff]
    %v3499 = vld [vmem:[#allocation14 + $0x1a0] sm:$0xff]
    %v3500 = vld [vmem:[#allocation14 + $0x1a8] sm:$0xff]
    %v3501 = vld [vmem:[#allocation14 + $0x1b0] sm:$0xff]
    %v3502 = vld [vmem:[#allocation14 + $0x1b8] sm:$0xff]
    %v3503 = vld [vmem:[#allocation14 + $0x1c0] sm:$0xff]
    %v3504 = vld [vmem:[#allocation14 + $0x1c8] sm:$0xff]
    %v3505 = vld [vmem:[#allocation14 + $0x1d0] sm:$0xff]
    %v3506 = vld [vmem:[#allocation14 + $0x1d8] sm:$0xff]
    %v3507 = vld [vmem:[#allocation14 + $0x1e0] sm:$0xff]
    %v3508 = vld [vmem:[#allocation14 + $0x1e8] sm:$0xff]
    %v3509 = vld [vmem:[#allocation14 + $0x1f0] sm:$0xff]
    %v3510 = vld [vmem:[#allocation14 + $0x1f8] sm:$0xff]
    %3511 = vmatprep.subr.mxu0 %v3448
    %3512 = vmatpush1.msra.mxu0 %v3447
    %3513 = vmatprep.subr.mxu0 %v3452
    %3514 = vmatpush1.msra.mxu0 %v3451
    %3515 = vmatprep.subr.mxu0 %v3456
    %3516 = vmatpush1.msra.mxu0 %v3455
    %3517 = vmatprep.subr.mxu0 %v3460
    %3518 = vmatpush1.msra.mxu0 %v3459
    %3519 = vmatprep.subr.mxu0 %v3464
    %3520 = vmatpush1.msra.mxu0 %v3463
    %3521 = vmatprep.subr.mxu0 %v3468
    %3522 = vmatpush1.msra.mxu0 %v3467
    %3523 = vmatprep.subr.mxu0 %v3472
    %3524 = vmatpush1.msra.mxu0 %v3471
    %3525 = vmatprep.subr.mxu0 %v3476
    %3526 = vmatpush1.msra.mxu0 %v3475
    %3527 = vmatprep.subr.mxu0 %v3480
    %3528 = vmatpush1.msra.mxu0 %v3479
    %3529 = vmatprep.subr.mxu0 %v3484
    %3530 = vmatpush1.msra.mxu0 %v3483
    %3531 = vmatprep.subr.mxu0 %v3488
    %3532 = vmatpush1.msra.mxu0 %v3487
    %3533 = vmatprep.subr.mxu0 %v3492
    %3534 = vmatpush1.msra.mxu0 %v3491
    %3535 = vmatprep.subr.mxu0 %v3496
    %3536 = vmatpush1.msra.mxu0 %v3495
    %3537 = vmatprep.subr.mxu0 %v3500
    %3538 = vmatpush1.msra.mxu0 %v3499
    %3539 = vmatprep.subr.mxu0 %v3504
    %3540 = vmatpush1.msra.mxu0 %v3503
    %3541 = vmatprep.subr.mxu0 %v3508
    %3542 = vmatpush1.msra.mxu0 %v3507
    %3543 = vmatprep.subr.mxu0 0.0
    %3544 = vmatpush1.msra.mxu0 0.0
    %3545 = vmatprep.subr.mxu0 0.0
    %3546 = vmatpush1.msra.mxu0 0.0
    %3547 = vmatprep.subr.mxu0 0.0
    %3548 = vmatpush1.msra.mxu0 0.0
    %3549 = vmatprep.subr.mxu0 0.0
    %3550 = vmatpush1.msra.mxu0 0.0
    %3551 = vmatprep.subr.mxu0 0.0
    %3552 = vmatpush1.msra.mxu0 0.0
    %3553 = vmatprep.subr.mxu0 0.0
    %3554 = vmatpush1.msra.mxu0 0.0
    %3555 = vmatprep.subr.mxu0 0.0
    %3556 = vmatpush1.msra.mxu0 0.0
    %3557 = vmatprep.subr.mxu0 0.0
    %3558 = vmatpush1.msra.mxu0 0.0
    %3559 = vmatprep.subr.mxu0 0.0
    %3560 = vmatpush1.msra.mxu0 0.0
    %3561 = vmatprep.subr.mxu0 0.0
    %3562 = vmatpush1.msra.mxu0 0.0
    %3563 = vmatprep.subr.mxu0 0.0
    %3564 = vmatpush1.msra.mxu0 0.0
    %3565 = vmatprep.subr.mxu0 0.0
    %3566 = vmatpush1.msra.mxu0 0.0
    %3567 = vmatprep.subr.mxu0 0.0
    %3568 = vmatpush1.msra.mxu0 0.0
    %3569 = vmatprep.subr.mxu0 0.0
    %3570 = vmatpush1.msra.mxu0 0.0
    %3571 = vmatprep.subr.mxu0 0.0
    %3572 = vmatpush1.msra.mxu0 0.0
    %3573 = vmatprep.subr.mxu0 0.0
    %3574 = vmatpush1.msra.mxu0 0.0
    %3575 = vmatprep.mubr.f32.mxu0 0.0
    %3576 = vmatmul.mubr.f32.gmra.mrb[0].mxu0 %v2709
    %v3577 = vpop.f32.mrb[0].mxu0
    %v3578 = vadd.f32 0.0, %v3577
    %v3579 = vpop.f32.mrb[0].mxu0
    %v3580 = vadd.f32 0.0, %v3579
    %3581 = vmatprep.mubr.f32.mxu0 0.0
    %3582 = vmatmul.mubr.f32.gmra.mrb[0].mxu0 %v2710
    %v3583 = vpop.f32.mrb[0].mxu0
    %v3584 = vadd.f32 0.0, %v3583
    %v3585 = vpop.f32.mrb[0].mxu0
    %v3586 = vadd.f32 0.0, %v3585
    %3587 = vmatprep.mubr.f32.mxu0 0.0
    %3588 = vmatmul.mubr.f32.gmra.mrb[0].mxu0 %v2711
    %v3589 = vpop.f32.mrb[0].mxu0
    %v3590 = vadd.f32 0.0, %v3589
    %v3591 = vpop.f32.mrb[0].mxu0
    %v3592 = vadd.f32 0.0, %v3591
    %3593 = vmatprep.mubr.f32.mxu0 0.0
    %3594 = vmatmul.mubr.f32.gmra.mrb[0].mxu0 %v2712
    %v3595 = vpop.f32.mrb[0].mxu0
    %v3596 = vadd.f32 0.0, %v3595
    %v3597 = vpop.f32.mrb[0].mxu0
    %v3598 = vadd.f32 0.0, %v3597
    %3599 = vmatprep.mubr.f32.mxu0 0.0
    %3600 = vmatmul.mubr.f32.gmra.mrb[0].mxu0 %v2713
    %v3601 = vpop.f32.mrb[0].mxu0
    %v3602 = vadd.f32 0.0, %v3601
    %v3603 = vpop.f32.mrb[0].mxu0
    %v3604 = vadd.f32 0.0, %v3603
    %3605 = vmatprep.mubr.f32.mxu0 0.0
    %3606 = vmatmul.mubr.f32.gmra.mrb[0].mxu0 %v2714
    %v3607 = vpop.f32.mrb[0].mxu0
    %v3608 = vadd.f32 0.0, %v3607
    %v3609 = vpop.f32.mrb[0].mxu0
    %v3610 = vadd.f32 0.0, %v3609
    %3611 = vmatprep.mubr.f32.mxu0 0.0
    %3612 = vmatmul.mubr.f32.gmra.mrb[0].mxu0 %v2715
    %v3613 = vpop.f32.mrb[0].mxu0
    %v3614 = vadd.f32 0.0, %v3613
    %v3615 = vpop.f32.mrb[0].mxu0
    %v3616 = vadd.f32 0.0, %v3615
    %3617 = vmatprep.mubr.f32.mxu0 0.0
    %3618 = vmatmul.mubr.f32.gmra.mrb[0].mxu0 %v2716
    %v3619 = vpop.f32.mrb[0].mxu0
    %v3620 = vadd.f32 0.0, %v3619
    %v3621 = vpop.f32.mrb[0].mxu0
    %v3622 = vadd.f32 0.0, %v3621
    %3623 = vdwg.mxu0
    %3624 = vmatprep.subr.mxu0 %v3450
    %3625 = vmatpush1.msra.mxu0 %v3449
    %3626 = vmatprep.subr.mxu0 %v3454
    %3627 = vmatpush1.msra.mxu0 %v3453
    %3628 = vmatprep.subr.mxu0 %v3458
    %3629 = vmatpush1.msra.mxu0 %v3457
    %3630 = vmatprep.subr.mxu0 %v3462
    %3631 = vmatpush1.msra.mxu0 %v3461
    %3632 = vmatprep.subr.mxu0 %v3466
    %3633 = vmatpush1.msra.mxu0 %v3465
    %3634 = vmatprep.subr.mxu0 %v3470
    %3635 = vmatpush1.msra.mxu0 %v3469
    %3636 = vmatprep.subr.mxu0 %v3474
    %3637 = vmatpush1.msra.mxu0 %v3473
    %3638 = vmatprep.subr.mxu0 %v3478
    %3639 = vmatpush1.msra.mxu0 %v3477
    %3640 = vmatprep.subr.mxu0 %v3482
    %3641 = vmatpush1.msra.mxu0 %v3481
    %3642 = vmatprep.subr.mxu0 %v3486
    %3643 = vmatpush1.msra.mxu0 %v3485
    %3644 = vmatprep.subr.mxu0 %v3490
    %3645 = vmatpush1.msra.mxu0 %v3489
    %3646 = vmatprep.subr.mxu0 %v3494
    %3647 = vmatpush1.msra.mxu0 %v3493
    %3648 = vmatprep.subr.mxu0 %v3498
    %3649 = vmatpush1.msra.mxu0 %v3497
    %3650 = vmatprep.subr.mxu0 %v3502
    %3651 = vmatpush1.msra.mxu0 %v3501
    %3652 = vmatprep.subr.mxu0 %v3506
    %3653 = vmatpush1.msra.mxu0 %v3505
    %3654 = vmatprep.subr.mxu0 %v3510
    %3655 = vmatpush1.msra.mxu0 %v3509
    %3656 = vmatprep.subr.mxu0 0.0
    %3657 = vmatpush1.msra.mxu0 0.0
    %3658 = vmatprep.subr.mxu0 0.0
    %3659 = vmatpush1.msra.mxu0 0.0
    %3660 = vmatprep.subr.mxu0 0.0
    %3661 = vmatpush1.msra.mxu0 0.0
    %3662 = vmatprep.subr.mxu0 0.0
    %3663 = vmatpush1.msra.mxu0 0.0
    %3664 = vmatprep.subr.mxu0 0.0
    %3665 = vmatpush1.msra.mxu0 0.0
    %3666 = vmatprep.subr.mxu0 0.0
    %3667 = vmatpush1.msra.mxu0 0.0
    %3668 = vmatprep.subr.mxu0 0.0
    %3669 = vmatpush1.msra.mxu0 0.0
    %3670 = vmatprep.subr.mxu0 0.0
    %3671 = vmatpush1.msra.mxu0 0.0
    %3672 = vmatprep.subr.mxu0 0.0
    %3673 = vmatpush1.msra.mxu0 0.0
    %3674 = vmatprep.subr.mxu0 0.0
    %3675 = vmatpush1.msra.mxu0 0.0
    %3676 = vmatprep.subr.mxu0 0.0
    %3677 = vmatpush1.msra.mxu0 0.0
    %3678 = vmatprep.subr.mxu0 0.0
    %3679 = vmatpush1.msra.mxu0 0.0
    %3680 = vmatprep.subr.mxu0 0.0
    %3681 = vmatpush1.msra.mxu0 0.0
    %3682 = vmatprep.subr.mxu0 0.0
    %3683 = vmatpush1.msra.mxu0 0.0
    %3684 = vmatprep.subr.mxu0 0.0
    %3685 = vmatpush1.msra.mxu0 0.0
    %3686 = vmatprep.subr.mxu0 0.0
    %3687 = vmatpush1.msra.mxu0 0.0
    %3688 = vmatprep.mubr.f32.mxu0 0.0
    %3689 = vmatmul.mubr.f32.gmra.mrb[0].mxu0 %v2709
    %v3690 = vpop.f32.mrb[0].mxu0
    %v3691 = vadd.f32 0.0, %v3690
    %v3692 = vpop.f32.mrb[0].mxu0
    %v3693 = vadd.f32 0.0, %v3692
    %3694 = vmatprep.mubr.f32.mxu0 0.0
    %3695 = vmatmul.mubr.f32.gmra.mrb[0].mxu0 %v2710
    %v3696 = vpop.f32.mrb[0].mxu0
    %v3697 = vadd.f32 0.0, %v3696
    %v3698 = vpop.f32.mrb[0].mxu0
    %v3699 = vadd.f32 0.0, %v3698
    %3700 = vmatprep.mubr.f32.mxu0 0.0
    %3701 = vmatmul.mubr.f32.gmra.mrb[0].mxu0 %v2711
    %v3702 = vpop.f32.mrb[0].mxu0
    %v3703 = vadd.f32 0.0, %v3702
    %v3704 = vpop.f32.mrb[0].mxu0
    %v3705 = vadd.f32 0.0, %v3704
    %3706 = vmatprep.mubr.f32.mxu0 0.0
    %3707 = vmatmul.mubr.f32.gmra.mrb[0].mxu0 %v2712
    %v3708 = vpop.f32.mrb[0].mxu0
    %v3709 = vadd.f32 0.0, %v3708
    %v3710 = vpop.f32.mrb[0].mxu0
    %v3711 = vadd.f32 0.0, %v3710
    %3712 = vmatprep.mubr.f32.mxu0 0.0
    %3713 = vmatmul.mubr.f32.gmra.mrb[0].mxu0 %v2713
    %v3714 = vpop.f32.mrb[0].mxu0
    %v3715 = vadd.f32 0.0, %v3714
    %v3716 = vpop.f32.mrb[0].mxu0
    %v3717 = vadd.f32 0.0, %v3716
    %3718 = vmatprep.mubr.f32.mxu0 0.0
    %3719 = vmatmul.mubr.f32.gmra.mrb[0].mxu0 %v2714
    %v3720 = vpop.f32.mrb[0].mxu0
    %v3721 = vadd.f32 0.0, %v3720
    %v3722 = vpop.f32.mrb[0].mxu0
    %v3723 = vadd.f32 0.0, %v3722
    %3724 = vmatprep.mubr.f32.mxu0 0.0
    %3725 = vmatmul.mubr.f32.gmra.mrb[0].mxu0 %v2715
    %v3726 = vpop.f32.mrb[0].mxu0
    %v3727 = vadd.f32 0.0, %v3726
    %v3728 = vpop.f32.mrb[0].mxu0
    %v3729 = vadd.f32 0.0, %v3728
    %3730 = vmatprep.mubr.f32.mxu0 0.0
    %3731 = vmatmul.mubr.f32.gmra.mrb[0].mxu0 %v2716
    %v3732 = vpop.f32.mrb[0].mxu0
    %v3733 = vadd.f32 0.0, %v3732
    %v3734 = vpop.f32.mrb[0].mxu0
    %v3735 = vadd.f32 0.0, %v3734
    %3736 = vdwg.mxu0
    %3737 = vmatprep.subr.mxu0 %v3384
    %3738 = vmatpush1.msra.mxu0 %v3383
    %3739 = vmatprep.subr.mxu0 %v3388
    %3740 = vmatpush1.msra.mxu0 %v3387
    %3741 = vmatprep.subr.mxu0 %v3392
    %3742 = vmatpush1.msra.mxu0 %v3391
    %3743 = vmatprep.subr.mxu0 %v3396
    %3744 = vmatpush1.msra.mxu0 %v3395
    %3745 = vmatprep.subr.mxu0 %v3400
    %3746 = vmatpush1.msra.mxu0 %v3399
    %3747 = vmatprep.subr.mxu0 %v3404
    %3748 = vmatpush1.msra.mxu0 %v3403
    %3749 = vmatprep.subr.mxu0 %v3408
    %3750 = vmatpush1.msra.mxu0 %v3407
    %3751 = vmatprep.subr.mxu0 %v3412
    %3752 = vmatpush1.msra.mxu0 %v3411
    %3753 = vmatprep.subr.mxu0 %v3416
    %3754 = vmatpush1.msra.mxu0 %v3415
    %3755 = vmatprep.subr.mxu0 %v3420
    %3756 = vmatpush1.msra.mxu0 %v3419
    %3757 = vmatprep.subr.mxu0 %v3424
    %3758 = vmatpush1.msra.mxu0 %v3423
    %3759 = vmatprep.subr.mxu0 %v3428
    %3760 = vmatpush1.msra.mxu0 %v3427
    %3761 = vmatprep.subr.mxu0 %v3432
    %3762 = vmatpush1.msra.mxu0 %v3431
    %3763 = vmatprep.subr.mxu0 %v3436
    %3764 = vmatpush1.msra.mxu0 %v3435
    %3765 = vmatprep.subr.mxu0 %v3440
    %3766 = vmatpush1.msra.mxu0 %v3439
    %3767 = vmatprep.subr.mxu0 %v3444
    %3768 = vmatpush1.msra.mxu0 %v3443
    %3769 = vmatprep.subr.mxu0 0.0
    %3770 = vmatpush1.msra.mxu0 0.0
    %3771 = vmatprep.subr.mxu0 0.0
    %3772 = vmatpush1.msra.mxu0 0.0
    %3773 = vmatprep.subr.mxu0 0.0
    %3774 = vmatpush1.msra.mxu0 0.0
    %3775 = vmatprep.subr.mxu0 0.0
    %3776 = vmatpush1.msra.mxu0 0.0
    %3777 = vmatprep.subr.mxu0 0.0
    %3778 = vmatpush1.msra.mxu0 0.0
    %3779 = vmatprep.subr.mxu0 0.0
    %3780 = vmatpush1.msra.mxu0 0.0
    %3781 = vmatprep.subr.mxu0 0.0
    %3782 = vmatpush1.msra.mxu0 0.0
    %3783 = vmatprep.subr.mxu0 0.0
    %3784 = vmatpush1.msra.mxu0 0.0
    %3785 = vmatprep.subr.mxu0 0.0
    %3786 = vmatpush1.msra.mxu0 0.0
    %3787 = vmatprep.subr.mxu0 0.0
    %3788 = vmatpush1.msra.mxu0 0.0
    %3789 = vmatprep.subr.mxu0 0.0
    %3790 = vmatpush1.msra.mxu0 0.0
    %3791 = vmatprep.subr.mxu0 0.0
    %3792 = vmatpush1.msra.mxu0 0.0
    %3793 = vmatprep.subr.mxu0 0.0
    %3794 = vmatpush1.msra.mxu0 0.0
    %3795 = vmatprep.subr.mxu0 0.0
    %3796 = vmatpush1.msra.mxu0 0.0
    %3797 = vmatprep.subr.mxu0 0.0
    %3798 = vmatpush1.msra.mxu0 0.0
    %3799 = vmatprep.subr.mxu0 0.0
    %3800 = vmatpush1.msra.mxu0 0.0
    %3801 = vmatprep.mubr.f32.mxu0 0.0
    %3802 = vmatmul.mubr.f32.gmra.mrb[0].mxu0 %v2701
    %v3803 = vpop.f32.mrb[0].mxu0
    %v3804 = vadd.f32 %v3578, %v3803
    %v3805 = vpop.f32.mrb[0].mxu0
    %v3806 = vadd.f32 %v3580, %v3805
    %3807 = vmatprep.mubr.f32.mxu0 0.0
    %3808 = vmatmul.mubr.f32.gmra.mrb[0].mxu0 %v2702
    %v3809 = vpop.f32.mrb[0].mxu0
    %v3810 = vadd.f32 %v3584, %v3809
    %v3811 = vpop.f32.mrb[0].mxu0
    %v3812 = vadd.f32 %v3586, %v3811
    %3813 = vmatprep.mubr.f32.mxu0 0.0
    %3814 = vmatmul.mubr.f32.gmra.mrb[0].mxu0 %v2703
    %v3815 = vpop.f32.mrb[0].mxu0
    %v3816 = vadd.f32 %v3590, %v3815
    %v3817 = vpop.f32.mrb[0].mxu0
    %v3818 = vadd.f32 %v3592, %v3817
    %3819 = vmatprep.mubr.f32.mxu0 0.0
    %3820 = vmatmul.mubr.f32.gmra.mrb[0].mxu0 %v2704
    %v3821 = vpop.f32.mrb[0].mxu0
    %v3822 = vadd.f32 %v3596, %v3821
    %v3823 = vpop.f32.mrb[0].mxu0
    %v3824 = vadd.f32 %v3598, %v3823
    %3825 = vmatprep.mubr.f32.mxu0 0.0
    %3826 = vmatmul.mubr.f32.gmra.mrb[0].mxu0 %v2705
    %v3827 = vpop.f32.mrb[0].mxu0
    %v3828 = vadd.f32 %v3602, %v3827
    %v3829 = vpop.f32.mrb[0].mxu0
    %v3830 = vadd.f32 %v3604, %v3829
    %3831 = vmatprep.mubr.f32.mxu0 0.0
    %3832 = vmatmul.mubr.f32.gmra.mrb[0].mxu0 %v2706
    %v3833 = vpop.f32.mrb[0].mxu0
    %v3834 = vadd.f32 %v3608, %v3833
    %v3835 = vpop.f32.mrb[0].mxu0
    %v3836 = vadd.f32 %v3610, %v3835
    %3837 = vmatprep.mubr.f32.mxu0 0.0
    %3838 = vmatmul.mubr.f32.gmra.mrb[0].mxu0 %v2707
    %v3839 = vpop.f32.mrb[0].mxu0
    %v3840 = vadd.f32 %v3614, %v3839
    %v3841 = vpop.f32.mrb[0].mxu0
    %v3842 = vadd.f32 %v3616, %v3841
    %3843 = vmatprep.mubr.f32.mxu0 0.0
    %3844 = vmatmul.mubr.f32.gmra.mrb[0].mxu0 %v2708
    %v3845 = vpop.f32.mrb[0].mxu0
    %v3846 = vadd.f32 %v3620, %v3845
    %v3847 = vpop.f32.mrb[0].mxu0
    %v3848 = vadd.f32 %v3622, %v3847
    %3849 = vdwg.mxu0
    %3850 = vmatprep.subr.mxu0 %v3386
    %3851 = vmatpush1.msra.mxu0 %v3385
    %3852 = vmatprep.subr.mxu0 %v3390
    %3853 = vmatpush1.msra.mxu0 %v3389
    %3854 = vmatprep.subr.mxu0 %v3394
    %3855 = vmatpush1.msra.mxu0 %v3393
    %3856 = vmatprep.subr.mxu0 %v3398
    %3857 = vmatpush1.msra.mxu0 %v3397
    %3858 = vmatprep.subr.mxu0 %v3402
    %3859 = vmatpush1.msra.mxu0 %v3401
    %3860 = vmatprep.subr.mxu0 %v3406
    %3861 = vmatpush1.msra.mxu0 %v3405
    %3862 = vmatprep.subr.mxu0 %v3410
    %3863 = vmatpush1.msra.mxu0 %v3409
    %3864 = vmatprep.subr.mxu0 %v3414
    %3865 = vmatpush1.msra.mxu0 %v3413
    %3866 = vmatprep.subr.mxu0 %v3418
    %3867 = vmatpush1.msra.mxu0 %v3417
    %3868 = vmatprep.subr.mxu0 %v3422
    %3869 = vmatpush1.msra.mxu0 %v3421
    %3870 = vmatprep.subr.mxu0 %v3426
    %3871 = vmatpush1.msra.mxu0 %v3425
    %3872 = vmatprep.subr.mxu0 %v3430
    %3873 = vmatpush1.msra.mxu0 %v3429
    %3874 = vmatprep.subr.mxu0 %v3434
    %3875 = vmatpush1.msra.mxu0 %v3433
    %3876 = vmatprep.subr.mxu0 %v3438
    %3877 = vmatpush1.msra.mxu0 %v3437
    %3878 = vmatprep.subr.mxu0 %v3442
    %3879 = vmatpush1.msra.mxu0 %v3441
    %3880 = vmatprep.subr.mxu0 %v3446
    %3881 = vmatpush1.msra.mxu0 %v3445
    %3882 = vmatprep.subr.mxu0 0.0
    %3883 = vmatpush1.msra.mxu0 0.0
    %3884 = vmatprep.subr.mxu0 0.0
    %3885 = vmatpush1.msra.mxu0 0.0
    %3886 = vmatprep.subr.mxu0 0.0
    %3887 = vmatpush1.msra.mxu0 0.0
    %3888 = vmatprep.subr.mxu0 0.0
    %3889 = vmatpush1.msra.mxu0 0.0
    %3890 = vmatprep.subr.mxu0 0.0
    %3891 = vmatpush1.msra.mxu0 0.0
    %3892 = vmatprep.subr.mxu0 0.0
    %3893 = vmatpush1.msra.mxu0 0.0
    %3894 = vmatprep.subr.mxu0 0.0
    %3895 = vmatpush1.msra.mxu0 0.0
    %3896 = vmatprep.subr.mxu0 0.0
    %3897 = vmatpush1.msra.mxu0 0.0
    %3898 = vmatprep.subr.mxu0 0.0
    %3899 = vmatpush1.msra.mxu0 0.0
    %3900 = vmatprep.subr.mxu0 0.0
    %3901 = vmatpush1.msra.mxu0 0.0
    %3902 = vmatprep.subr.mxu0 0.0
    %3903 = vmatpush1.msra.mxu0 0.0
    %3904 = vmatprep.subr.mxu0 0.0
    %3905 = vmatpush1.msra.mxu0 0.0
    %3906 = vmatprep.subr.mxu0 0.0
    %3907 = vmatpush1.msra.mxu0 0.0
    %3908 = vmatprep.subr.mxu0 0.0
    %3909 = vmatpush1.msra.mxu0 0.0
    %3910 = vmatprep.subr.mxu0 0.0
    %3911 = vmatpush1.msra.mxu0 0.0
    %3912 = vmatprep.subr.mxu0 0.0
    %3913 = vmatpush1.msra.mxu0 0.0
    %3914 = vmatprep.mubr.f32.mxu0 0.0
    %3915 = vmatmul.mubr.f32.gmra.mrb[0].mxu0 %v2701
    %v3916 = vpop.f32.mrb[0].mxu0
    %v3917 = vadd.f32 %v3691, %v3916
    %v3918 = vpop.f32.mrb[0].mxu0
    %v3919 = vadd.f32 %v3693, %v3918
    %3920 = vmatprep.mubr.f32.mxu0 0.0
    %3921 = vmatmul.mubr.f32.gmra.mrb[0].mxu0 %v2702
    %v3922 = vpop.f32.mrb[0].mxu0
    %v3923 = vadd.f32 %v3697, %v3922
    %v3924 = vpop.f32.mrb[0].mxu0
    %v3925 = vadd.f32 %v3699, %v3924
    %3926 = vmatprep.mubr.f32.mxu0 0.0
    %3927 = vmatmul.mubr.f32.gmra.mrb[0].mxu0 %v2703
    %v3928 = vpop.f32.mrb[0].mxu0
    %v3929 = vadd.f32 %v3703, %v3928
    %v3930 = vpop.f32.mrb[0].mxu0
    %v3931 = vadd.f32 %v3705, %v3930
    %3932 = vmatprep.mubr.f32.mxu0 0.0
    %3933 = vmatmul.mubr.f32.gmra.mrb[0].mxu0 %v2704
    %v3934 = vpop.f32.mrb[0].mxu0
    %v3935 = vadd.f32 %v3709, %v3934
    %v3936 = vpop.f32.mrb[0].mxu0
    %v3937 = vadd.f32 %v3711, %v3936
    %3938 = vmatprep.mubr.f32.mxu0 0.0
    %3939 = vmatmul.mubr.f32.gmra.mrb[0].mxu0 %v2705
    %v3940 = vpop.f32.mrb[0].mxu0
    %v3941 = vadd.f32 %v3715, %v3940
    %v3942 = vpop.f32.mrb[0].mxu0
    %v3943 = vadd.f32 %v3717, %v3942
    %3944 = vmatprep.mubr.f32.mxu0 0.0
    %3945 = vmatmul.mubr.f32.gmra.mrb[0].mxu0 %v2706
    %v3946 = vpop.f32.mrb[0].mxu0
    %v3947 = vadd.f32 %v3721, %v3946
    %v3948 = vpop.f32.mrb[0].mxu0
    %v3949 = vadd.f32 %v3723, %v3948
    %3950 = vmatprep.mubr.f32.mxu0 0.0
    %3951 = vmatmul.mubr.f32.gmra.mrb[0].mxu0 %v2707
    %v3952 = vpop.f32.mrb[0].mxu0
    %v3953 = vadd.f32 %v3727, %v3952
    %v3954 = vpop.f32.mrb[0].mxu0
    %v3955 = vadd.f32 %v3729, %v3954
    %3956 = vmatprep.mubr.f32.mxu0 0.0
    %3957 = vmatmul.mubr.f32.gmra.mrb[0].mxu0 %v2708
    %v3958 = vpop.f32.mrb[0].mxu0
    %v3959 = vadd.f32 %v3733, %v3958
    %v3960 = vpop.f32.mrb[0].mxu0
    %v3961 = vadd.f32 %v3735, %v3960
    %3962 = vdwg.mxu0
    %3963 = vst [vmem:[#allocation3] sm:$0xff] %v3804
    %3964 = vst [vmem:[#allocation3 + $0x8] sm:$0xff] %v3806
    %3965 = vst [vmem:[#allocation3 + $0x10] sm:$0xff] %v3917
    %3966 = vst [vmem:[#allocation3 + $0x18] sm:$0xff] %v3919
    %3967 = vst [vmem:[#allocation3 + $0x20] sm:$0xff] %v3810
    %3968 = vst [vmem:[#allocation3 + $0x28] sm:$0xff] %v3812
    %3969 = vst [vmem:[#allocation3 + $0x30] sm:$0xff] %v3923
    %3970 = vst [vmem:[#allocation3 + $0x38] sm:$0xff] %v3925
    %3971 = vst [vmem:[#allocation3 + $0x40] sm:$0xff] %v3816
    %3972 = vst [vmem:[#allocation3 + $0x48] sm:$0xff] %v3818
    %3973 = vst [vmem:[#allocation3 + $0x50] sm:$0xff] %v3929
    %3974 = vst [vmem:[#allocation3 + $0x58] sm:$0xff] %v3931
    %3975 = vst [vmem:[#allocation3 + $0x60] sm:$0xff] %v3822
    %3976 = vst [vmem:[#allocation3 + $0x68] sm:$0xff] %v3824
    %3977 = vst [vmem:[#allocation3 + $0x70] sm:$0xff] %v3935
    %3978 = vst [vmem:[#allocation3 + $0x78] sm:$0xff] %v3937
    %3979 = vst [vmem:[#allocation3 + $0x80] sm:$0xff] %v3828
    %3980 = vst [vmem:[#allocation3 + $0x88] sm:$0xff] %v3830
    %3981 = vst [vmem:[#allocation3 + $0x90] sm:$0xff] %v3941
    %3982 = vst [vmem:[#allocation3 + $0x98] sm:$0xff] %v3943
    %3983 = vst [vmem:[#allocation3 + $0xa0] sm:$0xff] %v3834
    %3984 = vst [vmem:[#allocation3 + $0xa8] sm:$0xff] %v3836
    %3985 = vst [vmem:[#allocation3 + $0xb0] sm:$0xff] %v3947
    %3986 = vst [vmem:[#allocation3 + $0xb8] sm:$0xff] %v3949
    %3987 = vst [vmem:[#allocation3 + $0xc0] sm:$0xff] %v3840
    %3988 = vst [vmem:[#allocation3 + $0xc8] sm:$0xff] %v3842
    %3989 = vst [vmem:[#allocation3 + $0xd0] sm:$0xff] %v3953
    %3990 = vst [vmem:[#allocation3 + $0xd8] sm:$0xff] %v3955
    %3991 = vst [vmem:[#allocation3 + $0xe0] sm:$0xff] %v3846
    %3992 = vst [vmem:[#allocation3 + $0xe8] sm:$0xff] %v3848
    %3993 = vst [vmem:[#allocation3 + $0xf0] sm:$0xff] %v3959
    %3994 = vst [vmem:[#allocation3 + $0xf8] sm:$0xff] %v3961
    %v3995 = vld [vmem:[#allocation2] sm:$0xff]
    %v3996 = vld [vmem:[#allocation2 + $0x8] sm:$0xff]
    %v3997 = vld [vmem:[#allocation2 + $0x10] sm:$0xff]
    %v3998 = vld [vmem:[#allocation2 + $0x18] sm:$0xff]
    %v3999 = vld [vmem:[#allocation3 + $0xe0] sm:$0xff]
    %v4000 = vld [vmem:[#allocation3 + $0xe8] sm:$0xff]
    %v4001 = vld [vmem:[#allocation3 + $0xf0] sm:$0xff]
    %v4002 = vld [vmem:[#allocation3 + $0xf8] sm:$0xff]
    %v4003 = vadd.f32 %v3995, %v3999
    %v4004 = vadd.f32 %v3996, %v4000
    %v4005 = vadd.f32 %v3997, %v4001
    %v4006 = vadd.f32 %v3998, %v4002
    %v4007 = vld [vmem:[#allocation15] sm:$0xff]
    %v4008 = vld [vmem:[#allocation15 + $0x8] sm:$0xff]
    %v4009 = vld [vmem:[#allocation15 + $0x10] sm:$0xff]
    %v4010 = vld [vmem:[#allocation15 + $0x18] sm:$0xff]
    %v4011 = vld [vmem:[#allocation15 + $0x20] sm:$0xff]
    %v4012 = vld [vmem:[#allocation15 + $0x28] sm:$0xff]
    %v4013 = vld [vmem:[#allocation15 + $0x30] sm:$0xff]
    %v4014 = vld [vmem:[#allocation15 + $0x38] sm:$0xff]
    %v4015 = vld [vmem:[#allocation15 + $0x40] sm:$0xff]
    %v4016 = vld [vmem:[#allocation15 + $0x48] sm:$0xff]
    %v4017 = vld [vmem:[#allocation15 + $0x50] sm:$0xff]
    %v4018 = vld [vmem:[#allocation15 + $0x58] sm:$0xff]
    %v4019 = vld [vmem:[#allocation15 + $0x60] sm:$0xff]
    %v4020 = vld [vmem:[#allocation15 + $0x68] sm:$0xff]
    %v4021 = vld [vmem:[#allocation15 + $0x70] sm:$0xff]
    %v4022 = vld [vmem:[#allocation15 + $0x78] sm:$0xff]
    %v4023 = vld [vmem:[#allocation15 + $0x80] sm:$0xff]
    %v4024 = vld [vmem:[#allocation15 + $0x88] sm:$0xff]
    %v4025 = vld [vmem:[#allocation15 + $0x90] sm:$0xff]
    %v4026 = vld [vmem:[#allocation15 + $0x98] sm:$0xff]
    %v4027 = vld [vmem:[#allocation15 + $0xa0] sm:$0xff]
    %v4028 = vld [vmem:[#allocation15 + $0xa8] sm:$0xff]
    %v4029 = vld [vmem:[#allocation15 + $0xb0] sm:$0xff]
    %v4030 = vld [vmem:[#allocation15 + $0xb8] sm:$0xff]
    %v4031 = vld [vmem:[#allocation15 + $0xc0] sm:$0xff]
    %v4032 = vld [vmem:[#allocation15 + $0xc8] sm:$0xff]
    %v4033 = vld [vmem:[#allocation15 + $0xd0] sm:$0xff]
    %v4034 = vld [vmem:[#allocation15 + $0xd8] sm:$0xff]
    %v4035 = vld [vmem:[#allocation15 + $0xe0] sm:$0xff]
    %v4036 = vld [vmem:[#allocation15 + $0xe8] sm:$0xff]
    %v4037 = vld [vmem:[#allocation15 + $0xf0] sm:$0xff]
    %v4038 = vld [vmem:[#allocation15 + $0xf8] sm:$0xff]
    %v4039 = vld [vmem:[#allocation15 + $0x100] sm:$0xff]
    %v4040 = vld [vmem:[#allocation15 + $0x108] sm:$0xff]
    %v4041 = vld [vmem:[#allocation15 + $0x110] sm:$0xff]
    %v4042 = vld [vmem:[#allocation15 + $0x118] sm:$0xff]
    %v4043 = vld [vmem:[#allocation15 + $0x120] sm:$0xff]
    %v4044 = vld [vmem:[#allocation15 + $0x128] sm:$0xff]
    %v4045 = vld [vmem:[#allocation15 + $0x130] sm:$0xff]
    %v4046 = vld [vmem:[#allocation15 + $0x138] sm:$0xff]
    %v4047 = vld [vmem:[#allocation15 + $0x140] sm:$0xff]
    %v4048 = vld [vmem:[#allocation15 + $0x148] sm:$0xff]
    %v4049 = vld [vmem:[#allocation15 + $0x150] sm:$0xff]
    %v4050 = vld [vmem:[#allocation15 + $0x158] sm:$0xff]
    %v4051 = vld [vmem:[#allocation15 + $0x160] sm:$0xff]
    %v4052 = vld [vmem:[#allocation15 + $0x168] sm:$0xff]
    %v4053 = vld [vmem:[#allocation15 + $0x170] sm:$0xff]
    %v4054 = vld [vmem:[#allocation15 + $0x178] sm:$0xff]
    %v4055 = vld [vmem:[#allocation15 + $0x180] sm:$0xff]
    %v4056 = vld [vmem:[#allocation15 + $0x188] sm:$0xff]
    %v4057 = vld [vmem:[#allocation15 + $0x190] sm:$0xff]
    %v4058 = vld [vmem:[#allocation15 + $0x198] sm:$0xff]
    %v4059 = vld [vmem:[#allocation15 + $0x1a0] sm:$0xff]
    %v4060 = vld [vmem:[#allocation15 + $0x1a8] sm:$0xff]
    %v4061 = vld [vmem:[#allocation15 + $0x1b0] sm:$0xff]
    %v4062 = vld [vmem:[#allocation15 + $0x1b8] sm:$0xff]
    %v4063 = vld [vmem:[#allocation15 + $0x1c0] sm:$0xff]
    %v4064 = vld [vmem:[#allocation15 + $0x1c8] sm:$0xff]
    %v4065 = vld [vmem:[#allocation15 + $0x1d0] sm:$0xff]
    %v4066 = vld [vmem:[#allocation15 + $0x1d8] sm:$0xff]
    %v4067 = vld [vmem:[#allocation15 + $0x1e0] sm:$0xff]
    %v4068 = vld [vmem:[#allocation15 + $0x1e8] sm:$0xff]
    %v4069 = vld [vmem:[#allocation15 + $0x1f0] sm:$0xff]
    %v4070 = vld [vmem:[#allocation15 + $0x1f8] sm:$0xff]
    %4071 = vmatprep.subr.mxu0 %v4008
    %4072 = vmatpush1.msra.mxu0 %v4007
    %4073 = vmatprep.subr.mxu0 %v4012
    %4074 = vmatpush1.msra.mxu0 %v4011
    %4075 = vmatprep.subr.mxu0 %v4016
    %4076 = vmatpush1.msra.mxu0 %v4015
    %4077 = vmatprep.subr.mxu0 %v4020
    %4078 = vmatpush1.msra.mxu0 %v4019
    %4079 = vmatprep.subr.mxu0 %v4024
    %4080 = vmatpush1.msra.mxu0 %v4023
    %4081 = vmatprep.subr.mxu0 %v4028
    %4082 = vmatpush1.msra.mxu0 %v4027
    %4083 = vmatprep.subr.mxu0 %v4032
    %4084 = vmatpush1.msra.mxu0 %v4031
    %4085 = vmatprep.subr.mxu0 %v4036
    %4086 = vmatpush1.msra.mxu0 %v4035
    %4087 = vmatprep.subr.mxu0 %v4040
    %4088 = vmatpush1.msra.mxu0 %v4039
    %4089 = vmatprep.subr.mxu0 %v4044
    %4090 = vmatpush1.msra.mxu0 %v4043
    %4091 = vmatprep.subr.mxu0 %v4048
    %4092 = vmatpush1.msra.mxu0 %v4047
    %4093 = vmatprep.subr.mxu0 %v4052
    %4094 = vmatpush1.msra.mxu0 %v4051
    %4095 = vmatprep.subr.mxu0 %v4056
    %4096 = vmatpush1.msra.mxu0 %v4055
    %4097 = vmatprep.subr.mxu0 %v4060
    %4098 = vmatpush1.msra.mxu0 %v4059
    %4099 = vmatprep.subr.mxu0 %v4064
    %4100 = vmatpush1.msra.mxu0 %v4063
    %4101 = vmatprep.subr.mxu0 %v4068
    %4102 = vmatpush1.msra.mxu0 %v4067
    %4103 = vmatprep.subr.mxu0 0.0
    %4104 = vmatpush1.msra.mxu0 0.0
    %4105 = vmatprep.subr.mxu0 0.0
    %4106 = vmatpush1.msra.mxu0 0.0
    %4107 = vmatprep.subr.mxu0 0.0
    %4108 = vmatpush1.msra.mxu0 0.0
    %4109 = vmatprep.subr.mxu0 0.0
    %4110 = vmatpush1.msra.mxu0 0.0
    %4111 = vmatprep.subr.mxu0 0.0
    %4112 = vmatpush1.msra.mxu0 0.0
    %4113 = vmatprep.subr.mxu0 0.0
    %4114 = vmatpush1.msra.mxu0 0.0
    %4115 = vmatprep.subr.mxu0 0.0
    %4116 = vmatpush1.msra.mxu0 0.0
    %4117 = vmatprep.subr.mxu0 0.0
    %4118 = vmatpush1.msra.mxu0 0.0
    %4119 = vmatprep.subr.mxu0 0.0
    %4120 = vmatpush1.msra.mxu0 0.0
    %4121 = vmatprep.subr.mxu0 0.0
    %4122 = vmatpush1.msra.mxu0 0.0
    %4123 = vmatprep.subr.mxu0 0.0
    %4124 = vmatpush1.msra.mxu0 0.0
    %4125 = vmatprep.subr.mxu0 0.0
    %4126 = vmatpush1.msra.mxu0 0.0
    %4127 = vmatprep.subr.mxu0 0.0
    %4128 = vmatpush1.msra.mxu0 0.0
    %4129 = vmatprep.subr.mxu0 0.0
    %4130 = vmatpush1.msra.mxu0 0.0
    %4131 = vmatprep.subr.mxu0 0.0
    %4132 = vmatpush1.msra.mxu0 0.0
    %4133 = vmatprep.subr.mxu0 0.0
    %4134 = vmatpush1.msra.mxu0 0.0
    %4135 = vmatprep.mubr.f32.mxu0 0.0
    %4136 = vmatmul.mubr.f32.gmra.mrb[0].mxu0 0.0
    %v4137 = vpop.f32.mrb[0].mxu0
    %v4138 = vadd.f32 0.0, %v4137
    %v4139 = vpop.f32.mrb[0].mxu0
    %v4140 = vadd.f32 0.0, %v4139
    %4141 = vdwg.mxu0
    %4142 = vmatprep.subr.mxu0 %v4010
    %4143 = vmatpush1.msra.mxu0 %v4009
    %4144 = vmatprep.subr.mxu0 %v4014
    %4145 = vmatpush1.msra.mxu0 %v4013
    %4146 = vmatprep.subr.mxu0 %v4018
    %4147 = vmatpush1.msra.mxu0 %v4017
    %4148 = vmatprep.subr.mxu0 %v4022
    %4149 = vmatpush1.msra.mxu0 %v4021
    %4150 = vmatprep.subr.mxu0 %v4026
    %4151 = vmatpush1.msra.mxu0 %v4025
    %4152 = vmatprep.subr.mxu0 %v4030
    %4153 = vmatpush1.msra.mxu0 %v4029
    %4154 = vmatprep.subr.mxu0 %v4034
    %4155 = vmatpush1.msra.mxu0 %v4033
    %4156 = vmatprep.subr.mxu0 %v4038
    %4157 = vmatpush1.msra.mxu0 %v4037
    %4158 = vmatprep.subr.mxu0 %v4042
    %4159 = vmatpush1.msra.mxu0 %v4041
    %4160 = vmatprep.subr.mxu0 %v4046
    %4161 = vmatpush1.msra.mxu0 %v4045
    %4162 = vmatprep.subr.mxu0 %v4050
    %4163 = vmatpush1.msra.mxu0 %v4049
    %4164 = vmatprep.subr.mxu0 %v4054
    %4165 = vmatpush1.msra.mxu0 %v4053
    %4166 = vmatprep.subr.mxu0 %v4058
    %4167 = vmatpush1.msra.mxu0 %v4057
    %4168 = vmatprep.subr.mxu0 %v4062
    %4169 = vmatpush1.msra.mxu0 %v4061
    %4170 = vmatprep.subr.mxu0 %v4066
    %4171 = vmatpush1.msra.mxu0 %v4065
    %4172 = vmatprep.subr.mxu0 %v4070
    %4173 = vmatpush1.msra.mxu0 %v4069
    %4174 = vmatprep.subr.mxu0 0.0
    %4175 = vmatpush1.msra.mxu0 0.0
    %4176 = vmatprep.subr.mxu0 0.0
    %4177 = vmatpush1.msra.mxu0 0.0
    %4178 = vmatprep.subr.mxu0 0.0
    %4179 = vmatpush1.msra.mxu0 0.0
    %4180 = vmatprep.subr.mxu0 0.0
    %4181 = vmatpush1.msra.mxu0 0.0
    %4182 = vmatprep.subr.mxu0 0.0
    %4183 = vmatpush1.msra.mxu0 0.0
    %4184 = vmatprep.subr.mxu0 0.0
    %4185 = vmatpush1.msra.mxu0 0.0
    %4186 = vmatprep.subr.mxu0 0.0
    %4187 = vmatpush1.msra.mxu0 0.0
    %4188 = vmatprep.subr.mxu0 0.0
    %4189 = vmatpush1.msra.mxu0 0.0
    %4190 = vmatprep.subr.mxu0 0.0
    %4191 = vmatpush1.msra.mxu0 0.0
    %4192 = vmatprep.subr.mxu0 0.0
    %4193 = vmatpush1.msra.mxu0 0.0
    %4194 = vmatprep.subr.mxu0 0.0
    %4195 = vmatpush1.msra.mxu0 0.0
    %4196 = vmatprep.subr.mxu0 0.0
    %4197 = vmatpush1.msra.mxu0 0.0
    %4198 = vmatprep.subr.mxu0 0.0
    %4199 = vmatpush1.msra.mxu0 0.0
    %4200 = vmatprep.subr.mxu0 0.0
    %4201 = vmatpush1.msra.mxu0 0.0
    %4202 = vmatprep.subr.mxu0 0.0
    %4203 = vmatpush1.msra.mxu0 0.0
    %4204 = vmatprep.subr.mxu0 0.0
    %4205 = vmatpush1.msra.mxu0 0.0
    %4206 = vmatprep.mubr.f32.mxu0 0.0
    %4207 = vmatmul.mubr.f32.gmra.mrb[0].mxu0 0.0
    %v4208 = vpop.f32.mrb[0].mxu0
    %v4209 = vadd.f32 0.0, %v4208
    %v4210 = vpop.f32.mrb[0].mxu0
    %v4211 = vadd.f32 0.0, %v4210
    %4212 = vdwg.mxu0
    %v4213 = vadd.f32 %v4003, %v4138
    %v4214 = vadd.f32 %v4004, %v4140
    %v4215 = vadd.f32 %v4005, %v4209
    %v4216 = vadd.f32 %v4006, %v4211
    %v4217 = vxor.u32 %v4213, 2147483648
    %v4218 = vmul.f32 %v4217, 1.442695
    %v4219 = vpow.pop %v4218
    %v4220 = vadd.f32 %v4219, 1.0
    %v4221 = vrcp.pop %v4220
    %v4222 = vmul.f32 1.0, %v4221
    %v4223 = vxor.u32 %v4214, 2147483648
    %v4224 = vmul.f32 %v4223, 1.442695
    %v4225 = vpow.pop %v4224
    %v4226 = vadd.f32 %v4225, 1.0
    %v4227 = vrcp.pop %v4226
    %v4228 = vmul.f32 1.0, %v4227
    %v4229 = vtanh.pop %v4215
    %v4230 = vxor.u32 %v4216, 2147483648
    %v4231 = vmul.f32 %v4230, 1.442695
    %v4232 = vpow.pop %v4231
    %v4233 = vadd.f32 %v4232, 1.0
    %v4234 = vrcp.pop %v4233
    %v4235 = vmul.f32 1.0, %v4234
    %v4236 = vmul.f32 %v4228, 0.0
    %v4237 = vmul.f32 %v4222, %v4229
    %v4238 = vadd.f32 %v4236, %v4237
    %v4239 = vtanh.pop %v4238
    %v4240 = vmul.f32 %v4235, %v4239
    %v4241 = vld [vmem:[#allocation2 + $0x20] sm:$0xff]
    %v4242 = vld [vmem:[#allocation2 + $0x28] sm:$0xff]
    %v4243 = vld [vmem:[#allocation2 + $0x30] sm:$0xff]
    %v4244 = vld [vmem:[#allocation2 + $0x38] sm:$0xff]
    %v4245 = vld [vmem:[#allocation3 + $0xc0] sm:$0xff]
    %v4246 = vld [vmem:[#allocation3 + $0xc8] sm:$0xff]
    %v4247 = vld [vmem:[#allocation3 + $0xd0] sm:$0xff]
    %v4248 = vld [vmem:[#allocation3 + $0xd8] sm:$0xff]
    %v4249 = vadd.f32 %v4241, %v4245
    %v4250 = vadd.f32 %v4242, %v4246
    %v4251 = vadd.f32 %v4243, %v4247
    %v4252 = vadd.f32 %v4244, %v4248
    %4253 = vmatprep.subr.mxu0 %v4008
    %4254 = vmatpush1.msra.mxu0 %v4007
    %4255 = vmatprep.subr.mxu0 %v4012
    %4256 = vmatpush1.msra.mxu0 %v4011
    %4257 = vmatprep.subr.mxu0 %v4016
    %4258 = vmatpush1.msra.mxu0 %v4015
    %4259 = vmatprep.subr.mxu0 %v4020
    %4260 = vmatpush1.msra.mxu0 %v4019
    %4261 = vmatprep.subr.mxu0 %v4024
    %4262 = vmatpush1.msra.mxu0 %v4023
    %4263 = vmatprep.subr.mxu0 %v4028
    %4264 = vmatpush1.msra.mxu0 %v4027
    %4265 = vmatprep.subr.mxu0 %v4032
    %4266 = vmatpush1.msra.mxu0 %v4031
    %4267 = vmatprep.subr.mxu0 %v4036
    %4268 = vmatpush1.msra.mxu0 %v4035
    %4269 = vmatprep.subr.mxu0 %v4040
    %4270 = vmatpush1.msra.mxu0 %v4039
    %4271 = vmatprep.subr.mxu0 %v4044
    %4272 = vmatpush1.msra.mxu0 %v4043
    %4273 = vmatprep.subr.mxu0 %v4048
    %4274 = vmatpush1.msra.mxu0 %v4047
    %4275 = vmatprep.subr.mxu0 %v4052
    %4276 = vmatpush1.msra.mxu0 %v4051
    %4277 = vmatprep.subr.mxu0 %v4056
    %4278 = vmatpush1.msra.mxu0 %v4055
    %4279 = vmatprep.subr.mxu0 %v4060
    %4280 = vmatpush1.msra.mxu0 %v4059
    %4281 = vmatprep.subr.mxu0 %v4064
    %4282 = vmatpush1.msra.mxu0 %v4063
    %4283 = vmatprep.subr.mxu0 %v4068
    %4284 = vmatpush1.msra.mxu0 %v4067
    %4285 = vmatprep.subr.mxu0 0.0
    %4286 = vmatpush1.msra.mxu0 0.0
    %4287 = vmatprep.subr.mxu0 0.0
    %4288 = vmatpush1.msra.mxu0 0.0
    %4289 = vmatprep.subr.mxu0 0.0
    %4290 = vmatpush1.msra.mxu0 0.0
    %4291 = vmatprep.subr.mxu0 0.0
    %4292 = vmatpush1.msra.mxu0 0.0
    %4293 = vmatprep.subr.mxu0 0.0
    %4294 = vmatpush1.msra.mxu0 0.0
    %4295 = vmatprep.subr.mxu0 0.0
    %4296 = vmatpush1.msra.mxu0 0.0
    %4297 = vmatprep.subr.mxu0 0.0
    %4298 = vmatpush1.msra.mxu0 0.0
    %4299 = vmatprep.subr.mxu0 0.0
    %4300 = vmatpush1.msra.mxu0 0.0
    %4301 = vmatprep.subr.mxu0 0.0
    %4302 = vmatpush1.msra.mxu0 0.0
    %4303 = vmatprep.subr.mxu0 0.0
    %4304 = vmatpush1.msra.mxu0 0.0
    %4305 = vmatprep.subr.mxu0 0.0
    %4306 = vmatpush1.msra.mxu0 0.0
    %4307 = vmatprep.subr.mxu0 0.0
    %4308 = vmatpush1.msra.mxu0 0.0
    %4309 = vmatprep.subr.mxu0 0.0
    %4310 = vmatpush1.msra.mxu0 0.0
    %4311 = vmatprep.subr.mxu0 0.0
    %4312 = vmatpush1.msra.mxu0 0.0
    %4313 = vmatprep.subr.mxu0 0.0
    %4314 = vmatpush1.msra.mxu0 0.0
    %4315 = vmatprep.subr.mxu0 0.0
    %4316 = vmatpush1.msra.mxu0 0.0
    %4317 = vmatprep.mubr.f32.mxu0 0.0
    %4318 = vmatmul.mubr.f32.gmra.mrb[0].mxu0 %v4240
    %v4319 = vpop.f32.mrb[0].mxu0
    %v4320 = vadd.f32 0.0, %v4319
    %v4321 = vpop.f32.mrb[0].mxu0
    %v4322 = vadd.f32 0.0, %v4321
    %4323 = vdwg.mxu0
    %4324 = vmatprep.subr.mxu0 %v4010
    %4325 = vmatpush1.msra.mxu0 %v4009
    %4326 = vmatprep.subr.mxu0 %v4014
    %4327 = vmatpush1.msra.mxu0 %v4013
    %4328 = vmatprep.subr.mxu0 %v4018
    %4329 = vmatpush1.msra.mxu0 %v4017
    %4330 = vmatprep.subr.mxu0 %v4022
    %4331 = vmatpush1.msra.mxu0 %v4021
    %4332 = vmatprep.subr.mxu0 %v4026
    %4333 = vmatpush1.msra.mxu0 %v4025
    %4334 = vmatprep.subr.mxu0 %v4030
    %4335 = vmatpush1.msra.mxu0 %v4029
    %4336 = vmatprep.subr.mxu0 %v4034
    %4337 = vmatpush1.msra.mxu0 %v4033
    %4338 = vmatprep.subr.mxu0 %v4038
    %4339 = vmatpush1.msra.mxu0 %v4037
    %4340 = vmatprep.subr.mxu0 %v4042
    %4341 = vmatpush1.msra.mxu0 %v4041
    %4342 = vmatprep.subr.mxu0 %v4046
    %4343 = vmatpush1.msra.mxu0 %v4045
    %4344 = vmatprep.subr.mxu0 %v4050
    %4345 = vmatpush1.msra.mxu0 %v4049
    %4346 = vmatprep.subr.mxu0 %v4054
    %4347 = vmatpush1.msra.mxu0 %v4053
    %4348 = vmatprep.subr.mxu0 %v4058
    %4349 = vmatpush1.msra.mxu0 %v4057
    %4350 = vmatprep.subr.mxu0 %v4062
    %4351 = vmatpush1.msra.mxu0 %v4061
    %4352 = vmatprep.subr.mxu0 %v4066
    %4353 = vmatpush1.msra.mxu0 %v4065
    %4354 = vmatprep.subr.mxu0 %v4070
    %4355 = vmatpush1.msra.mxu0 %v4069
    %4356 = vmatprep.subr.mxu0 0.0
    %4357 = vmatpush1.msra.mxu0 0.0
    %4358 = vmatprep.subr.mxu0 0.0
    %4359 = vmatpush1.msra.mxu0 0.0
    %4360 = vmatprep.subr.mxu0 0.0
    %4361 = vmatpush1.msra.mxu0 0.0
    %4362 = vmatprep.subr.mxu0 0.0
    %4363 = vmatpush1.msra.mxu0 0.0
    %4364 = vmatprep.subr.mxu0 0.0
    %4365 = vmatpush1.msra.mxu0 0.0
    %4366 = vmatprep.subr.mxu0 0.0
    %4367 = vmatpush1.msra.mxu0 0.0
    %4368 = vmatprep.subr.mxu0 0.0
    %4369 = vmatpush1.msra.mxu0 0.0
    %4370 = vmatprep.subr.mxu0 0.0
    %4371 = vmatpush1.msra.mxu0 0.0
    %4372 = vmatprep.subr.mxu0 0.0
    %4373 = vmatpush1.msra.mxu0 0.0
    %4374 = vmatprep.subr.mxu0 0.0
    %4375 = vmatpush1.msra.mxu0 0.0
    %4376 = vmatprep.subr.mxu0 0.0
    %4377 = vmatpush1.msra.mxu0 0.0
    %4378 = vmatprep.subr.mxu0 0.0
    %4379 = vmatpush1.msra.mxu0 0.0
    %4380 = vmatprep.subr.mxu0 0.0
    %4381 = vmatpush1.msra.mxu0 0.0
    %4382 = vmatprep.subr.mxu0 0.0
    %4383 = vmatpush1.msra.mxu0 0.0
    %4384 = vmatprep.subr.mxu0 0.0
    %4385 = vmatpush1.msra.mxu0 0.0
    %4386 = vmatprep.subr.mxu0 0.0
    %4387 = vmatpush1.msra.mxu0 0.0
    %4388 = vmatprep.mubr.f32.mxu0 0.0
    %4389 = vmatmul.mubr.f32.gmra.mrb[0].mxu0 %v4240
    %v4390 = vpop.f32.mrb[0].mxu0
    %v4391 = vadd.f32 0.0, %v4390
    %v4392 = vpop.f32.mrb[0].mxu0
    %v4393 = vadd.f32 0.0, %v4392
    %4394 = vdwg.mxu0
    %v4395 = vadd.f32 %v4249, %v4320
    %v4396 = vadd.f32 %v4250, %v4322
    %v4397 = vadd.f32 %v4251, %v4391
    %v4398 = vadd.f32 %v4252, %v4393
    %v4399 = vxor.u32 %v4395, 2147483648
    %v4400 = vmul.f32 %v4399, 1.442695
    %v4401 = vpow.pop %v4400
    %v4402 = vadd.f32 %v4401, 1.0
    %v4403 = vrcp.pop %v4402
    %v4404 = vmul.f32 1.0, %v4403
    %v4405 = vxor.u32 %v4396, 2147483648
    %v4406 = vmul.f32 %v4405, 1.442695
    %v4407 = vpow.pop %v4406
    %v4408 = vadd.f32 %v4407, 1.0
    %v4409 = vrcp.pop %v4408
    %v4410 = vmul.f32 1.0, %v4409
    %v4411 = vtanh.pop %v4397
    %v4412 = vxor.u32 %v4398, 2147483648
    %v4413 = vmul.f32 %v4412, 1.442695
    %v4414 = vpow.pop %v4413
    %v4415 = vadd.f32 %v4414, 1.0
    %v4416 = vrcp.pop %v4415
    %v4417 = vmul.f32 1.0, %v4416
    %v4418 = vmul.f32 %v4410, %v4238
    %v4419 = vmul.f32 %v4404, %v4411
    %v4420 = vadd.f32 %v4418, %v4419
    %v4421 = vtanh.pop %v4420
    %v4422 = vmul.f32 %v4417, %v4421
    %v4423 = vld [vmem:[#allocation2 + $0x40] sm:$0xff]
    %v4424 = vld [vmem:[#allocation2 + $0x48] sm:$0xff]
    %v4425 = vld [vmem:[#allocation2 + $0x50] sm:$0xff]
    %v4426 = vld [vmem:[#allocation2 + $0x58] sm:$0xff]
    %v4427 = vld [vmem:[#allocation3 + $0xa0] sm:$0xff]
    %v4428 = vld [vmem:[#allocation3 + $0xa8] sm:$0xff]
    %v4429 = vld [vmem:[#allocation3 + $0xb0] sm:$0xff]
    %v4430 = vld [vmem:[#allocation3 + $0xb8] sm:$0xff]
    %v4431 = vadd.f32 %v4423, %v4427
    %v4432 = vadd.f32 %v4424, %v4428
    %v4433 = vadd.f32 %v4425, %v4429
    %v4434 = vadd.f32 %v4426, %v4430
    %4435 = vmatprep.subr.mxu0 %v4008
    %4436 = vmatpush1.msra.mxu0 %v4007
    %4437 = vmatprep.subr.mxu0 %v4012
    %4438 = vmatpush1.msra.mxu0 %v4011
    %4439 = vmatprep.subr.mxu0 %v4016
    %4440 = vmatpush1.msra.mxu0 %v4015
    %4441 = vmatprep.subr.mxu0 %v4020
    %4442 = vmatpush1.msra.mxu0 %v4019
    %4443 = vmatprep.subr.mxu0 %v4024
    %4444 = vmatpush1.msra.mxu0 %v4023
    %4445 = vmatprep.subr.mxu0 %v4028
    %4446 = vmatpush1.msra.mxu0 %v4027
    %4447 = vmatprep.subr.mxu0 %v4032
    %4448 = vmatpush1.msra.mxu0 %v4031
    %4449 = vmatprep.subr.mxu0 %v4036
    %4450 = vmatpush1.msra.mxu0 %v4035
    %4451 = vmatprep.subr.mxu0 %v4040
    %4452 = vmatpush1.msra.mxu0 %v4039
    %4453 = vmatprep.subr.mxu0 %v4044
    %4454 = vmatpush1.msra.mxu0 %v4043
    %4455 = vmatprep.subr.mxu0 %v4048
    %4456 = vmatpush1.msra.mxu0 %v4047
    %4457 = vmatprep.subr.mxu0 %v4052
    %4458 = vmatpush1.msra.mxu0 %v4051
    %4459 = vmatprep.subr.mxu0 %v4056
    %4460 = vmatpush1.msra.mxu0 %v4055
    %4461 = vmatprep.subr.mxu0 %v4060
    %4462 = vmatpush1.msra.mxu0 %v4059
    %4463 = vmatprep.subr.mxu0 %v4064
    %4464 = vmatpush1.msra.mxu0 %v4063
    %4465 = vmatprep.subr.mxu0 %v4068
    %4466 = vmatpush1.msra.mxu0 %v4067
    %4467 = vmatprep.subr.mxu0 0.0
    %4468 = vmatpush1.msra.mxu0 0.0
    %4469 = vmatprep.subr.mxu0 0.0
    %4470 = vmatpush1.msra.mxu0 0.0
    %4471 = vmatprep.subr.mxu0 0.0
    %4472 = vmatpush1.msra.mxu0 0.0
    %4473 = vmatprep.subr.mxu0 0.0
    %4474 = vmatpush1.msra.mxu0 0.0
    %4475 = vmatprep.subr.mxu0 0.0
    %4476 = vmatpush1.msra.mxu0 0.0
    %4477 = vmatprep.subr.mxu0 0.0
    %4478 = vmatpush1.msra.mxu0 0.0
    %4479 = vmatprep.subr.mxu0 0.0
    %4480 = vmatpush1.msra.mxu0 0.0
    %4481 = vmatprep.subr.mxu0 0.0
    %4482 = vmatpush1.msra.mxu0 0.0
    %4483 = vmatprep.subr.mxu0 0.0
    %4484 = vmatpush1.msra.mxu0 0.0
    %4485 = vmatprep.subr.mxu0 0.0
    %4486 = vmatpush1.msra.mxu0 0.0
    %4487 = vmatprep.subr.mxu0 0.0
    %4488 = vmatpush1.msra.mxu0 0.0
    %4489 = vmatprep.subr.mxu0 0.0
    %4490 = vmatpush1.msra.mxu0 0.0
    %4491 = vmatprep.subr.mxu0 0.0
    %4492 = vmatpush1.msra.mxu0 0.0
    %4493 = vmatprep.subr.mxu0 0.0
    %4494 = vmatpush1.msra.mxu0 0.0
    %4495 = vmatprep.subr.mxu0 0.0
    %4496 = vmatpush1.msra.mxu0 0.0
    %4497 = vmatprep.subr.mxu0 0.0
    %4498 = vmatpush1.msra.mxu0 0.0
    %4499 = vmatprep.mubr.f32.mxu0 0.0
    %4500 = vmatmul.mubr.f32.gmra.mrb[0].mxu0 %v4422
    %v4501 = vpop.f32.mrb[0].mxu0
    %v4502 = vadd.f32 0.0, %v4501
    %v4503 = vpop.f32.mrb[0].mxu0
    %v4504 = vadd.f32 0.0, %v4503
    %4505 = vdwg.mxu0
    %4506 = vmatprep.subr.mxu0 %v4010
    %4507 = vmatpush1.msra.mxu0 %v4009
    %4508 = vmatprep.subr.mxu0 %v4014
    %4509 = vmatpush1.msra.mxu0 %v4013
    %4510 = vmatprep.subr.mxu0 %v4018
    %4511 = vmatpush1.msra.mxu0 %v4017
    %4512 = vmatprep.subr.mxu0 %v4022
    %4513 = vmatpush1.msra.mxu0 %v4021
    %4514 = vmatprep.subr.mxu0 %v4026
    %4515 = vmatpush1.msra.mxu0 %v4025
    %4516 = vmatprep.subr.mxu0 %v4030
    %4517 = vmatpush1.msra.mxu0 %v4029
    %4518 = vmatprep.subr.mxu0 %v4034
    %4519 = vmatpush1.msra.mxu0 %v4033
    %4520 = vmatprep.subr.mxu0 %v4038
    %4521 = vmatpush1.msra.mxu0 %v4037
    %4522 = vmatprep.subr.mxu0 %v4042
    %4523 = vmatpush1.msra.mxu0 %v4041
    %4524 = vmatprep.subr.mxu0 %v4046
    %4525 = vmatpush1.msra.mxu0 %v4045
    %4526 = vmatprep.subr.mxu0 %v4050
    %4527 = vmatpush1.msra.mxu0 %v4049
    %4528 = vmatprep.subr.mxu0 %v4054
    %4529 = vmatpush1.msra.mxu0 %v4053
    %4530 = vmatprep.subr.mxu0 %v4058
    %4531 = vmatpush1.msra.mxu0 %v4057
    %4532 = vmatprep.subr.mxu0 %v4062
    %4533 = vmatpush1.msra.mxu0 %v4061
    %4534 = vmatprep.subr.mxu0 %v4066
    %4535 = vmatpush1.msra.mxu0 %v4065
    %4536 = vmatprep.subr.mxu0 %v4070
    %4537 = vmatpush1.msra.mxu0 %v4069
    %4538 = vmatprep.subr.mxu0 0.0
    %4539 = vmatpush1.msra.mxu0 0.0
    %4540 = vmatprep.subr.mxu0 0.0
    %4541 = vmatpush1.msra.mxu0 0.0
    %4542 = vmatprep.subr.mxu0 0.0
    %4543 = vmatpush1.msra.mxu0 0.0
    %4544 = vmatprep.subr.mxu0 0.0
    %4545 = vmatpush1.msra.mxu0 0.0
    %4546 = vmatprep.subr.mxu0 0.0
    %4547 = vmatpush1.msra.mxu0 0.0
    %4548 = vmatprep.subr.mxu0 0.0
    %4549 = vmatpush1.msra.mxu0 0.0
    %4550 = vmatprep.subr.mxu0 0.0
    %4551 = vmatpush1.msra.mxu0 0.0
    %4552 = vmatprep.subr.mxu0 0.0
    %4553 = vmatpush1.msra.mxu0 0.0
    %4554 = vmatprep.subr.mxu0 0.0
    %4555 = vmatpush1.msra.mxu0 0.0
    %4556 = vmatprep.subr.mxu0 0.0
    %4557 = vmatpush1.msra.mxu0 0.0
    %4558 = vmatprep.subr.mxu0 0.0
    %4559 = vmatpush1.msra.mxu0 0.0
    %4560 = vmatprep.subr.mxu0 0.0
    %4561 = vmatpush1.msra.mxu0 0.0
    %4562 = vmatprep.subr.mxu0 0.0
    %4563 = vmatpush1.msra.mxu0 0.0
    %4564 = vmatprep.subr.mxu0 0.0
    %4565 = vmatpush1.msra.mxu0 0.0
    %4566 = vmatprep.subr.mxu0 0.0
    %4567 = vmatpush1.msra.mxu0 0.0
    %4568 = vmatprep.subr.mxu0 0.0
    %4569 = vmatpush1.msra.mxu0 0.0
    %4570 = vmatprep.mubr.f32.mxu0 0.0
    %4571 = vmatmul.mubr.f32.gmra.mrb[0].mxu0 %v4422
    %v4572 = vpop.f32.mrb[0].mxu0
    %v4573 = vadd.f32 0.0, %v4572
    %v4574 = vpop.f32.mrb[0].mxu0
    %v4575 = vadd.f32 0.0, %v4574
    %4576 = vdwg.mxu0
    %v4577 = vadd.f32 %v4431, %v4502
    %v4578 = vadd.f32 %v4432, %v4504
    %v4579 = vadd.f32 %v4433, %v4573
    %v4580 = vadd.f32 %v4434, %v4575
    %v4581 = vxor.u32 %v4577, 2147483648
    %v4582 = vmul.f32 %v4581, 1.442695
    %v4583 = vpow.pop %v4582
    %v4584 = vadd.f32 %v4583, 1.0
    %v4585 = vrcp.pop %v4584
    %v4586 = vmul.f32 1.0, %v4585
    %v4587 = vxor.u32 %v4578, 2147483648
    %v4588 = vmul.f32 %v4587, 1.442695
    %v4589 = vpow.pop %v4588
    %v4590 = vadd.f32 %v4589, 1.0
    %v4591 = vrcp.pop %v4590
    %v4592 = vmul.f32 1.0, %v4591
    %v4593 = vtanh.pop %v4579
    %v4594 = vxor.u32 %v4580, 2147483648
    %v4595 = vmul.f32 %v4594, 1.442695
    %v4596 = vpow.pop %v4595
    %v4597 = vadd.f32 %v4596, 1.0
    %v4598 = vrcp.pop %v4597
    %v4599 = vmul.f32 1.0, %v4598
    %v4600 = vmul.f32 %v4592, %v4420
    %v4601 = vmul.f32 %v4586, %v4593
    %v4602 = vadd.f32 %v4600, %v4601
    %v4603 = vtanh.pop %v4602
    %v4604 = vmul.f32 %v4599, %v4603
    %v4605 = vld [vmem:[#allocation2 + $0x60] sm:$0xff]
    %v4606 = vld [vmem:[#allocation2 + $0x68] sm:$0xff]
    %v4607 = vld [vmem:[#allocation2 + $0x70] sm:$0xff]
    %v4608 = vld [vmem:[#allocation2 + $0x78] sm:$0xff]
    %v4609 = vld [vmem:[#allocation3 + $0x80] sm:$0xff]
    %v4610 = vld [vmem:[#allocation3 + $0x88] sm:$0xff]
    %v4611 = vld [vmem:[#allocation3 + $0x90] sm:$0xff]
    %v4612 = vld [vmem:[#allocation3 + $0x98] sm:$0xff]
    %v4613 = vadd.f32 %v4605, %v4609
    %v4614 = vadd.f32 %v4606, %v4610
    %v4615 = vadd.f32 %v4607, %v4611
    %v4616 = vadd.f32 %v4608, %v4612
    %4617 = vmatprep.subr.mxu0 %v4008
    %4618 = vmatpush1.msra.mxu0 %v4007
    %4619 = vmatprep.subr.mxu0 %v4012
    %4620 = vmatpush1.msra.mxu0 %v4011
    %4621 = vmatprep.subr.mxu0 %v4016
    %4622 = vmatpush1.msra.mxu0 %v4015
    %4623 = vmatprep.subr.mxu0 %v4020
    %4624 = vmatpush1.msra.mxu0 %v4019
    %4625 = vmatprep.subr.mxu0 %v4024
    %4626 = vmatpush1.msra.mxu0 %v4023
    %4627 = vmatprep.subr.mxu0 %v4028
    %4628 = vmatpush1.msra.mxu0 %v4027
    %4629 = vmatprep.subr.mxu0 %v4032
    %4630 = vmatpush1.msra.mxu0 %v4031
    %4631 = vmatprep.subr.mxu0 %v4036
    %4632 = vmatpush1.msra.mxu0 %v4035
    %4633 = vmatprep.subr.mxu0 %v4040
    %4634 = vmatpush1.msra.mxu0 %v4039
    %4635 = vmatprep.subr.mxu0 %v4044
    %4636 = vmatpush1.msra.mxu0 %v4043
    %4637 = vmatprep.subr.mxu0 %v4048
    %4638 = vmatpush1.msra.mxu0 %v4047
    %4639 = vmatprep.subr.mxu0 %v4052
    %4640 = vmatpush1.msra.mxu0 %v4051
    %4641 = vmatprep.subr.mxu0 %v4056
    %4642 = vmatpush1.msra.mxu0 %v4055
    %4643 = vmatprep.subr.mxu0 %v4060
    %4644 = vmatpush1.msra.mxu0 %v4059
    %4645 = vmatprep.subr.mxu0 %v4064
    %4646 = vmatpush1.msra.mxu0 %v4063
    %4647 = vmatprep.subr.mxu0 %v4068
    %4648 = vmatpush1.msra.mxu0 %v4067
    %4649 = vmatprep.subr.mxu0 0.0
    %4650 = vmatpush1.msra.mxu0 0.0
    %4651 = vmatprep.subr.mxu0 0.0
    %4652 = vmatpush1.msra.mxu0 0.0
    %4653 = vmatprep.subr.mxu0 0.0
    %4654 = vmatpush1.msra.mxu0 0.0
    %4655 = vmatprep.subr.mxu0 0.0
    %4656 = vmatpush1.msra.mxu0 0.0
    %4657 = vmatprep.subr.mxu0 0.0
    %4658 = vmatpush1.msra.mxu0 0.0
    %4659 = vmatprep.subr.mxu0 0.0
    %4660 = vmatpush1.msra.mxu0 0.0
    %4661 = vmatprep.subr.mxu0 0.0
    %4662 = vmatpush1.msra.mxu0 0.0
    %4663 = vmatprep.subr.mxu0 0.0
    %4664 = vmatpush1.msra.mxu0 0.0
    %4665 = vmatprep.subr.mxu0 0.0
    %4666 = vmatpush1.msra.mxu0 0.0
    %4667 = vmatprep.subr.mxu0 0.0
    %4668 = vmatpush1.msra.mxu0 0.0
    %4669 = vmatprep.subr.mxu0 0.0
    %4670 = vmatpush1.msra.mxu0 0.0
    %4671 = vmatprep.subr.mxu0 0.0
    %4672 = vmatpush1.msra.mxu0 0.0
    %4673 = vmatprep.subr.mxu0 0.0
    %4674 = vmatpush1.msra.mxu0 0.0
    %4675 = vmatprep.subr.mxu0 0.0
    %4676 = vmatpush1.msra.mxu0 0.0
    %4677 = vmatprep.subr.mxu0 0.0
    %4678 = vmatpush1.msra.mxu0 0.0
    %4679 = vmatprep.subr.mxu0 0.0
    %4680 = vmatpush1.msra.mxu0 0.0
    %4681 = vmatprep.mubr.f32.mxu0 0.0
    %4682 = vmatmul.mubr.f32.gmra.mrb[0].mxu0 %v4604
    %v4683 = vpop.f32.mrb[0].mxu0
    %v4684 = vadd.f32 0.0, %v4683
    %v4685 = vpop.f32.mrb[0].mxu0
    %v4686 = vadd.f32 0.0, %v4685
    %4687 = vdwg.mxu0
    %4688 = vmatprep.subr.mxu0 %v4010
    %4689 = vmatpush1.msra.mxu0 %v4009
    %4690 = vmatprep.subr.mxu0 %v4014
    %4691 = vmatpush1.msra.mxu0 %v4013
    %4692 = vmatprep.subr.mxu0 %v4018
    %4693 = vmatpush1.msra.mxu0 %v4017
    %4694 = vmatprep.subr.mxu0 %v4022
    %4695 = vmatpush1.msra.mxu0 %v4021
    %4696 = vmatprep.subr.mxu0 %v4026
    %4697 = vmatpush1.msra.mxu0 %v4025
    %4698 = vmatprep.subr.mxu0 %v4030
    %4699 = vmatpush1.msra.mxu0 %v4029
    %4700 = vmatprep.subr.mxu0 %v4034
    %4701 = vmatpush1.msra.mxu0 %v4033
    %4702 = vmatprep.subr.mxu0 %v4038
    %4703 = vmatpush1.msra.mxu0 %v4037
    %4704 = vmatprep.subr.mxu0 %v4042
    %4705 = vmatpush1.msra.mxu0 %v4041
    %4706 = vmatprep.subr.mxu0 %v4046
    %4707 = vmatpush1.msra.mxu0 %v4045
    %4708 = vmatprep.subr.mxu0 %v4050
    %4709 = vmatpush1.msra.mxu0 %v4049
    %4710 = vmatprep.subr.mxu0 %v4054
    %4711 = vmatpush1.msra.mxu0 %v4053
    %4712 = vmatprep.subr.mxu0 %v4058
    %4713 = vmatpush1.msra.mxu0 %v4057
    %4714 = vmatprep.subr.mxu0 %v4062
    %4715 = vmatpush1.msra.mxu0 %v4061
    %4716 = vmatprep.subr.mxu0 %v4066
    %4717 = vmatpush1.msra.mxu0 %v4065
    %4718 = vmatprep.subr.mxu0 %v4070
    %4719 = vmatpush1.msra.mxu0 %v4069
    %4720 = vmatprep.subr.mxu0 0.0
    %4721 = vmatpush1.msra.mxu0 0.0
    %4722 = vmatprep.subr.mxu0 0.0
    %4723 = vmatpush1.msra.mxu0 0.0
    %4724 = vmatprep.subr.mxu0 0.0
    %4725 = vmatpush1.msra.mxu0 0.0
    %4726 = vmatprep.subr.mxu0 0.0
    %4727 = vmatpush1.msra.mxu0 0.0
    %4728 = vmatprep.subr.mxu0 0.0
    %4729 = vmatpush1.msra.mxu0 0.0
    %4730 = vmatprep.subr.mxu0 0.0
    %4731 = vmatpush1.msra.mxu0 0.0
    %4732 = vmatprep.subr.mxu0 0.0
    %4733 = vmatpush1.msra.mxu0 0.0
    %4734 = vmatprep.subr.mxu0 0.0
    %4735 = vmatpush1.msra.mxu0 0.0
    %4736 = vmatprep.subr.mxu0 0.0
    %4737 = vmatpush1.msra.mxu0 0.0
    %4738 = vmatprep.subr.mxu0 0.0
    %4739 = vmatpush1.msra.mxu0 0.0
    %4740 = vmatprep.subr.mxu0 0.0
    %4741 = vmatpush1.msra.mxu0 0.0
    %4742 = vmatprep.subr.mxu0 0.0
    %4743 = vmatpush1.msra.mxu0 0.0
    %4744 = vmatprep.subr.mxu0 0.0
    %4745 = vmatpush1.msra.mxu0 0.0
    %4746 = vmatprep.subr.mxu0 0.0
    %4747 = vmatpush1.msra.mxu0 0.0
    %4748 = vmatprep.subr.mxu0 0.0
    %4749 = vmatpush1.msra.mxu0 0.0
    %4750 = vmatprep.subr.mxu0 0.0
    %4751 = vmatpush1.msra.mxu0 0.0
    %4752 = vmatprep.mubr.f32.mxu0 0.0
    %4753 = vmatmul.mubr.f32.gmra.mrb[0].mxu0 %v4604
    %v4754 = vpop.f32.mrb[0].mxu0
    %v4755 = vadd.f32 0.0, %v4754
    %v4756 = vpop.f32.mrb[0].mxu0
    %v4757 = vadd.f32 0.0, %v4756
    %4758 = vdwg.mxu0
    %v4759 = vadd.f32 %v4613, %v4684
    %v4760 = vadd.f32 %v4614, %v4686
    %v4761 = vadd.f32 %v4615, %v4755
    %v4762 = vadd.f32 %v4616, %v4757
    %v4763 = vxor.u32 %v4759, 2147483648
    %v4764 = vmul.f32 %v4763, 1.442695
    %v4765 = vpow.pop %v4764
    %v4766 = vadd.f32 %v4765, 1.0
    %v4767 = vrcp.pop %v4766
    %v4768 = vmul.f32 1.0, %v4767
    %v4769 = vxor.u32 %v4760, 2147483648
    %v4770 = vmul.f32 %v4769, 1.442695
    %v4771 = vpow.pop %v4770
    %v4772 = vadd.f32 %v4771, 1.0
    %v4773 = vrcp.pop %v4772
    %v4774 = vmul.f32 1.0, %v4773
    %v4775 = vtanh.pop %v4761
    %v4776 = vxor.u32 %v4762, 2147483648
    %v4777 = vmul.f32 %v4776, 1.442695
    %v4778 = vpow.pop %v4777
    %v4779 = vadd.f32 %v4778, 1.0
    %v4780 = vrcp.pop %v4779
    %v4781 = vmul.f32 1.0, %v4780
    %v4782 = vmul.f32 %v4774, %v4602
    %v4783 = vmul.f32 %v4768, %v4775
    %v4784 = vadd.f32 %v4782, %v4783
    %v4785 = vtanh.pop %v4784
    %v4786 = vmul.f32 %v4781, %v4785
    %v4787 = vld [vmem:[#allocation2 + $0x80] sm:$0xff]
    %v4788 = vld [vmem:[#allocation2 + $0x88] sm:$0xff]
    %v4789 = vld [vmem:[#allocation2 + $0x90] sm:$0xff]
    %v4790 = vld [vmem:[#allocation2 + $0x98] sm:$0xff]
    %v4791 = vld [vmem:[#allocation3 + $0x60] sm:$0xff]
    %v4792 = vld [vmem:[#allocation3 + $0x68] sm:$0xff]
    %v4793 = vld [vmem:[#allocation3 + $0x70] sm:$0xff]
    %v4794 = vld [vmem:[#allocation3 + $0x78] sm:$0xff]
    %v4795 = vadd.f32 %v4787, %v4791
    %v4796 = vadd.f32 %v4788, %v4792
    %v4797 = vadd.f32 %v4789, %v4793
    %v4798 = vadd.f32 %v4790, %v4794
    %4799 = vmatprep.subr.mxu0 %v4008
    %4800 = vmatpush1.msra.mxu0 %v4007
    %4801 = vmatprep.subr.mxu0 %v4012
    %4802 = vmatpush1.msra.mxu0 %v4011
    %4803 = vmatprep.subr.mxu0 %v4016
    %4804 = vmatpush1.msra.mxu0 %v4015
    %4805 = vmatprep.subr.mxu0 %v4020
    %4806 = vmatpush1.msra.mxu0 %v4019
    %4807 = vmatprep.subr.mxu0 %v4024
    %4808 = vmatpush1.msra.mxu0 %v4023
    %4809 = vmatprep.subr.mxu0 %v4028
    %4810 = vmatpush1.msra.mxu0 %v4027
    %4811 = vmatprep.subr.mxu0 %v4032
    %4812 = vmatpush1.msra.mxu0 %v4031
    %4813 = vmatprep.subr.mxu0 %v4036
    %4814 = vmatpush1.msra.mxu0 %v4035
    %4815 = vmatprep.subr.mxu0 %v4040
    %4816 = vmatpush1.msra.mxu0 %v4039
    %4817 = vmatprep.subr.mxu0 %v4044
    %4818 = vmatpush1.msra.mxu0 %v4043
    %4819 = vmatprep.subr.mxu0 %v4048
    %4820 = vmatpush1.msra.mxu0 %v4047
    %4821 = vmatprep.subr.mxu0 %v4052
    %4822 = vmatpush1.msra.mxu0 %v4051
    %4823 = vmatprep.subr.mxu0 %v4056
    %4824 = vmatpush1.msra.mxu0 %v4055
    %4825 = vmatprep.subr.mxu0 %v4060
    %4826 = vmatpush1.msra.mxu0 %v4059
    %4827 = vmatprep.subr.mxu0 %v4064
    %4828 = vmatpush1.msra.mxu0 %v4063
    %4829 = vmatprep.subr.mxu0 %v4068
    %4830 = vmatpush1.msra.mxu0 %v4067
    %4831 = vmatprep.subr.mxu0 0.0
    %4832 = vmatpush1.msra.mxu0 0.0
    %4833 = vmatprep.subr.mxu0 0.0
    %4834 = vmatpush1.msra.mxu0 0.0
    %4835 = vmatprep.subr.mxu0 0.0
    %4836 = vmatpush1.msra.mxu0 0.0
    %4837 = vmatprep.subr.mxu0 0.0
    %4838 = vmatpush1.msra.mxu0 0.0
    %4839 = vmatprep.subr.mxu0 0.0
    %4840 = vmatpush1.msra.mxu0 0.0
    %4841 = vmatprep.subr.mxu0 0.0
    %4842 = vmatpush1.msra.mxu0 0.0
    %4843 = vmatprep.subr.mxu0 0.0
    %4844 = vmatpush1.msra.mxu0 0.0
    %4845 = vmatprep.subr.mxu0 0.0
    %4846 = vmatpush1.msra.mxu0 0.0
    %4847 = vmatprep.subr.mxu0 0.0
    %4848 = vmatpush1.msra.mxu0 0.0
    %4849 = vmatprep.subr.mxu0 0.0
    %4850 = vmatpush1.msra.mxu0 0.0
    %4851 = vmatprep.subr.mxu0 0.0
    %4852 = vmatpush1.msra.mxu0 0.0
    %4853 = vmatprep.subr.mxu0 0.0
    %4854 = vmatpush1.msra.mxu0 0.0
    %4855 = vmatprep.subr.mxu0 0.0
    %4856 = vmatpush1.msra.mxu0 0.0
    %4857 = vmatprep.subr.mxu0 0.0
    %4858 = vmatpush1.msra.mxu0 0.0
    %4859 = vmatprep.subr.mxu0 0.0
    %4860 = vmatpush1.msra.mxu0 0.0
    %4861 = vmatprep.subr.mxu0 0.0
    %4862 = vmatpush1.msra.mxu0 0.0
    %4863 = vmatprep.mubr.f32.mxu0 0.0
    %4864 = vmatmul.mubr.f32.gmra.mrb[0].mxu0 %v4786
    %v4865 = vpop.f32.mrb[0].mxu0
    %v4866 = vadd.f32 0.0, %v4865
    %v4867 = vpop.f32.mrb[0].mxu0
    %v4868 = vadd.f32 0.0, %v4867
    %4869 = vdwg.mxu0
    %4870 = vmatprep.subr.mxu0 %v4010
    %4871 = vmatpush1.msra.mxu0 %v4009
    %4872 = vmatprep.subr.mxu0 %v4014
    %4873 = vmatpush1.msra.mxu0 %v4013
    %4874 = vmatprep.subr.mxu0 %v4018
    %4875 = vmatpush1.msra.mxu0 %v4017
    %4876 = vmatprep.subr.mxu0 %v4022
    %4877 = vmatpush1.msra.mxu0 %v4021
    %4878 = vmatprep.subr.mxu0 %v4026
    %4879 = vmatpush1.msra.mxu0 %v4025
    %4880 = vmatprep.subr.mxu0 %v4030
    %4881 = vmatpush1.msra.mxu0 %v4029
    %4882 = vmatprep.subr.mxu0 %v4034
    %4883 = vmatpush1.msra.mxu0 %v4033
    %4884 = vmatprep.subr.mxu0 %v4038
    %4885 = vmatpush1.msra.mxu0 %v4037
    %4886 = vmatprep.subr.mxu0 %v4042
    %4887 = vmatpush1.msra.mxu0 %v4041
    %4888 = vmatprep.subr.mxu0 %v4046
    %4889 = vmatpush1.msra.mxu0 %v4045
    %4890 = vmatprep.subr.mxu0 %v4050
    %4891 = vmatpush1.msra.mxu0 %v4049
    %4892 = vmatprep.subr.mxu0 %v4054
    %4893 = vmatpush1.msra.mxu0 %v4053
    %4894 = vmatprep.subr.mxu0 %v4058
    %4895 = vmatpush1.msra.mxu0 %v4057
    %4896 = vmatprep.subr.mxu0 %v4062
    %4897 = vmatpush1.msra.mxu0 %v4061
    %4898 = vmatprep.subr.mxu0 %v4066
    %4899 = vmatpush1.msra.mxu0 %v4065
    %4900 = vmatprep.subr.mxu0 %v4070
    %4901 = vmatpush1.msra.mxu0 %v4069
    %4902 = vmatprep.subr.mxu0 0.0
    %4903 = vmatpush1.msra.mxu0 0.0
    %4904 = vmatprep.subr.mxu0 0.0
    %4905 = vmatpush1.msra.mxu0 0.0
    %4906 = vmatprep.subr.mxu0 0.0
    %4907 = vmatpush1.msra.mxu0 0.0
    %4908 = vmatprep.subr.mxu0 0.0
    %4909 = vmatpush1.msra.mxu0 0.0
    %4910 = vmatprep.subr.mxu0 0.0
    %4911 = vmatpush1.msra.mxu0 0.0
    %4912 = vmatprep.subr.mxu0 0.0
    %4913 = vmatpush1.msra.mxu0 0.0
    %4914 = vmatprep.subr.mxu0 0.0
    %4915 = vmatpush1.msra.mxu0 0.0
    %4916 = vmatprep.subr.mxu0 0.0
    %4917 = vmatpush1.msra.mxu0 0.0
    %4918 = vmatprep.subr.mxu0 0.0
    %4919 = vmatpush1.msra.mxu0 0.0
    %4920 = vmatprep.subr.mxu0 0.0
    %4921 = vmatpush1.msra.mxu0 0.0
    %4922 = vmatprep.subr.mxu0 0.0
    %4923 = vmatpush1.msra.mxu0 0.0
    %4924 = vmatprep.subr.mxu0 0.0
    %4925 = vmatpush1.msra.mxu0 0.0
    %4926 = vmatprep.subr.mxu0 0.0
    %4927 = vmatpush1.msra.mxu0 0.0
    %4928 = vmatprep.subr.mxu0 0.0
    %4929 = vmatpush1.msra.mxu0 0.0
    %4930 = vmatprep.subr.mxu0 0.0
    %4931 = vmatpush1.msra.mxu0 0.0
    %4932 = vmatprep.subr.mxu0 0.0
    %4933 = vmatpush1.msra.mxu0 0.0
    %4934 = vmatprep.mubr.f32.mxu0 0.0
    %4935 = vmatmul.mubr.f32.gmra.mrb[0].mxu0 %v4786
    %v4936 = vpop.f32.mrb[0].mxu0
    %v4937 = vadd.f32 0.0, %v4936
    %v4938 = vpop.f32.mrb[0].mxu0
    %v4939 = vadd.f32 0.0, %v4938
    %4940 = vdwg.mxu0
    %v4941 = vadd.f32 %v4795, %v4866
    %v4942 = vadd.f32 %v4796, %v4868
    %v4943 = vadd.f32 %v4797, %v4937
    %v4944 = vadd.f32 %v4798, %v4939
    %v4945 = vxor.u32 %v4941, 2147483648
    %v4946 = vmul.f32 %v4945, 1.442695
    %v4947 = vpow.pop %v4946
    %v4948 = vadd.f32 %v4947, 1.0
    %v4949 = vrcp.pop %v4948
    %v4950 = vmul.f32 1.0, %v4949
    %v4951 = vxor.u32 %v4942, 2147483648
    %v4952 = vmul.f32 %v4951, 1.442695
    %v4953 = vpow.pop %v4952
    %v4954 = vadd.f32 %v4953, 1.0
    %v4955 = vrcp.pop %v4954
    %v4956 = vmul.f32 1.0, %v4955
    %v4957 = vtanh.pop %v4943
    %v4958 = vxor.u32 %v4944, 2147483648
    %v4959 = vmul.f32 %v4958, 1.442695
    %v4960 = vpow.pop %v4959
    %v4961 = vadd.f32 %v4960, 1.0
    %v4962 = vrcp.pop %v4961
    %v4963 = vmul.f32 1.0, %v4962
    %v4964 = vmul.f32 %v4956, %v4784
    %v4965 = vmul.f32 %v4950, %v4957
    %v4966 = vadd.f32 %v4964, %v4965
    %v4967 = vtanh.pop %v4966
    %v4968 = vmul.f32 %v4963, %v4967
    %v4969 = vld [vmem:[#allocation2 + $0xa0] sm:$0xff]
    %v4970 = vld [vmem:[#allocation2 + $0xa8] sm:$0xff]
    %v4971 = vld [vmem:[#allocation2 + $0xb0] sm:$0xff]
    %v4972 = vld [vmem:[#allocation2 + $0xb8] sm:$0xff]
    %v4973 = vld [vmem:[#allocation3 + $0x40] sm:$0xff]
    %v4974 = vld [vmem:[#allocation3 + $0x48] sm:$0xff]
    %v4975 = vld [vmem:[#allocation3 + $0x50] sm:$0xff]
    %v4976 = vld [vmem:[#allocation3 + $0x58] sm:$0xff]
    %v4977 = vadd.f32 %v4969, %v4973
    %v4978 = vadd.f32 %v4970, %v4974
    %v4979 = vadd.f32 %v4971, %v4975
    %v4980 = vadd.f32 %v4972, %v4976
    %4981 = vmatprep.subr.mxu0 %v4008
    %4982 = vmatpush1.msra.mxu0 %v4007
    %4983 = vmatprep.subr.mxu0 %v4012
    %4984 = vmatpush1.msra.mxu0 %v4011
    %4985 = vmatprep.subr.mxu0 %v4016
    %4986 = vmatpush1.msra.mxu0 %v4015
    %4987 = vmatprep.subr.mxu0 %v4020
    %4988 = vmatpush1.msra.mxu0 %v4019
    %4989 = vmatprep.subr.mxu0 %v4024
    %4990 = vmatpush1.msra.mxu0 %v4023
    %4991 = vmatprep.subr.mxu0 %v4028
    %4992 = vmatpush1.msra.mxu0 %v4027
    %4993 = vmatprep.subr.mxu0 %v4032
    %4994 = vmatpush1.msra.mxu0 %v4031
    %4995 = vmatprep.subr.mxu0 %v4036
    %4996 = vmatpush1.msra.mxu0 %v4035
    %4997 = vmatprep.subr.mxu0 %v4040
    %4998 = vmatpush1.msra.mxu0 %v4039
    %4999 = vmatprep.subr.mxu0 %v4044
    %5000 = vmatpush1.msra.mxu0 %v4043
    %5001 = vmatprep.subr.mxu0 %v4048
    %5002 = vmatpush1.msra.mxu0 %v4047
    %5003 = vmatprep.subr.mxu0 %v4052
    %5004 = vmatpush1.msra.mxu0 %v4051
    %5005 = vmatprep.subr.mxu0 %v4056
    %5006 = vmatpush1.msra.mxu0 %v4055
    %5007 = vmatprep.subr.mxu0 %v4060
    %5008 = vmatpush1.msra.mxu0 %v4059
    %5009 = vmatprep.subr.mxu0 %v4064
    %5010 = vmatpush1.msra.mxu0 %v4063
    %5011 = vmatprep.subr.mxu0 %v4068
    %5012 = vmatpush1.msra.mxu0 %v4067
    %5013 = vmatprep.subr.mxu0 0.0
    %5014 = vmatpush1.msra.mxu0 0.0
    %5015 = vmatprep.subr.mxu0 0.0
    %5016 = vmatpush1.msra.mxu0 0.0
    %5017 = vmatprep.subr.mxu0 0.0
    %5018 = vmatpush1.msra.mxu0 0.0
    %5019 = vmatprep.subr.mxu0 0.0
    %5020 = vmatpush1.msra.mxu0 0.0
    %5021 = vmatprep.subr.mxu0 0.0
    %5022 = vmatpush1.msra.mxu0 0.0
    %5023 = vmatprep.subr.mxu0 0.0
    %5024 = vmatpush1.msra.mxu0 0.0
    %5025 = vmatprep.subr.mxu0 0.0
    %5026 = vmatpush1.msra.mxu0 0.0
    %5027 = vmatprep.subr.mxu0 0.0
    %5028 = vmatpush1.msra.mxu0 0.0
    %5029 = vmatprep.subr.mxu0 0.0
    %5030 = vmatpush1.msra.mxu0 0.0
    %5031 = vmatprep.subr.mxu0 0.0
    %5032 = vmatpush1.msra.mxu0 0.0
    %5033 = vmatprep.subr.mxu0 0.0
    %5034 = vmatpush1.msra.mxu0 0.0
    %5035 = vmatprep.subr.mxu0 0.0
    %5036 = vmatpush1.msra.mxu0 0.0
    %5037 = vmatprep.subr.mxu0 0.0
    %5038 = vmatpush1.msra.mxu0 0.0
    %5039 = vmatprep.subr.mxu0 0.0
    %5040 = vmatpush1.msra.mxu0 0.0
    %5041 = vmatprep.subr.mxu0 0.0
    %5042 = vmatpush1.msra.mxu0 0.0
    %5043 = vmatprep.subr.mxu0 0.0
    %5044 = vmatpush1.msra.mxu0 0.0
    %5045 = vmatprep.mubr.f32.mxu0 0.0
    %5046 = vmatmul.mubr.f32.gmra.mrb[0].mxu0 %v4968
    %v5047 = vpop.f32.mrb[0].mxu0
    %v5048 = vadd.f32 0.0, %v5047
    %v5049 = vpop.f32.mrb[0].mxu0
    %v5050 = vadd.f32 0.0, %v5049
    %5051 = vdwg.mxu0
    %5052 = vmatprep.subr.mxu0 %v4010
    %5053 = vmatpush1.msra.mxu0 %v4009
    %5054 = vmatprep.subr.mxu0 %v4014
    %5055 = vmatpush1.msra.mxu0 %v4013
    %5056 = vmatprep.subr.mxu0 %v4018
    %5057 = vmatpush1.msra.mxu0 %v4017
    %5058 = vmatprep.subr.mxu0 %v4022
    %5059 = vmatpush1.msra.mxu0 %v4021
    %5060 = vmatprep.subr.mxu0 %v4026
    %5061 = vmatpush1.msra.mxu0 %v4025
    %5062 = vmatprep.subr.mxu0 %v4030
    %5063 = vmatpush1.msra.mxu0 %v4029
    %5064 = vmatprep.subr.mxu0 %v4034
    %5065 = vmatpush1.msra.mxu0 %v4033
    %5066 = vmatprep.subr.mxu0 %v4038
    %5067 = vmatpush1.msra.mxu0 %v4037
    %5068 = vmatprep.subr.mxu0 %v4042
    %5069 = vmatpush1.msra.mxu0 %v4041
    %5070 = vmatprep.subr.mxu0 %v4046
    %5071 = vmatpush1.msra.mxu0 %v4045
    %5072 = vmatprep.subr.mxu0 %v4050
    %5073 = vmatpush1.msra.mxu0 %v4049
    %5074 = vmatprep.subr.mxu0 %v4054
    %5075 = vmatpush1.msra.mxu0 %v4053
    %5076 = vmatprep.subr.mxu0 %v4058
    %5077 = vmatpush1.msra.mxu0 %v4057
    %5078 = vmatprep.subr.mxu0 %v4062
    %5079 = vmatpush1.msra.mxu0 %v4061
    %5080 = vmatprep.subr.mxu0 %v4066
    %5081 = vmatpush1.msra.mxu0 %v4065
    %5082 = vmatprep.subr.mxu0 %v4070
    %5083 = vmatpush1.msra.mxu0 %v4069
    %5084 = vmatprep.subr.mxu0 0.0
    %5085 = vmatpush1.msra.mxu0 0.0
    %5086 = vmatprep.subr.mxu0 0.0
    %5087 = vmatpush1.msra.mxu0 0.0
    %5088 = vmatprep.subr.mxu0 0.0
    %5089 = vmatpush1.msra.mxu0 0.0
    %5090 = vmatprep.subr.mxu0 0.0
    %5091 = vmatpush1.msra.mxu0 0.0
    %5092 = vmatprep.subr.mxu0 0.0
    %5093 = vmatpush1.msra.mxu0 0.0
    %5094 = vmatprep.subr.mxu0 0.0
    %5095 = vmatpush1.msra.mxu0 0.0
    %5096 = vmatprep.subr.mxu0 0.0
    %5097 = vmatpush1.msra.mxu0 0.0
    %5098 = vmatprep.subr.mxu0 0.0
    %5099 = vmatpush1.msra.mxu0 0.0
    %5100 = vmatprep.subr.mxu0 0.0
    %5101 = vmatpush1.msra.mxu0 0.0
    %5102 = vmatprep.subr.mxu0 0.0
    %5103 = vmatpush1.msra.mxu0 0.0
    %5104 = vmatprep.subr.mxu0 0.0
    %5105 = vmatpush1.msra.mxu0 0.0
    %5106 = vmatprep.subr.mxu0 0.0
    %5107 = vmatpush1.msra.mxu0 0.0
    %5108 = vmatprep.subr.mxu0 0.0
    %5109 = vmatpush1.msra.mxu0 0.0
    %5110 = vmatprep.subr.mxu0 0.0
    %5111 = vmatpush1.msra.mxu0 0.0
    %5112 = vmatprep.subr.mxu0 0.0
    %5113 = vmatpush1.msra.mxu0 0.0
    %5114 = vmatprep.subr.mxu0 0.0
    %5115 = vmatpush1.msra.mxu0 0.0
    %5116 = vmatprep.mubr.f32.mxu0 0.0
    %5117 = vmatmul.mubr.f32.gmra.mrb[0].mxu0 %v4968
    %v5118 = vpop.f32.mrb[0].mxu0
    %v5119 = vadd.f32 0.0, %v5118
    %v5120 = vpop.f32.mrb[0].mxu0
    %v5121 = vadd.f32 0.0, %v5120
    %5122 = vdwg.mxu0
    %v5123 = vadd.f32 %v4977, %v5048
    %v5124 = vadd.f32 %v4978, %v5050
    %v5125 = vadd.f32 %v4979, %v5119
    %v5126 = vadd.f32 %v4980, %v5121
    %v5127 = vxor.u32 %v5123, 2147483648
    %v5128 = vmul.f32 %v5127, 1.442695
    %v5129 = vpow.pop %v5128
    %v5130 = vadd.f32 %v5129, 1.0
    %v5131 = vrcp.pop %v5130
    %v5132 = vmul.f32 1.0, %v5131
    %v5133 = vxor.u32 %v5124, 2147483648
    %v5134 = vmul.f32 %v5133, 1.442695
    %v5135 = vpow.pop %v5134
    %v5136 = vadd.f32 %v5135, 1.0
    %v5137 = vrcp.pop %v5136
    %v5138 = vmul.f32 1.0, %v5137
    %v5139 = vtanh.pop %v5125
    %v5140 = vxor.u32 %v5126, 2147483648
    %v5141 = vmul.f32 %v5140, 1.442695
    %v5142 = vpow.pop %v5141
    %v5143 = vadd.f32 %v5142, 1.0
    %v5144 = vrcp.pop %v5143
    %v5145 = vmul.f32 1.0, %v5144
    %v5146 = vmul.f32 %v5138, %v4966
    %v5147 = vmul.f32 %v5132, %v5139
    %v5148 = vadd.f32 %v5146, %v5147
    %v5149 = vtanh.pop %v5148
    %v5150 = vmul.f32 %v5145, %v5149
    %v5151 = vld [vmem:[#allocation2 + $0xc0] sm:$0xff]
    %v5152 = vld [vmem:[#allocation2 + $0xc8] sm:$0xff]
    %v5153 = vld [vmem:[#allocation2 + $0xd0] sm:$0xff]
    %v5154 = vld [vmem:[#allocation2 + $0xd8] sm:$0xff]
    %v5155 = vld [vmem:[#allocation3 + $0x20] sm:$0xff]
    %v5156 = vld [vmem:[#allocation3 + $0x28] sm:$0xff]
    %v5157 = vld [vmem:[#allocation3 + $0x30] sm:$0xff]
    %v5158 = vld [vmem:[#allocation3 + $0x38] sm:$0xff]
    %v5159 = vadd.f32 %v5151, %v5155
    %v5160 = vadd.f32 %v5152, %v5156
    %v5161 = vadd.f32 %v5153, %v5157
    %v5162 = vadd.f32 %v5154, %v5158
    %5163 = vmatprep.subr.mxu0 %v4008
    %5164 = vmatpush1.msra.mxu0 %v4007
    %5165 = vmatprep.subr.mxu0 %v4012
    %5166 = vmatpush1.msra.mxu0 %v4011
    %5167 = vmatprep.subr.mxu0 %v4016
    %5168 = vmatpush1.msra.mxu0 %v4015
    %5169 = vmatprep.subr.mxu0 %v4020
    %5170 = vmatpush1.msra.mxu0 %v4019
    %5171 = vmatprep.subr.mxu0 %v4024
    %5172 = vmatpush1.msra.mxu0 %v4023
    %5173 = vmatprep.subr.mxu0 %v4028
    %5174 = vmatpush1.msra.mxu0 %v4027
    %5175 = vmatprep.subr.mxu0 %v4032
    %5176 = vmatpush1.msra.mxu0 %v4031
    %5177 = vmatprep.subr.mxu0 %v4036
    %5178 = vmatpush1.msra.mxu0 %v4035
    %5179 = vmatprep.subr.mxu0 %v4040
    %5180 = vmatpush1.msra.mxu0 %v4039
    %5181 = vmatprep.subr.mxu0 %v4044
    %5182 = vmatpush1.msra.mxu0 %v4043
    %5183 = vmatprep.subr.mxu0 %v4048
    %5184 = vmatpush1.msra.mxu0 %v4047
    %5185 = vmatprep.subr.mxu0 %v4052
    %5186 = vmatpush1.msra.mxu0 %v4051
    %5187 = vmatprep.subr.mxu0 %v4056
    %5188 = vmatpush1.msra.mxu0 %v4055
    %5189 = vmatprep.subr.mxu0 %v4060
    %5190 = vmatpush1.msra.mxu0 %v4059
    %5191 = vmatprep.subr.mxu0 %v4064
    %5192 = vmatpush1.msra.mxu0 %v4063
    %5193 = vmatprep.subr.mxu0 %v4068
    %5194 = vmatpush1.msra.mxu0 %v4067
    %5195 = vmatprep.subr.mxu0 0.0
    %5196 = vmatpush1.msra.mxu0 0.0
    %5197 = vmatprep.subr.mxu0 0.0
    %5198 = vmatpush1.msra.mxu0 0.0
    %5199 = vmatprep.subr.mxu0 0.0
    %5200 = vmatpush1.msra.mxu0 0.0
    %5201 = vmatprep.subr.mxu0 0.0
    %5202 = vmatpush1.msra.mxu0 0.0
    %5203 = vmatprep.subr.mxu0 0.0
    %5204 = vmatpush1.msra.mxu0 0.0
    %5205 = vmatprep.subr.mxu0 0.0
    %5206 = vmatpush1.msra.mxu0 0.0
    %5207 = vmatprep.subr.mxu0 0.0
    %5208 = vmatpush1.msra.mxu0 0.0
    %5209 = vmatprep.subr.mxu0 0.0
    %5210 = vmatpush1.msra.mxu0 0.0
    %5211 = vmatprep.subr.mxu0 0.0
    %5212 = vmatpush1.msra.mxu0 0.0
    %5213 = vmatprep.subr.mxu0 0.0
    %5214 = vmatpush1.msra.mxu0 0.0
    %5215 = vmatprep.subr.mxu0 0.0
    %5216 = vmatpush1.msra.mxu0 0.0
    %5217 = vmatprep.subr.mxu0 0.0
    %5218 = vmatpush1.msra.mxu0 0.0
    %5219 = vmatprep.subr.mxu0 0.0
    %5220 = vmatpush1.msra.mxu0 0.0
    %5221 = vmatprep.subr.mxu0 0.0
    %5222 = vmatpush1.msra.mxu0 0.0
    %5223 = vmatprep.subr.mxu0 0.0
    %5224 = vmatpush1.msra.mxu0 0.0
    %5225 = vmatprep.subr.mxu0 0.0
    %5226 = vmatpush1.msra.mxu0 0.0
    %5227 = vmatprep.mubr.f32.mxu0 0.0
    %5228 = vmatmul.mubr.f32.gmra.mrb[0].mxu0 %v5150
    %v5229 = vpop.f32.mrb[0].mxu0
    %v5230 = vadd.f32 0.0, %v5229
    %v5231 = vpop.f32.mrb[0].mxu0
    %v5232 = vadd.f32 0.0, %v5231
    %5233 = vdwg.mxu0
    %5234 = vmatprep.subr.mxu0 %v4010
    %5235 = vmatpush1.msra.mxu0 %v4009
    %5236 = vmatprep.subr.mxu0 %v4014
    %5237 = vmatpush1.msra.mxu0 %v4013
    %5238 = vmatprep.subr.mxu0 %v4018
    %5239 = vmatpush1.msra.mxu0 %v4017
    %5240 = vmatprep.subr.mxu0 %v4022
    %5241 = vmatpush1.msra.mxu0 %v4021
    %5242 = vmatprep.subr.mxu0 %v4026
    %5243 = vmatpush1.msra.mxu0 %v4025
    %5244 = vmatprep.subr.mxu0 %v4030
    %5245 = vmatpush1.msra.mxu0 %v4029
    %5246 = vmatprep.subr.mxu0 %v4034
    %5247 = vmatpush1.msra.mxu0 %v4033
    %5248 = vmatprep.subr.mxu0 %v4038
    %5249 = vmatpush1.msra.mxu0 %v4037
    %5250 = vmatprep.subr.mxu0 %v4042
    %5251 = vmatpush1.msra.mxu0 %v4041
    %5252 = vmatprep.subr.mxu0 %v4046
    %5253 = vmatpush1.msra.mxu0 %v4045
    %5254 = vmatprep.subr.mxu0 %v4050
    %5255 = vmatpush1.msra.mxu0 %v4049
    %5256 = vmatprep.subr.mxu0 %v4054
    %5257 = vmatpush1.msra.mxu0 %v4053
    %5258 = vmatprep.subr.mxu0 %v4058
    %5259 = vmatpush1.msra.mxu0 %v4057
    %5260 = vmatprep.subr.mxu0 %v4062
    %5261 = vmatpush1.msra.mxu0 %v4061
    %5262 = vmatprep.subr.mxu0 %v4066
    %5263 = vmatpush1.msra.mxu0 %v4065
    %5264 = vmatprep.subr.mxu0 %v4070
    %5265 = vmatpush1.msra.mxu0 %v4069
    %5266 = vmatprep.subr.mxu0 0.0
    %5267 = vmatpush1.msra.mxu0 0.0
    %5268 = vmatprep.subr.mxu0 0.0
    %5269 = vmatpush1.msra.mxu0 0.0
    %5270 = vmatprep.subr.mxu0 0.0
    %5271 = vmatpush1.msra.mxu0 0.0
    %5272 = vmatprep.subr.mxu0 0.0
    %5273 = vmatpush1.msra.mxu0 0.0
    %5274 = vmatprep.subr.mxu0 0.0
    %5275 = vmatpush1.msra.mxu0 0.0
    %5276 = vmatprep.subr.mxu0 0.0
    %5277 = vmatpush1.msra.mxu0 0.0
    %5278 = vmatprep.subr.mxu0 0.0
    %5279 = vmatpush1.msra.mxu0 0.0
    %5280 = vmatprep.subr.mxu0 0.0
    %5281 = vmatpush1.msra.mxu0 0.0
    %5282 = vmatprep.subr.mxu0 0.0
    %5283 = vmatpush1.msra.mxu0 0.0
    %5284 = vmatprep.subr.mxu0 0.0
    %5285 = vmatpush1.msra.mxu0 0.0
    %5286 = vmatprep.subr.mxu0 0.0
    %5287 = vmatpush1.msra.mxu0 0.0
    %5288 = vmatprep.subr.mxu0 0.0
    %5289 = vmatpush1.msra.mxu0 0.0
    %5290 = vmatprep.subr.mxu0 0.0
    %5291 = vmatpush1.msra.mxu0 0.0
    %5292 = vmatprep.subr.mxu0 0.0
    %5293 = vmatpush1.msra.mxu0 0.0
    %5294 = vmatprep.subr.mxu0 0.0
    %5295 = vmatpush1.msra.mxu0 0.0
    %5296 = vmatprep.subr.mxu0 0.0
    %5297 = vmatpush1.msra.mxu0 0.0
    %5298 = vmatprep.mubr.f32.mxu0 0.0
    %5299 = vmatmul.mubr.f32.gmra.mrb[0].mxu0 %v5150
    %v5300 = vpop.f32.mrb[0].mxu0
    %v5301 = vadd.f32 0.0, %v5300
    %v5302 = vpop.f32.mrb[0].mxu0
    %v5303 = vadd.f32 0.0, %v5302
    %5304 = vdwg.mxu0
    %v5305 = vadd.f32 %v5159, %v5230
    %v5306 = vadd.f32 %v5160, %v5232
    %v5307 = vadd.f32 %v5161, %v5301
    %v5308 = vadd.f32 %v5162, %v5303
    %v5309 = vxor.u32 %v5305, 2147483648
    %v5310 = vmul.f32 %v5309, 1.442695
    %v5311 = vpow.pop %v5310
    %v5312 = vadd.f32 %v5311, 1.0
    %v5313 = vrcp.pop %v5312
    %v5314 = vmul.f32 1.0, %v5313
    %v5315 = vxor.u32 %v5306, 2147483648
    %v5316 = vmul.f32 %v5315, 1.442695
    %v5317 = vpow.pop %v5316
    %v5318 = vadd.f32 %v5317, 1.0
    %v5319 = vrcp.pop %v5318
    %v5320 = vmul.f32 1.0, %v5319
    %v5321 = vtanh.pop %v5307
    %v5322 = vxor.u32 %v5308, 2147483648
    %v5323 = vmul.f32 %v5322, 1.442695
    %v5324 = vpow.pop %v5323
    %v5325 = vadd.f32 %v5324, 1.0
    %v5326 = vrcp.pop %v5325
    %v5327 = vmul.f32 1.0, %v5326
    %v5328 = vmul.f32 %v5320, %v5148
    %v5329 = vmul.f32 %v5314, %v5321
    %v5330 = vadd.f32 %v5328, %v5329
    %v5331 = vtanh.pop %v5330
    %v5332 = vmul.f32 %v5327, %v5331
    %v5333 = vld [vmem:[#allocation2 + $0xe0] sm:$0xff]
    %v5334 = vld [vmem:[#allocation2 + $0xe8] sm:$0xff]
    %v5335 = vld [vmem:[#allocation2 + $0xf0] sm:$0xff]
    %v5336 = vld [vmem:[#allocation2 + $0xf8] sm:$0xff]
    %v5337 = vld [vmem:[#allocation3] sm:$0xff]
    %v5338 = vld [vmem:[#allocation3 + $0x8] sm:$0xff]
    %v5339 = vld [vmem:[#allocation3 + $0x10] sm:$0xff]
    %v5340 = vld [vmem:[#allocation3 + $0x18] sm:$0xff]
    %v5341 = vadd.f32 %v5333, %v5337
    %v5342 = vadd.f32 %v5334, %v5338
    %v5343 = vadd.f32 %v5335, %v5339
    %v5344 = vadd.f32 %v5336, %v5340
    %5345 = vmatprep.subr.mxu0 %v4008
    %5346 = vmatpush1.msra.mxu0 %v4007
    %5347 = vmatprep.subr.mxu0 %v4012
    %5348 = vmatpush1.msra.mxu0 %v4011
    %5349 = vmatprep.subr.mxu0 %v4016
    %5350 = vmatpush1.msra.mxu0 %v4015
    %5351 = vmatprep.subr.mxu0 %v4020
    %5352 = vmatpush1.msra.mxu0 %v4019
    %5353 = vmatprep.subr.mxu0 %v4024
    %5354 = vmatpush1.msra.mxu0 %v4023
    %5355 = vmatprep.subr.mxu0 %v4028
    %5356 = vmatpush1.msra.mxu0 %v4027
    %5357 = vmatprep.subr.mxu0 %v4032
    %5358 = vmatpush1.msra.mxu0 %v4031
    %5359 = vmatprep.subr.mxu0 %v4036
    %5360 = vmatpush1.msra.mxu0 %v4035
    %5361 = vmatprep.subr.mxu0 %v4040
    %5362 = vmatpush1.msra.mxu0 %v4039
    %5363 = vmatprep.subr.mxu0 %v4044
    %5364 = vmatpush1.msra.mxu0 %v4043
    %5365 = vmatprep.subr.mxu0 %v4048
    %5366 = vmatpush1.msra.mxu0 %v4047
    %5367 = vmatprep.subr.mxu0 %v4052
    %5368 = vmatpush1.msra.mxu0 %v4051
    %5369 = vmatprep.subr.mxu0 %v4056
    %5370 = vmatpush1.msra.mxu0 %v4055
    %5371 = vmatprep.subr.mxu0 %v4060
    %5372 = vmatpush1.msra.mxu0 %v4059
    %5373 = vmatprep.subr.mxu0 %v4064
    %5374 = vmatpush1.msra.mxu0 %v4063
    %5375 = vmatprep.subr.mxu0 %v4068
    %5376 = vmatpush1.msra.mxu0 %v4067
    %5377 = vmatprep.subr.mxu0 0.0
    %5378 = vmatpush1.msra.mxu0 0.0
    %5379 = vmatprep.subr.mxu0 0.0
    %5380 = vmatpush1.msra.mxu0 0.0
    %5381 = vmatprep.subr.mxu0 0.0
    %5382 = vmatpush1.msra.mxu0 0.0
    %5383 = vmatprep.subr.mxu0 0.0
    %5384 = vmatpush1.msra.mxu0 0.0
    %5385 = vmatprep.subr.mxu0 0.0
    %5386 = vmatpush1.msra.mxu0 0.0
    %5387 = vmatprep.subr.mxu0 0.0
    %5388 = vmatpush1.msra.mxu0 0.0
    %5389 = vmatprep.subr.mxu0 0.0
    %5390 = vmatpush1.msra.mxu0 0.0
    %5391 = vmatprep.subr.mxu0 0.0
    %5392 = vmatpush1.msra.mxu0 0.0
    %5393 = vmatprep.subr.mxu0 0.0
    %5394 = vmatpush1.msra.mxu0 0.0
    %5395 = vmatprep.subr.mxu0 0.0
    %5396 = vmatpush1.msra.mxu0 0.0
    %5397 = vmatprep.subr.mxu0 0.0
    %5398 = vmatpush1.msra.mxu0 0.0
    %5399 = vmatprep.subr.mxu0 0.0
    %5400 = vmatpush1.msra.mxu0 0.0
    %5401 = vmatprep.subr.mxu0 0.0
    %5402 = vmatpush1.msra.mxu0 0.0
    %5403 = vmatprep.subr.mxu0 0.0
    %5404 = vmatpush1.msra.mxu0 0.0
    %5405 = vmatprep.subr.mxu0 0.0
    %5406 = vmatpush1.msra.mxu0 0.0
    %5407 = vmatprep.subr.mxu0 0.0
    %5408 = vmatpush1.msra.mxu0 0.0
    %5409 = vmatprep.mubr.f32.mxu0 0.0
    %5410 = vmatmul.mubr.f32.gmra.mrb[0].mxu0 %v5332
    %v5411 = vpop.f32.mrb[0].mxu0
    %v5412 = vadd.f32 0.0, %v5411
    %v5413 = vpop.f32.mrb[0].mxu0
    %v5414 = vadd.f32 0.0, %v5413
    %5415 = vdwg.mxu0
    %5416 = vmatprep.subr.mxu0 %v4010
    %5417 = vmatpush1.msra.mxu0 %v4009
    %5418 = vmatprep.subr.mxu0 %v4014
    %5419 = vmatpush1.msra.mxu0 %v4013
    %5420 = vmatprep.subr.mxu0 %v4018
    %5421 = vmatpush1.msra.mxu0 %v4017
    %5422 = vmatprep.subr.mxu0 %v4022
    %5423 = vmatpush1.msra.mxu0 %v4021
    %5424 = vmatprep.subr.mxu0 %v4026
    %5425 = vmatpush1.msra.mxu0 %v4025
    %5426 = vmatprep.subr.mxu0 %v4030
    %5427 = vmatpush1.msra.mxu0 %v4029
    %5428 = vmatprep.subr.mxu0 %v4034
    %5429 = vmatpush1.msra.mxu0 %v4033
    %5430 = vmatprep.subr.mxu0 %v4038
    %5431 = vmatpush1.msra.mxu0 %v4037
    %5432 = vmatprep.subr.mxu0 %v4042
    %5433 = vmatpush1.msra.mxu0 %v4041
    %5434 = vmatprep.subr.mxu0 %v4046
    %5435 = vmatpush1.msra.mxu0 %v4045
    %5436 = vmatprep.subr.mxu0 %v4050
    %5437 = vmatpush1.msra.mxu0 %v4049
    %5438 = vmatprep.subr.mxu0 %v4054
    %5439 = vmatpush1.msra.mxu0 %v4053
    %5440 = vmatprep.subr.mxu0 %v4058
    %5441 = vmatpush1.msra.mxu0 %v4057
    %5442 = vmatprep.subr.mxu0 %v4062
    %5443 = vmatpush1.msra.mxu0 %v4061
    %5444 = vmatprep.subr.mxu0 %v4066
    %5445 = vmatpush1.msra.mxu0 %v4065
    %5446 = vmatprep.subr.mxu0 %v4070
    %5447 = vmatpush1.msra.mxu0 %v4069
    %5448 = vmatprep.subr.mxu0 0.0
    %5449 = vmatpush1.msra.mxu0 0.0
    %5450 = vmatprep.subr.mxu0 0.0
    %5451 = vmatpush1.msra.mxu0 0.0
    %5452 = vmatprep.subr.mxu0 0.0
    %5453 = vmatpush1.msra.mxu0 0.0
    %5454 = vmatprep.subr.mxu0 0.0
    %5455 = vmatpush1.msra.mxu0 0.0
    %5456 = vmatprep.subr.mxu0 0.0
    %5457 = vmatpush1.msra.mxu0 0.0
    %5458 = vmatprep.subr.mxu0 0.0
    %5459 = vmatpush1.msra.mxu0 0.0
    %5460 = vmatprep.subr.mxu0 0.0
    %5461 = vmatpush1.msra.mxu0 0.0
    %5462 = vmatprep.subr.mxu0 0.0
    %5463 = vmatpush1.msra.mxu0 0.0
    %5464 = vmatprep.subr.mxu0 0.0
    %5465 = vmatpush1.msra.mxu0 0.0
    %5466 = vmatprep.subr.mxu0 0.0
    %5467 = vmatpush1.msra.mxu0 0.0
    %5468 = vmatprep.subr.mxu0 0.0
    %5469 = vmatpush1.msra.mxu0 0.0
    %5470 = vmatprep.subr.mxu0 0.0
    %5471 = vmatpush1.msra.mxu0 0.0
    %5472 = vmatprep.subr.mxu0 0.0
    %5473 = vmatpush1.msra.mxu0 0.0
    %5474 = vmatprep.subr.mxu0 0.0
    %5475 = vmatpush1.msra.mxu0 0.0
    %5476 = vmatprep.subr.mxu0 0.0
    %5477 = vmatpush1.msra.mxu0 0.0
    %5478 = vmatprep.subr.mxu0 0.0
    %5479 = vmatpush1.msra.mxu0 0.0
    %5480 = vmatprep.mubr.f32.mxu0 0.0
    %5481 = vmatmul.mubr.f32.gmra.mrb[0].mxu0 %v5332
    %v5482 = vpop.f32.mrb[0].mxu0
    %v5483 = vadd.f32 0.0, %v5482
    %v5484 = vpop.f32.mrb[0].mxu0
    %v5485 = vadd.f32 0.0, %v5484
    %5486 = vdwg.mxu0
    %v5487 = vadd.f32 %v5341, %v5412
    %v5488 = vadd.f32 %v5342, %v5414
    %v5489 = vadd.f32 %v5343, %v5483
    %v5490 = vadd.f32 %v5344, %v5485
    %v5491 = vxor.u32 %v5487, 2147483648
    %v5492 = vmul.f32 %v5491, 1.442695
    %v5493 = vpow.pop %v5492
    %v5494 = vadd.f32 %v5493, 1.0
    %v5495 = vrcp.pop %v5494
    %v5496 = vmul.f32 1.0, %v5495
    %v5497 = vxor.u32 %v5488, 2147483648
    %v5498 = vmul.f32 %v5497, 1.442695
    %v5499 = vpow.pop %v5498
    %v5500 = vadd.f32 %v5499, 1.0
    %v5501 = vrcp.pop %v5500
    %v5502 = vmul.f32 1.0, %v5501
    %v5503 = vtanh.pop %v5489
    %v5504 = vxor.u32 %v5490, 2147483648
    %v5505 = vmul.f32 %v5504, 1.442695
    %v5506 = vpow.pop %v5505
    %v5507 = vadd.f32 %v5506, 1.0
    %v5508 = vrcp.pop %v5507
    %v5509 = vmul.f32 1.0, %v5508
    %v5510 = vmul.f32 %v5502, %v5330
    %v5511 = vmul.f32 %v5496, %v5503
    %v5512 = vadd.f32 %v5510, %v5511
    %v5513 = vtanh.pop %v5512
    %v5514 = vmul.f32 %v5509, %v5513
    %v5515 = vld [vmem:[%s11] sm:$0xff]
    %v5516 = vld [vmem:[%s11 + $0x8] sm:$0xff]
    %v5517 = vld [vmem:[%s11 + $0x10] sm:$0xff]
    %v5518 = vld [vmem:[%s11 + $0x18] sm:$0xff]
    %v5519 = vld [vmem:[%s11 + $0x20] sm:$0xff]
    %v5520 = vld [vmem:[%s11 + $0x28] sm:$0xff]
    %v5521 = vld [vmem:[%s11 + $0x30] sm:$0xff]
    %v5522 = vld [vmem:[%s11 + $0x38] sm:$0xff]
    %v5523 = vld [vmem:[%s11 + $0x40] sm:$0xff]
    %v5524 = vld [vmem:[%s11 + $0x48] sm:$0xff]
    %v5525 = vld [vmem:[%s11 + $0x50] sm:$0xff]
    %v5526 = vld [vmem:[%s11 + $0x58] sm:$0xff]
    %v5527 = vld [vmem:[%s11 + $0x60] sm:$0xff]
    %v5528 = vld [vmem:[%s11 + $0x68] sm:$0xff]
    %v5529 = vld [vmem:[%s11 + $0x70] sm:$0xff]
    %v5530 = vld [vmem:[%s11 + $0x78] sm:$0xff]
    %v5531 = vld [vmem:[%s12] sm:$0xff]
    %v5532 = vld [vmem:[%s12 + $0x8] sm:$0xff]
    %v5533 = vld [vmem:[%s12 + $0x10] sm:$0xff]
    %v5534 = vld [vmem:[%s12 + $0x18] sm:$0xff]
    %v5535 = vld [vmem:[%s12 + $0x20] sm:$0xff]
    %v5536 = vld [vmem:[%s12 + $0x28] sm:$0xff]
    %v5537 = vld [vmem:[%s12 + $0x30] sm:$0xff]
    %v5538 = vld [vmem:[%s12 + $0x38] sm:$0xff]
    %v5539 = vld [vmem:[%s12 + $0x40] sm:$0xff]
    %v5540 = vld [vmem:[%s12 + $0x48] sm:$0xff]
    %v5541 = vld [vmem:[%s12 + $0x50] sm:$0xff]
    %v5542 = vld [vmem:[%s12 + $0x58] sm:$0xff]
    %v5543 = vld [vmem:[%s12 + $0x60] sm:$0xff]
    %v5544 = vld [vmem:[%s12 + $0x68] sm:$0xff]
    %v5545 = vld [vmem:[%s12 + $0x70] sm:$0xff]
    %v5546 = vld [vmem:[%s12 + $0x78] sm:$0xff]
    %5547 = vmatprep.subr.mxu0 0.0
    %5548 = vmatpush1.msra.mxu0 %v5531
    %5549 = vmatprep.subr.mxu0 0.0
    %5550 = vmatpush1.msra.mxu0 %v5532
    %5551 = vmatprep.subr.mxu0 0.0
    %5552 = vmatpush1.msra.mxu0 %v5533
    %5553 = vmatprep.subr.mxu0 0.0
    %5554 = vmatpush1.msra.mxu0 %v5534
    %5555 = vmatprep.subr.mxu0 0.0
    %5556 = vmatpush1.msra.mxu0 %v5535
    %5557 = vmatprep.subr.mxu0 0.0
    %5558 = vmatpush1.msra.mxu0 %v5536
    %5559 = vmatprep.subr.mxu0 0.0
    %5560 = vmatpush1.msra.mxu0 %v5537
    %5561 = vmatprep.subr.mxu0 0.0
    %5562 = vmatpush1.msra.mxu0 %v5538
    %5563 = vmatprep.subr.mxu0 0.0
    %5564 = vmatpush1.msra.mxu0 %v5539
    %5565 = vmatprep.subr.mxu0 0.0
    %5566 = vmatpush1.msra.mxu0 %v5540
    %5567 = vmatprep.subr.mxu0 0.0
    %5568 = vmatpush1.msra.mxu0 %v5541
    %5569 = vmatprep.subr.mxu0 0.0
    %5570 = vmatpush1.msra.mxu0 %v5542
    %5571 = vmatprep.subr.mxu0 0.0
    %5572 = vmatpush1.msra.mxu0 %v5543
    %5573 = vmatprep.subr.mxu0 0.0
    %5574 = vmatpush1.msra.mxu0 %v5544
    %5575 = vmatprep.subr.mxu0 0.0
    %5576 = vmatpush1.msra.mxu0 %v5545
    %5577 = vmatprep.subr.mxu0 0.0
    %5578 = vmatpush1.msra.mxu0 %v5546
    %5579 = vmatprep.subr.mxu0 0.0
    %5580 = vmatpush1.msra.mxu0 0.0
    %5581 = vmatprep.subr.mxu0 0.0
    %5582 = vmatpush1.msra.mxu0 0.0
    %5583 = vmatprep.subr.mxu0 0.0
    %5584 = vmatpush1.msra.mxu0 0.0
    %5585 = vmatprep.subr.mxu0 0.0
    %5586 = vmatpush1.msra.mxu0 0.0
    %5587 = vmatprep.subr.mxu0 0.0
    %5588 = vmatpush1.msra.mxu0 0.0
    %5589 = vmatprep.subr.mxu0 0.0
    %5590 = vmatpush1.msra.mxu0 0.0
    %5591 = vmatprep.subr.mxu0 0.0
    %5592 = vmatpush1.msra.mxu0 0.0
    %5593 = vmatprep.subr.mxu0 0.0
    %5594 = vmatpush1.msra.mxu0 0.0
    %5595 = vmatprep.subr.mxu0 0.0
    %5596 = vmatpush1.msra.mxu0 0.0
    %5597 = vmatprep.subr.mxu0 0.0
    %5598 = vmatpush1.msra.mxu0 0.0
    %5599 = vmatprep.subr.mxu0 0.0
    %5600 = vmatpush1.msra.mxu0 0.0
    %5601 = vmatprep.subr.mxu0 0.0
    %5602 = vmatpush1.msra.mxu0 0.0
    %5603 = vmatprep.subr.mxu0 0.0
    %5604 = vmatpush1.msra.mxu0 0.0
    %5605 = vmatprep.subr.mxu0 0.0
    %5606 = vmatpush1.msra.mxu0 0.0
    %5607 = vmatprep.subr.mxu0 0.0
    %5608 = vmatpush1.msra.mxu0 0.0
    %5609 = vmatprep.subr.mxu0 0.0
    %5610 = vmatpush1.msra.mxu0 0.0
    %5611 = vmatprep.mubr.f32.mxu0 0.0
    %5612 = vmatmul.mubr.f32.gmra.mrb[0].mxu0 %v4240
    %v5613 = vpop.f32.mrb[0].mxu0
    %v5614 = vadd.f32 0.0, %v5613
    %v5615 = vpop.f32.mrb[0].mxu0
    %5616 = vdwg.mxu0
    %5617 = vmatprep.subr.mxu0 0.0
    %5618 = vmatpush1.msra.mxu0 %v5515
    %5619 = vmatprep.subr.mxu0 0.0
    %5620 = vmatpush1.msra.mxu0 %v5516
    %5621 = vmatprep.subr.mxu0 0.0
    %5622 = vmatpush1.msra.mxu0 %v5517
    %5623 = vmatprep.subr.mxu0 0.0
    %5624 = vmatpush1.msra.mxu0 %v5518
    %5625 = vmatprep.subr.mxu0 0.0
    %5626 = vmatpush1.msra.mxu0 %v5519
    %5627 = vmatprep.subr.mxu0 0.0
    %5628 = vmatpush1.msra.mxu0 %v5520
    %5629 = vmatprep.subr.mxu0 0.0
    %5630 = vmatpush1.msra.mxu0 %v5521
    %5631 = vmatprep.subr.mxu0 0.0
    %5632 = vmatpush1.msra.mxu0 %v5522
    %5633 = vmatprep.subr.mxu0 0.0
    %5634 = vmatpush1.msra.mxu0 %v5523
    %5635 = vmatprep.subr.mxu0 0.0
    %5636 = vmatpush1.msra.mxu0 %v5524
    %5637 = vmatprep.subr.mxu0 0.0
    %5638 = vmatpush1.msra.mxu0 %v5525
    %5639 = vmatprep.subr.mxu0 0.0
    %5640 = vmatpush1.msra.mxu0 %v5526
    %5641 = vmatprep.subr.mxu0 0.0
    %5642 = vmatpush1.msra.mxu0 %v5527
    %5643 = vmatprep.subr.mxu0 0.0
    %5644 = vmatpush1.msra.mxu0 %v5528
    %5645 = vmatprep.subr.mxu0 0.0
    %5646 = vmatpush1.msra.mxu0 %v5529
    %5647 = vmatprep.subr.mxu0 0.0
    %5648 = vmatpush1.msra.mxu0 %v5530
    %5649 = vmatprep.subr.mxu0 0.0
    %5650 = vmatpush1.msra.mxu0 0.0
    %5651 = vmatprep.subr.mxu0 0.0
    %5652 = vmatpush1.msra.mxu0 0.0
    %5653 = vmatprep.subr.mxu0 0.0
    %5654 = vmatpush1.msra.mxu0 0.0
    %5655 = vmatprep.subr.mxu0 0.0
    %5656 = vmatpush1.msra.mxu0 0.0
    %5657 = vmatprep.subr.mxu0 0.0
    %5658 = vmatpush1.msra.mxu0 0.0
    %5659 = vmatprep.subr.mxu0 0.0
    %5660 = vmatpush1.msra.mxu0 0.0
    %5661 = vmatprep.subr.mxu0 0.0
    %5662 = vmatpush1.msra.mxu0 0.0
    %5663 = vmatprep.subr.mxu0 0.0
    %5664 = vmatpush1.msra.mxu0 0.0
    %5665 = vmatprep.subr.mxu0 0.0
    %5666 = vmatpush1.msra.mxu0 0.0
    %5667 = vmatprep.subr.mxu0 0.0
    %5668 = vmatpush1.msra.mxu0 0.0
    %5669 = vmatprep.subr.mxu0 0.0
    %5670 = vmatpush1.msra.mxu0 0.0
    %5671 = vmatprep.subr.mxu0 0.0
    %5672 = vmatpush1.msra.mxu0 0.0
    %5673 = vmatprep.subr.mxu0 0.0
    %5674 = vmatpush1.msra.mxu0 0.0
    %5675 = vmatprep.subr.mxu0 0.0
    %5676 = vmatpush1.msra.mxu0 0.0
    %5677 = vmatprep.subr.mxu0 0.0
    %5678 = vmatpush1.msra.mxu0 0.0
    %5679 = vmatprep.subr.mxu0 0.0
    %5680 = vmatpush1.msra.mxu0 0.0
    %5681 = vmatprep.mubr.f32.mxu0 0.0
    %5682 = vmatmul.mubr.f32.gmra.mrb[0].mxu0 %v5514
    %v5683 = vpop.f32.mrb[0].mxu0
    %v5684 = vadd.f32 %v5614, %v5683
    %v5685 = vpop.f32.mrb[0].mxu0
    %5686 = vdwg.mxu0
    %v5687 = vld [vmem:[%s13] sm:$0x1]
    %v5689 = vlaneseq
    %v5690 = vshrl.u32 %v5689, 7
    %v5691 = vsub.s32 0, %v5690
    %v5692 = vrot.slane %v5687, %v5691
    %v5694 = vadd.f32 %v5684, %v5692
    %vm5695 = vcmask 74752
    %5696 = vst.msk [vmem:[#allocation17] sm:$0x3] %vm5695, %v5694
    // Predicated region
    $region82: #{lstm_model_forward.1} parent=1 // pred_check
      _
    $region83: #{lstm_model_forward.1} parent=1 // pred_check_branch
      %5698 = sbr.rel (0) target = $region85
    $region84: #{lstm_model_forward.1} parent=1 // pred_region
      %s5700 = ssub.s32 32, 32
      %5701 = vsyncadd [#allocation8], %s5700
      %s5703 = sshll.u32 [#allocation17], 4
      %s5704 = int_to_ptr.vmem [resolvable:$true] %s5703
      %5706 = dma.vmem_to_hbm [thread:$0]  %s5704, 32, %s14, [#allocation8]
    $region85: #{lstm_model_forward.1} parent=1 // pred_fallthru
      _
    // Predicated region
    $region86: #{lstm_model_forward.1} parent=1 // pred_check
      _
    $region87: #{lstm_model_forward.1} parent=1 // pred_check_branch
      %5708 = sbr.rel (0) target = $region89
    $region88: #{lstm_model_forward.1} parent=1 // pred_region
      %5709 = dma.done [#allocation8], 32
    $region89: #{lstm_model_forward.1} parent=1 // pred_fallthru
      _
    %5710 = vsyncpa [#allocation7], 1
    %5711 = vsyncpa [#allocation10], 1
    %5712 = vsyncpa [#allocation13], 1
    %5713 = vsyncpa [#allocation16], 1
    %5714 = vsyncpa [#allocation8], 1

</llo_original>
